<compile_context>
chip_gen: v7x
topology: tpu7x:2x2x1
jax: 0.10.0
libtpu: 0.0.40
codegen_flags: <defaults>
</compile_context>

<pallas_src>
import jax
import jax.numpy as jnp
from jax.experimental import pallas as pl
from jax.experimental.pallas import tpu as pltpu


# ----------------------------------------------------------------------------
# Fused kernel: per-point MLP + max-pool over points + MLP head (+ identity)
# ----------------------------------------------------------------------------
def _tnet_kernel(x_ref,
                 w1_ref, b1_ref, w2_ref, b2_ref, w3_ref, b3_ref,
                 w4_ref, b4_ref, w5_ref, b5_ref, w6_ref, b6_ref, id_ref,
                 out_ref, acc_ref):
    t = pl.program_id(1)                        # point-tile index (reduction)

    @pl.when(t == 0)
    def _init():
        acc_ref[...] = jnp.full(acc_ref.shape, -jnp.inf, acc_ref.dtype)

    x = x_ref[0]                                # (K, TN) f32, points on lanes
    K = x.shape[0]
    tn = x.shape[1]
    w1 = w1_ref[...]                            # (64, K) f32

    # block1: Conv1d(K,64,1)+BN+ReLU on the VPU (contraction over K is tiny).
    h = w1[:, 0:1] * x[0:1, :]                  # (64,1)*(1,TN) -> (64, TN)
    for k in range(1, K):                       # K is static -> unrolled
        h = h + w1[:, k:k + 1] * x[k:k + 1, :]
    h = jnp.maximum(h + b1_ref[...], 0.0)       # (64, TN) f32

    # block2 on the MXU: bf16 inputs, f32 accumulation.
    h = jnp.dot(w2_ref[...], h.astype(jnp.bfloat16),
                preferred_element_type=jnp.float32)
    h = jnp.maximum(h + b2_ref[...], 0.0)       # (128, TN)

    # block3 on the MXU: raw output only.  The per-channel bias + ReLU are
    # hoisted past the max (monotone), applied once in _head().
    z = jnp.dot(w3_ref[...], h.astype(jnp.bfloat16),
                preferred_element_type=jnp.float32)     # (1024, TN)

    # Lane-fold the TN/128 lane-slices against each other (VPU-only, lane
    # aligned), then one elementwise max into the (1024, 128) accumulator.
    # No per-tile XLU cross-lane reduction, no lane-sparse scratch stores.
    m = z[:, 0:128]
    for i in range(1, tn // 128):
        m = jnp.maximum(m, z[:, i * 128:(i + 1) * 128])
    acc_ref[...] = jnp.maximum(acc_ref[...], m)

    # Fused MLP head on the final reduction step of each batch element.
    @pl.when(t == pl.num_programs(1) - 1)
    def _head():
        # Single cross-lane reduce per batch element, then the hoisted
        # bias + ReLU of block 3.
        pooled = jnp.max(acc_ref[...], axis=1, keepdims=True)    # (1024, 1)
        feat = jnp.maximum(pooled + b3_ref[...], 0.0).astype(jnp.bfloat16)
        g = jnp.dot(w4_ref[...], feat, preferred_element_type=jnp.float32)
        g = jnp.maximum(g + b4_ref[...], 0.0)                    # (512, 1)
        g = jnp.dot(w5_ref[...], g.astype(jnp.bfloat16),
                    preferred_element_type=jnp.float32)
        g = jnp.maximum(g + b5_ref[...], 0.0)                    # (256, 1)
        g = jnp.dot(w6_ref[...], g.astype(jnp.bfloat16),
                    preferred_element_type=jnp.float32)
        out_ref[0] = g + b6_ref[...] + id_ref[...]               # (K*K, 1)


def transformer_forward(x_bkn, p, *, tn=2048,
                        vmem_limit_bytes=32 * 1024 * 1024):
    """x_bkn: (B, K, N) float32 in PyTorch NCW layout -> (B, K, K)."""
    B, K, N = x_bkn.shape
    tn = min(tn, N)
    assert N % tn == 0, (N, tn)
    assert tn % 128 == 0, tn          # lane-aligned tile for the VPU max-fold
    C3 = p["w3"].shape[0]
    KK = p["w6"].shape[0]
    x_bkn = x_bkn.astype(jnp.float32)

    def full(a):
        return pl.BlockSpec(a.shape, lambda b, t: (0, 0))

    out = pl.pallas_call(
        _tnet_kernel,
        out_shape=jax.ShapeDtypeStruct((B, KK, 1), jnp.float32),
        grid_spec=pltpu.PrefetchScalarGridSpec(
            num_scalar_prefetch=0,
            grid=(B, N // tn),
            in_specs=[
                pl.BlockSpec((1, K, tn), lambda b, t: (b, 0, t)),
                full(p["w1"]), full(p["b1"]),
                full(p["w2"]), full(p["b2"]),
                full(p["w3"]), full(p["b3"]),
                full(p["w4"]), full(p["b4"]),
                full(p["w5"]), full(p["b5"]),
                full(p["w6"]), full(p["b6"]),
                full(p["identity"]),
            ],
            out_specs=pl.BlockSpec((1, KK, 1), lambda b, t: (b, 0, 0)),
            scratch_shapes=[pltpu.VMEM((C3, 128), jnp.float32)],
        ),
        compiler_params=pltpu.CompilerParams(
            dimension_semantics=("parallel", "arbitrary"),
            vmem_limit_bytes=vmem_limit_bytes),
    )(x_bkn, p["w1"], p["b1"], p["w2"], p["b2"], p["w3"], p["b3"],
      p["w4"], p["b4"], p["w5"], p["b5"], p["w6"], p["b6"], p["identity"])
    return out[..., 0].reshape(B, K, K)


# ----------------------------------------------------------------------------
# Parameter construction (deterministic, BN folded into affine, channel-major)
# ----------------------------------------------------------------------------
def _fold_bn(w, b, gamma, beta, mean, var, eps=1e-5):
    scale = gamma / jnp.sqrt(var + eps)
    w_f = w * scale[:, None]                      # (cout, cin)
    b_f = ((b - mean) * scale + beta)[:, None]    # (cout, 1)
    return w_f, b_f


def init_params(key, K=3):
    dims = [(K, 64), (64, 128), (128, 1024), (1024, 512), (512, 256)]
    # Layer 1 stays f32 (VPU path); MXU layers store bf16 weights.
    wdtype = {1: jnp.float32, 2: jnp.bfloat16, 3: jnp.bfloat16,
              4: jnp.bfloat16, 5: jnp.bfloat16}
    params = {}
    k = key
    for i, (cin, cout) in enumerate(dims, start=1):
        k, kw, kb, kg, kbe, km, kv = jax.random.split(k, 7)
        w = 0.1 * jax.random.normal(kw, (cout, cin), jnp.float32)
        b = 0.1 * jax.random.normal(kb, (cout,), jnp.float32)
        gamma = 1.0 + 0.1 * jax.random.normal(kg, (cout,), jnp.float32)
        beta = 0.1 * jax.random.normal(kbe, (cout,), jnp.float32)
        mean = 0.1 * jax.random.normal(km, (cout,), jnp.float32)
        var = 0.5 + jnp.abs(jax.random.normal(kv, (cout,), jnp.float32))
        wf, bf_ = _fold_bn(w, b, gamma, beta, mean, var)
        params[f"w{i}"] = wf.astype(wdtype[i])
        params[f"b{i}"] = bf_                     # f32 (cout, 1)
    k, kw, kb = jax.random.split(k, 3)
    w6 = 0.1 * jax.random.normal(kw, (K * K, 256), jnp.float32)
    b6 = 0.1 * jax.random.normal(kb, (K * K,), jnp.float32)
    params["w6"] = w6.astype(jnp.bfloat16)
    params["b6"] = b6[:, None]
    params["identity"] = jnp.eye(K, dtype=jnp.float32).reshape(K * K, 1)
    return params


# ----------------------------------------------------------------------------
# Pure-JAX reference (mirrors the kernel's bf16-input / f32-accum matmul
# numerics so the comparison stays tight; layer 1 is exact f32 like the VPU).
# The bias+ReLU hoist in the kernel is algebraically identical to applying
# them per-point before the max, so the reference keeps the original order.
# ----------------------------------------------------------------------------
def ref_forward(x_bkn, p):
    bf = jnp.bfloat16
    f32 = jnp.float32

    def mm(w, h):   # (Cout, Cin) x (B, Cin, N) -> (B, Cout, N)
        return jnp.einsum("dc,bcn->bdn", w.astype(bf), h.astype(bf),
                          preferred_element_type=f32)

    B, K, _ = x_bkn.shape
    x = x_bkn.astype(f32)
    h = jax.nn.relu(jnp.einsum("dk,bkn->bdn", p["w1"], x,
                               precision=jax.lax.Precision.HIGHEST)
                    + p["b1"][None])
    h = jax.nn.relu(mm(p["w2"], h) + p["b2"][None])
    h = jax.nn.relu(mm(p["w3"], h) + p["b3"][None])
    feat = jnp.max(h, axis=2, keepdims=True)                   # (B, 1024, 1)
    h = jax.nn.relu(mm(p["w4"], feat) + p["b4"][None])
    h = jax.nn.relu(mm(p["w5"], h) + p["b5"][None])
    out = mm(p["w6"], h) + p["b6"][None] + p["identity"][None]  # (B, K*K, 1)
    return out[..., 0].reshape(B, K, K)


if __name__ == "__main__":
    B, K, N = 2, 3, 1024       # small test: 2 clouds x 3 coords x 1024 points
    key = jax.random.PRNGKey(0)
    kx, kp = jax.random.split(key)
    x = jax.random.normal(kx, (B, K, N), jnp.float32)   # PyTorch NCW input
    params = init_params(kp, K=K)

    out = jax.block_until_ready(transformer_forward(x, params))
    ref = jax.block_until_ready(ref_forward(x, params))

    assert out.shape == (B, K, K), out.shape
    err = jnp.max(jnp.abs(out - ref))
    assert jnp.allclose(out, ref, rtol=1e-2, atol=1e-2), f"max abs err {err}"
    print("KERNEL_OK")
</pallas_src>

<mosaic_0001>
module attributes {stable_mosaic.version = 11 : i64} {
  func.func @_tnet_kernel(%arg0: i32, %arg1: i32, %arg2: memref<1x3x1024xf32, #tpu.memory_space<vmem>>, %arg3: memref<64x3xf32, #tpu.memory_space<vmem>>, %arg4: memref<64x1xf32, #tpu.memory_space<vmem>>, %arg5: memref<128x64xbf16, #tpu.memory_space<vmem>>, %arg6: memref<128x1xf32, #tpu.memory_space<vmem>>, %arg7: memref<1024x128xbf16, #tpu.memory_space<vmem>>, %arg8: memref<1024x1xf32, #tpu.memory_space<vmem>>, %arg9: memref<512x1024xbf16, #tpu.memory_space<vmem>>, %arg10: memref<512x1xf32, #tpu.memory_space<vmem>>, %arg11: memref<256x512xbf16, #tpu.memory_space<vmem>>, %arg12: memref<256x1xf32, #tpu.memory_space<vmem>>, %arg13: memref<9x256xbf16, #tpu.memory_space<vmem>>, %arg14: memref<9x1xf32, #tpu.memory_space<vmem>>, %arg15: memref<9x1xf32, #tpu.memory_space<vmem>>, %arg16: memref<1x9x1xf32, #tpu.memory_space<vmem>>, %arg17: memref<1024x128xf32, #tpu.memory_space<vmem>>) attributes {dimension_semantics = [#tpu.dimension_semantics<parallel>, #tpu.dimension_semantics<arbitrary>], iteration_bounds = array<i64: 2, 1>, scalar_prefetch = 0 : i64, scratch_operands = 1 : i64, tpu.core_type = #tpu.core_type<tc>, window_params = [{transform_indices = @transform_0, window_bounds = array<i64: 1, 3, 1024>}, {pipeline_mode = #tpu.pipeline_mode<synchronous>, transform_indices = @transform_1, window_bounds = array<i64: 64, 3>}, {pipeline_mode = #tpu.pipeline_mode<synchronous>, transform_indices = @transform_2, window_bounds = array<i64: 64, 1>}, {pipeline_mode = #tpu.pipeline_mode<synchronous>, transform_indices = @transform_3, window_bounds = array<i64: 128, 64>}, {pipeline_mode = #tpu.pipeline_mode<synchronous>, transform_indices = @transform_4, window_bounds = array<i64: 128, 1>}, {pipeline_mode = #tpu.pipeline_mode<synchronous>, transform_indices = @transform_5, window_bounds = array<i64: 1024, 128>}, {pipeline_mode = #tpu.pipeline_mode<synchronous>, transform_indices = @transform_6, window_bounds = array<i64: 1024, 1>}, {pipeline_mode = #tpu.pipeline_mode<synchronous>, transform_indices = @transform_7, window_bounds = array<i64: 512, 1024>}, {pipeline_mode = #tpu.pipeline_mode<synchronous>, transform_indices = @transform_8, window_bounds = array<i64: 512, 1>}, {pipeline_mode = #tpu.pipeline_mode<synchronous>, transform_indices = @transform_9, window_bounds = array<i64: 256, 512>}, {pipeline_mode = #tpu.pipeline_mode<synchronous>, transform_indices = @transform_10, window_bounds = array<i64: 256, 1>}, {pipeline_mode = #tpu.pipeline_mode<synchronous>, transform_indices = @transform_11, window_bounds = array<i64: 9, 256>}, {pipeline_mode = #tpu.pipeline_mode<synchronous>, transform_indices = @transform_12, window_bounds = array<i64: 9, 1>}, {pipeline_mode = #tpu.pipeline_mode<synchronous>, transform_indices = @transform_13, window_bounds = array<i64: 9, 1>}, {transform_indices = @transform_14, window_bounds = array<i64: 1, 9, 1>}]} {
    %c0_i32 = arith.constant 0 : i32
    %0 = arith.cmpi eq, %arg1, %c0_i32 : i32
    %1 = arith.extui %0 : i1 to i32
    %c0_i32_0 = arith.constant 0 : i32
    %2 = arith.cmpi ne, %1, %c0_i32_0 : i32
    scf.if %2 {
      %cst_22 = arith.constant 0xFF800000 : f32
      %60 = vector.broadcast %cst_22 : f32 to vector<1024x128xf32>
      %c0_23 = arith.constant 0 : index
      %c0_24 = arith.constant 0 : index
      %61 = vector.load %arg17[%c0_23, %c0_24] : memref<1024x128xf32, #tpu.memory_space<vmem>>, vector<1024x128xf32>
      tpu.vector_store %arg17[%c0_23, %c0_24], %60 {strides = array<i32>} : memref<1024x128xf32, #tpu.memory_space<vmem>>, vector<1024x128xf32>,
    } else {
    }
    %c0 = arith.constant 0 : index
    %c0_1 = arith.constant 0 : index
    %c0_2 = arith.constant 0 : index
    %3 = vector.load %arg2[%c0, %c0_1, %c0_2] : memref<1x3x1024xf32, #tpu.memory_space<vmem>>, vector<1x3x1024xf32>
    %4 = vector.shape_cast %3 : vector<1x3x1024xf32> to vector<3x1024xf32>
    %c0_3 = arith.constant 0 : index
    %c0_4 = arith.constant 0 : index
    %5 = vector.load %arg3[%c0_3, %c0_4] : memref<64x3xf32, #tpu.memory_space<vmem>>, vector<64x3xf32>
    %6 = vector.extract_strided_slice %5 {offsets = [0, 0], sizes = [64, 1], strides = [1, 1]} : vector<64x3xf32> to vector<64x1xf32>
    %7 = vector.extract_strided_slice %4 {offsets = [0, 0], sizes = [1, 1024], strides = [1, 1]} : vector<3x1024xf32> to vector<1x1024xf32>
    %8 = vector.broadcast %6 : vector<64x1xf32> to vector<64x1024xf32>
    %9 = vector.broadcast %7 : vector<1x1024xf32> to vector<64x1024xf32>
    %10 = arith.mulf %8, %9 : vector<64x1024xf32>
    %11 = vector.extract_strided_slice %5 {offsets = [0, 1], sizes = [64, 1], strides = [1, 1]} : vector<64x3xf32> to vector<64x1xf32>
    %12 = vector.extract_strided_slice %4 {offsets = [1, 0], sizes = [1, 1024], strides = [1, 1]} : vector<3x1024xf32> to vector<1x1024xf32>
    %13 = vector.broadcast %11 : vector<64x1xf32> to vector<64x1024xf32>
    %14 = vector.broadcast %12 : vector<1x1024xf32> to vector<64x1024xf32>
    %15 = arith.mulf %13, %14 : vector<64x1024xf32>
    %16 = arith.addf %10, %15 : vector<64x1024xf32>
    %17 = vector.extract_strided_slice %5 {offsets = [0, 2], sizes = [64, 1], strides = [1, 1]} : vector<64x3xf32> to vector<64x1xf32>
    %18 = vector.extract_strided_slice %4 {offsets = [2, 0], sizes = [1, 1024], strides = [1, 1]} : vector<3x1024xf32> to vector<1x1024xf32>
    %19 = vector.broadcast %17 : vector<64x1xf32> to vector<64x1024xf32>
    %20 = vector.broadcast %18 : vector<1x1024xf32> to vector<64x1024xf32>
    %21 = arith.mulf %19, %20 : vector<64x1024xf32>
    %22 = arith.addf %16, %21 : vector<64x1024xf32>
    %c0_5 = arith.constant 0 : index
    %c0_6 = arith.constant 0 : index
    %23 = vector.load %arg4[%c0_5, %c0_6] : memref<64x1xf32, #tpu.memory_space<vmem>>, vector<64x1xf32>
    %24 = vector.broadcast %23 : vector<64x1xf32> to vector<64x1024xf32>
    %25 = arith.addf %22, %24 : vector<64x1024xf32>
    %cst = arith.constant 0.000000e+00 : f32
    %26 = vector.broadcast %cst : f32 to vector<64x1024xf32>
    %27 = arith.maximumf %25, %26 : vector<64x1024xf32>
    %c0_7 = arith.constant 0 : index
    %c0_8 = arith.constant 0 : index
    %28 = vector.load %arg5[%c0_7, %c0_8] : memref<128x64xbf16, #tpu.memory_space<vmem>>, vector<128x64xbf16>
    %29 = arith.truncf %27 : vector<64x1024xf32> to vector<64x1024xbf16>
    %cst_9 = arith.constant dense<0.000000e+00> : vector<128x1024xf32>
    %30 = tpu.matmul %28, %29, %cst_9 {dimension_numbers = #tpu.dot_dimension_numbers<[1], [0], [0], [1], [0, 0, 1, 1], [], []>} : vector<128x64xbf16>, vector<64x1024xbf16>, vector<128x1024xf32> -> vector<128x1024xf32>
    %c0_10 = arith.constant 0 : index
    %c0_11 = arith.constant 0 : index
    %31 = vector.load %arg6[%c0_10, %c0_11] : memref<128x1xf32, #tpu.memory_space<vmem>>, vector<128x1xf32>
    %32 = vector.broadcast %31 : vector<128x1xf32> to vector<128x1024xf32>
    %33 = arith.addf %30, %32 : vector<128x1024xf32>
    %cst_12 = arith.constant 0.000000e+00 : f32
    %34 = vector.broadcast %cst_12 : f32 to vector<128x1024xf32>
    %35 = arith.maximumf %33, %34 : vector<128x1024xf32>
    %c0_13 = arith.constant 0 : index
    %c0_14 = arith.constant 0 : index
    %36 = vector.load %arg7[%c0_13, %c0_14] : memref<1024x128xbf16, #tpu.memory_space<vmem>>, vector<1024x128xbf16>
    %37 = arith.truncf %35 : vector<128x1024xf32> to vector<128x1024xbf16>
    %cst_15 = arith.constant dense<0.000000e+00> : vector<1024x1024xf32>
    %38 = tpu.matmul %36, %37, %cst_15 {dimension_numbers = #tpu.dot_dimension_numbers<[1], [0], [0], [1], [0, 0, 1, 1], [], []>} : vector<1024x128xbf16>, vector<128x1024xbf16>, vector<1024x1024xf32> -> vector<1024x1024xf32>
    %39 = vector.extract_strided_slice %38 {offsets = [0, 0], sizes = [1024, 128], strides = [1, 1]} : vector<1024x1024xf32> to vector<1024x128xf32>
    %40 = vector.extract_strided_slice %38 {offsets = [0, 128], sizes = [1024, 128], strides = [1, 1]} : vector<1024x1024xf32> to vector<1024x128xf32>
    %41 = arith.maximumf %39, %40 : vector<1024x128xf32>
    %42 = vector.extract_strided_slice %38 {offsets = [0, 256], sizes = [1024, 128], strides = [1, 1]} : vector<1024x1024xf32> to vector<1024x128xf32>
    %43 = arith.maximumf %41, %42 : vector<1024x128xf32>
    %44 = vector.extract_strided_slice %38 {offsets = [0, 384], sizes = [1024, 128], strides = [1, 1]} : vector<1024x1024xf32> to vector<1024x128xf32>
    %45 = arith.maximumf %43, %44 : vector<1024x128xf32>
    %46 = vector.extract_strided_slice %38 {offsets = [0, 512], sizes = [1024, 128], strides = [1, 1]} : vector<1024x1024xf32> to vector<1024x128xf32>
    %47 = arith.maximumf %45, %46 : vector<1024x128xf32>
    %48 = vector.extract_strided_slice %38 {offsets = [0, 640], sizes = [1024, 128], strides = [1, 1]} : vector<1024x1024xf32> to vector<1024x128xf32>
    %49 = arith.maximumf %47, %48 : vector<1024x128xf32>
    %50 = vector.extract_strided_slice %38 {offsets = [0, 768], sizes = [1024, 128], strides = [1, 1]} : vector<1024x1024xf32> to vector<1024x128xf32>
    %51 = arith.maximumf %49, %50 : vector<1024x128xf32>
    %52 = vector.extract_strided_slice %38 {offsets = [0, 896], sizes = [1024, 128], strides = [1, 1]} : vector<1024x1024xf32> to vector<1024x128xf32>
    %53 = arith.maximumf %51, %52 : vector<1024x128xf32>
    %c0_16 = arith.constant 0 : index
    %c0_17 = arith.constant 0 : index
    %54 = vector.load %arg17[%c0_16, %c0_17] : memref<1024x128xf32, #tpu.memory_space<vmem>>, vector<1024x128xf32>
    %55 = arith.maximumf %54, %53 : vector<1024x128xf32>
    %c0_18 = arith.constant 0 : index
    %c0_19 = arith.constant 0 : index
    %56 = vector.load %arg17[%c0_18, %c0_19] : memref<1024x128xf32, #tpu.memory_space<vmem>>, vector<1024x128xf32>
    tpu.vector_store %arg17[%c0_18, %c0_19], %55 {strides = array<i32>} : memref<1024x128xf32, #tpu.memory_space<vmem>>, vector<1024x128xf32>,
    %c0_i32_20 = arith.constant 0 : i32
    %57 = arith.cmpi eq, %arg1, %c0_i32_20 : i32
    %58 = arith.extui %57 : i1 to i32
    %c0_i32_21 = arith.constant 0 : i32
    %59 = arith.cmpi ne, %58, %c0_i32_21 : i32
    scf.if %59 {
      %c0_22 = arith.constant 0 : index
      %c0_23 = arith.constant 0 : index
      %60 = vector.load %arg17[%c0_22, %c0_23] : memref<1024x128xf32, #tpu.memory_space<vmem>>, vector<1024x128xf32>
      %cst_24 = arith.constant dense<0xFF800000> : vector<1024xf32>
      %61 = vector.multi_reduction <maximumf>, %60, %cst_24 [1] : vector<1024x128xf32> to vector<1024xf32>
      %62 = vector.shape_cast %61 : vector<1024xf32> to vector<1024x1xf32>
      %c0_25 = arith.constant 0 : index
      %c0_26 = arith.constant 0 : index
      %63 = vector.load %arg8[%c0_25, %c0_26] : memref<1024x1xf32, #tpu.memory_space<vmem>>, vector<1024x1xf32>
      %64 = arith.addf %62, %63 : vector<1024x1xf32>
      %cst_27 = arith.constant 0.000000e+00 : f32
      %65 = vector.broadcast %cst_27 : f32 to vector<1024x1xf32>
      %66 = arith.maximumf %64, %65 : vector<1024x1xf32>
      %67 = arith.truncf %66 : vector<1024x1xf32> to vector<1024x1xbf16>
      %c0_28 = arith.constant 0 : index
      %c0_29 = arith.constant 0 : index
      %68 = vector.load %arg9[%c0_28, %c0_29] : memref<512x1024xbf16, #tpu.memory_space<vmem>>, vector<512x1024xbf16>
      %cst_30 = arith.constant dense<0.000000e+00> : vector<512x1xf32>
      %69 = tpu.matmul %68, %67, %cst_30 {dimension_numbers = #tpu.dot_dimension_numbers<[1], [0], [0], [1], [0, 0, 1, 1], [], []>} : vector<512x1024xbf16>, vector<1024x1xbf16>, vector<512x1xf32> -> vector<512x1xf32>
      %c0_31 = arith.constant 0 : index
      %c0_32 = arith.constant 0 : index
      %70 = vector.load %arg10[%c0_31, %c0_32] : memref<512x1xf32, #tpu.memory_space<vmem>>, vector<512x1xf32>
      %71 = arith.addf %69, %70 : vector<512x1xf32>
      %cst_33 = arith.constant 0.000000e+00 : f32
      %72 = vector.broadcast %cst_33 : f32 to vector<512x1xf32>
      %73 = arith.maximumf %71, %72 : vector<512x1xf32>
      %c0_34 = arith.constant 0 : index
      %c0_35 = arith.constant 0 : index
      %74 = vector.load %arg11[%c0_34, %c0_35] : memref<256x512xbf16, #tpu.memory_space<vmem>>, vector<256x512xbf16>
      %75 = arith.truncf %73 : vector<512x1xf32> to vector<512x1xbf16>
      %cst_36 = arith.constant dense<0.000000e+00> : vector<256x1xf32>
      %76 = tpu.matmul %74, %75, %cst_36 {dimension_numbers = #tpu.dot_dimension_numbers<[1], [0], [0], [1], [0, 0, 1, 1], [], []>} : vector<256x512xbf16>, vector<512x1xbf16>, vector<256x1xf32> -> vector<256x1xf32>
      %c0_37 = arith.constant 0 : index
      %c0_38 = arith.constant 0 : index
      %77 = vector.load %arg12[%c0_37, %c0_38] : memref<256x1xf32, #tpu.memory_space<vmem>>, vector<256x1xf32>
      %78 = arith.addf %76, %77 : vector<256x1xf32>
      %cst_39 = arith.constant 0.000000e+00 : f32
      %79 = vector.broadcast %cst_39 : f32 to vector<256x1xf32>
      %80 = arith.maximumf %78, %79 : vector<256x1xf32>
      %c0_40 = arith.constant 0 : index
      %c0_41 = arith.constant 0 : index
      %81 = vector.load %arg13[%c0_40, %c0_41] : memref<9x256xbf16, #tpu.memory_space<vmem>>, vector<9x256xbf16>
      %82 = arith.truncf %80 : vector<256x1xf32> to vector<256x1xbf16>
      %cst_42 = arith.constant dense<0.000000e+00> : vector<9x1xf32>
      %83 = tpu.matmul %81, %82, %cst_42 {dimension_numbers = #tpu.dot_dimension_numbers<[1], [0], [0], [1], [0, 0, 1, 1], [], []>} : vector<9x256xbf16>, vector<256x1xbf16>, vector<9x1xf32> -> vector<9x1xf32>
      %c0_43 = arith.constant 0 : index
      %c0_44 = arith.constant 0 : index
      %84 = vector.load %arg14[%c0_43, %c0_44] : memref<9x1xf32, #tpu.memory_space<vmem>>, vector<9x1xf32>
      %85 = arith.addf %83, %84 : vector<9x1xf32>
      %c0_45 = arith.constant 0 : index
      %c0_46 = arith.constant 0 : index
      %86 = vector.load %arg15[%c0_45, %c0_46] : memref<9x1xf32, #tpu.memory_space<vmem>>, vector<9x1xf32>
      %87 = arith.addf %85, %86 : vector<9x1xf32>
      %c0_47 = arith.constant 0 : index
      %c0_48 = arith.constant 0 : index
      %c0_49 = arith.constant 0 : index
      %88 = vector.load %arg16[%c0_47, %c0_48, %c0_49] : memref<1x9x1xf32, #tpu.memory_space<vmem>>, vector<1x9x1xf32>
      %89 = vector.shape_cast %88 : vector<1x9x1xf32> to vector<9x1xf32>
      %90 = vector.shape_cast %87 : vector<9x1xf32> to vector<1x9x1xf32>
      tpu.vector_store %arg16[%c0_47, %c0_48, %c0_49], %90 {strides = array<i32>} : memref<1x9x1xf32, #tpu.memory_space<vmem>>, vector<1x9x1xf32>,
    } else {
    }
    return
  }
  func.func @transform_0(%arg0: i32, %arg1: i32) -> (i32, i32, i32) {
    %c0_i32 = arith.constant 0 : i32
    %c0_i32_0 = arith.constant 0 : i32
    return %arg0, %c0_i32, %arg1 : i32, i32, i32
  }
  func.func @transform_1(%arg0: i32, %arg1: i32) -> (i32, i32) {
    %c0_i32 = arith.constant 0 : i32
    %c0_i32_0 = arith.constant 0 : i32
    %c0_i32_1 = arith.constant 0 : i32
    return %c0_i32, %c0_i32_0 : i32, i32
  }
  func.func @transform_2(%arg0: i32, %arg1: i32) -> (i32, i32) {
    %c0_i32 = arith.constant 0 : i32
    %c0_i32_0 = arith.constant 0 : i32
    %c0_i32_1 = arith.constant 0 : i32
    return %c0_i32, %c0_i32_0 : i32, i32
  }
  func.func @transform_3(%arg0: i32, %arg1: i32) -> (i32, i32) {
    %c0_i32 = arith.constant 0 : i32
    %c0_i32_0 = arith.constant 0 : i32
    %c0_i32_1 = arith.constant 0 : i32
    return %c0_i32, %c0_i32_0 : i32, i32
  }
  func.func @transform_4(%arg0: i32, %arg1: i32) -> (i32, i32) {
    %c0_i32 = arith.constant 0 : i32
    %c0_i32_0 = arith.constant 0 : i32
    %c0_i32_1 = arith.constant 0 : i32
    return %c0_i32, %c0_i32_0 : i32, i32
  }
  func.func @transform_5(%arg0: i32, %arg1: i32) -> (i32, i32) {
    %c0_i32 = arith.constant 0 : i32
    %c0_i32_0 = arith.constant 0 : i32
    %c0_i32_1 = arith.constant 0 : i32
    return %c0_i32, %c0_i32_0 : i32, i32
  }
  func.func @transform_6(%arg0: i32, %arg1: i32) -> (i32, i32) {
    %c0_i32 = arith.constant 0 : i32
    %c0_i32_0 = arith.constant 0 : i32
    %c0_i32_1 = arith.constant 0 : i32
    return %c0_i32, %c0_i32_0 : i32, i32
  }
  func.func @transform_7(%arg0: i32, %arg1: i32) -> (i32, i32) {
    %c0_i32 = arith.constant 0 : i32
    %c0_i32_0 = arith.constant 0 : i32
    %c0_i32_1 = arith.constant 0 : i32
    return %c0_i32, %c0_i32_0 : i32, i32
  }
  func.func @transform_8(%arg0: i32, %arg1: i32) -> (i32, i32) {
    %c0_i32 = arith.constant 0 : i32
    %c0_i32_0 = arith.constant 0 : i32
    %c0_i32_1 = arith.constant 0 : i32
    return %c0_i32, %c0_i32_0 : i32, i32
  }
  func.func @transform_9(%arg0: i32, %arg1: i32) -> (i32, i32) {
    %c0_i32 = arith.constant 0 : i32
    %c0_i32_0 = arith.constant 0 : i32
    %c0_i32_1 = arith.constant 0 : i32
    return %c0_i32, %c0_i32_0 : i32, i32
  }
  func.func @transform_10(%arg0: i32, %arg1: i32) -> (i32, i32) {
    %c0_i32 = arith.constant 0 : i32
    %c0_i32_0 = arith.constant 0 : i32
    %c0_i32_1 = arith.constant 0 : i32
    return %c0_i32, %c0_i32_0 : i32, i32
  }
  func.func @transform_11(%arg0: i32, %arg1: i32) -> (i32, i32) {
    %c0_i32 = arith.constant 0 : i32
    %c0_i32_0 = arith.constant 0 : i32
    %c0_i32_1 = arith.constant 0 : i32
    return %c0_i32, %c0_i32_0 : i32, i32
  }
  func.func @transform_12(%arg0: i32, %arg1: i32) -> (i32, i32) {
    %c0_i32 = arith.constant 0 : i32
    %c0_i32_0 = arith.constant 0 : i32
    %c0_i32_1 = arith.constant 0 : i32
    return %c0_i32, %c0_i32_0 : i32, i32
  }
  func.func @transform_13(%arg0: i32, %arg1: i32) -> (i32, i32) {
    %c0_i32 = arith.constant 0 : i32
    %c0_i32_0 = arith.constant 0 : i32
    %c0_i32_1 = arith.constant 0 : i32
    return %c0_i32, %c0_i32_0 : i32, i32
  }
  func.func @transform_14(%arg0: i32, %arg1: i32) -> (i32, i32, i32) {
    %c0_i32 = arith.constant 0 : i32
    %c0_i32_0 = arith.constant 0 : i32
    %c0_i32_1 = arith.constant 0 : i32
    return %arg0, %c0_i32, %c0_i32_0 : i32, i32, i32
  }
}

</mosaic_0001>

<llo_original>
// kernel: tpu_custom_call.1
$region0: #{tpu_custom_call.1}
  #allocation0 [shape = 'u32[]', space=smem, size = 0x4, offset = 0x4, fixed_abs, tag = 'smem constant byte address 0x4 - core index']
  #allocation1 [shape = 'u32[144,128]{1,0:T(1,128)}', space=vmem, size = 0x12000, scoped, tag = 'internal scratch']
  #allocation2 [shape = 'f32[1024,128]{1,0:T(8,128)}', space=vmem, size = 0x80000, scoped, tag = 'scratch operand']
  %s0 = inlined_call_operand.vmem [shape: f32[2,3,1024], index: 0, kind: input, shape index: {}]
  %s1 = inlined_call_operand.vmem [shape: f32[64,3], index: 1, kind: input, shape index: {}]
  %s2 = inlined_call_operand.vmem [shape: f32[64,1], index: 2, kind: input, shape index: {}]
  %s3 = inlined_call_operand.vmem [shape: bf16[128,64], index: 3, kind: input, shape index: {}]
  %s4 = inlined_call_operand.vmem [shape: f32[128,1], index: 4, kind: input, shape index: {}]
  %s5 = inlined_call_operand.hbm [shape: bf16[1024,128], index: 5, kind: input, shape index: {}]
  %s6 = inlined_call_operand.vmem [shape: f32[1024,1], index: 6, kind: input, shape index: {}]
  %s7 = inlined_call_operand.vmem [shape: bf16[512,1024], index: 7, kind: input, shape index: {}]
  %s8 = inlined_call_operand.vmem [shape: f32[512,1], index: 8, kind: input, shape index: {}]
  %s9 = inlined_call_operand.hbm [shape: bf16[256,512], index: 9, kind: input, shape index: {}]
  %s10 = inlined_call_operand.vmem [shape: f32[256,1], index: 10, kind: input, shape index: {}]
  %s11 = inlined_call_operand.vmem [shape: bf16[9,256], index: 11, kind: input, shape index: {}]
  %s12 = inlined_call_operand.vmem [shape: f32[9,1], index: 12, kind: input, shape index: {}]
  %s13 = inlined_call_operand.vmem [shape: f32[9,1], index: 13, kind: input, shape index: {}]
  %s14 = inlined_call_operand.vmem [shape: f32[2,9,1], index: 14, kind: output, shape index: {}]
  %s15 = sld [smem:[#allocation0]]
  $region105: #{tpu_custom_call.1} parent=0
    _
  %s17 = ssub.s32 1, %s15
  %s18 = scalar_select 0, %s17, %s15
  $region1: #{tpu_custom_call.1} parent=0
    #allocation3 [shape = 'u8[262144]{0}', space=vmem, size = 0x40000, scoped, tag = 'input window, operand 5, single buffered']
    #allocation4 [shape = 's32[2]{0}', space=sflag, size = 0x8, scoped, tag = 'scoped memory for tpu_custom_call.1']
    #allocation5 [shape = 'u8[262144]{0}', space=vmem, size = 0x40000, scoped, tag = 'input window, operand 9, single buffered']
    #allocation6 [shape = 's32[1]{0}', space=sflag, size = 0x4, scoped, tag = 'scoped memory for tpu_custom_call.1']
    %19 = vsyncpa [#allocation4], 0
    %20 = vsyncpa [#allocation6], 0
    loop: start=0, step=1, limit=4
    $region2: #{tpu_custom_call.1} parent=1 // loop_pre_header
      _
    $region3: #{tpu_custom_call.1} parent=1 // loop_header
      %s22 = sphi 0, %s26
      %p23 = scmp.ge.s32.totalorder %s22, 4
      %s29 = sphi 0, %s41
      %s30 = sphi 0, %s37
      %s31 = sphi 0, %s29
      %s32 = sphi 0, %s30
      %s33 = sphi 0, %s31
      %s34 = sphi 0, %s32
      %s46 = sphi 0, %s48
      %s49 = sphi 0, %s46
      %s50 = sphi 0, %s49
      %s66 = sphi 0, %s50
      %s70 = sphi 0, %s70
      %s72 = sphi 0, %s70
      %s73 = sphi 0, %s72
      %s87 = sphi 0, %s73
      %s91 = sphi 0, %s91
      %s93 = sphi 0, %s91
      %s94 = sphi 0, %s93
      %s108 = sphi 0, %s94
      %s112 = sphi 0, %s112
      %s114 = sphi 0, %s112
      %s115 = sphi 0, %s114
      %s129 = sphi 0, %s115
      %s133 = sphi 0, %s133
      %s135 = sphi 0, %s133
      %s136 = sphi 0, %s135
      %s150 = sphi 0, %s136
      %s154 = sphi 0, %s154
      %s156 = sphi 0, %s154
      %s157 = sphi 0, %s156
      %s171 = sphi 0, %s157
      %s175 = sphi 0, %s175
      %s177 = sphi 0, %s175
      %s178 = sphi 0, %s177
      %s192 = sphi 0, %s178
      %s196 = sphi 0, %s196
      %s198 = sphi 0, %s196
      %s199 = sphi 0, %s198
      %s213 = sphi 0, %s199
      %s217 = sphi 0, %s217
      %s219 = sphi 0, %s217
      %s220 = sphi 0, %s219
      %s234 = sphi 0, %s220
      %s238 = sphi 0, %s238
      %s240 = sphi 0, %s238
      %s241 = sphi 0, %s240
      %s255 = sphi 0, %s241
      %s259 = sphi 0, %s259
      %s261 = sphi 0, %s259
      %s262 = sphi 0, %s261
      %s276 = sphi 0, %s262
      %s280 = sphi 0, %s280
      %s282 = sphi 0, %s280
      %s283 = sphi 0, %s282
      %s297 = sphi 0, %s283
      %s301 = sphi 0, %s301
      %s303 = sphi 0, %s301
      %s304 = sphi 0, %s303
      %s318 = sphi 0, %s304
      %s322 = sphi 0, %s322
      %s324 = sphi 0, %s322
      %s325 = sphi 0, %s324
      %s339 = sphi 0, %s325
      %s345 = sphi 0, %s347
      %s348 = sphi 0, %s345
      %s349 = sphi 0, %s348
      %s365 = sphi 0, %s349
    $region4: #{tpu_custom_call.1} parent=1 // loop_header_branch
      %25 = sbr.rel (%p23) target = $region8
    $region5: #{tpu_custom_call.1} parent=1 // loop_body
      %s27 = ssub.s32 %s22, 1
      %s28 = ssub.s32 %s22, 2
      %s35 = sadd.s32 1, %s30
      %p36 = scmp.ge.s32.totalorder %s35, 1
      %s37 = scalar_select %p36, 0, %s35
      %s38 = sadd.s32 1, %s29
      %s39 = scalar_select %p36, %s38, %s29
      %p40 = scmp.ge.s32.totalorder %s39, 2
      %s41 = scalar_select %p40, 0, %s39
      %s42 = ssub.s32 %s29, %s41
      %s43 = ssub.s32 %s30, %s37
      %s44 = sor.u32 %s42, %s43
      %p45 = scmp.eq.s32.totalorder %s44, 0
      %s47 = sadd.s32 %s46, 1
      %s48 = scalar_select %p45, %s46, %s47
      %p51 = pneg %p45
      %p52 = scmp.eq.s32.totalorder %s22, 1
      %p53 = por %p51, %p52
      %p54 = scmp.ne.s32.totalorder %s46, %s49
      %p55 = scmp.eq.s32.totalorder %s22, 0
      %p56 = por %p54, %p55
      %p57 = scmp.ne.s32.totalorder %s46, %s49
      %p58 = scmp.eq.s32.totalorder %s27, 1
      %p59 = por %p57, %p58
      %p60 = scmp.ne.s32.totalorder %s49, %s50
      %p61 = scmp.eq.s32.totalorder %s27, 0
      %p62 = por %p60, %p61
      %p63 = scmp.ne.s32.totalorder %s49, %s50
      %p64 = scmp.eq.s32.totalorder %s28, 1
      %p65 = por %p63, %p64
      %p67 = scmp.ne.s32.totalorder %s50, %s66
      %p68 = scmp.eq.s32.totalorder %s28, 0
      %p69 = por %p67, %p68
      %s71 = sadd.s32 %s70, 1
      %p74 = scmp.eq.s32.totalorder %s22, 1
      %p75 = scmp.ne.s32.totalorder %s70, %s72
      %p76 = scmp.eq.s32.totalorder %s22, 0
      %p77 = por %p75, %p76
      %p78 = scmp.ne.s32.totalorder %s70, %s72
      %p79 = scmp.eq.s32.totalorder %s27, 1
      %p80 = por %p78, %p79
      %p81 = scmp.ne.s32.totalorder %s72, %s73
      %p82 = scmp.eq.s32.totalorder %s27, 0
      %p83 = por %p81, %p82
      %p84 = scmp.ne.s32.totalorder %s72, %s73
      %p85 = scmp.eq.s32.totalorder %s28, 1
      %p86 = por %p84, %p85
      %p88 = scmp.ne.s32.totalorder %s73, %s87
      %p89 = scmp.eq.s32.totalorder %s28, 0
      %p90 = por %p88, %p89
      %s92 = sadd.s32 %s91, 1
      %p95 = scmp.eq.s32.totalorder %s22, 1
      %p96 = scmp.ne.s32.totalorder %s91, %s93
      %p97 = scmp.eq.s32.totalorder %s22, 0
      %p98 = por %p96, %p97
      %p99 = scmp.ne.s32.totalorder %s91, %s93
      %p100 = scmp.eq.s32.totalorder %s27, 1
      %p101 = por %p99, %p100
      %p102 = scmp.ne.s32.totalorder %s93, %s94
      %p103 = scmp.eq.s32.totalorder %s27, 0
      %p104 = por %p102, %p103
      %p105 = scmp.ne.s32.totalorder %s93, %s94
      %p106 = scmp.eq.s32.totalorder %s28, 1
      %p107 = por %p105, %p106
      %p109 = scmp.ne.s32.totalorder %s94, %s108
      %p110 = scmp.eq.s32.totalorder %s28, 0
      %p111 = por %p109, %p110
      %s113 = sadd.s32 %s112, 1
      %p116 = scmp.eq.s32.totalorder %s22, 1
      %p117 = scmp.ne.s32.totalorder %s112, %s114
      %p118 = scmp.eq.s32.totalorder %s22, 0
      %p119 = por %p117, %p118
      %p120 = scmp.ne.s32.totalorder %s112, %s114
      %p121 = scmp.eq.s32.totalorder %s27, 1
      %p122 = por %p120, %p121
      %p123 = scmp.ne.s32.totalorder %s114, %s115
      %p124 = scmp.eq.s32.totalorder %s27, 0
      %p125 = por %p123, %p124
      %p126 = scmp.ne.s32.totalorder %s114, %s115
      %p127 = scmp.eq.s32.totalorder %s28, 1
      %p128 = por %p126, %p127
      %p130 = scmp.ne.s32.totalorder %s115, %s129
      %p131 = scmp.eq.s32.totalorder %s28, 0
      %p132 = por %p130, %p131
      %s134 = sadd.s32 %s133, 1
      %p137 = scmp.eq.s32.totalorder %s22, 1
      %p138 = scmp.ne.s32.totalorder %s133, %s135
      %p139 = scmp.eq.s32.totalorder %s22, 0
      %p140 = por %p138, %p139
      %p141 = scmp.ne.s32.totalorder %s133, %s135
      %p142 = scmp.eq.s32.totalorder %s27, 1
      %p143 = por %p141, %p142
      %p144 = scmp.ne.s32.totalorder %s135, %s136
      %p145 = scmp.eq.s32.totalorder %s27, 0
      %p146 = por %p144, %p145
      %p147 = scmp.ne.s32.totalorder %s135, %s136
      %p148 = scmp.eq.s32.totalorder %s28, 1
      %p149 = por %p147, %p148
      %p151 = scmp.ne.s32.totalorder %s136, %s150
      %p152 = scmp.eq.s32.totalorder %s28, 0
      %p153 = por %p151, %p152
      %s155 = sadd.s32 %s154, 1
      %p158 = scmp.eq.s32.totalorder %s22, 1
      %p159 = scmp.ne.s32.totalorder %s154, %s156
      %p160 = scmp.eq.s32.totalorder %s22, 0
      %p161 = por %p159, %p160
      %p162 = scmp.ne.s32.totalorder %s154, %s156
      %p163 = scmp.eq.s32.totalorder %s27, 1
      %p164 = por %p162, %p163
      %p165 = scmp.ne.s32.totalorder %s156, %s157
      %p166 = scmp.eq.s32.totalorder %s27, 0
      %p167 = por %p165, %p166
      %p168 = scmp.ne.s32.totalorder %s156, %s157
      %p169 = scmp.eq.s32.totalorder %s28, 1
      %p170 = por %p168, %p169
      %p172 = scmp.ne.s32.totalorder %s157, %s171
      %p173 = scmp.eq.s32.totalorder %s28, 0
      %p174 = por %p172, %p173
      %s176 = sadd.s32 %s175, 1
      %p179 = scmp.eq.s32.totalorder %s22, 1
      %p180 = scmp.ne.s32.totalorder %s175, %s177
      %p181 = scmp.eq.s32.totalorder %s22, 0
      %p182 = por %p180, %p181
      %p183 = scmp.ne.s32.totalorder %s175, %s177
      %p184 = scmp.eq.s32.totalorder %s27, 1
      %p185 = por %p183, %p184
      %p186 = scmp.ne.s32.totalorder %s177, %s178
      %p187 = scmp.eq.s32.totalorder %s27, 0
      %p188 = por %p186, %p187
      %p189 = scmp.ne.s32.totalorder %s177, %s178
      %p190 = scmp.eq.s32.totalorder %s28, 1
      %p191 = por %p189, %p190
      %p193 = scmp.ne.s32.totalorder %s178, %s192
      %p194 = scmp.eq.s32.totalorder %s28, 0
      %p195 = por %p193, %p194
      %s197 = sadd.s32 %s196, 1
      %p200 = scmp.eq.s32.totalorder %s22, 1
      %p201 = scmp.ne.s32.totalorder %s196, %s198
      %p202 = scmp.eq.s32.totalorder %s22, 0
      %p203 = por %p201, %p202
      %p204 = scmp.ne.s32.totalorder %s196, %s198
      %p205 = scmp.eq.s32.totalorder %s27, 1
      %p206 = por %p204, %p205
      %p207 = scmp.ne.s32.totalorder %s198, %s199
      %p208 = scmp.eq.s32.totalorder %s27, 0
      %p209 = por %p207, %p208
      %p210 = scmp.ne.s32.totalorder %s198, %s199
      %p211 = scmp.eq.s32.totalorder %s28, 1
      %p212 = por %p210, %p211
      %p214 = scmp.ne.s32.totalorder %s199, %s213
      %p215 = scmp.eq.s32.totalorder %s28, 0
      %p216 = por %p214, %p215
      %s218 = sadd.s32 %s217, 1
      %p221 = scmp.eq.s32.totalorder %s22, 1
      %p222 = scmp.ne.s32.totalorder %s217, %s219
      %p223 = scmp.eq.s32.totalorder %s22, 0
      %p224 = por %p222, %p223
      %p225 = scmp.ne.s32.totalorder %s217, %s219
      %p226 = scmp.eq.s32.totalorder %s27, 1
      %p227 = por %p225, %p226
      %p228 = scmp.ne.s32.totalorder %s219, %s220
      %p229 = scmp.eq.s32.totalorder %s27, 0
      %p230 = por %p228, %p229
      %p231 = scmp.ne.s32.totalorder %s219, %s220
      %p232 = scmp.eq.s32.totalorder %s28, 1
      %p233 = por %p231, %p232
      %p235 = scmp.ne.s32.totalorder %s220, %s234
      %p236 = scmp.eq.s32.totalorder %s28, 0
      %p237 = por %p235, %p236
      %s239 = sadd.s32 %s238, 1
      %p242 = scmp.eq.s32.totalorder %s22, 1
      %p243 = scmp.ne.s32.totalorder %s238, %s240
      %p244 = scmp.eq.s32.totalorder %s22, 0
      %p245 = por %p243, %p244
      %p246 = scmp.ne.s32.totalorder %s238, %s240
      %p247 = scmp.eq.s32.totalorder %s27, 1
      %p248 = por %p246, %p247
      %p249 = scmp.ne.s32.totalorder %s240, %s241
      %p250 = scmp.eq.s32.totalorder %s27, 0
      %p251 = por %p249, %p250
      %p252 = scmp.ne.s32.totalorder %s240, %s241
      %p253 = scmp.eq.s32.totalorder %s28, 1
      %p254 = por %p252, %p253
      %p256 = scmp.ne.s32.totalorder %s241, %s255
      %p257 = scmp.eq.s32.totalorder %s28, 0
      %p258 = por %p256, %p257
      %s260 = sadd.s32 %s259, 1
      %p263 = scmp.eq.s32.totalorder %s22, 1
      %p264 = scmp.ne.s32.totalorder %s259, %s261
      %p265 = scmp.eq.s32.totalorder %s22, 0
      %p266 = por %p264, %p265
      %p267 = scmp.ne.s32.totalorder %s259, %s261
      %p268 = scmp.eq.s32.totalorder %s27, 1
      %p269 = por %p267, %p268
      %p270 = scmp.ne.s32.totalorder %s261, %s262
      %p271 = scmp.eq.s32.totalorder %s27, 0
      %p272 = por %p270, %p271
      %p273 = scmp.ne.s32.totalorder %s261, %s262
      %p274 = scmp.eq.s32.totalorder %s28, 1
      %p275 = por %p273, %p274
      %p277 = scmp.ne.s32.totalorder %s262, %s276
      %p278 = scmp.eq.s32.totalorder %s28, 0
      %p279 = por %p277, %p278
      %s281 = sadd.s32 %s280, 1
      %p284 = scmp.eq.s32.totalorder %s22, 1
      %p285 = scmp.ne.s32.totalorder %s280, %s282
      %p286 = scmp.eq.s32.totalorder %s22, 0
      %p287 = por %p285, %p286
      %p288 = scmp.ne.s32.totalorder %s280, %s282
      %p289 = scmp.eq.s32.totalorder %s27, 1
      %p290 = por %p288, %p289
      %p291 = scmp.ne.s32.totalorder %s282, %s283
      %p292 = scmp.eq.s32.totalorder %s27, 0
      %p293 = por %p291, %p292
      %p294 = scmp.ne.s32.totalorder %s282, %s283
      %p295 = scmp.eq.s32.totalorder %s28, 1
      %p296 = por %p294, %p295
      %p298 = scmp.ne.s32.totalorder %s283, %s297
      %p299 = scmp.eq.s32.totalorder %s28, 0
      %p300 = por %p298, %p299
      %s302 = sadd.s32 %s301, 1
      %p305 = scmp.eq.s32.totalorder %s22, 1
      %p306 = scmp.ne.s32.totalorder %s301, %s303
      %p307 = scmp.eq.s32.totalorder %s22, 0
      %p308 = por %p306, %p307
      %p309 = scmp.ne.s32.totalorder %s301, %s303
      %p310 = scmp.eq.s32.totalorder %s27, 1
      %p311 = por %p309, %p310
      %p312 = scmp.ne.s32.totalorder %s303, %s304
      %p313 = scmp.eq.s32.totalorder %s27, 0
      %p314 = por %p312, %p313
      %p315 = scmp.ne.s32.totalorder %s303, %s304
      %p316 = scmp.eq.s32.totalorder %s28, 1
      %p317 = por %p315, %p316
      %p319 = scmp.ne.s32.totalorder %s304, %s318
      %p320 = scmp.eq.s32.totalorder %s28, 0
      %p321 = por %p319, %p320
      %s323 = sadd.s32 %s322, 1
      %p326 = scmp.eq.s32.totalorder %s22, 1
      %p327 = scmp.ne.s32.totalorder %s322, %s324
      %p328 = scmp.eq.s32.totalorder %s22, 0
      %p329 = por %p327, %p328
      %p330 = scmp.ne.s32.totalorder %s322, %s324
      %p331 = scmp.eq.s32.totalorder %s27, 1
      %p332 = por %p330, %p331
      %p333 = scmp.ne.s32.totalorder %s324, %s325
      %p334 = scmp.eq.s32.totalorder %s27, 0
      %p335 = por %p333, %p334
      %p336 = scmp.ne.s32.totalorder %s324, %s325
      %p337 = scmp.eq.s32.totalorder %s28, 1
      %p338 = por %p336, %p337
      %p340 = scmp.ne.s32.totalorder %s325, %s339
      %p341 = scmp.eq.s32.totalorder %s28, 0
      %p342 = por %p340, %p341
      %s343 = ssub.s32 %s29, %s41
      %p344 = scmp.eq.s32.totalorder %s343, 0
      %s346 = sadd.s32 %s345, 1
      %s347 = scalar_select %p344, %s345, %s346
      %p350 = pneg %p344
      %p351 = scmp.eq.s32.totalorder %s22, 1
      %p352 = por %p350, %p351
      %p353 = scmp.ne.s32.totalorder %s345, %s348
      %p354 = scmp.eq.s32.totalorder %s22, 0
      %p355 = por %p353, %p354
      %p356 = scmp.ne.s32.totalorder %s345, %s348
      %p357 = scmp.eq.s32.totalorder %s27, 1
      %p358 = por %p356, %p357
      %p359 = scmp.ne.s32.totalorder %s348, %s349
      %p360 = scmp.eq.s32.totalorder %s27, 0
      %p361 = por %p359, %p360
      %p362 = scmp.ne.s32.totalorder %s348, %s349
      %p363 = scmp.eq.s32.totalorder %s28, 1
      %p364 = por %p362, %p363
      %p366 = scmp.ne.s32.totalorder %s349, %s365
      %p367 = scmp.eq.s32.totalorder %s28, 0
      %p368 = por %p366, %p367
      %p369 = scmp.le.s32.totalorder 1, %s22
      %p370 = scmp.lt.s32.totalorder %s22, 3
      %p371 = pnand %p369, %p370
      %p372 = pneg %p371
      // Predicated region
      $region9: #{tpu_custom_call.1} parent=5 // pred_check
        _
      $region10: #{tpu_custom_call.1} parent=5 // pred_check_branch
        %374 = sbr.rel (%p371) target = $region12
      $region11: #{tpu_custom_call.1} parent=5 // pred_region
        %s375 = ssub.s32 %s22, 1
        // Predicated region
        $region13: #{tpu_custom_call.1} parent=11 // pred_check
          %p376 = pneg %p83
        $region14: #{tpu_custom_call.1} parent=11 // pred_check_branch
          %378 = sbr.rel (%p376) target = $region16
        $region15: #{tpu_custom_call.1} parent=11 // pred_region
          _
        $region16: #{tpu_custom_call.1} parent=11 // pred_fallthru
          _
        // Predicated region
        $region17: #{tpu_custom_call.1} parent=11 // pred_check
          %p379 = pneg %p104
        $region18: #{tpu_custom_call.1} parent=11 // pred_check_branch
          %381 = sbr.rel (%p379) target = $region20
        $region19: #{tpu_custom_call.1} parent=11 // pred_region
          _
        $region20: #{tpu_custom_call.1} parent=11 // pred_fallthru
          _
        // Predicated region
        $region21: #{tpu_custom_call.1} parent=11 // pred_check
          %p382 = pneg %p125
        $region22: #{tpu_custom_call.1} parent=11 // pred_check_branch
          %384 = sbr.rel (%p382) target = $region24
        $region23: #{tpu_custom_call.1} parent=11 // pred_region
          _
        $region24: #{tpu_custom_call.1} parent=11 // pred_fallthru
          _
        // Predicated region
        $region25: #{tpu_custom_call.1} parent=11 // pred_check
          %p385 = pneg %p146
        $region26: #{tpu_custom_call.1} parent=11 // pred_check_branch
          %387 = sbr.rel (%p385) target = $region28
        $region27: #{tpu_custom_call.1} parent=11 // pred_region
          _
        $region28: #{tpu_custom_call.1} parent=11 // pred_fallthru
          _
        // Predicated region
        $region29: #{tpu_custom_call.1} parent=11 // pred_check
          %p388 = pneg %p167
        $region30: #{tpu_custom_call.1} parent=11 // pred_check_branch
          %390 = sbr.rel (%p388) target = $region32
        $region31: #{tpu_custom_call.1} parent=11 // pred_region
          %s392 = ssub.s32 8192, 8192
          %393 = vsyncadd [#allocation4], %s392
          %s394 = sshll.u32 [#allocation3], 4
          %s395 = int_to_ptr.vmem [resolvable:$true] %s394
          %400 = dma.hbm_to_vmem [thread:$0]  %s5, 8192, %s395, [#allocation4], 64, 64, 4
        $region32: #{tpu_custom_call.1} parent=11 // pred_fallthru
          _
        // Predicated region
        $region33: #{tpu_custom_call.1} parent=11 // pred_check
          %p401 = pneg %p188
        $region34: #{tpu_custom_call.1} parent=11 // pred_check_branch
          %403 = sbr.rel (%p401) target = $region36
        $region35: #{tpu_custom_call.1} parent=11 // pred_region
          _
        $region36: #{tpu_custom_call.1} parent=11 // pred_fallthru
          _
        // Predicated region
        $region37: #{tpu_custom_call.1} parent=11 // pred_check
          %p404 = pneg %p209
        $region38: #{tpu_custom_call.1} parent=11 // pred_check_branch
          %406 = sbr.rel (%p404) target = $region40
        $region39: #{tpu_custom_call.1} parent=11 // pred_region
          _
        $region40: #{tpu_custom_call.1} parent=11 // pred_fallthru
          _
        // Predicated region
        $region41: #{tpu_custom_call.1} parent=11 // pred_check
          %p407 = pneg %p230
        $region42: #{tpu_custom_call.1} parent=11 // pred_check_branch
          %409 = sbr.rel (%p407) target = $region44
        $region43: #{tpu_custom_call.1} parent=11 // pred_region
          _
        $region44: #{tpu_custom_call.1} parent=11 // pred_fallthru
          _
        // Predicated region
        $region45: #{tpu_custom_call.1} parent=11 // pred_check
          %p410 = pneg %p251
        $region46: #{tpu_custom_call.1} parent=11 // pred_check_branch
          %412 = sbr.rel (%p410) target = $region48
        $region47: #{tpu_custom_call.1} parent=11 // pred_region
          %s414 = ssub.s32 8192, 8192
          %415 = vsyncadd [#allocation6], %s414
          %s416 = sshll.u32 [#allocation5], 4
          %s417 = int_to_ptr.vmem [resolvable:$true] %s416
          %422 = dma.hbm_to_vmem [thread:$0]  %s9, 8192, %s417, [#allocation6], 256, 256, 16
        $region48: #{tpu_custom_call.1} parent=11 // pred_fallthru
          _
        // Predicated region
        $region49: #{tpu_custom_call.1} parent=11 // pred_check
          %p423 = pneg %p272
        $region50: #{tpu_custom_call.1} parent=11 // pred_check_branch
          %425 = sbr.rel (%p423) target = $region52
        $region51: #{tpu_custom_call.1} parent=11 // pred_region
          _
        $region52: #{tpu_custom_call.1} parent=11 // pred_fallthru
          _
        // Predicated region
        $region53: #{tpu_custom_call.1} parent=11 // pred_check
          %p426 = pneg %p293
        $region54: #{tpu_custom_call.1} parent=11 // pred_check_branch
          %428 = sbr.rel (%p426) target = $region56
        $region55: #{tpu_custom_call.1} parent=11 // pred_region
          _
        $region56: #{tpu_custom_call.1} parent=11 // pred_fallthru
          _
        // Predicated region
        $region57: #{tpu_custom_call.1} parent=11 // pred_check
          %p429 = pneg %p314
        $region58: #{tpu_custom_call.1} parent=11 // pred_check_branch
          %431 = sbr.rel (%p429) target = $region60
        $region59: #{tpu_custom_call.1} parent=11 // pred_region
          _
        $region60: #{tpu_custom_call.1} parent=11 // pred_fallthru
          _
        // Predicated region
        $region61: #{tpu_custom_call.1} parent=11 // pred_check
          %p432 = pneg %p335
        $region62: #{tpu_custom_call.1} parent=11 // pred_check_branch
          %434 = sbr.rel (%p432) target = $region64
        $region63: #{tpu_custom_call.1} parent=11 // pred_region
          _
        $region64: #{tpu_custom_call.1} parent=11 // pred_fallthru
          _
      $region12: #{tpu_custom_call.1} parent=5 // pred_fallthru
        _
      %p435 = scmp.lt.s32.totalorder %s22, 2
      // Predicated region
      $region65: #{tpu_custom_call.1} parent=5 // pred_check
        %p436 = pneg %p435
      $region66: #{tpu_custom_call.1} parent=5 // pred_check_branch
        %438 = sbr.rel (%p436) target = $region68
      $region67: #{tpu_custom_call.1} parent=5 // pred_region
        // Predicated region
        $region69: #{tpu_custom_call.1} parent=67 // pred_check
          %p439 = pneg %p56
        $region70: #{tpu_custom_call.1} parent=67 // pred_check_branch
          %441 = sbr.rel (%p439) target = $region72
        $region71: #{tpu_custom_call.1} parent=67 // pred_region
          %s442 = smul.u32 8, %s30
          %p443 = scmp.lt.s32.totalorder %s29, 1
          %s444 = scalar_select %p443, %s29, 1
          %p445 = scmp.lt.s32.totalorder %s442, 7
          %s446 = scalar_select %p445, %s442, 7
          %s447 = smul.addr %s444, 8
          %s448 = sadd.s32 %s446, %s447
          %s449 = smul.addr %s448, 4
          %s450 = scalar_lea.vmem %s0, %s449
          %s451 = smul.u32 8, %s30
        $region72: #{tpu_custom_call.1} parent=67 // pred_fallthru
          _
      $region68: #{tpu_custom_call.1} parent=5 // pred_fallthru
        _
      %p452 = scmp.le.s32.totalorder 1, %s22
      %p453 = scmp.lt.s32.totalorder %s22, 3
      %p454 = pnand %p452, %p453
      %p455 = pneg %p454
      // Predicated region
      $region73: #{tpu_custom_call.1} parent=5 // pred_check
        _
      $region74: #{tpu_custom_call.1} parent=5 // pred_check_branch
        %457 = sbr.rel (%p454) target = $region76
      $region75: #{tpu_custom_call.1} parent=5 // pred_region
        %s458 = ssub.s32 %s22, 1
        // Predicated region
        $region77: #{tpu_custom_call.1} parent=75 // pred_check
          %p459 = pneg %p167
        $region78: #{tpu_custom_call.1} parent=75 // pred_check_branch
          %461 = sbr.rel (%p459) target = $region80
        $region79: #{tpu_custom_call.1} parent=75 // pred_region
          %462 = dma.done [#allocation4], 8192
        $region80: #{tpu_custom_call.1} parent=75 // pred_fallthru
          _
        // Predicated region
        $region81: #{tpu_custom_call.1} parent=75 // pred_check
          %p463 = pneg %p251
        $region82: #{tpu_custom_call.1} parent=75 // pred_check_branch
          %465 = sbr.rel (%p463) target = $region84
        $region83: #{tpu_custom_call.1} parent=75 // pred_region
          %466 = dma.done [#allocation6], 8192
        $region84: #{tpu_custom_call.1} parent=75 // pred_fallthru
          _
        %s467 = smul.u32 8, %s32
        %p468 = scmp.lt.s32.totalorder %s31, 1
        %s469 = scalar_select %p468, %s31, 1
        %p470 = scmp.lt.s32.totalorder %s467, 7
        %s471 = scalar_select %p470, %s467, 7
        %s472 = smul.addr %s469, 8
        %s473 = sadd.s32 %s471, %s472
        %s474 = smul.addr %s473, 4
        %s475 = scalar_lea.vmem %s0, %s474
        %p476 = pneg %p62
        %p477 = pneg %p59
        %p478 = pneg %p83
        %p479 = pneg %p80
        %p480 = pneg %p104
        %p481 = pneg %p101
        %p482 = pneg %p125
        %p483 = pneg %p122
        %p484 = pneg %p146
        %p485 = pneg %p143
        %p486 = pneg %p167
        %p487 = pneg %p164
        %p488 = pneg %p188
        %p489 = pneg %p185
        %p490 = pneg %p209
        %p491 = pneg %p206
        %p492 = pneg %p230
        %p493 = pneg %p227
        %p494 = pneg %p251
        %p495 = pneg %p248
        %p496 = pneg %p272
        %p497 = pneg %p269
        %p498 = pneg %p293
        %p499 = pneg %p290
        %p500 = pneg %p314
        %p501 = pneg %p311
        %p502 = pneg %p335
        %p503 = pneg %p332
        %p504 = pneg %p361
        %p505 = pneg %p358
        %p506 = scmp.lt.s32.totalorder %s31, 1
        %s507 = scalar_select %p506, %s31, 1
        %s508 = smul.addr %s507, 2
        %s509 = smul.addr %s508, 8
        %s510 = scalar_lea.vmem %s14, %s509
        %s511 = smul.u32 8, %s32
        %p512 = scmp.lt.s32.totalorder %s31, 1
        %s513 = scalar_select %p512, %s31, 1
        %p514 = scmp.lt.s32.totalorder %s511, 7
        %s515 = scalar_select %p514, %s511, 7
        %s516 = smul.addr %s513, 8
        %s517 = sadd.s32 %s515, %s516
        %s518 = smul.addr %s517, 4
        %s519 = scalar_lea.vmem %s0, %s518
        %s520 = smul.u32 8, %s32
        %p521 = scmp.lt.s32.totalorder %s31, 1
        %s522 = scalar_select %p521, %s31, 1
        %s523 = smul.addr %s522, 2
        %s524 = smul.addr %s523, 8
        %s525 = scalar_lea.vmem %s14, %s524
        %p527 = scmp.eq.s32.totalorder %s32, 0
        // Predicated region
        $region85: #{tpu_custom_call.1} parent=75 // pred_check
          %p528 = pneg %p527
        $region86: #{tpu_custom_call.1} parent=75 // pred_check_branch
          %530 = sbr.rel (%p528) target = $region88
        $region87: #{tpu_custom_call.1} parent=75 // pred_region
          %531 = vst [vmem:[#allocation2] sm:$0xff] -inf
          %532 = vst [vmem:[#allocation2 + $0x8] sm:$0xff] -inf
          %533 = vst [vmem:[#allocation2 + $0x10] sm:$0xff] -inf
          %534 = vst [vmem:[#allocation2 + $0x18] sm:$0xff] -inf
          %535 = vst [vmem:[#allocation2 + $0x20] sm:$0xff] -inf
          %536 = vst [vmem:[#allocation2 + $0x28] sm:$0xff] -inf
          %537 = vst [vmem:[#allocation2 + $0x30] sm:$0xff] -inf
          %538 = vst [vmem:[#allocation2 + $0x38] sm:$0xff] -inf
          %539 = vst [vmem:[#allocation2 + $0x40] sm:$0xff] -inf
          %540 = vst [vmem:[#allocation2 + $0x48] sm:$0xff] -inf
          %541 = vst [vmem:[#allocation2 + $0x50] sm:$0xff] -inf
          %542 = vst [vmem:[#allocation2 + $0x58] sm:$0xff] -inf
          %543 = vst [vmem:[#allocation2 + $0x60] sm:$0xff] -inf
          %544 = vst [vmem:[#allocation2 + $0x68] sm:$0xff] -inf
          %545 = vst [vmem:[#allocation2 + $0x70] sm:$0xff] -inf
          %546 = vst [vmem:[#allocation2 + $0x78] sm:$0xff] -inf
          %547 = vst [vmem:[#allocation2 + $0x80] sm:$0xff] -inf
          %548 = vst [vmem:[#allocation2 + $0x88] sm:$0xff] -inf
          %549 = vst [vmem:[#allocation2 + $0x90] sm:$0xff] -inf
          %550 = vst [vmem:[#allocation2 + $0x98] sm:$0xff] -inf
          %551 = vst [vmem:[#allocation2 + $0xa0] sm:$0xff] -inf
          %552 = vst [vmem:[#allocation2 + $0xa8] sm:$0xff] -inf
          %553 = vst [vmem:[#allocation2 + $0xb0] sm:$0xff] -inf
          %554 = vst [vmem:[#allocation2 + $0xb8] sm:$0xff] -inf
          %555 = vst [vmem:[#allocation2 + $0xc0] sm:$0xff] -inf
          %556 = vst [vmem:[#allocation2 + $0xc8] sm:$0xff] -inf
          %557 = vst [vmem:[#allocation2 + $0xd0] sm:$0xff] -inf
          %558 = vst [vmem:[#allocation2 + $0xd8] sm:$0xff] -inf
          %559 = vst [vmem:[#allocation2 + $0xe0] sm:$0xff] -inf
          %560 = vst [vmem:[#allocation2 + $0xe8] sm:$0xff] -inf
          %561 = vst [vmem:[#allocation2 + $0xf0] sm:$0xff] -inf
          %562 = vst [vmem:[#allocation2 + $0xf8] sm:$0xff] -inf
          %563 = vst [vmem:[#allocation2 + $0x100] sm:$0xff] -inf
          %564 = vst [vmem:[#allocation2 + $0x108] sm:$0xff] -inf
          %565 = vst [vmem:[#allocation2 + $0x110] sm:$0xff] -inf
          %566 = vst [vmem:[#allocation2 + $0x118] sm:$0xff] -inf
          %567 = vst [vmem:[#allocation2 + $0x120] sm:$0xff] -inf
          %568 = vst [vmem:[#allocation2 + $0x128] sm:$0xff] -inf
          %569 = vst [vmem:[#allocation2 + $0x130] sm:$0xff] -inf
          %570 = vst [vmem:[#allocation2 + $0x138] sm:$0xff] -inf
          %571 = vst [vmem:[#allocation2 + $0x140] sm:$0xff] -inf
          %572 = vst [vmem:[#allocation2 + $0x148] sm:$0xff] -inf
          %573 = vst [vmem:[#allocation2 + $0x150] sm:$0xff] -inf
          %574 = vst [vmem:[#allocation2 + $0x158] sm:$0xff] -inf
          %575 = vst [vmem:[#allocation2 + $0x160] sm:$0xff] -inf
          %576 = vst [vmem:[#allocation2 + $0x168] sm:$0xff] -inf
          %577 = vst [vmem:[#allocation2 + $0x170] sm:$0xff] -inf
          %578 = vst [vmem:[#allocation2 + $0x178] sm:$0xff] -inf
          %579 = vst [vmem:[#allocation2 + $0x180] sm:$0xff] -inf
          %580 = vst [vmem:[#allocation2 + $0x188] sm:$0xff] -inf
          %581 = vst [vmem:[#allocation2 + $0x190] sm:$0xff] -inf
          %582 = vst [vmem:[#allocation2 + $0x198] sm:$0xff] -inf
          %583 = vst [vmem:[#allocation2 + $0x1a0] sm:$0xff] -inf
          %584 = vst [vmem:[#allocation2 + $0x1a8] sm:$0xff] -inf
          %585 = vst [vmem:[#allocation2 + $0x1b0] sm:$0xff] -inf
          %586 = vst [vmem:[#allocation2 + $0x1b8] sm:$0xff] -inf
          %587 = vst [vmem:[#allocation2 + $0x1c0] sm:$0xff] -inf
          %588 = vst [vmem:[#allocation2 + $0x1c8] sm:$0xff] -inf
          %589 = vst [vmem:[#allocation2 + $0x1d0] sm:$0xff] -inf
          %590 = vst [vmem:[#allocation2 + $0x1d8] sm:$0xff] -inf
          %591 = vst [vmem:[#allocation2 + $0x1e0] sm:$0xff] -inf
          %592 = vst [vmem:[#allocation2 + $0x1e8] sm:$0xff] -inf
          %593 = vst [vmem:[#allocation2 + $0x1f0] sm:$0xff] -inf
          %594 = vst [vmem:[#allocation2 + $0x1f8] sm:$0xff] -inf
          %595 = vst [vmem:[#allocation2 + $0x200] sm:$0xff] -inf
          %596 = vst [vmem:[#allocation2 + $0x208] sm:$0xff] -inf
          %597 = vst [vmem:[#allocation2 + $0x210] sm:$0xff] -inf
          %598 = vst [vmem:[#allocation2 + $0x218] sm:$0xff] -inf
          %599 = vst [vmem:[#allocation2 + $0x220] sm:$0xff] -inf
          %600 = vst [vmem:[#allocation2 + $0x228] sm:$0xff] -inf
          %601 = vst [vmem:[#allocation2 + $0x230] sm:$0xff] -inf
          %602 = vst [vmem:[#allocation2 + $0x238] sm:$0xff] -inf
          %603 = vst [vmem:[#allocation2 + $0x240] sm:$0xff] -inf
          %604 = vst [vmem:[#allocation2 + $0x248] sm:$0xff] -inf
          %605 = vst [vmem:[#allocation2 + $0x250] sm:$0xff] -inf
          %606 = vst [vmem:[#allocation2 + $0x258] sm:$0xff] -inf
          %607 = vst [vmem:[#allocation2 + $0x260] sm:$0xff] -inf
          %608 = vst [vmem:[#allocation2 + $0x268] sm:$0xff] -inf
          %609 = vst [vmem:[#allocation2 + $0x270] sm:$0xff] -inf
          %610 = vst [vmem:[#allocation2 + $0x278] sm:$0xff] -inf
          %611 = vst [vmem:[#allocation2 + $0x280] sm:$0xff] -inf
          %612 = vst [vmem:[#allocation2 + $0x288] sm:$0xff] -inf
          %613 = vst [vmem:[#allocation2 + $0x290] sm:$0xff] -inf
          %614 = vst [vmem:[#allocation2 + $0x298] sm:$0xff] -inf
          %615 = vst [vmem:[#allocation2 + $0x2a0] sm:$0xff] -inf
          %616 = vst [vmem:[#allocation2 + $0x2a8] sm:$0xff] -inf
          %617 = vst [vmem:[#allocation2 + $0x2b0] sm:$0xff] -inf
          %618 = vst [vmem:[#allocation2 + $0x2b8] sm:$0xff] -inf
          %619 = vst [vmem:[#allocation2 + $0x2c0] sm:$0xff] -inf
          %620 = vst [vmem:[#allocation2 + $0x2c8] sm:$0xff] -inf
          %621 = vst [vmem:[#allocation2 + $0x2d0] sm:$0xff] -inf
          %622 = vst [vmem:[#allocation2 + $0x2d8] sm:$0xff] -inf
          %623 = vst [vmem:[#allocation2 + $0x2e0] sm:$0xff] -inf
          %624 = vst [vmem:[#allocation2 + $0x2e8] sm:$0xff] -inf
          %625 = vst [vmem:[#allocation2 + $0x2f0] sm:$0xff] -inf
          %626 = vst [vmem:[#allocation2 + $0x2f8] sm:$0xff] -inf
          %627 = vst [vmem:[#allocation2 + $0x300] sm:$0xff] -inf
          %628 = vst [vmem:[#allocation2 + $0x308] sm:$0xff] -inf
          %629 = vst [vmem:[#allocation2 + $0x310] sm:$0xff] -inf
          %630 = vst [vmem:[#allocation2 + $0x318] sm:$0xff] -inf
          %631 = vst [vmem:[#allocation2 + $0x320] sm:$0xff] -inf
          %632 = vst [vmem:[#allocation2 + $0x328] sm:$0xff] -inf
          %633 = vst [vmem:[#allocation2 + $0x330] sm:$0xff] -inf
          %634 = vst [vmem:[#allocation2 + $0x338] sm:$0xff] -inf
          %635 = vst [vmem:[#allocation2 + $0x340] sm:$0xff] -inf
          %636 = vst [vmem:[#allocation2 + $0x348] sm:$0xff] -inf
          %637 = vst [vmem:[#allocation2 + $0x350] sm:$0xff] -inf
          %638 = vst [vmem:[#allocation2 + $0x358] sm:$0xff] -inf
          %639 = vst [vmem:[#allocation2 + $0x360] sm:$0xff] -inf
          %640 = vst [vmem:[#allocation2 + $0x368] sm:$0xff] -inf
          %641 = vst [vmem:[#allocation2 + $0x370] sm:$0xff] -inf
          %642 = vst [vmem:[#allocation2 + $0x378] sm:$0xff] -inf
          %643 = vst [vmem:[#allocation2 + $0x380] sm:$0xff] -inf
          %644 = vst [vmem:[#allocation2 + $0x388] sm:$0xff] -inf
          %645 = vst [vmem:[#allocation2 + $0x390] sm:$0xff] -inf
          %646 = vst [vmem:[#allocation2 + $0x398] sm:$0xff] -inf
          %647 = vst [vmem:[#allocation2 + $0x3a0] sm:$0xff] -inf
          %648 = vst [vmem:[#allocation2 + $0x3a8] sm:$0xff] -inf
          %649 = vst [vmem:[#allocation2 + $0x3b0] sm:$0xff] -inf
          %650 = vst [vmem:[#allocation2 + $0x3b8] sm:$0xff] -inf
          %651 = vst [vmem:[#allocation2 + $0x3c0] sm:$0xff] -inf
          %652 = vst [vmem:[#allocation2 + $0x3c8] sm:$0xff] -inf
          %653 = vst [vmem:[#allocation2 + $0x3d0] sm:$0xff] -inf
          %654 = vst [vmem:[#allocation2 + $0x3d8] sm:$0xff] -inf
          %655 = vst [vmem:[#allocation2 + $0x3e0] sm:$0xff] -inf
          %656 = vst [vmem:[#allocation2 + $0x3e8] sm:$0xff] -inf
          %657 = vst [vmem:[#allocation2 + $0x3f0] sm:$0xff] -inf
          %658 = vst [vmem:[#allocation2 + $0x3f8] sm:$0xff] -inf
        $region88: #{tpu_custom_call.1} parent=75 // pred_fallthru
          _
        %v659 = vld [vmem:[%s519] sm:$0x77]
        %v660 = vld [vmem:[%s519 + $0x8] sm:$0x77]
        %v661 = vld [vmem:[%s519 + $0x10] sm:$0x77]
        %v662 = vld [vmem:[%s519 + $0x18] sm:$0x77]
        %v663 = vld [vmem:[%s1] sm:$0xff]
        %v664 = vld [vmem:[%s1 + $0x8] sm:$0xff]
        %v665 = vld [vmem:[%s1 + $0x10] sm:$0xff]
        %v666 = vld [vmem:[%s1 + $0x18] sm:$0xff]
        %v667 = vld [vmem:[%s1 + $0x20] sm:$0xff]
        %v668 = vld [vmem:[%s1 + $0x28] sm:$0xff]
        %v669 = vld [vmem:[%s1 + $0x30] sm:$0xff]
        %v670 = vld [vmem:[%s1 + $0x38] sm:$0xff]
        %672 = vset.pattern.permute.xlu0 0
        %673 = vperm.xlu0 %672, %v663
        %v674 = vpop.permute.xlu0 %673
        %677 = vset.pattern.permute.xlu0 0
        %678 = vperm.xlu0 %677, %v664
        %v679 = vpop.permute.xlu0 %678
        %682 = vset.pattern.permute.xlu0 0
        %683 = vperm.xlu0 %682, %v665
        %v684 = vpop.permute.xlu0 %683
        %687 = vset.pattern.permute.xlu0 0
        %688 = vperm.xlu0 %687, %v666
        %v689 = vpop.permute.xlu0 %688
        %692 = vset.pattern.permute.xlu0 0
        %693 = vperm.xlu0 %692, %v667
        %v694 = vpop.permute.xlu0 %693
        %697 = vset.pattern.permute.xlu0 0
        %698 = vperm.xlu0 %697, %v668
        %v699 = vpop.permute.xlu0 %698
        %702 = vset.pattern.permute.xlu0 0
        %703 = vperm.xlu0 %702, %v669
        %v704 = vpop.permute.xlu0 %703
        %707 = vset.pattern.permute.xlu0 0
        %708 = vperm.xlu0 %707, %v670
        %v709 = vpop.permute.xlu0 %708
        %v715 = vlaneseq
        %v716 = vshrl.u32 %v715, 7
        %v717 = vsub.s32 0, %v716
        %v718 = vrot.slane %v659, %v717
        %v719 = vlaneseq
        %v720 = vshrl.u32 %v719, 7
        %v721 = vsub.s32 4, %v720
        %v722 = vrot.slane %v659, %v721
        %v723 = vlaneseq
        %v724 = vshrl.u32 %v723, 7
        %v725 = vsub.s32 0, %v724
        %v726 = vrot.slane %v660, %v725
        %v727 = vlaneseq
        %v728 = vshrl.u32 %v727, 7
        %v729 = vsub.s32 4, %v728
        %v730 = vrot.slane %v660, %v729
        %v731 = vlaneseq
        %v732 = vshrl.u32 %v731, 7
        %v733 = vsub.s32 0, %v732
        %v734 = vrot.slane %v661, %v733
        %v735 = vlaneseq
        %v736 = vshrl.u32 %v735, 7
        %v737 = vsub.s32 4, %v736
        %v738 = vrot.slane %v661, %v737
        %v739 = vlaneseq
        %v740 = vshrl.u32 %v739, 7
        %v741 = vsub.s32 0, %v740
        %v742 = vrot.slane %v662, %v741
        %v743 = vlaneseq
        %v744 = vshrl.u32 %v743, 7
        %v745 = vsub.s32 4, %v744
        %v746 = vrot.slane %v662, %v745
        %v755 = vlaneseq
        %v756 = vshrl.u32 %v755, 7
        %v757 = vsub.s32 0, %v756
        %v758 = vrot.slane %v718, %v757
        %v759 = vlaneseq
        %v760 = vshrl.u32 %v759, 7
        %v761 = vsub.s32 0, %v760
        %v762 = vrot.slane %v722, %v761
        %v763 = vlaneseq
        %v764 = vshrl.u32 %v763, 7
        %v765 = vsub.s32 0, %v764
        %v766 = vrot.slane %v726, %v765
        %v767 = vlaneseq
        %v768 = vshrl.u32 %v767, 7
        %v769 = vsub.s32 0, %v768
        %v770 = vrot.slane %v730, %v769
        %v771 = vlaneseq
        %v772 = vshrl.u32 %v771, 7
        %v773 = vsub.s32 0, %v772
        %v774 = vrot.slane %v734, %v773
        %v775 = vlaneseq
        %v776 = vshrl.u32 %v775, 7
        %v777 = vsub.s32 0, %v776
        %v778 = vrot.slane %v738, %v777
        %v779 = vlaneseq
        %v780 = vshrl.u32 %v779, 7
        %v781 = vsub.s32 0, %v780
        %v782 = vrot.slane %v742, %v781
        %v783 = vlaneseq
        %v784 = vshrl.u32 %v783, 7
        %v785 = vsub.s32 0, %v784
        %v786 = vrot.slane %v746, %v785
        %v787 = vmul.f32 %v674, %v758
        %v788 = vmul.f32 %v674, %v762
        %v789 = vmul.f32 %v674, %v766
        %v790 = vmul.f32 %v674, %v770
        %v791 = vmul.f32 %v674, %v774
        %v792 = vmul.f32 %v674, %v778
        %v793 = vmul.f32 %v674, %v782
        %v794 = vmul.f32 %v674, %v786
        %v795 = vmul.f32 %v679, %v758
        %v796 = vmul.f32 %v679, %v762
        %v797 = vmul.f32 %v679, %v766
        %v798 = vmul.f32 %v679, %v770
        %v799 = vmul.f32 %v679, %v774
        %v800 = vmul.f32 %v679, %v778
        %v801 = vmul.f32 %v679, %v782
        %v802 = vmul.f32 %v679, %v786
        %v803 = vmul.f32 %v684, %v758
        %v804 = vmul.f32 %v684, %v762
        %v805 = vmul.f32 %v684, %v766
        %v806 = vmul.f32 %v684, %v770
        %v807 = vmul.f32 %v684, %v774
        %v808 = vmul.f32 %v684, %v778
        %v809 = vmul.f32 %v684, %v782
        %v810 = vmul.f32 %v684, %v786
        %v811 = vmul.f32 %v689, %v758
        %v812 = vmul.f32 %v689, %v762
        %v813 = vmul.f32 %v689, %v766
        %v814 = vmul.f32 %v689, %v770
        %v815 = vmul.f32 %v689, %v774
        %v816 = vmul.f32 %v689, %v778
        %v817 = vmul.f32 %v689, %v782
        %v818 = vmul.f32 %v689, %v786
        %v819 = vmul.f32 %v694, %v758
        %v820 = vmul.f32 %v694, %v762
        %v821 = vmul.f32 %v694, %v766
        %v822 = vmul.f32 %v694, %v770
        %v823 = vmul.f32 %v694, %v774
        %v824 = vmul.f32 %v694, %v778
        %v825 = vmul.f32 %v694, %v782
        %v826 = vmul.f32 %v694, %v786
        %v827 = vmul.f32 %v699, %v758
        %v828 = vmul.f32 %v699, %v762
        %v829 = vmul.f32 %v699, %v766
        %v830 = vmul.f32 %v699, %v770
        %v831 = vmul.f32 %v699, %v774
        %v832 = vmul.f32 %v699, %v778
        %v833 = vmul.f32 %v699, %v782
        %v834 = vmul.f32 %v699, %v786
        %v835 = vmul.f32 %v704, %v758
        %v836 = vmul.f32 %v704, %v762
        %v837 = vmul.f32 %v704, %v766
        %v838 = vmul.f32 %v704, %v770
        %v839 = vmul.f32 %v704, %v774
        %v840 = vmul.f32 %v704, %v778
        %v841 = vmul.f32 %v704, %v782
        %v842 = vmul.f32 %v704, %v786
        %v843 = vmul.f32 %v709, %v758
        %v844 = vmul.f32 %v709, %v762
        %v845 = vmul.f32 %v709, %v766
        %v846 = vmul.f32 %v709, %v770
        %v847 = vmul.f32 %v709, %v774
        %v848 = vmul.f32 %v709, %v778
        %v849 = vmul.f32 %v709, %v782
        %v850 = vmul.f32 %v709, %v786
        %851 = vset.pattern.permute.xlu0 1
        %852 = vperm.xlu0 %851, %v663
        %v853 = vpop.permute.xlu0 %852
        %855 = vset.pattern.permute.xlu0 1
        %856 = vperm.xlu0 %855, %v664
        %v857 = vpop.permute.xlu0 %856
        %859 = vset.pattern.permute.xlu0 1
        %860 = vperm.xlu0 %859, %v665
        %v861 = vpop.permute.xlu0 %860
        %863 = vset.pattern.permute.xlu0 1
        %864 = vperm.xlu0 %863, %v666
        %v865 = vpop.permute.xlu0 %864
        %867 = vset.pattern.permute.xlu0 1
        %868 = vperm.xlu0 %867, %v667
        %v869 = vpop.permute.xlu0 %868
        %871 = vset.pattern.permute.xlu0 1
        %872 = vperm.xlu0 %871, %v668
        %v873 = vpop.permute.xlu0 %872
        %875 = vset.pattern.permute.xlu0 1
        %876 = vperm.xlu0 %875, %v669
        %v877 = vpop.permute.xlu0 %876
        %879 = vset.pattern.permute.xlu0 1
        %880 = vperm.xlu0 %879, %v670
        %v881 = vpop.permute.xlu0 %880
        %v883 = vlaneseq
        %v884 = vshrl.u32 %v883, 7
        %v885 = vsub.s32 1, %v884
        %v886 = vrot.slane %v659, %v885
        %v887 = vlaneseq
        %v888 = vshrl.u32 %v887, 7
        %v889 = vsub.s32 5, %v888
        %v890 = vrot.slane %v659, %v889
        %v891 = vlaneseq
        %v892 = vshrl.u32 %v891, 7
        %v893 = vsub.s32 1, %v892
        %v894 = vrot.slane %v660, %v893
        %v895 = vlaneseq
        %v896 = vshrl.u32 %v895, 7
        %v897 = vsub.s32 5, %v896
        %v898 = vrot.slane %v660, %v897
        %v899 = vlaneseq
        %v900 = vshrl.u32 %v899, 7
        %v901 = vsub.s32 1, %v900
        %v902 = vrot.slane %v661, %v901
        %v903 = vlaneseq
        %v904 = vshrl.u32 %v903, 7
        %v905 = vsub.s32 5, %v904
        %v906 = vrot.slane %v661, %v905
        %v907 = vlaneseq
        %v908 = vshrl.u32 %v907, 7
        %v909 = vsub.s32 1, %v908
        %v910 = vrot.slane %v662, %v909
        %v911 = vlaneseq
        %v912 = vshrl.u32 %v911, 7
        %v913 = vsub.s32 5, %v912
        %v914 = vrot.slane %v662, %v913
        %v923 = vlaneseq
        %v924 = vshrl.u32 %v923, 7
        %v925 = vsub.s32 1, %v924
        %v926 = vrot.slane %v886, %v925
        %v927 = vlaneseq
        %v928 = vshrl.u32 %v927, 7
        %v929 = vsub.s32 1, %v928
        %v930 = vrot.slane %v890, %v929
        %v931 = vlaneseq
        %v932 = vshrl.u32 %v931, 7
        %v933 = vsub.s32 1, %v932
        %v934 = vrot.slane %v894, %v933
        %v935 = vlaneseq
        %v936 = vshrl.u32 %v935, 7
        %v937 = vsub.s32 1, %v936
        %v938 = vrot.slane %v898, %v937
        %v939 = vlaneseq
        %v940 = vshrl.u32 %v939, 7
        %v941 = vsub.s32 1, %v940
        %v942 = vrot.slane %v902, %v941
        %v943 = vlaneseq
        %v944 = vshrl.u32 %v943, 7
        %v945 = vsub.s32 1, %v944
        %v946 = vrot.slane %v906, %v945
        %v947 = vlaneseq
        %v948 = vshrl.u32 %v947, 7
        %v949 = vsub.s32 1, %v948
        %v950 = vrot.slane %v910, %v949
        %v951 = vlaneseq
        %v952 = vshrl.u32 %v951, 7
        %v953 = vsub.s32 1, %v952
        %v954 = vrot.slane %v914, %v953
        %v955 = vmul.f32 %v853, %v926
        %v956 = vmul.f32 %v853, %v930
        %v957 = vmul.f32 %v853, %v934
        %v958 = vmul.f32 %v853, %v938
        %v959 = vmul.f32 %v853, %v942
        %v960 = vmul.f32 %v853, %v946
        %v961 = vmul.f32 %v853, %v950
        %v962 = vmul.f32 %v853, %v954
        %v963 = vmul.f32 %v857, %v926
        %v964 = vmul.f32 %v857, %v930
        %v965 = vmul.f32 %v857, %v934
        %v966 = vmul.f32 %v857, %v938
        %v967 = vmul.f32 %v857, %v942
        %v968 = vmul.f32 %v857, %v946
        %v969 = vmul.f32 %v857, %v950
        %v970 = vmul.f32 %v857, %v954
        %v971 = vmul.f32 %v861, %v926
        %v972 = vmul.f32 %v861, %v930
        %v973 = vmul.f32 %v861, %v934
        %v974 = vmul.f32 %v861, %v938
        %v975 = vmul.f32 %v861, %v942
        %v976 = vmul.f32 %v861, %v946
        %v977 = vmul.f32 %v861, %v950
        %v978 = vmul.f32 %v861, %v954
        %v979 = vmul.f32 %v865, %v926
        %v980 = vmul.f32 %v865, %v930
        %v981 = vmul.f32 %v865, %v934
        %v982 = vmul.f32 %v865, %v938
        %v983 = vmul.f32 %v865, %v942
        %v984 = vmul.f32 %v865, %v946
        %v985 = vmul.f32 %v865, %v950
        %v986 = vmul.f32 %v865, %v954
        %v987 = vmul.f32 %v869, %v926
        %v988 = vmul.f32 %v869, %v930
        %v989 = vmul.f32 %v869, %v934
        %v990 = vmul.f32 %v869, %v938
        %v991 = vmul.f32 %v869, %v942
        %v992 = vmul.f32 %v869, %v946
        %v993 = vmul.f32 %v869, %v950
        %v994 = vmul.f32 %v869, %v954
        %v995 = vmul.f32 %v873, %v926
        %v996 = vmul.f32 %v873, %v930
        %v997 = vmul.f32 %v873, %v934
        %v998 = vmul.f32 %v873, %v938
        %v999 = vmul.f32 %v873, %v942
        %v1000 = vmul.f32 %v873, %v946
        %v1001 = vmul.f32 %v873, %v950
        %v1002 = vmul.f32 %v873, %v954
        %v1003 = vmul.f32 %v877, %v926
        %v1004 = vmul.f32 %v877, %v930
        %v1005 = vmul.f32 %v877, %v934
        %v1006 = vmul.f32 %v877, %v938
        %v1007 = vmul.f32 %v877, %v942
        %v1008 = vmul.f32 %v877, %v946
        %v1009 = vmul.f32 %v877, %v950
        %v1010 = vmul.f32 %v877, %v954
        %v1011 = vmul.f32 %v881, %v926
        %v1012 = vmul.f32 %v881, %v930
        %v1013 = vmul.f32 %v881, %v934
        %v1014 = vmul.f32 %v881, %v938
        %v1015 = vmul.f32 %v881, %v942
        %v1016 = vmul.f32 %v881, %v946
        %v1017 = vmul.f32 %v881, %v950
        %v1018 = vmul.f32 %v881, %v954
        %v1019 = vadd.f32 %v787, %v955
        %v1020 = vadd.f32 %v788, %v956
        %v1021 = vadd.f32 %v789, %v957
        %v1022 = vadd.f32 %v790, %v958
        %v1023 = vadd.f32 %v791, %v959
        %v1024 = vadd.f32 %v792, %v960
        %v1025 = vadd.f32 %v793, %v961
        %v1026 = vadd.f32 %v794, %v962
        %v1027 = vadd.f32 %v795, %v963
        %v1028 = vadd.f32 %v796, %v964
        %v1029 = vadd.f32 %v797, %v965
        %v1030 = vadd.f32 %v798, %v966
        %v1031 = vadd.f32 %v799, %v967
        %v1032 = vadd.f32 %v800, %v968
        %v1033 = vadd.f32 %v801, %v969
        %v1034 = vadd.f32 %v802, %v970
        %v1035 = vadd.f32 %v803, %v971
        %v1036 = vadd.f32 %v804, %v972
        %v1037 = vadd.f32 %v805, %v973
        %v1038 = vadd.f32 %v806, %v974
        %v1039 = vadd.f32 %v807, %v975
        %v1040 = vadd.f32 %v808, %v976
        %v1041 = vadd.f32 %v809, %v977
        %v1042 = vadd.f32 %v810, %v978
        %v1043 = vadd.f32 %v811, %v979
        %v1044 = vadd.f32 %v812, %v980
        %v1045 = vadd.f32 %v813, %v981
        %v1046 = vadd.f32 %v814, %v982
        %v1047 = vadd.f32 %v815, %v983
        %v1048 = vadd.f32 %v816, %v984
        %v1049 = vadd.f32 %v817, %v985
        %v1050 = vadd.f32 %v818, %v986
        %v1051 = vadd.f32 %v819, %v987
        %v1052 = vadd.f32 %v820, %v988
        %v1053 = vadd.f32 %v821, %v989
        %v1054 = vadd.f32 %v822, %v990
        %v1055 = vadd.f32 %v823, %v991
        %v1056 = vadd.f32 %v824, %v992
        %v1057 = vadd.f32 %v825, %v993
        %v1058 = vadd.f32 %v826, %v994
        %v1059 = vadd.f32 %v827, %v995
        %v1060 = vadd.f32 %v828, %v996
        %v1061 = vadd.f32 %v829, %v997
        %v1062 = vadd.f32 %v830, %v998
        %v1063 = vadd.f32 %v831, %v999
        %v1064 = vadd.f32 %v832, %v1000
        %v1065 = vadd.f32 %v833, %v1001
        %v1066 = vadd.f32 %v834, %v1002
        %v1067 = vadd.f32 %v835, %v1003
        %v1068 = vadd.f32 %v836, %v1004
        %v1069 = vadd.f32 %v837, %v1005
        %v1070 = vadd.f32 %v838, %v1006
        %v1071 = vadd.f32 %v839, %v1007
        %v1072 = vadd.f32 %v840, %v1008
        %v1073 = vadd.f32 %v841, %v1009
        %v1074 = vadd.f32 %v842, %v1010
        %v1075 = vadd.f32 %v843, %v1011
        %v1076 = vadd.f32 %v844, %v1012
        %v1077 = vadd.f32 %v845, %v1013
        %v1078 = vadd.f32 %v846, %v1014
        %v1079 = vadd.f32 %v847, %v1015
        %v1080 = vadd.f32 %v848, %v1016
        %v1081 = vadd.f32 %v849, %v1017
        %v1082 = vadd.f32 %v850, %v1018
        %1083 = vset.pattern.permute.xlu0 2
        %1084 = vperm.xlu0 %1083, %v663
        %v1085 = vpop.permute.xlu0 %1084
        %1087 = vset.pattern.permute.xlu0 2
        %1088 = vperm.xlu0 %1087, %v664
        %v1089 = vpop.permute.xlu0 %1088
        %1091 = vset.pattern.permute.xlu0 2
        %1092 = vperm.xlu0 %1091, %v665
        %v1093 = vpop.permute.xlu0 %1092
        %1095 = vset.pattern.permute.xlu0 2
        %1096 = vperm.xlu0 %1095, %v666
        %v1097 = vpop.permute.xlu0 %1096
        %1099 = vset.pattern.permute.xlu0 2
        %1100 = vperm.xlu0 %1099, %v667
        %v1101 = vpop.permute.xlu0 %1100
        %1103 = vset.pattern.permute.xlu0 2
        %1104 = vperm.xlu0 %1103, %v668
        %v1105 = vpop.permute.xlu0 %1104
        %1107 = vset.pattern.permute.xlu0 2
        %1108 = vperm.xlu0 %1107, %v669
        %v1109 = vpop.permute.xlu0 %1108
        %1111 = vset.pattern.permute.xlu0 2
        %1112 = vperm.xlu0 %1111, %v670
        %v1113 = vpop.permute.xlu0 %1112
        %v1115 = vlaneseq
        %v1116 = vshrl.u32 %v1115, 7
        %v1117 = vsub.s32 2, %v1116
        %v1118 = vrot.slane %v659, %v1117
        %v1119 = vlaneseq
        %v1120 = vshrl.u32 %v1119, 7
        %v1121 = vsub.s32 6, %v1120
        %v1122 = vrot.slane %v659, %v1121
        %v1123 = vlaneseq
        %v1124 = vshrl.u32 %v1123, 7
        %v1125 = vsub.s32 2, %v1124
        %v1126 = vrot.slane %v660, %v1125
        %v1127 = vlaneseq
        %v1128 = vshrl.u32 %v1127, 7
        %v1129 = vsub.s32 6, %v1128
        %v1130 = vrot.slane %v660, %v1129
        %v1131 = vlaneseq
        %v1132 = vshrl.u32 %v1131, 7
        %v1133 = vsub.s32 2, %v1132
        %v1134 = vrot.slane %v661, %v1133
        %v1135 = vlaneseq
        %v1136 = vshrl.u32 %v1135, 7
        %v1137 = vsub.s32 6, %v1136
        %v1138 = vrot.slane %v661, %v1137
        %v1139 = vlaneseq
        %v1140 = vshrl.u32 %v1139, 7
        %v1141 = vsub.s32 2, %v1140
        %v1142 = vrot.slane %v662, %v1141
        %v1143 = vlaneseq
        %v1144 = vshrl.u32 %v1143, 7
        %v1145 = vsub.s32 6, %v1144
        %v1146 = vrot.slane %v662, %v1145
        %v1155 = vlaneseq
        %v1156 = vshrl.u32 %v1155, 7
        %v1157 = vsub.s32 2, %v1156
        %v1158 = vrot.slane %v1118, %v1157
        %v1159 = vlaneseq
        %v1160 = vshrl.u32 %v1159, 7
        %v1161 = vsub.s32 2, %v1160
        %v1162 = vrot.slane %v1122, %v1161
        %v1163 = vlaneseq
        %v1164 = vshrl.u32 %v1163, 7
        %v1165 = vsub.s32 2, %v1164
        %v1166 = vrot.slane %v1126, %v1165
        %v1167 = vlaneseq
        %v1168 = vshrl.u32 %v1167, 7
        %v1169 = vsub.s32 2, %v1168
        %v1170 = vrot.slane %v1130, %v1169
        %v1171 = vlaneseq
        %v1172 = vshrl.u32 %v1171, 7
        %v1173 = vsub.s32 2, %v1172
        %v1174 = vrot.slane %v1134, %v1173
        %v1175 = vlaneseq
        %v1176 = vshrl.u32 %v1175, 7
        %v1177 = vsub.s32 2, %v1176
        %v1178 = vrot.slane %v1138, %v1177
        %v1179 = vlaneseq
        %v1180 = vshrl.u32 %v1179, 7
        %v1181 = vsub.s32 2, %v1180
        %v1182 = vrot.slane %v1142, %v1181
        %v1183 = vlaneseq
        %v1184 = vshrl.u32 %v1183, 7
        %v1185 = vsub.s32 2, %v1184
        %v1186 = vrot.slane %v1146, %v1185
        %v1187 = vmul.f32 %v1085, %v1158
        %v1188 = vmul.f32 %v1085, %v1162
        %v1189 = vmul.f32 %v1085, %v1166
        %v1190 = vmul.f32 %v1085, %v1170
        %v1191 = vmul.f32 %v1085, %v1174
        %v1192 = vmul.f32 %v1085, %v1178
        %v1193 = vmul.f32 %v1085, %v1182
        %v1194 = vmul.f32 %v1085, %v1186
        %v1195 = vmul.f32 %v1089, %v1158
        %v1196 = vmul.f32 %v1089, %v1162
        %v1197 = vmul.f32 %v1089, %v1166
        %v1198 = vmul.f32 %v1089, %v1170
        %v1199 = vmul.f32 %v1089, %v1174
        %v1200 = vmul.f32 %v1089, %v1178
        %v1201 = vmul.f32 %v1089, %v1182
        %v1202 = vmul.f32 %v1089, %v1186
        %v1203 = vmul.f32 %v1093, %v1158
        %v1204 = vmul.f32 %v1093, %v1162
        %v1205 = vmul.f32 %v1093, %v1166
        %v1206 = vmul.f32 %v1093, %v1170
        %v1207 = vmul.f32 %v1093, %v1174
        %v1208 = vmul.f32 %v1093, %v1178
        %v1209 = vmul.f32 %v1093, %v1182
        %v1210 = vmul.f32 %v1093, %v1186
        %v1211 = vmul.f32 %v1097, %v1158
        %v1212 = vmul.f32 %v1097, %v1162
        %v1213 = vmul.f32 %v1097, %v1166
        %v1214 = vmul.f32 %v1097, %v1170
        %v1215 = vmul.f32 %v1097, %v1174
        %v1216 = vmul.f32 %v1097, %v1178
        %v1217 = vmul.f32 %v1097, %v1182
        %v1218 = vmul.f32 %v1097, %v1186
        %v1219 = vmul.f32 %v1101, %v1158
        %v1220 = vmul.f32 %v1101, %v1162
        %v1221 = vmul.f32 %v1101, %v1166
        %v1222 = vmul.f32 %v1101, %v1170
        %v1223 = vmul.f32 %v1101, %v1174
        %v1224 = vmul.f32 %v1101, %v1178
        %v1225 = vmul.f32 %v1101, %v1182
        %v1226 = vmul.f32 %v1101, %v1186
        %v1227 = vmul.f32 %v1105, %v1158
        %v1228 = vmul.f32 %v1105, %v1162
        %v1229 = vmul.f32 %v1105, %v1166
        %v1230 = vmul.f32 %v1105, %v1170
        %v1231 = vmul.f32 %v1105, %v1174
        %v1232 = vmul.f32 %v1105, %v1178
        %v1233 = vmul.f32 %v1105, %v1182
        %v1234 = vmul.f32 %v1105, %v1186
        %v1235 = vmul.f32 %v1109, %v1158
        %v1236 = vmul.f32 %v1109, %v1162
        %v1237 = vmul.f32 %v1109, %v1166
        %v1238 = vmul.f32 %v1109, %v1170
        %v1239 = vmul.f32 %v1109, %v1174
        %v1240 = vmul.f32 %v1109, %v1178
        %v1241 = vmul.f32 %v1109, %v1182
        %v1242 = vmul.f32 %v1109, %v1186
        %v1243 = vmul.f32 %v1113, %v1158
        %v1244 = vmul.f32 %v1113, %v1162
        %v1245 = vmul.f32 %v1113, %v1166
        %v1246 = vmul.f32 %v1113, %v1170
        %v1247 = vmul.f32 %v1113, %v1174
        %v1248 = vmul.f32 %v1113, %v1178
        %v1249 = vmul.f32 %v1113, %v1182
        %v1250 = vmul.f32 %v1113, %v1186
        %v1251 = vadd.f32 %v1019, %v1187
        %v1252 = vadd.f32 %v1020, %v1188
        %v1253 = vadd.f32 %v1021, %v1189
        %v1254 = vadd.f32 %v1022, %v1190
        %v1255 = vadd.f32 %v1023, %v1191
        %v1256 = vadd.f32 %v1024, %v1192
        %v1257 = vadd.f32 %v1025, %v1193
        %v1258 = vadd.f32 %v1026, %v1194
        %v1259 = vadd.f32 %v1027, %v1195
        %v1260 = vadd.f32 %v1028, %v1196
        %v1261 = vadd.f32 %v1029, %v1197
        %v1262 = vadd.f32 %v1030, %v1198
        %v1263 = vadd.f32 %v1031, %v1199
        %v1264 = vadd.f32 %v1032, %v1200
        %v1265 = vadd.f32 %v1033, %v1201
        %v1266 = vadd.f32 %v1034, %v1202
        %v1267 = vadd.f32 %v1035, %v1203
        %v1268 = vadd.f32 %v1036, %v1204
        %v1269 = vadd.f32 %v1037, %v1205
        %v1270 = vadd.f32 %v1038, %v1206
        %v1271 = vadd.f32 %v1039, %v1207
        %v1272 = vadd.f32 %v1040, %v1208
        %v1273 = vadd.f32 %v1041, %v1209
        %v1274 = vadd.f32 %v1042, %v1210
        %v1275 = vadd.f32 %v1043, %v1211
        %v1276 = vadd.f32 %v1044, %v1212
        %v1277 = vadd.f32 %v1045, %v1213
        %v1278 = vadd.f32 %v1046, %v1214
        %v1279 = vadd.f32 %v1047, %v1215
        %v1280 = vadd.f32 %v1048, %v1216
        %v1281 = vadd.f32 %v1049, %v1217
        %v1282 = vadd.f32 %v1050, %v1218
        %v1283 = vadd.f32 %v1051, %v1219
        %v1284 = vadd.f32 %v1052, %v1220
        %v1285 = vadd.f32 %v1053, %v1221
        %v1286 = vadd.f32 %v1054, %v1222
        %v1287 = vadd.f32 %v1055, %v1223
        %v1288 = vadd.f32 %v1056, %v1224
        %v1289 = vadd.f32 %v1057, %v1225
        %v1290 = vadd.f32 %v1058, %v1226
        %v1291 = vadd.f32 %v1059, %v1227
        %v1292 = vadd.f32 %v1060, %v1228
        %v1293 = vadd.f32 %v1061, %v1229
        %v1294 = vadd.f32 %v1062, %v1230
        %v1295 = vadd.f32 %v1063, %v1231
        %v1296 = vadd.f32 %v1064, %v1232
        %v1297 = vadd.f32 %v1065, %v1233
        %v1298 = vadd.f32 %v1066, %v1234
        %v1299 = vadd.f32 %v1067, %v1235
        %v1300 = vadd.f32 %v1068, %v1236
        %v1301 = vadd.f32 %v1069, %v1237
        %v1302 = vadd.f32 %v1070, %v1238
        %v1303 = vadd.f32 %v1071, %v1239
        %v1304 = vadd.f32 %v1072, %v1240
        %v1305 = vadd.f32 %v1073, %v1241
        %v1306 = vadd.f32 %v1074, %v1242
        %v1307 = vadd.f32 %v1075, %v1243
        %v1308 = vadd.f32 %v1076, %v1244
        %v1309 = vadd.f32 %v1077, %v1245
        %v1310 = vadd.f32 %v1078, %v1246
        %v1311 = vadd.f32 %v1079, %v1247
        %v1312 = vadd.f32 %v1080, %v1248
        %v1313 = vadd.f32 %v1081, %v1249
        %v1314 = vadd.f32 %v1082, %v1250
        %v1315 = vld [vmem:[%s2] sm:$0xff]
        %v1316 = vld [vmem:[%s2 + $0x8] sm:$0xff]
        %v1317 = vld [vmem:[%s2 + $0x10] sm:$0xff]
        %v1318 = vld [vmem:[%s2 + $0x18] sm:$0xff]
        %v1319 = vld [vmem:[%s2 + $0x20] sm:$0xff]
        %v1320 = vld [vmem:[%s2 + $0x28] sm:$0xff]
        %v1321 = vld [vmem:[%s2 + $0x30] sm:$0xff]
        %v1322 = vld [vmem:[%s2 + $0x38] sm:$0xff]
        %1324 = vset.pattern.permute.xlu0 0
        %1325 = vperm.xlu0 %1324, %v1315
        %v1326 = vpop.permute.xlu0 %1325
        %1329 = vset.pattern.permute.xlu0 0
        %1330 = vperm.xlu0 %1329, %v1316
        %v1331 = vpop.permute.xlu0 %1330
        %1334 = vset.pattern.permute.xlu0 0
        %1335 = vperm.xlu0 %1334, %v1317
        %v1336 = vpop.permute.xlu0 %1335
        %1339 = vset.pattern.permute.xlu0 0
        %1340 = vperm.xlu0 %1339, %v1318
        %v1341 = vpop.permute.xlu0 %1340
        %1344 = vset.pattern.permute.xlu0 0
        %1345 = vperm.xlu0 %1344, %v1319
        %v1346 = vpop.permute.xlu0 %1345
        %1349 = vset.pattern.permute.xlu0 0
        %1350 = vperm.xlu0 %1349, %v1320
        %v1351 = vpop.permute.xlu0 %1350
        %1354 = vset.pattern.permute.xlu0 0
        %1355 = vperm.xlu0 %1354, %v1321
        %v1356 = vpop.permute.xlu0 %1355
        %1359 = vset.pattern.permute.xlu0 0
        %1360 = vperm.xlu0 %1359, %v1322
        %v1361 = vpop.permute.xlu0 %1360
        %v1363 = vadd.f32 %v1251, %v1326
        %v1364 = vadd.f32 %v1252, %v1326
        %v1365 = vadd.f32 %v1253, %v1326
        %v1366 = vadd.f32 %v1254, %v1326
        %v1367 = vadd.f32 %v1255, %v1326
        %v1368 = vadd.f32 %v1256, %v1326
        %v1369 = vadd.f32 %v1257, %v1326
        %v1370 = vadd.f32 %v1258, %v1326
        %v1371 = vadd.f32 %v1259, %v1331
        %v1372 = vadd.f32 %v1260, %v1331
        %v1373 = vadd.f32 %v1261, %v1331
        %v1374 = vadd.f32 %v1262, %v1331
        %v1375 = vadd.f32 %v1263, %v1331
        %v1376 = vadd.f32 %v1264, %v1331
        %v1377 = vadd.f32 %v1265, %v1331
        %v1378 = vadd.f32 %v1266, %v1331
        %v1379 = vadd.f32 %v1267, %v1336
        %v1380 = vadd.f32 %v1268, %v1336
        %v1381 = vadd.f32 %v1269, %v1336
        %v1382 = vadd.f32 %v1270, %v1336
        %v1383 = vadd.f32 %v1271, %v1336
        %v1384 = vadd.f32 %v1272, %v1336
        %v1385 = vadd.f32 %v1273, %v1336
        %v1386 = vadd.f32 %v1274, %v1336
        %v1387 = vadd.f32 %v1275, %v1341
        %v1388 = vadd.f32 %v1276, %v1341
        %v1389 = vadd.f32 %v1277, %v1341
        %v1390 = vadd.f32 %v1278, %v1341
        %v1391 = vadd.f32 %v1279, %v1341
        %v1392 = vadd.f32 %v1280, %v1341
        %v1393 = vadd.f32 %v1281, %v1341
        %v1394 = vadd.f32 %v1282, %v1341
        %v1395 = vadd.f32 %v1283, %v1346
        %v1396 = vadd.f32 %v1284, %v1346
        %v1397 = vadd.f32 %v1285, %v1346
        %v1398 = vadd.f32 %v1286, %v1346
        %v1399 = vadd.f32 %v1287, %v1346
        %v1400 = vadd.f32 %v1288, %v1346
        %v1401 = vadd.f32 %v1289, %v1346
        %v1402 = vadd.f32 %v1290, %v1346
        %v1403 = vadd.f32 %v1291, %v1351
        %v1404 = vadd.f32 %v1292, %v1351
        %v1405 = vadd.f32 %v1293, %v1351
        %v1406 = vadd.f32 %v1294, %v1351
        %v1407 = vadd.f32 %v1295, %v1351
        %v1408 = vadd.f32 %v1296, %v1351
        %v1409 = vadd.f32 %v1297, %v1351
        %v1410 = vadd.f32 %v1298, %v1351
        %v1411 = vadd.f32 %v1299, %v1356
        %v1412 = vadd.f32 %v1300, %v1356
        %v1413 = vadd.f32 %v1301, %v1356
        %v1414 = vadd.f32 %v1302, %v1356
        %v1415 = vadd.f32 %v1303, %v1356
        %v1416 = vadd.f32 %v1304, %v1356
        %v1417 = vadd.f32 %v1305, %v1356
        %v1418 = vadd.f32 %v1306, %v1356
        %v1419 = vadd.f32 %v1307, %v1361
        %v1420 = vadd.f32 %v1308, %v1361
        %v1421 = vadd.f32 %v1309, %v1361
        %v1422 = vadd.f32 %v1310, %v1361
        %v1423 = vadd.f32 %v1311, %v1361
        %v1424 = vadd.f32 %v1312, %v1361
        %v1425 = vadd.f32 %v1313, %v1361
        %v1426 = vadd.f32 %v1314, %v1361
        %v1427 = vmax.f32 %v1363, 0.0
        %v1428 = vmax.f32 %v1364, 0.0
        %v1429 = vmax.f32 %v1365, 0.0
        %v1430 = vmax.f32 %v1366, 0.0
        %v1431 = vmax.f32 %v1367, 0.0
        %v1432 = vmax.f32 %v1368, 0.0
        %v1433 = vmax.f32 %v1369, 0.0
        %v1434 = vmax.f32 %v1370, 0.0
        %v1435 = vmax.f32 %v1371, 0.0
        %v1436 = vmax.f32 %v1372, 0.0
        %v1437 = vmax.f32 %v1373, 0.0
        %v1438 = vmax.f32 %v1374, 0.0
        %v1439 = vmax.f32 %v1375, 0.0
        %v1440 = vmax.f32 %v1376, 0.0
        %v1441 = vmax.f32 %v1377, 0.0
        %v1442 = vmax.f32 %v1378, 0.0
        %v1443 = vmax.f32 %v1379, 0.0
        %v1444 = vmax.f32 %v1380, 0.0
        %v1445 = vmax.f32 %v1381, 0.0
        %v1446 = vmax.f32 %v1382, 0.0
        %v1447 = vmax.f32 %v1383, 0.0
        %v1448 = vmax.f32 %v1384, 0.0
        %v1449 = vmax.f32 %v1385, 0.0
        %v1450 = vmax.f32 %v1386, 0.0
        %v1451 = vmax.f32 %v1387, 0.0
        %v1452 = vmax.f32 %v1388, 0.0
        %v1453 = vmax.f32 %v1389, 0.0
        %v1454 = vmax.f32 %v1390, 0.0
        %v1455 = vmax.f32 %v1391, 0.0
        %v1456 = vmax.f32 %v1392, 0.0
        %v1457 = vmax.f32 %v1393, 0.0
        %v1458 = vmax.f32 %v1394, 0.0
        %v1459 = vmax.f32 %v1395, 0.0
        %v1460 = vmax.f32 %v1396, 0.0
        %v1461 = vmax.f32 %v1397, 0.0
        %v1462 = vmax.f32 %v1398, 0.0
        %v1463 = vmax.f32 %v1399, 0.0
        %v1464 = vmax.f32 %v1400, 0.0
        %v1465 = vmax.f32 %v1401, 0.0
        %v1466 = vmax.f32 %v1402, 0.0
        %v1467 = vmax.f32 %v1403, 0.0
        %v1468 = vmax.f32 %v1404, 0.0
        %v1469 = vmax.f32 %v1405, 0.0
        %v1470 = vmax.f32 %v1406, 0.0
        %v1471 = vmax.f32 %v1407, 0.0
        %v1472 = vmax.f32 %v1408, 0.0
        %v1473 = vmax.f32 %v1409, 0.0
        %v1474 = vmax.f32 %v1410, 0.0
        %v1475 = vmax.f32 %v1411, 0.0
        %v1476 = vmax.f32 %v1412, 0.0
        %v1477 = vmax.f32 %v1413, 0.0
        %v1478 = vmax.f32 %v1414, 0.0
        %v1479 = vmax.f32 %v1415, 0.0
        %v1480 = vmax.f32 %v1416, 0.0
        %v1481 = vmax.f32 %v1417, 0.0
        %v1482 = vmax.f32 %v1418, 0.0
        %v1483 = vmax.f32 %v1419, 0.0
        %v1484 = vmax.f32 %v1420, 0.0
        %v1485 = vmax.f32 %v1421, 0.0
        %v1486 = vmax.f32 %v1422, 0.0
        %v1487 = vmax.f32 %v1423, 0.0
        %v1488 = vmax.f32 %v1424, 0.0
        %v1489 = vmax.f32 %v1425, 0.0
        %v1490 = vmax.f32 %v1426, 0.0
        %v1491 = vld [vmem:[%s3] sm:$0xf]
        %v1492 = vld [vmem:[%s3 + $0x4] sm:$0xf]
        %v1493 = vld [vmem:[%s3 + $0x8] sm:$0xf]
        %v1494 = vld [vmem:[%s3 + $0xc] sm:$0xf]
        %v1495 = vld [vmem:[%s3 + $0x10] sm:$0xf]
        %v1496 = vld [vmem:[%s3 + $0x14] sm:$0xf]
        %v1497 = vld [vmem:[%s3 + $0x18] sm:$0xf]
        %v1498 = vld [vmem:[%s3 + $0x1c] sm:$0xf]
        %v1499 = vld [vmem:[%s3 + $0x20] sm:$0xf]
        %v1500 = vld [vmem:[%s3 + $0x24] sm:$0xf]
        %v1501 = vld [vmem:[%s3 + $0x28] sm:$0xf]
        %v1502 = vld [vmem:[%s3 + $0x2c] sm:$0xf]
        %v1503 = vld [vmem:[%s3 + $0x30] sm:$0xf]
        %v1504 = vld [vmem:[%s3 + $0x34] sm:$0xf]
        %v1505 = vld [vmem:[%s3 + $0x38] sm:$0xf]
        %v1506 = vld [vmem:[%s3 + $0x3c] sm:$0xf]
        %v1507 = vpack.c.bf16 %v1435, %v1427
        %v1508 = vpack.c.bf16 %v1436, %v1428
        %v1509 = vpack.c.bf16 %v1437, %v1429
        %v1510 = vpack.c.bf16 %v1438, %v1430
        %v1511 = vpack.c.bf16 %v1439, %v1431
        %v1512 = vpack.c.bf16 %v1440, %v1432
        %v1513 = vpack.c.bf16 %v1441, %v1433
        %v1514 = vpack.c.bf16 %v1442, %v1434
        %v1515 = vpack.c.bf16 %v1451, %v1443
        %v1516 = vpack.c.bf16 %v1452, %v1444
        %v1517 = vpack.c.bf16 %v1453, %v1445
        %v1518 = vpack.c.bf16 %v1454, %v1446
        %v1519 = vpack.c.bf16 %v1455, %v1447
        %v1520 = vpack.c.bf16 %v1456, %v1448
        %v1521 = vpack.c.bf16 %v1457, %v1449
        %v1522 = vpack.c.bf16 %v1458, %v1450
        %v1523 = vpack.c.bf16 %v1467, %v1459
        %v1524 = vpack.c.bf16 %v1468, %v1460
        %v1525 = vpack.c.bf16 %v1469, %v1461
        %v1526 = vpack.c.bf16 %v1470, %v1462
        %v1527 = vpack.c.bf16 %v1471, %v1463
        %v1528 = vpack.c.bf16 %v1472, %v1464
        %v1529 = vpack.c.bf16 %v1473, %v1465
        %v1530 = vpack.c.bf16 %v1474, %v1466
        %v1531 = vpack.c.bf16 %v1483, %v1475
        %v1532 = vpack.c.bf16 %v1484, %v1476
        %v1533 = vpack.c.bf16 %v1485, %v1477
        %v1534 = vpack.c.bf16 %v1486, %v1478
        %v1535 = vpack.c.bf16 %v1487, %v1479
        %v1536 = vpack.c.bf16 %v1488, %v1480
        %v1537 = vpack.c.bf16 %v1489, %v1481
        %v1538 = vpack.c.bf16 %v1490, %v1482
        %v1539 = vld [vmem:[%s4] sm:$0xff]
        %v1540 = vld [vmem:[%s4 + $0x8] sm:$0xff]
        %v1541 = vld [vmem:[%s4 + $0x10] sm:$0xff]
        %v1542 = vld [vmem:[%s4 + $0x18] sm:$0xff]
        %v1543 = vld [vmem:[%s4 + $0x20] sm:$0xff]
        %v1544 = vld [vmem:[%s4 + $0x28] sm:$0xff]
        %v1545 = vld [vmem:[%s4 + $0x30] sm:$0xff]
        %v1546 = vld [vmem:[%s4 + $0x38] sm:$0xff]
        %v1547 = vld [vmem:[%s4 + $0x40] sm:$0xff]
        %v1548 = vld [vmem:[%s4 + $0x48] sm:$0xff]
        %v1549 = vld [vmem:[%s4 + $0x50] sm:$0xff]
        %v1550 = vld [vmem:[%s4 + $0x58] sm:$0xff]
        %v1551 = vld [vmem:[%s4 + $0x60] sm:$0xff]
        %v1552 = vld [vmem:[%s4 + $0x68] sm:$0xff]
        %v1553 = vld [vmem:[%s4 + $0x70] sm:$0xff]
        %v1554 = vld [vmem:[%s4 + $0x78] sm:$0xff]
        %1556 = vset.pattern.permute.xlu0 0
        %1557 = vperm.xlu0 %1556, %v1539
        %v1558 = vpop.permute.xlu0 %1557
        %1561 = vset.pattern.permute.xlu0 0
        %1562 = vperm.xlu0 %1561, %v1540
        %v1563 = vpop.permute.xlu0 %1562
        %1566 = vset.pattern.permute.xlu0 0
        %1567 = vperm.xlu0 %1566, %v1541
        %v1568 = vpop.permute.xlu0 %1567
        %1571 = vset.pattern.permute.xlu0 0
        %1572 = vperm.xlu0 %1571, %v1542
        %v1573 = vpop.permute.xlu0 %1572
        %1576 = vset.pattern.permute.xlu0 0
        %1577 = vperm.xlu0 %1576, %v1543
        %v1578 = vpop.permute.xlu0 %1577
        %1581 = vset.pattern.permute.xlu0 0
        %1582 = vperm.xlu0 %1581, %v1544
        %v1583 = vpop.permute.xlu0 %1582
        %1586 = vset.pattern.permute.xlu0 0
        %1587 = vperm.xlu0 %1586, %v1545
        %v1588 = vpop.permute.xlu0 %1587
        %1591 = vset.pattern.permute.xlu0 0
        %1592 = vperm.xlu0 %1591, %v1546
        %v1593 = vpop.permute.xlu0 %1592
        %1596 = vset.pattern.permute.xlu0 0
        %1597 = vperm.xlu0 %1596, %v1547
        %v1598 = vpop.permute.xlu0 %1597
        %1601 = vset.pattern.permute.xlu0 0
        %1602 = vperm.xlu0 %1601, %v1548
        %v1603 = vpop.permute.xlu0 %1602
        %1606 = vset.pattern.permute.xlu0 0
        %1607 = vperm.xlu0 %1606, %v1549
        %v1608 = vpop.permute.xlu0 %1607
        %1611 = vset.pattern.permute.xlu0 0
        %1612 = vperm.xlu0 %1611, %v1550
        %v1613 = vpop.permute.xlu0 %1612
        %1616 = vset.pattern.permute.xlu0 0
        %1617 = vperm.xlu0 %1616, %v1551
        %v1618 = vpop.permute.xlu0 %1617
        %1621 = vset.pattern.permute.xlu0 0
        %1622 = vperm.xlu0 %1621, %v1552
        %v1623 = vpop.permute.xlu0 %1622
        %1626 = vset.pattern.permute.xlu0 0
        %1627 = vperm.xlu0 %1626, %v1553
        %v1628 = vpop.permute.xlu0 %1627
        %1631 = vset.pattern.permute.xlu0 0
        %1632 = vperm.xlu0 %1631, %v1554
        %v1633 = vpop.permute.xlu0 %1632
        %v1651 = vunpack.c.l.b16 %v1491
        %v1652 = vunpack.c.l.b16 %v1492
        %v1653 = vunpack.c.l.b16 %v1493
        %v1654 = vunpack.c.l.b16 %v1494
        %v1655 = vunpack.c.l.b16 %v1495
        %v1656 = vunpack.c.l.b16 %v1496
        %v1657 = vunpack.c.l.b16 %v1497
        %v1658 = vunpack.c.l.b16 %v1498
        %v1659 = vunpack.c.l.b16 %v1499
        %v1660 = vunpack.c.l.b16 %v1500
        %v1661 = vunpack.c.l.b16 %v1501
        %v1662 = vunpack.c.l.b16 %v1502
        %v1663 = vunpack.c.l.b16 %v1503
        %v1664 = vunpack.c.l.b16 %v1504
        %v1665 = vunpack.c.l.b16 %v1505
        %v1666 = vunpack.c.l.b16 %v1506
        %v1667 = vpack.c.b16 %v1652, %v1651
        %v1668 = vpack.c.b16 %v1654, %v1653
        %v1669 = vpack.c.b16 %v1656, %v1655
        %v1670 = vpack.c.b16 %v1658, %v1657
        %v1671 = vpack.c.b16 %v1660, %v1659
        %v1672 = vpack.c.b16 %v1662, %v1661
        %v1673 = vpack.c.b16 %v1664, %v1663
        %v1674 = vpack.c.b16 %v1666, %v1665
        %vm1675 = vcmask 523264
        %v1677 = vsel %vm1675, %v1667, 0
        %v1680 = vsel %vm1675, %v1668, 0
        %v1683 = vsel %vm1675, %v1669, 0
        %v1686 = vsel %vm1675, %v1670, 0
        %v1689 = vsel %vm1675, %v1671, 0
        %v1692 = vsel %vm1675, %v1672, 0
        %v1695 = vsel %vm1675, %v1673, 0
        %v1698 = vsel %vm1675, %v1674, 0
        %1700 = vmatprep.subr.bf16.mxu0 %v1508
        %1701 = vmatpush1.bf16.msra.mxu0 %v1507
        %1702 = vmatprep.subr.bf16.mxu0 %v1516
        %1703 = vmatpush1.bf16.msra.mxu0 %v1515
        %1704 = vmatprep.subr.bf16.mxu0 %v1524
        %1705 = vmatpush1.bf16.msra.mxu0 %v1523
        %1706 = vmatprep.subr.bf16.mxu0 %v1532
        %1707 = vmatpush1.bf16.msra.mxu0 %v1531
        %1708 = vmatprep.subr.bf16.mxu0 0
        %1709 = vmatpush1.bf16.msra.mxu0 0
        %1710 = vmatprep.subr.bf16.mxu0 0
        %1711 = vmatpush1.bf16.msra.mxu0 0
        %1712 = vmatprep.subr.bf16.mxu0 0
        %1713 = vmatpush1.bf16.msra.mxu0 0
        %1714 = vmatprep.subr.bf16.mxu0 0
        %1715 = vmatpush1.bf16.msra.mxu0 0
        %1716 = vmatprep.subr.bf16.mxu0 0
        %1717 = vmatpush1.bf16.msra.mxu0 0
        %1718 = vmatprep.subr.bf16.mxu0 0
        %1719 = vmatpush1.bf16.msra.mxu0 0
        %1720 = vmatprep.subr.bf16.mxu0 0
        %1721 = vmatpush1.bf16.msra.mxu0 0
        %1722 = vmatprep.subr.bf16.mxu0 0
        %1723 = vmatpush1.bf16.msra.mxu0 0
        %1724 = vmatprep.subr.bf16.mxu0 0
        %1725 = vmatpush1.bf16.msra.mxu0 0
        %1726 = vmatprep.subr.bf16.mxu0 0
        %1727 = vmatpush1.bf16.msra.mxu0 0
        %1728 = vmatprep.subr.bf16.mxu0 0
        %1729 = vmatpush1.bf16.msra.mxu0 0
        %1730 = vmatprep.subr.bf16.mxu0 0
        %1731 = vmatpush1.bf16.msra.mxu0 0
        %1732 = vmatprep.mubr.bf16.mxu0 0
        %1733 = vmatmul.mubr.bf16.gmra.mrb[0].mxu0 %v1677
        %v1734 = vpop.f32.mrb[0].mxu0
        %v1735 = vadd.f32 %v1558, %v1734
        %v1736 = vpop.f32.mrb[0].mxu0
        %v1737 = vadd.f32 %v1558, %v1736
        %v1738 = vpop.f32.mrb[0].mxu0
        %v1739 = vadd.f32 %v1563, %v1738
        %v1740 = vpop.f32.mrb[0].mxu0
        %v1741 = vadd.f32 %v1563, %v1740
        %1742 = vmatprep.mubr.bf16.mxu0 0
        %1743 = vmatmul.mubr.bf16.gmra.mrb[0].mxu0 %v1680
        %v1744 = vpop.f32.mrb[0].mxu0
        %v1745 = vadd.f32 %v1568, %v1744
        %v1746 = vpop.f32.mrb[0].mxu0
        %v1747 = vadd.f32 %v1568, %v1746
        %v1748 = vpop.f32.mrb[0].mxu0
        %v1749 = vadd.f32 %v1573, %v1748
        %v1750 = vpop.f32.mrb[0].mxu0
        %v1751 = vadd.f32 %v1573, %v1750
        %1752 = vmatprep.mubr.bf16.mxu0 0
        %1753 = vmatmul.mubr.bf16.gmra.mrb[0].mxu0 %v1683
        %v1754 = vpop.f32.mrb[0].mxu0
        %v1755 = vadd.f32 %v1578, %v1754
        %v1756 = vpop.f32.mrb[0].mxu0
        %v1757 = vadd.f32 %v1578, %v1756
        %v1758 = vpop.f32.mrb[0].mxu0
        %v1759 = vadd.f32 %v1583, %v1758
        %v1760 = vpop.f32.mrb[0].mxu0
        %v1761 = vadd.f32 %v1583, %v1760
        %1762 = vmatprep.mubr.bf16.mxu0 0
        %1763 = vmatmul.mubr.bf16.gmra.mrb[0].mxu0 %v1686
        %v1764 = vpop.f32.mrb[0].mxu0
        %v1765 = vadd.f32 %v1588, %v1764
        %v1766 = vpop.f32.mrb[0].mxu0
        %v1767 = vadd.f32 %v1588, %v1766
        %v1768 = vpop.f32.mrb[0].mxu0
        %v1769 = vadd.f32 %v1593, %v1768
        %v1770 = vpop.f32.mrb[0].mxu0
        %v1771 = vadd.f32 %v1593, %v1770
        %1772 = vmatprep.mubr.bf16.mxu0 0
        %1773 = vmatmul.mubr.bf16.gmra.mrb[0].mxu0 %v1689
        %v1774 = vpop.f32.mrb[0].mxu0
        %v1775 = vadd.f32 %v1598, %v1774
        %v1776 = vpop.f32.mrb[0].mxu0
        %v1777 = vadd.f32 %v1598, %v1776
        %v1778 = vpop.f32.mrb[0].mxu0
        %v1779 = vadd.f32 %v1603, %v1778
        %v1780 = vpop.f32.mrb[0].mxu0
        %v1781 = vadd.f32 %v1603, %v1780
        %1782 = vmatprep.mubr.bf16.mxu0 0
        %1783 = vmatmul.mubr.bf16.gmra.mrb[0].mxu0 %v1692
        %v1784 = vpop.f32.mrb[0].mxu0
        %v1785 = vadd.f32 %v1608, %v1784
        %v1786 = vpop.f32.mrb[0].mxu0
        %v1787 = vadd.f32 %v1608, %v1786
        %v1788 = vpop.f32.mrb[0].mxu0
        %v1789 = vadd.f32 %v1613, %v1788
        %v1790 = vpop.f32.mrb[0].mxu0
        %v1791 = vadd.f32 %v1613, %v1790
        %1792 = vmatprep.mubr.bf16.mxu0 0
        %1793 = vmatmul.mubr.bf16.gmra.mrb[0].mxu0 %v1695
        %v1794 = vpop.f32.mrb[0].mxu0
        %v1795 = vadd.f32 %v1618, %v1794
        %v1796 = vpop.f32.mrb[0].mxu0
        %v1797 = vadd.f32 %v1618, %v1796
        %v1798 = vpop.f32.mrb[0].mxu0
        %v1799 = vadd.f32 %v1623, %v1798
        %v1800 = vpop.f32.mrb[0].mxu0
        %v1801 = vadd.f32 %v1623, %v1800
        %1802 = vmatprep.mubr.bf16.mxu0 0
        %1803 = vmatmul.mubr.bf16.gmra.mrb[0].mxu0 %v1698
        %v1804 = vpop.f32.mrb[0].mxu0
        %v1805 = vadd.f32 %v1628, %v1804
        %v1806 = vpop.f32.mrb[0].mxu0
        %v1807 = vadd.f32 %v1628, %v1806
        %v1808 = vpop.f32.mrb[0].mxu0
        %v1809 = vadd.f32 %v1633, %v1808
        %v1810 = vpop.f32.mrb[0].mxu0
        %v1811 = vadd.f32 %v1633, %v1810
        %1812 = vdwg.mxu0
        %1813 = vmatprep.subr.bf16.mxu0 %v1510
        %1814 = vmatpush1.bf16.msra.mxu0 %v1509
        %1815 = vmatprep.subr.bf16.mxu0 %v1518
        %1816 = vmatpush1.bf16.msra.mxu0 %v1517
        %1817 = vmatprep.subr.bf16.mxu0 %v1526
        %1818 = vmatpush1.bf16.msra.mxu0 %v1525
        %1819 = vmatprep.subr.bf16.mxu0 %v1534
        %1820 = vmatpush1.bf16.msra.mxu0 %v1533
        %1821 = vmatprep.subr.bf16.mxu0 0
        %1822 = vmatpush1.bf16.msra.mxu0 0
        %1823 = vmatprep.subr.bf16.mxu0 0
        %1824 = vmatpush1.bf16.msra.mxu0 0
        %1825 = vmatprep.subr.bf16.mxu0 0
        %1826 = vmatpush1.bf16.msra.mxu0 0
        %1827 = vmatprep.subr.bf16.mxu0 0
        %1828 = vmatpush1.bf16.msra.mxu0 0
        %1829 = vmatprep.subr.bf16.mxu0 0
        %1830 = vmatpush1.bf16.msra.mxu0 0
        %1831 = vmatprep.subr.bf16.mxu0 0
        %1832 = vmatpush1.bf16.msra.mxu0 0
        %1833 = vmatprep.subr.bf16.mxu0 0
        %1834 = vmatpush1.bf16.msra.mxu0 0
        %1835 = vmatprep.subr.bf16.mxu0 0
        %1836 = vmatpush1.bf16.msra.mxu0 0
        %1837 = vmatprep.subr.bf16.mxu0 0
        %1838 = vmatpush1.bf16.msra.mxu0 0
        %1839 = vmatprep.subr.bf16.mxu0 0
        %1840 = vmatpush1.bf16.msra.mxu0 0
        %1841 = vmatprep.subr.bf16.mxu0 0
        %1842 = vmatpush1.bf16.msra.mxu0 0
        %1843 = vmatprep.subr.bf16.mxu0 0
        %1844 = vmatpush1.bf16.msra.mxu0 0
        %1845 = vmatprep.mubr.bf16.mxu0 0
        %1846 = vmatmul.mubr.bf16.gmra.mrb[0].mxu0 %v1677
        %v1847 = vpop.f32.mrb[0].mxu0
        %v1848 = vadd.f32 %v1558, %v1847
        %v1849 = vpop.f32.mrb[0].mxu0
        %v1850 = vadd.f32 %v1558, %v1849
        %v1851 = vpop.f32.mrb[0].mxu0
        %v1852 = vadd.f32 %v1563, %v1851
        %v1853 = vpop.f32.mrb[0].mxu0
        %v1854 = vadd.f32 %v1563, %v1853
        %1855 = vmatprep.mubr.bf16.mxu0 0
        %1856 = vmatmul.mubr.bf16.gmra.mrb[0].mxu0 %v1680
        %v1857 = vpop.f32.mrb[0].mxu0
        %v1858 = vadd.f32 %v1568, %v1857
        %v1859 = vpop.f32.mrb[0].mxu0
        %v1860 = vadd.f32 %v1568, %v1859
        %v1861 = vpop.f32.mrb[0].mxu0
        %v1862 = vadd.f32 %v1573, %v1861
        %v1863 = vpop.f32.mrb[0].mxu0
        %v1864 = vadd.f32 %v1573, %v1863
        %1865 = vmatprep.mubr.bf16.mxu0 0
        %1866 = vmatmul.mubr.bf16.gmra.mrb[0].mxu0 %v1683
        %v1867 = vpop.f32.mrb[0].mxu0
        %v1868 = vadd.f32 %v1578, %v1867
        %v1869 = vpop.f32.mrb[0].mxu0
        %v1870 = vadd.f32 %v1578, %v1869
        %v1871 = vpop.f32.mrb[0].mxu0
        %v1872 = vadd.f32 %v1583, %v1871
        %v1873 = vpop.f32.mrb[0].mxu0
        %v1874 = vadd.f32 %v1583, %v1873
        %1875 = vmatprep.mubr.bf16.mxu0 0
        %1876 = vmatmul.mubr.bf16.gmra.mrb[0].mxu0 %v1686
        %v1877 = vpop.f32.mrb[0].mxu0
        %v1878 = vadd.f32 %v1588, %v1877
        %v1879 = vpop.f32.mrb[0].mxu0
        %v1880 = vadd.f32 %v1588, %v1879
        %v1881 = vpop.f32.mrb[0].mxu0
        %v1882 = vadd.f32 %v1593, %v1881
        %v1883 = vpop.f32.mrb[0].mxu0
        %v1884 = vadd.f32 %v1593, %v1883
        %1885 = vmatprep.mubr.bf16.mxu0 0
        %1886 = vmatmul.mubr.bf16.gmra.mrb[0].mxu0 %v1689
        %v1887 = vpop.f32.mrb[0].mxu0
        %v1888 = vadd.f32 %v1598, %v1887
        %v1889 = vpop.f32.mrb[0].mxu0
        %v1890 = vadd.f32 %v1598, %v1889
        %v1891 = vpop.f32.mrb[0].mxu0
        %v1892 = vadd.f32 %v1603, %v1891
        %v1893 = vpop.f32.mrb[0].mxu0
        %v1894 = vadd.f32 %v1603, %v1893
        %1895 = vmatprep.mubr.bf16.mxu0 0
        %1896 = vmatmul.mubr.bf16.gmra.mrb[0].mxu0 %v1692
        %v1897 = vpop.f32.mrb[0].mxu0
        %v1898 = vadd.f32 %v1608, %v1897
        %v1899 = vpop.f32.mrb[0].mxu0
        %v1900 = vadd.f32 %v1608, %v1899
        %v1901 = vpop.f32.mrb[0].mxu0
        %v1902 = vadd.f32 %v1613, %v1901
        %v1903 = vpop.f32.mrb[0].mxu0
        %v1904 = vadd.f32 %v1613, %v1903
        %1905 = vmatprep.mubr.bf16.mxu0 0
        %1906 = vmatmul.mubr.bf16.gmra.mrb[0].mxu0 %v1695
        %v1907 = vpop.f32.mrb[0].mxu0
        %v1908 = vadd.f32 %v1618, %v1907
        %v1909 = vpop.f32.mrb[0].mxu0
        %v1910 = vadd.f32 %v1618, %v1909
        %v1911 = vpop.f32.mrb[0].mxu0
        %v1912 = vadd.f32 %v1623, %v1911
        %v1913 = vpop.f32.mrb[0].mxu0
        %v1914 = vadd.f32 %v1623, %v1913
        %1915 = vmatprep.mubr.bf16.mxu0 0
        %1916 = vmatmul.mubr.bf16.gmra.mrb[0].mxu0 %v1698
        %v1917 = vpop.f32.mrb[0].mxu0
        %v1918 = vadd.f32 %v1628, %v1917
        %v1919 = vpop.f32.mrb[0].mxu0
        %v1920 = vadd.f32 %v1628, %v1919
        %v1921 = vpop.f32.mrb[0].mxu0
        %v1922 = vadd.f32 %v1633, %v1921
        %v1923 = vpop.f32.mrb[0].mxu0
        %v1924 = vadd.f32 %v1633, %v1923
        %1925 = vdwg.mxu0
        %1926 = vmatprep.subr.bf16.mxu0 %v1512
        %1927 = vmatpush1.bf16.msra.mxu0 %v1511
        %1928 = vmatprep.subr.bf16.mxu0 %v1520
        %1929 = vmatpush1.bf16.msra.mxu0 %v1519
        %1930 = vmatprep.subr.bf16.mxu0 %v1528
        %1931 = vmatpush1.bf16.msra.mxu0 %v1527
        %1932 = vmatprep.subr.bf16.mxu0 %v1536
        %1933 = vmatpush1.bf16.msra.mxu0 %v1535
        %1934 = vmatprep.subr.bf16.mxu0 0
        %1935 = vmatpush1.bf16.msra.mxu0 0
        %1936 = vmatprep.subr.bf16.mxu0 0
        %1937 = vmatpush1.bf16.msra.mxu0 0
        %1938 = vmatprep.subr.bf16.mxu0 0
        %1939 = vmatpush1.bf16.msra.mxu0 0
        %1940 = vmatprep.subr.bf16.mxu0 0
        %1941 = vmatpush1.bf16.msra.mxu0 0
        %1942 = vmatprep.subr.bf16.mxu0 0
        %1943 = vmatpush1.bf16.msra.mxu0 0
        %1944 = vmatprep.subr.bf16.mxu0 0
        %1945 = vmatpush1.bf16.msra.mxu0 0
        %1946 = vmatprep.subr.bf16.mxu0 0
        %1947 = vmatpush1.bf16.msra.mxu0 0
        %1948 = vmatprep.subr.bf16.mxu0 0
        %1949 = vmatpush1.bf16.msra.mxu0 0
        %1950 = vmatprep.subr.bf16.mxu0 0
        %1951 = vmatpush1.bf16.msra.mxu0 0
        %1952 = vmatprep.subr.bf16.mxu0 0
        %1953 = vmatpush1.bf16.msra.mxu0 0
        %1954 = vmatprep.subr.bf16.mxu0 0
        %1955 = vmatpush1.bf16.msra.mxu0 0
        %1956 = vmatprep.subr.bf16.mxu0 0
        %1957 = vmatpush1.bf16.msra.mxu0 0
        %1958 = vmatprep.mubr.bf16.mxu0 0
        %1959 = vmatmul.mubr.bf16.gmra.mrb[0].mxu0 %v1677
        %v1960 = vpop.f32.mrb[0].mxu0
        %v1961 = vadd.f32 %v1558, %v1960
        %v1962 = vpop.f32.mrb[0].mxu0
        %v1963 = vadd.f32 %v1558, %v1962
        %v1964 = vpop.f32.mrb[0].mxu0
        %v1965 = vadd.f32 %v1563, %v1964
        %v1966 = vpop.f32.mrb[0].mxu0
        %v1967 = vadd.f32 %v1563, %v1966
        %1968 = vmatprep.mubr.bf16.mxu0 0
        %1969 = vmatmul.mubr.bf16.gmra.mrb[0].mxu0 %v1680
        %v1970 = vpop.f32.mrb[0].mxu0
        %v1971 = vadd.f32 %v1568, %v1970
        %v1972 = vpop.f32.mrb[0].mxu0
        %v1973 = vadd.f32 %v1568, %v1972
        %v1974 = vpop.f32.mrb[0].mxu0
        %v1975 = vadd.f32 %v1573, %v1974
        %v1976 = vpop.f32.mrb[0].mxu0
        %v1977 = vadd.f32 %v1573, %v1976
        %1978 = vmatprep.mubr.bf16.mxu0 0
        %1979 = vmatmul.mubr.bf16.gmra.mrb[0].mxu0 %v1683
        %v1980 = vpop.f32.mrb[0].mxu0
        %v1981 = vadd.f32 %v1578, %v1980
        %v1982 = vpop.f32.mrb[0].mxu0
        %v1983 = vadd.f32 %v1578, %v1982
        %v1984 = vpop.f32.mrb[0].mxu0
        %v1985 = vadd.f32 %v1583, %v1984
        %v1986 = vpop.f32.mrb[0].mxu0
        %v1987 = vadd.f32 %v1583, %v1986
        %1988 = vmatprep.mubr.bf16.mxu0 0
        %1989 = vmatmul.mubr.bf16.gmra.mrb[0].mxu0 %v1686
        %v1990 = vpop.f32.mrb[0].mxu0
        %v1991 = vadd.f32 %v1588, %v1990
        %v1992 = vpop.f32.mrb[0].mxu0
        %v1993 = vadd.f32 %v1588, %v1992
        %v1994 = vpop.f32.mrb[0].mxu0
        %v1995 = vadd.f32 %v1593, %v1994
        %v1996 = vpop.f32.mrb[0].mxu0
        %v1997 = vadd.f32 %v1593, %v1996
        %1998 = vmatprep.mubr.bf16.mxu0 0
        %1999 = vmatmul.mubr.bf16.gmra.mrb[0].mxu0 %v1689
        %v2000 = vpop.f32.mrb[0].mxu0
        %v2001 = vadd.f32 %v1598, %v2000
        %v2002 = vpop.f32.mrb[0].mxu0
        %v2003 = vadd.f32 %v1598, %v2002
        %v2004 = vpop.f32.mrb[0].mxu0
        %v2005 = vadd.f32 %v1603, %v2004
        %v2006 = vpop.f32.mrb[0].mxu0
        %v2007 = vadd.f32 %v1603, %v2006
        %2008 = vmatprep.mubr.bf16.mxu0 0
        %2009 = vmatmul.mubr.bf16.gmra.mrb[0].mxu0 %v1692
        %v2010 = vpop.f32.mrb[0].mxu0
        %v2011 = vadd.f32 %v1608, %v2010
        %v2012 = vpop.f32.mrb[0].mxu0
        %v2013 = vadd.f32 %v1608, %v2012
        %v2014 = vpop.f32.mrb[0].mxu0
        %v2015 = vadd.f32 %v1613, %v2014
        %v2016 = vpop.f32.mrb[0].mxu0
        %v2017 = vadd.f32 %v1613, %v2016
        %2018 = vmatprep.mubr.bf16.mxu0 0
        %2019 = vmatmul.mubr.bf16.gmra.mrb[0].mxu0 %v1695
        %v2020 = vpop.f32.mrb[0].mxu0
        %v2021 = vadd.f32 %v1618, %v2020
        %v2022 = vpop.f32.mrb[0].mxu0
        %v2023 = vadd.f32 %v1618, %v2022
        %v2024 = vpop.f32.mrb[0].mxu0
        %v2025 = vadd.f32 %v1623, %v2024
        %v2026 = vpop.f32.mrb[0].mxu0
        %v2027 = vadd.f32 %v1623, %v2026
        %2028 = vmatprep.mubr.bf16.mxu0 0
        %2029 = vmatmul.mubr.bf16.gmra.mrb[0].mxu0 %v1698
        %v2030 = vpop.f32.mrb[0].mxu0
        %v2031 = vadd.f32 %v1628, %v2030
        %v2032 = vpop.f32.mrb[0].mxu0
        %v2033 = vadd.f32 %v1628, %v2032
        %v2034 = vpop.f32.mrb[0].mxu0
        %v2035 = vadd.f32 %v1633, %v2034
        %v2036 = vpop.f32.mrb[0].mxu0
        %v2037 = vadd.f32 %v1633, %v2036
        %2038 = vdwg.mxu0
        %2039 = vmatprep.subr.bf16.mxu0 %v1514
        %2040 = vmatpush1.bf16.msra.mxu0 %v1513
        %2041 = vmatprep.subr.bf16.mxu0 %v1522
        %2042 = vmatpush1.bf16.msra.mxu0 %v1521
        %2043 = vmatprep.subr.bf16.mxu0 %v1530
        %2044 = vmatpush1.bf16.msra.mxu0 %v1529
        %2045 = vmatprep.subr.bf16.mxu0 %v1538
        %2046 = vmatpush1.bf16.msra.mxu0 %v1537
        %2047 = vmatprep.subr.bf16.mxu0 0
        %2048 = vmatpush1.bf16.msra.mxu0 0
        %2049 = vmatprep.subr.bf16.mxu0 0
        %2050 = vmatpush1.bf16.msra.mxu0 0
        %2051 = vmatprep.subr.bf16.mxu0 0
        %2052 = vmatpush1.bf16.msra.mxu0 0
        %2053 = vmatprep.subr.bf16.mxu0 0
        %2054 = vmatpush1.bf16.msra.mxu0 0
        %2055 = vmatprep.subr.bf16.mxu0 0
        %2056 = vmatpush1.bf16.msra.mxu0 0
        %2057 = vmatprep.subr.bf16.mxu0 0
        %2058 = vmatpush1.bf16.msra.mxu0 0
        %2059 = vmatprep.subr.bf16.mxu0 0
        %2060 = vmatpush1.bf16.msra.mxu0 0
        %2061 = vmatprep.subr.bf16.mxu0 0
        %2062 = vmatpush1.bf16.msra.mxu0 0
        %2063 = vmatprep.subr.bf16.mxu0 0
        %2064 = vmatpush1.bf16.msra.mxu0 0
        %2065 = vmatprep.subr.bf16.mxu0 0
        %2066 = vmatpush1.bf16.msra.mxu0 0
        %2067 = vmatprep.subr.bf16.mxu0 0
        %2068 = vmatpush1.bf16.msra.mxu0 0
        %2069 = vmatprep.subr.bf16.mxu0 0
        %2070 = vmatpush1.bf16.msra.mxu0 0
        %2071 = vmatprep.mubr.bf16.mxu0 0
        %2072 = vmatmul.mubr.bf16.gmra.mrb[0].mxu0 %v1677
        %v2073 = vpop.f32.mrb[0].mxu0
        %v2074 = vadd.f32 %v1558, %v2073
        %v2075 = vpop.f32.mrb[0].mxu0
        %v2076 = vadd.f32 %v1558, %v2075
        %v2077 = vpop.f32.mrb[0].mxu0
        %v2078 = vadd.f32 %v1563, %v2077
        %v2079 = vpop.f32.mrb[0].mxu0
        %v2080 = vadd.f32 %v1563, %v2079
        %2081 = vmatprep.mubr.bf16.mxu0 0
        %2082 = vmatmul.mubr.bf16.gmra.mrb[0].mxu0 %v1680
        %v2083 = vpop.f32.mrb[0].mxu0
        %v2084 = vadd.f32 %v1568, %v2083
        %v2085 = vpop.f32.mrb[0].mxu0
        %v2086 = vadd.f32 %v1568, %v2085
        %v2087 = vpop.f32.mrb[0].mxu0
        %v2088 = vadd.f32 %v1573, %v2087
        %v2089 = vpop.f32.mrb[0].mxu0
        %v2090 = vadd.f32 %v1573, %v2089
        %2091 = vmatprep.mubr.bf16.mxu0 0
        %2092 = vmatmul.mubr.bf16.gmra.mrb[0].mxu0 %v1683
        %v2093 = vpop.f32.mrb[0].mxu0
        %v2094 = vadd.f32 %v1578, %v2093
        %v2095 = vpop.f32.mrb[0].mxu0
        %v2096 = vadd.f32 %v1578, %v2095
        %v2097 = vpop.f32.mrb[0].mxu0
        %v2098 = vadd.f32 %v1583, %v2097
        %v2099 = vpop.f32.mrb[0].mxu0
        %v2100 = vadd.f32 %v1583, %v2099
        %2101 = vmatprep.mubr.bf16.mxu0 0
        %2102 = vmatmul.mubr.bf16.gmra.mrb[0].mxu0 %v1686
        %v2103 = vpop.f32.mrb[0].mxu0
        %v2104 = vadd.f32 %v1588, %v2103
        %v2105 = vpop.f32.mrb[0].mxu0
        %v2106 = vadd.f32 %v1588, %v2105
        %v2107 = vpop.f32.mrb[0].mxu0
        %v2108 = vadd.f32 %v1593, %v2107
        %v2109 = vpop.f32.mrb[0].mxu0
        %v2110 = vadd.f32 %v1593, %v2109
        %2111 = vmatprep.mubr.bf16.mxu0 0
        %2112 = vmatmul.mubr.bf16.gmra.mrb[0].mxu0 %v1689
        %v2113 = vpop.f32.mrb[0].mxu0
        %v2114 = vadd.f32 %v1598, %v2113
        %v2115 = vpop.f32.mrb[0].mxu0
        %v2116 = vadd.f32 %v1598, %v2115
        %v2117 = vpop.f32.mrb[0].mxu0
        %v2118 = vadd.f32 %v1603, %v2117
        %v2119 = vpop.f32.mrb[0].mxu0
        %v2120 = vadd.f32 %v1603, %v2119
        %2121 = vmatprep.mubr.bf16.mxu0 0
        %2122 = vmatmul.mubr.bf16.gmra.mrb[0].mxu0 %v1692
        %v2123 = vpop.f32.mrb[0].mxu0
        %v2124 = vadd.f32 %v1608, %v2123
        %v2125 = vpop.f32.mrb[0].mxu0
        %v2126 = vadd.f32 %v1608, %v2125
        %v2127 = vpop.f32.mrb[0].mxu0
        %v2128 = vadd.f32 %v1613, %v2127
        %v2129 = vpop.f32.mrb[0].mxu0
        %v2130 = vadd.f32 %v1613, %v2129
        %2131 = vmatprep.mubr.bf16.mxu0 0
        %2132 = vmatmul.mubr.bf16.gmra.mrb[0].mxu0 %v1695
        %v2133 = vpop.f32.mrb[0].mxu0
        %v2134 = vadd.f32 %v1618, %v2133
        %v2135 = vpop.f32.mrb[0].mxu0
        %v2136 = vadd.f32 %v1618, %v2135
        %v2137 = vpop.f32.mrb[0].mxu0
        %v2138 = vadd.f32 %v1623, %v2137
        %v2139 = vpop.f32.mrb[0].mxu0
        %v2140 = vadd.f32 %v1623, %v2139
        %2141 = vmatprep.mubr.bf16.mxu0 0
        %2142 = vmatmul.mubr.bf16.gmra.mrb[0].mxu0 %v1698
        %v2143 = vpop.f32.mrb[0].mxu0
        %v2144 = vadd.f32 %v1628, %v2143
        %v2145 = vpop.f32.mrb[0].mxu0
        %v2146 = vadd.f32 %v1628, %v2145
        %v2147 = vpop.f32.mrb[0].mxu0
        %v2148 = vadd.f32 %v1633, %v2147
        %v2149 = vpop.f32.mrb[0].mxu0
        %v2150 = vadd.f32 %v1633, %v2149
        %2151 = vdwg.mxu0
        %v2152 = vmax.f32 %v1735, 0.0
        %v2153 = vmax.f32 %v1737, 0.0
        %v2154 = vmax.f32 %v1848, 0.0
        %v2155 = vmax.f32 %v1850, 0.0
        %v2156 = vmax.f32 %v1961, 0.0
        %v2157 = vmax.f32 %v1963, 0.0
        %v2158 = vmax.f32 %v2074, 0.0
        %v2159 = vmax.f32 %v2076, 0.0
        %v2160 = vmax.f32 %v1739, 0.0
        %v2161 = vmax.f32 %v1741, 0.0
        %v2162 = vmax.f32 %v1852, 0.0
        %v2163 = vmax.f32 %v1854, 0.0
        %v2164 = vmax.f32 %v1965, 0.0
        %v2165 = vmax.f32 %v1967, 0.0
        %v2166 = vmax.f32 %v2078, 0.0
        %v2167 = vmax.f32 %v2080, 0.0
        %v2168 = vmax.f32 %v1745, 0.0
        %v2169 = vmax.f32 %v1747, 0.0
        %v2170 = vmax.f32 %v1858, 0.0
        %v2171 = vmax.f32 %v1860, 0.0
        %v2172 = vmax.f32 %v1971, 0.0
        %v2173 = vmax.f32 %v1973, 0.0
        %v2174 = vmax.f32 %v2084, 0.0
        %v2175 = vmax.f32 %v2086, 0.0
        %v2176 = vmax.f32 %v1749, 0.0
        %v2177 = vmax.f32 %v1751, 0.0
        %v2178 = vmax.f32 %v1862, 0.0
        %v2179 = vmax.f32 %v1864, 0.0
        %v2180 = vmax.f32 %v1975, 0.0
        %v2181 = vmax.f32 %v1977, 0.0
        %v2182 = vmax.f32 %v2088, 0.0
        %v2183 = vmax.f32 %v2090, 0.0
        %v2184 = vmax.f32 %v1755, 0.0
        %v2185 = vmax.f32 %v1757, 0.0
        %v2186 = vmax.f32 %v1868, 0.0
        %v2187 = vmax.f32 %v1870, 0.0
        %v2188 = vmax.f32 %v1981, 0.0
        %v2189 = vmax.f32 %v1983, 0.0
        %v2190 = vmax.f32 %v2094, 0.0
        %v2191 = vmax.f32 %v2096, 0.0
        %v2192 = vmax.f32 %v1759, 0.0
        %v2193 = vmax.f32 %v1761, 0.0
        %v2194 = vmax.f32 %v1872, 0.0
        %v2195 = vmax.f32 %v1874, 0.0
        %v2196 = vmax.f32 %v1985, 0.0
        %v2197 = vmax.f32 %v1987, 0.0
        %v2198 = vmax.f32 %v2098, 0.0
        %v2199 = vmax.f32 %v2100, 0.0
        %v2200 = vmax.f32 %v1765, 0.0
        %v2201 = vmax.f32 %v1767, 0.0
        %v2202 = vmax.f32 %v1878, 0.0
        %v2203 = vmax.f32 %v1880, 0.0
        %v2204 = vmax.f32 %v1991, 0.0
        %v2205 = vmax.f32 %v1993, 0.0
        %v2206 = vmax.f32 %v2104, 0.0
        %v2207 = vmax.f32 %v2106, 0.0
        %v2208 = vmax.f32 %v1769, 0.0
        %v2209 = vmax.f32 %v1771, 0.0
        %v2210 = vmax.f32 %v1882, 0.0
        %v2211 = vmax.f32 %v1884, 0.0
        %v2212 = vmax.f32 %v1995, 0.0
        %v2213 = vmax.f32 %v1997, 0.0
        %v2214 = vmax.f32 %v2108, 0.0
        %v2215 = vmax.f32 %v2110, 0.0
        %v2216 = vmax.f32 %v1775, 0.0
        %v2217 = vmax.f32 %v1777, 0.0
        %v2218 = vmax.f32 %v1888, 0.0
        %v2219 = vmax.f32 %v1890, 0.0
        %v2220 = vmax.f32 %v2001, 0.0
        %v2221 = vmax.f32 %v2003, 0.0
        %v2222 = vmax.f32 %v2114, 0.0
        %v2223 = vmax.f32 %v2116, 0.0
        %v2224 = vmax.f32 %v1779, 0.0
        %v2225 = vmax.f32 %v1781, 0.0
        %v2226 = vmax.f32 %v1892, 0.0
        %v2227 = vmax.f32 %v1894, 0.0
        %v2228 = vmax.f32 %v2005, 0.0
        %v2229 = vmax.f32 %v2007, 0.0
        %v2230 = vmax.f32 %v2118, 0.0
        %v2231 = vmax.f32 %v2120, 0.0
        %v2232 = vmax.f32 %v1785, 0.0
        %v2233 = vmax.f32 %v1787, 0.0
        %v2234 = vmax.f32 %v1898, 0.0
        %v2235 = vmax.f32 %v1900, 0.0
        %v2236 = vmax.f32 %v2011, 0.0
        %v2237 = vmax.f32 %v2013, 0.0
        %v2238 = vmax.f32 %v2124, 0.0
        %v2239 = vmax.f32 %v2126, 0.0
        %v2240 = vmax.f32 %v1789, 0.0
        %v2241 = vmax.f32 %v1791, 0.0
        %v2242 = vmax.f32 %v1902, 0.0
        %v2243 = vmax.f32 %v1904, 0.0
        %v2244 = vmax.f32 %v2015, 0.0
        %v2245 = vmax.f32 %v2017, 0.0
        %v2246 = vmax.f32 %v2128, 0.0
        %v2247 = vmax.f32 %v2130, 0.0
        %v2248 = vmax.f32 %v1795, 0.0
        %v2249 = vmax.f32 %v1797, 0.0
        %v2250 = vmax.f32 %v1908, 0.0
        %v2251 = vmax.f32 %v1910, 0.0
        %v2252 = vmax.f32 %v2021, 0.0
        %v2253 = vmax.f32 %v2023, 0.0
        %v2254 = vmax.f32 %v2134, 0.0
        %v2255 = vmax.f32 %v2136, 0.0
        %v2256 = vmax.f32 %v1799, 0.0
        %v2257 = vmax.f32 %v1801, 0.0
        %v2258 = vmax.f32 %v1912, 0.0
        %v2259 = vmax.f32 %v1914, 0.0
        %v2260 = vmax.f32 %v2025, 0.0
        %v2261 = vmax.f32 %v2027, 0.0
        %v2262 = vmax.f32 %v2138, 0.0
        %v2263 = vmax.f32 %v2140, 0.0
        %v2264 = vmax.f32 %v1805, 0.0
        %v2265 = vmax.f32 %v1807, 0.0
        %v2266 = vmax.f32 %v1918, 0.0
        %v2267 = vmax.f32 %v1920, 0.0
        %v2268 = vmax.f32 %v2031, 0.0
        %v2269 = vmax.f32 %v2033, 0.0
        %v2270 = vmax.f32 %v2144, 0.0
        %v2271 = vmax.f32 %v2146, 0.0
        %v2272 = vmax.f32 %v1809, 0.0
        %v2273 = vmax.f32 %v1811, 0.0
        %v2274 = vmax.f32 %v1922, 0.0
        %v2275 = vmax.f32 %v1924, 0.0
        %v2276 = vmax.f32 %v2035, 0.0
        %v2277 = vmax.f32 %v2037, 0.0
        %v2278 = vmax.f32 %v2148, 0.0
        %v2279 = vmax.f32 %v2150, 0.0
        %v2280 = vld [vmem:[#allocation3] sm:$0xf]
        %v2281 = vld [vmem:[#allocation3 + $0x4] sm:$0xf]
        %v2282 = vld [vmem:[#allocation3 + $0x8] sm:$0xf]
        %v2283 = vld [vmem:[#allocation3 + $0xc] sm:$0xf]
        %v2284 = vld [vmem:[#allocation3 + $0x10] sm:$0xf]
        %v2285 = vld [vmem:[#allocation3 + $0x14] sm:$0xf]
        %v2286 = vld [vmem:[#allocation3 + $0x18] sm:$0xf]
        %v2287 = vld [vmem:[#allocation3 + $0x1c] sm:$0xf]
        %v2288 = vld [vmem:[#allocation3 + $0x20] sm:$0xf]
        %v2289 = vld [vmem:[#allocation3 + $0x24] sm:$0xf]
        %v2290 = vld [vmem:[#allocation3 + $0x28] sm:$0xf]
        %v2291 = vld [vmem:[#allocation3 + $0x2c] sm:$0xf]
        %v2292 = vld [vmem:[#allocation3 + $0x30] sm:$0xf]
        %v2293 = vld [vmem:[#allocation3 + $0x34] sm:$0xf]
        %v2294 = vld [vmem:[#allocation3 + $0x38] sm:$0xf]
        %v2295 = vld [vmem:[#allocation3 + $0x3c] sm:$0xf]
        %v2296 = vld [vmem:[#allocation3 + $0x40] sm:$0xf]
        %v2297 = vld [vmem:[#allocation3 + $0x44] sm:$0xf]
        %v2298 = vld [vmem:[#allocation3 + $0x48] sm:$0xf]
        %v2299 = vld [vmem:[#allocation3 + $0x4c] sm:$0xf]
        %v2300 = vld [vmem:[#allocation3 + $0x50] sm:$0xf]
        %v2301 = vld [vmem:[#allocation3 + $0x54] sm:$0xf]
        %v2302 = vld [vmem:[#allocation3 + $0x58] sm:$0xf]
        %v2303 = vld [vmem:[#allocation3 + $0x5c] sm:$0xf]
        %v2304 = vld [vmem:[#allocation3 + $0x60] sm:$0xf]
        %v2305 = vld [vmem:[#allocation3 + $0x64] sm:$0xf]
        %v2306 = vld [vmem:[#allocation3 + $0x68] sm:$0xf]
        %v2307 = vld [vmem:[#allocation3 + $0x6c] sm:$0xf]
        %v2308 = vld [vmem:[#allocation3 + $0x70] sm:$0xf]
        %v2309 = vld [vmem:[#allocation3 + $0x74] sm:$0xf]
        %v2310 = vld [vmem:[#allocation3 + $0x78] sm:$0xf]
        %v2311 = vld [vmem:[#allocation3 + $0x7c] sm:$0xf]
        %v2312 = vld [vmem:[#allocation3 + $0x80] sm:$0xf]
        %v2313 = vld [vmem:[#allocation3 + $0x84] sm:$0xf]
        %v2314 = vld [vmem:[#allocation3 + $0x88] sm:$0xf]
        %v2315 = vld [vmem:[#allocation3 + $0x8c] sm:$0xf]
        %v2316 = vld [vmem:[#allocation3 + $0x90] sm:$0xf]
        %v2317 = vld [vmem:[#allocation3 + $0x94] sm:$0xf]
        %v2318 = vld [vmem:[#allocation3 + $0x98] sm:$0xf]
        %v2319 = vld [vmem:[#allocation3 + $0x9c] sm:$0xf]
        %v2320 = vld [vmem:[#allocation3 + $0xa0] sm:$0xf]
        %v2321 = vld [vmem:[#allocation3 + $0xa4] sm:$0xf]
        %v2322 = vld [vmem:[#allocation3 + $0xa8] sm:$0xf]
        %v2323 = vld [vmem:[#allocation3 + $0xac] sm:$0xf]
        %v2324 = vld [vmem:[#allocation3 + $0xb0] sm:$0xf]
        %v2325 = vld [vmem:[#allocation3 + $0xb4] sm:$0xf]
        %v2326 = vld [vmem:[#allocation3 + $0xb8] sm:$0xf]
        %v2327 = vld [vmem:[#allocation3 + $0xbc] sm:$0xf]
        %v2328 = vld [vmem:[#allocation3 + $0xc0] sm:$0xf]
        %v2329 = vld [vmem:[#allocation3 + $0xc4] sm:$0xf]
        %v2330 = vld [vmem:[#allocation3 + $0xc8] sm:$0xf]
        %v2331 = vld [vmem:[#allocation3 + $0xcc] sm:$0xf]
        %v2332 = vld [vmem:[#allocation3 + $0xd0] sm:$0xf]
        %v2333 = vld [vmem:[#allocation3 + $0xd4] sm:$0xf]
        %v2334 = vld [vmem:[#allocation3 + $0xd8] sm:$0xf]
        %v2335 = vld [vmem:[#allocation3 + $0xdc] sm:$0xf]
        %v2336 = vld [vmem:[#allocation3 + $0xe0] sm:$0xf]
        %v2337 = vld [vmem:[#allocation3 + $0xe4] sm:$0xf]
        %v2338 = vld [vmem:[#allocation3 + $0xe8] sm:$0xf]
        %v2339 = vld [vmem:[#allocation3 + $0xec] sm:$0xf]
        %v2340 = vld [vmem:[#allocation3 + $0xf0] sm:$0xf]
        %v2341 = vld [vmem:[#allocation3 + $0xf4] sm:$0xf]
        %v2342 = vld [vmem:[#allocation3 + $0xf8] sm:$0xf]
        %v2343 = vld [vmem:[#allocation3 + $0xfc] sm:$0xf]
        %v2344 = vld [vmem:[#allocation3 + $0x100] sm:$0xf]
        %v2345 = vld [vmem:[#allocation3 + $0x104] sm:$0xf]
        %v2346 = vld [vmem:[#allocation3 + $0x108] sm:$0xf]
        %v2347 = vld [vmem:[#allocation3 + $0x10c] sm:$0xf]
        %v2348 = vld [vmem:[#allocation3 + $0x110] sm:$0xf]
        %v2349 = vld [vmem:[#allocation3 + $0x114] sm:$0xf]
        %v2350 = vld [vmem:[#allocation3 + $0x118] sm:$0xf]
        %v2351 = vld [vmem:[#allocation3 + $0x11c] sm:$0xf]
        %v2352 = vld [vmem:[#allocation3 + $0x120] sm:$0xf]
        %v2353 = vld [vmem:[#allocation3 + $0x124] sm:$0xf]
        %v2354 = vld [vmem:[#allocation3 + $0x128] sm:$0xf]
        %v2355 = vld [vmem:[#allocation3 + $0x12c] sm:$0xf]
        %v2356 = vld [vmem:[#allocation3 + $0x130] sm:$0xf]
        %v2357 = vld [vmem:[#allocation3 + $0x134] sm:$0xf]
        %v2358 = vld [vmem:[#allocation3 + $0x138] sm:$0xf]
        %v2359 = vld [vmem:[#allocation3 + $0x13c] sm:$0xf]
        %v2360 = vld [vmem:[#allocation3 + $0x140] sm:$0xf]
        %v2361 = vld [vmem:[#allocation3 + $0x144] sm:$0xf]
        %v2362 = vld [vmem:[#allocation3 + $0x148] sm:$0xf]
        %v2363 = vld [vmem:[#allocation3 + $0x14c] sm:$0xf]
        %v2364 = vld [vmem:[#allocation3 + $0x150] sm:$0xf]
        %v2365 = vld [vmem:[#allocation3 + $0x154] sm:$0xf]
        %v2366 = vld [vmem:[#allocation3 + $0x158] sm:$0xf]
        %v2367 = vld [vmem:[#allocation3 + $0x15c] sm:$0xf]
        %v2368 = vld [vmem:[#allocation3 + $0x160] sm:$0xf]
        %v2369 = vld [vmem:[#allocation3 + $0x164] sm:$0xf]
        %v2370 = vld [vmem:[#allocation3 + $0x168] sm:$0xf]
        %v2371 = vld [vmem:[#allocation3 + $0x16c] sm:$0xf]
        %v2372 = vld [vmem:[#allocation3 + $0x170] sm:$0xf]
        %v2373 = vld [vmem:[#allocation3 + $0x174] sm:$0xf]
        %v2374 = vld [vmem:[#allocation3 + $0x178] sm:$0xf]
        %v2375 = vld [vmem:[#allocation3 + $0x17c] sm:$0xf]
        %v2376 = vld [vmem:[#allocation3 + $0x180] sm:$0xf]
        %v2377 = vld [vmem:[#allocation3 + $0x184] sm:$0xf]
        %v2378 = vld [vmem:[#allocation3 + $0x188] sm:$0xf]
        %v2379 = vld [vmem:[#allocation3 + $0x18c] sm:$0xf]
        %v2380 = vld [vmem:[#allocation3 + $0x190] sm:$0xf]
        %v2381 = vld [vmem:[#allocation3 + $0x194] sm:$0xf]
        %v2382 = vld [vmem:[#allocation3 + $0x198] sm:$0xf]
        %v2383 = vld [vmem:[#allocation3 + $0x19c] sm:$0xf]
        %v2384 = vld [vmem:[#allocation3 + $0x1a0] sm:$0xf]
        %v2385 = vld [vmem:[#allocation3 + $0x1a4] sm:$0xf]
        %v2386 = vld [vmem:[#allocation3 + $0x1a8] sm:$0xf]
        %v2387 = vld [vmem:[#allocation3 + $0x1ac] sm:$0xf]
        %v2388 = vld [vmem:[#allocation3 + $0x1b0] sm:$0xf]
        %v2389 = vld [vmem:[#allocation3 + $0x1b4] sm:$0xf]
        %v2390 = vld [vmem:[#allocation3 + $0x1b8] sm:$0xf]
        %v2391 = vld [vmem:[#allocation3 + $0x1bc] sm:$0xf]
        %v2392 = vld [vmem:[#allocation3 + $0x1c0] sm:$0xf]
        %v2393 = vld [vmem:[#allocation3 + $0x1c4] sm:$0xf]
        %v2394 = vld [vmem:[#allocation3 + $0x1c8] sm:$0xf]
        %v2395 = vld [vmem:[#allocation3 + $0x1cc] sm:$0xf]
        %v2396 = vld [vmem:[#allocation3 + $0x1d0] sm:$0xf]
        %v2397 = vld [vmem:[#allocation3 + $0x1d4] sm:$0xf]
        %v2398 = vld [vmem:[#allocation3 + $0x1d8] sm:$0xf]
        %v2399 = vld [vmem:[#allocation3 + $0x1dc] sm:$0xf]
        %v2400 = vld [vmem:[#allocation3 + $0x1e0] sm:$0xf]
        %v2401 = vld [vmem:[#allocation3 + $0x1e4] sm:$0xf]
        %v2402 = vld [vmem:[#allocation3 + $0x1e8] sm:$0xf]
        %v2403 = vld [vmem:[#allocation3 + $0x1ec] sm:$0xf]
        %v2404 = vld [vmem:[#allocation3 + $0x1f0] sm:$0xf]
        %v2405 = vld [vmem:[#allocation3 + $0x1f4] sm:$0xf]
        %v2406 = vld [vmem:[#allocation3 + $0x1f8] sm:$0xf]
        %v2407 = vld [vmem:[#allocation3 + $0x1fc] sm:$0xf]
        %v2408 = vpack.c.bf16 %v2160, %v2152
        %v2409 = vpack.c.bf16 %v2161, %v2153
        %v2410 = vpack.c.bf16 %v2162, %v2154
        %v2411 = vpack.c.bf16 %v2163, %v2155
        %v2412 = vpack.c.bf16 %v2164, %v2156
        %v2413 = vpack.c.bf16 %v2165, %v2157
        %v2414 = vpack.c.bf16 %v2166, %v2158
        %v2415 = vpack.c.bf16 %v2167, %v2159
        %v2416 = vpack.c.bf16 %v2176, %v2168
        %v2417 = vpack.c.bf16 %v2177, %v2169
        %v2418 = vpack.c.bf16 %v2178, %v2170
        %v2419 = vpack.c.bf16 %v2179, %v2171
        %v2420 = vpack.c.bf16 %v2180, %v2172
        %v2421 = vpack.c.bf16 %v2181, %v2173
        %v2422 = vpack.c.bf16 %v2182, %v2174
        %v2423 = vpack.c.bf16 %v2183, %v2175
        %v2424 = vpack.c.bf16 %v2192, %v2184
        %v2425 = vpack.c.bf16 %v2193, %v2185
        %v2426 = vpack.c.bf16 %v2194, %v2186
        %v2427 = vpack.c.bf16 %v2195, %v2187
        %v2428 = vpack.c.bf16 %v2196, %v2188
        %v2429 = vpack.c.bf16 %v2197, %v2189
        %v2430 = vpack.c.bf16 %v2198, %v2190
        %v2431 = vpack.c.bf16 %v2199, %v2191
        %v2432 = vpack.c.bf16 %v2208, %v2200
        %v2433 = vpack.c.bf16 %v2209, %v2201
        %v2434 = vpack.c.bf16 %v2210, %v2202
        %v2435 = vpack.c.bf16 %v2211, %v2203
        %v2436 = vpack.c.bf16 %v2212, %v2204
        %v2437 = vpack.c.bf16 %v2213, %v2205
        %v2438 = vpack.c.bf16 %v2214, %v2206
        %v2439 = vpack.c.bf16 %v2215, %v2207
        %v2440 = vpack.c.bf16 %v2224, %v2216
        %v2441 = vpack.c.bf16 %v2225, %v2217
        %v2442 = vpack.c.bf16 %v2226, %v2218
        %v2443 = vpack.c.bf16 %v2227, %v2219
        %v2444 = vpack.c.bf16 %v2228, %v2220
        %v2445 = vpack.c.bf16 %v2229, %v2221
        %v2446 = vpack.c.bf16 %v2230, %v2222
        %v2447 = vpack.c.bf16 %v2231, %v2223
        %v2448 = vpack.c.bf16 %v2240, %v2232
        %v2449 = vpack.c.bf16 %v2241, %v2233
        %v2450 = vpack.c.bf16 %v2242, %v2234
        %v2451 = vpack.c.bf16 %v2243, %v2235
        %v2452 = vpack.c.bf16 %v2244, %v2236
        %v2453 = vpack.c.bf16 %v2245, %v2237
        %v2454 = vpack.c.bf16 %v2246, %v2238
        %v2455 = vpack.c.bf16 %v2247, %v2239
        %v2456 = vpack.c.bf16 %v2256, %v2248
        %v2457 = vpack.c.bf16 %v2257, %v2249
        %v2458 = vpack.c.bf16 %v2258, %v2250
        %v2459 = vpack.c.bf16 %v2259, %v2251
        %v2460 = vpack.c.bf16 %v2260, %v2252
        %v2461 = vpack.c.bf16 %v2261, %v2253
        %v2462 = vpack.c.bf16 %v2262, %v2254
        %v2463 = vpack.c.bf16 %v2263, %v2255
        %v2464 = vpack.c.bf16 %v2272, %v2264
        %v2465 = vpack.c.bf16 %v2273, %v2265
        %v2466 = vpack.c.bf16 %v2274, %v2266
        %v2467 = vpack.c.bf16 %v2275, %v2267
        %v2468 = vpack.c.bf16 %v2276, %v2268
        %v2469 = vpack.c.bf16 %v2277, %v2269
        %v2470 = vpack.c.bf16 %v2278, %v2270
        %v2471 = vpack.c.bf16 %v2279, %v2271
        %v2600 = vunpack.c.l.b16 %v2280
        %v2601 = vunpack.c.l.b16 %v2281
        %v2602 = vunpack.c.l.b16 %v2282
        %v2603 = vunpack.c.l.b16 %v2283
        %v2604 = vunpack.c.l.b16 %v2284
        %v2605 = vunpack.c.l.b16 %v2285
        %v2606 = vunpack.c.l.b16 %v2286
        %v2607 = vunpack.c.l.b16 %v2287
        %v2608 = vunpack.c.l.b16 %v2288
        %v2609 = vunpack.c.l.b16 %v2289
        %v2610 = vunpack.c.l.b16 %v2290
        %v2611 = vunpack.c.l.b16 %v2291
        %v2612 = vunpack.c.l.b16 %v2292
        %v2613 = vunpack.c.l.b16 %v2293
        %v2614 = vunpack.c.l.b16 %v2294
        %v2615 = vunpack.c.l.b16 %v2295
        %v2616 = vunpack.c.l.b16 %v2296
        %v2617 = vunpack.c.l.b16 %v2297
        %v2618 = vunpack.c.l.b16 %v2298
        %v2619 = vunpack.c.l.b16 %v2299
        %v2620 = vunpack.c.l.b16 %v2300
        %v2621 = vunpack.c.l.b16 %v2301
        %v2622 = vunpack.c.l.b16 %v2302
        %v2623 = vunpack.c.l.b16 %v2303
        %v2624 = vunpack.c.l.b16 %v2304
        %v2625 = vunpack.c.l.b16 %v2305
        %v2626 = vunpack.c.l.b16 %v2306
        %v2627 = vunpack.c.l.b16 %v2307
        %v2628 = vunpack.c.l.b16 %v2308
        %v2629 = vunpack.c.l.b16 %v2309
        %v2630 = vunpack.c.l.b16 %v2310
        %v2631 = vunpack.c.l.b16 %v2311
        %v2632 = vunpack.c.l.b16 %v2312
        %v2633 = vunpack.c.l.b16 %v2313
        %v2634 = vunpack.c.l.b16 %v2314
        %v2635 = vunpack.c.l.b16 %v2315
        %v2636 = vunpack.c.l.b16 %v2316
        %v2637 = vunpack.c.l.b16 %v2317
        %v2638 = vunpack.c.l.b16 %v2318
        %v2639 = vunpack.c.l.b16 %v2319
        %v2640 = vunpack.c.l.b16 %v2320
        %v2641 = vunpack.c.l.b16 %v2321
        %v2642 = vunpack.c.l.b16 %v2322
        %v2643 = vunpack.c.l.b16 %v2323
        %v2644 = vunpack.c.l.b16 %v2324
        %v2645 = vunpack.c.l.b16 %v2325
        %v2646 = vunpack.c.l.b16 %v2326
        %v2647 = vunpack.c.l.b16 %v2327
        %v2648 = vunpack.c.l.b16 %v2328
        %v2649 = vunpack.c.l.b16 %v2329
        %v2650 = vunpack.c.l.b16 %v2330
        %v2651 = vunpack.c.l.b16 %v2331
        %v2652 = vunpack.c.l.b16 %v2332
        %v2653 = vunpack.c.l.b16 %v2333
        %v2654 = vunpack.c.l.b16 %v2334
        %v2655 = vunpack.c.l.b16 %v2335
        %v2656 = vunpack.c.l.b16 %v2336
        %v2657 = vunpack.c.l.b16 %v2337
        %v2658 = vunpack.c.l.b16 %v2338
        %v2659 = vunpack.c.l.b16 %v2339
        %v2660 = vunpack.c.l.b16 %v2340
        %v2661 = vunpack.c.l.b16 %v2341
        %v2662 = vunpack.c.l.b16 %v2342
        %v2663 = vunpack.c.l.b16 %v2343
        %v2664 = vunpack.c.l.b16 %v2344
        %v2665 = vunpack.c.l.b16 %v2345
        %v2666 = vunpack.c.l.b16 %v2346
        %v2667 = vunpack.c.l.b16 %v2347
        %v2668 = vunpack.c.l.b16 %v2348
        %v2669 = vunpack.c.l.b16 %v2349
        %v2670 = vunpack.c.l.b16 %v2350
        %v2671 = vunpack.c.l.b16 %v2351
        %v2672 = vunpack.c.l.b16 %v2352
        %v2673 = vunpack.c.l.b16 %v2353
        %v2674 = vunpack.c.l.b16 %v2354
        %v2675 = vunpack.c.l.b16 %v2355
        %v2676 = vunpack.c.l.b16 %v2356
        %v2677 = vunpack.c.l.b16 %v2357
        %v2678 = vunpack.c.l.b16 %v2358
        %v2679 = vunpack.c.l.b16 %v2359
        %v2680 = vunpack.c.l.b16 %v2360
        %v2681 = vunpack.c.l.b16 %v2361
        %v2682 = vunpack.c.l.b16 %v2362
        %v2683 = vunpack.c.l.b16 %v2363
        %v2684 = vunpack.c.l.b16 %v2364
        %v2685 = vunpack.c.l.b16 %v2365
        %v2686 = vunpack.c.l.b16 %v2366
        %v2687 = vunpack.c.l.b16 %v2367
        %v2688 = vunpack.c.l.b16 %v2368
        %v2689 = vunpack.c.l.b16 %v2369
        %v2690 = vunpack.c.l.b16 %v2370
        %v2691 = vunpack.c.l.b16 %v2371
        %v2692 = vunpack.c.l.b16 %v2372
        %v2693 = vunpack.c.l.b16 %v2373
        %v2694 = vunpack.c.l.b16 %v2374
        %v2695 = vunpack.c.l.b16 %v2375
        %v2696 = vunpack.c.l.b16 %v2376
        %v2697 = vunpack.c.l.b16 %v2377
        %v2698 = vunpack.c.l.b16 %v2378
        %v2699 = vunpack.c.l.b16 %v2379
        %v2700 = vunpack.c.l.b16 %v2380
        %v2701 = vunpack.c.l.b16 %v2381
        %v2702 = vunpack.c.l.b16 %v2382
        %v2703 = vunpack.c.l.b16 %v2383
        %v2704 = vunpack.c.l.b16 %v2384
        %v2705 = vunpack.c.l.b16 %v2385
        %v2706 = vunpack.c.l.b16 %v2386
        %v2707 = vunpack.c.l.b16 %v2387
        %v2708 = vunpack.c.l.b16 %v2388
        %v2709 = vunpack.c.l.b16 %v2389
        %v2710 = vunpack.c.l.b16 %v2390
        %v2711 = vunpack.c.l.b16 %v2391
        %v2712 = vunpack.c.l.b16 %v2392
        %v2713 = vunpack.c.l.b16 %v2393
        %v2714 = vunpack.c.l.b16 %v2394
        %v2715 = vunpack.c.l.b16 %v2395
        %v2716 = vunpack.c.l.b16 %v2396
        %v2717 = vunpack.c.l.b16 %v2397
        %v2718 = vunpack.c.l.b16 %v2398
        %v2719 = vunpack.c.l.b16 %v2399
        %v2720 = vunpack.c.l.b16 %v2400
        %v2721 = vunpack.c.l.b16 %v2401
        %v2722 = vunpack.c.l.b16 %v2402
        %v2723 = vunpack.c.l.b16 %v2403
        %v2724 = vunpack.c.l.b16 %v2404
        %v2725 = vunpack.c.l.b16 %v2405
        %v2726 = vunpack.c.l.b16 %v2406
        %v2727 = vunpack.c.l.b16 %v2407
        %v2728 = vpack.c.b16 %v2601, %v2600
        %v2729 = vpack.c.b16 %v2603, %v2602
        %v2730 = vpack.c.b16 %v2605, %v2604
        %v2731 = vpack.c.b16 %v2607, %v2606
        %v2732 = vpack.c.b16 %v2609, %v2608
        %v2733 = vpack.c.b16 %v2611, %v2610
        %v2734 = vpack.c.b16 %v2613, %v2612
        %v2735 = vpack.c.b16 %v2615, %v2614
        %v2736 = vpack.c.b16 %v2617, %v2616
        %v2737 = vpack.c.b16 %v2619, %v2618
        %v2738 = vpack.c.b16 %v2621, %v2620
        %v2739 = vpack.c.b16 %v2623, %v2622
        %v2740 = vpack.c.b16 %v2625, %v2624
        %v2741 = vpack.c.b16 %v2627, %v2626
        %v2742 = vpack.c.b16 %v2629, %v2628
        %v2743 = vpack.c.b16 %v2631, %v2630
        %v2744 = vpack.c.b16 %v2633, %v2632
        %v2745 = vpack.c.b16 %v2635, %v2634
        %v2746 = vpack.c.b16 %v2637, %v2636
        %v2747 = vpack.c.b16 %v2639, %v2638
        %v2748 = vpack.c.b16 %v2641, %v2640
        %v2749 = vpack.c.b16 %v2643, %v2642
        %v2750 = vpack.c.b16 %v2645, %v2644
        %v2751 = vpack.c.b16 %v2647, %v2646
        %v2752 = vpack.c.b16 %v2649, %v2648
        %v2753 = vpack.c.b16 %v2651, %v2650
        %v2754 = vpack.c.b16 %v2653, %v2652
        %v2755 = vpack.c.b16 %v2655, %v2654
        %v2756 = vpack.c.b16 %v2657, %v2656
        %v2757 = vpack.c.b16 %v2659, %v2658
        %v2758 = vpack.c.b16 %v2661, %v2660
        %v2759 = vpack.c.b16 %v2663, %v2662
        %v2760 = vpack.c.b16 %v2665, %v2664
        %v2761 = vpack.c.b16 %v2667, %v2666
        %v2762 = vpack.c.b16 %v2669, %v2668
        %v2763 = vpack.c.b16 %v2671, %v2670
        %v2764 = vpack.c.b16 %v2673, %v2672
        %v2765 = vpack.c.b16 %v2675, %v2674
        %v2766 = vpack.c.b16 %v2677, %v2676
        %v2767 = vpack.c.b16 %v2679, %v2678
        %v2768 = vpack.c.b16 %v2681, %v2680
        %v2769 = vpack.c.b16 %v2683, %v2682
        %v2770 = vpack.c.b16 %v2685, %v2684
        %v2771 = vpack.c.b16 %v2687, %v2686
        %v2772 = vpack.c.b16 %v2689, %v2688
        %v2773 = vpack.c.b16 %v2691, %v2690
        %v2774 = vpack.c.b16 %v2693, %v2692
        %v2775 = vpack.c.b16 %v2695, %v2694
        %v2776 = vpack.c.b16 %v2697, %v2696
        %v2777 = vpack.c.b16 %v2699, %v2698
        %v2778 = vpack.c.b16 %v2701, %v2700
        %v2779 = vpack.c.b16 %v2703, %v2702
        %v2780 = vpack.c.b16 %v2705, %v2704
        %v2781 = vpack.c.b16 %v2707, %v2706
        %v2782 = vpack.c.b16 %v2709, %v2708
        %v2783 = vpack.c.b16 %v2711, %v2710
        %v2784 = vpack.c.b16 %v2713, %v2712
        %v2785 = vpack.c.b16 %v2715, %v2714
        %v2786 = vpack.c.b16 %v2717, %v2716
        %v2787 = vpack.c.b16 %v2719, %v2718
        %v2788 = vpack.c.b16 %v2721, %v2720
        %v2789 = vpack.c.b16 %v2723, %v2722
        %v2790 = vpack.c.b16 %v2725, %v2724
        %v2791 = vpack.c.b16 %v2727, %v2726
        %2856 = vmatprep.subr.bf16.mxu0 %v2409
        %2857 = vmatpush1.bf16.msra.mxu0 %v2408
        %2858 = vmatprep.subr.bf16.mxu0 %v2417
        %2859 = vmatpush1.bf16.msra.mxu0 %v2416
        %2860 = vmatprep.subr.bf16.mxu0 %v2425
        %2861 = vmatpush1.bf16.msra.mxu0 %v2424
        %2862 = vmatprep.subr.bf16.mxu0 %v2433
        %2863 = vmatpush1.bf16.msra.mxu0 %v2432
        %2864 = vmatprep.subr.bf16.mxu0 %v2441
        %2865 = vmatpush1.bf16.msra.mxu0 %v2440
        %2866 = vmatprep.subr.bf16.mxu0 %v2449
        %2867 = vmatpush1.bf16.msra.mxu0 %v2448
        %2868 = vmatprep.subr.bf16.mxu0 %v2457
        %2869 = vmatpush1.bf16.msra.mxu0 %v2456
        %2870 = vmatprep.subr.bf16.mxu0 %v2465
        %2871 = vmatpush1.bf16.msra.mxu0 %v2464
        %2872 = vmatprep.subr.bf16.mxu0 0
        %2873 = vmatpush1.bf16.msra.mxu0 0
        %2874 = vmatprep.subr.bf16.mxu0 0
        %2875 = vmatpush1.bf16.msra.mxu0 0
        %2876 = vmatprep.subr.bf16.mxu0 0
        %2877 = vmatpush1.bf16.msra.mxu0 0
        %2878 = vmatprep.subr.bf16.mxu0 0
        %2879 = vmatpush1.bf16.msra.mxu0 0
        %2880 = vmatprep.subr.bf16.mxu0 0
        %2881 = vmatpush1.bf16.msra.mxu0 0
        %2882 = vmatprep.subr.bf16.mxu0 0
        %2883 = vmatpush1.bf16.msra.mxu0 0
        %2884 = vmatprep.subr.bf16.mxu0 0
        %2885 = vmatpush1.bf16.msra.mxu0 0
        %2886 = vmatprep.subr.bf16.mxu0 0
        %2887 = vmatpush1.bf16.msra.mxu0 0
        %2888 = vmatprep.mubr.bf16.mxu0 0
        %2889 = vmatmul.mubr.bf16.gmra.mrb[0].mxu0 %v2728
        %v2890 = vpop.f32.mrb[0].mxu0
        %v2891 = vadd.f32 0.0, %v2890
        %v2892 = vpop.f32.mrb[0].mxu0
        %v2893 = vadd.f32 0.0, %v2892
        %v2894 = vpop.f32.mrb[0].mxu0
        %v2895 = vadd.f32 0.0, %v2894
        %v2896 = vpop.f32.mrb[0].mxu0
        %v2897 = vadd.f32 0.0, %v2896
        %2898 = vmatprep.mubr.bf16.mxu0 0
        %2899 = vmatmul.mubr.bf16.gmra.mrb[0].mxu0 %v2729
        %v2900 = vpop.f32.mrb[0].mxu0
        %v2901 = vadd.f32 0.0, %v2900
        %v2902 = vpop.f32.mrb[0].mxu0
        %v2903 = vadd.f32 0.0, %v2902
        %v2904 = vpop.f32.mrb[0].mxu0
        %v2905 = vadd.f32 0.0, %v2904
        %v2906 = vpop.f32.mrb[0].mxu0
        %v2907 = vadd.f32 0.0, %v2906
        %2908 = vmatprep.mubr.bf16.mxu0 0
        %2909 = vmatmul.mubr.bf16.gmra.mrb[0].mxu0 %v2730
        %v2910 = vpop.f32.mrb[0].mxu0
        %v2911 = vadd.f32 0.0, %v2910
        %v2912 = vpop.f32.mrb[0].mxu0
        %v2913 = vadd.f32 0.0, %v2912
        %v2914 = vpop.f32.mrb[0].mxu0
        %v2915 = vadd.f32 0.0, %v2914
        %v2916 = vpop.f32.mrb[0].mxu0
        %v2917 = vadd.f32 0.0, %v2916
        %2918 = vmatprep.mubr.bf16.mxu0 0
        %2919 = vmatmul.mubr.bf16.gmra.mrb[0].mxu0 %v2731
        %v2920 = vpop.f32.mrb[0].mxu0
        %v2921 = vadd.f32 0.0, %v2920
        %v2922 = vpop.f32.mrb[0].mxu0
        %v2923 = vadd.f32 0.0, %v2922
        %v2924 = vpop.f32.mrb[0].mxu0
        %v2925 = vadd.f32 0.0, %v2924
        %v2926 = vpop.f32.mrb[0].mxu0
        %v2927 = vadd.f32 0.0, %v2926
        %2928 = vmatprep.mubr.bf16.mxu0 0
        %2929 = vmatmul.mubr.bf16.gmra.mrb[0].mxu0 %v2732
        %v2930 = vpop.f32.mrb[0].mxu0
        %v2931 = vadd.f32 0.0, %v2930
        %v2932 = vpop.f32.mrb[0].mxu0
        %v2933 = vadd.f32 0.0, %v2932
        %v2934 = vpop.f32.mrb[0].mxu0
        %v2935 = vadd.f32 0.0, %v2934
        %v2936 = vpop.f32.mrb[0].mxu0
        %v2937 = vadd.f32 0.0, %v2936
        %2938 = vmatprep.mubr.bf16.mxu0 0
        %2939 = vmatmul.mubr.bf16.gmra.mrb[0].mxu0 %v2733
        %v2940 = vpop.f32.mrb[0].mxu0
        %v2941 = vadd.f32 0.0, %v2940
        %v2942 = vpop.f32.mrb[0].mxu0
        %v2943 = vadd.f32 0.0, %v2942
        %v2944 = vpop.f32.mrb[0].mxu0
        %v2945 = vadd.f32 0.0, %v2944
        %v2946 = vpop.f32.mrb[0].mxu0
        %v2947 = vadd.f32 0.0, %v2946
        %2948 = vmatprep.mubr.bf16.mxu0 0
        %2949 = vmatmul.mubr.bf16.gmra.mrb[0].mxu0 %v2734
        %v2950 = vpop.f32.mrb[0].mxu0
        %v2951 = vadd.f32 0.0, %v2950
        %v2952 = vpop.f32.mrb[0].mxu0
        %v2953 = vadd.f32 0.0, %v2952
        %v2954 = vpop.f32.mrb[0].mxu0
        %v2955 = vadd.f32 0.0, %v2954
        %v2956 = vpop.f32.mrb[0].mxu0
        %v2957 = vadd.f32 0.0, %v2956
        %2958 = vmatprep.mubr.bf16.mxu0 0
        %2959 = vmatmul.mubr.bf16.gmra.mrb[0].mxu0 %v2735
        %v2960 = vpop.f32.mrb[0].mxu0
        %v2961 = vadd.f32 0.0, %v2960
        %v2962 = vpop.f32.mrb[0].mxu0
        %v2963 = vadd.f32 0.0, %v2962
        %v2964 = vpop.f32.mrb[0].mxu0
        %v2965 = vadd.f32 0.0, %v2964
        %v2966 = vpop.f32.mrb[0].mxu0
        %v2967 = vadd.f32 0.0, %v2966
        %2968 = vmatprep.mubr.bf16.mxu0 0
        %2969 = vmatmul.mubr.bf16.gmra.mrb[0].mxu0 %v2736
        %v2970 = vpop.f32.mrb[0].mxu0
        %v2971 = vadd.f32 0.0, %v2970
        %v2972 = vpop.f32.mrb[0].mxu0
        %v2973 = vadd.f32 0.0, %v2972
        %v2974 = vpop.f32.mrb[0].mxu0
        %v2975 = vadd.f32 0.0, %v2974
        %v2976 = vpop.f32.mrb[0].mxu0
        %v2977 = vadd.f32 0.0, %v2976
        %2978 = vmatprep.mubr.bf16.mxu0 0
        %2979 = vmatmul.mubr.bf16.gmra.mrb[0].mxu0 %v2737
        %v2980 = vpop.f32.mrb[0].mxu0
        %v2981 = vadd.f32 0.0, %v2980
        %v2982 = vpop.f32.mrb[0].mxu0
        %v2983 = vadd.f32 0.0, %v2982
        %v2984 = vpop.f32.mrb[0].mxu0
        %v2985 = vadd.f32 0.0, %v2984
        %v2986 = vpop.f32.mrb[0].mxu0
        %v2987 = vadd.f32 0.0, %v2986
        %2988 = vmatprep.mubr.bf16.mxu0 0
        %2989 = vmatmul.mubr.bf16.gmra.mrb[0].mxu0 %v2738
        %v2990 = vpop.f32.mrb[0].mxu0
        %v2991 = vadd.f32 0.0, %v2990
        %v2992 = vpop.f32.mrb[0].mxu0
        %v2993 = vadd.f32 0.0, %v2992
        %v2994 = vpop.f32.mrb[0].mxu0
        %v2995 = vadd.f32 0.0, %v2994
        %v2996 = vpop.f32.mrb[0].mxu0
        %v2997 = vadd.f32 0.0, %v2996
        %2998 = vmatprep.mubr.bf16.mxu0 0
        %2999 = vmatmul.mubr.bf16.gmra.mrb[0].mxu0 %v2739
        %v3000 = vpop.f32.mrb[0].mxu0
        %v3001 = vadd.f32 0.0, %v3000
        %v3002 = vpop.f32.mrb[0].mxu0
        %v3003 = vadd.f32 0.0, %v3002
        %v3004 = vpop.f32.mrb[0].mxu0
        %v3005 = vadd.f32 0.0, %v3004
        %v3006 = vpop.f32.mrb[0].mxu0
        %v3007 = vadd.f32 0.0, %v3006
        %3008 = vmatprep.mubr.bf16.mxu0 0
        %3009 = vmatmul.mubr.bf16.gmra.mrb[0].mxu0 %v2740
        %v3010 = vpop.f32.mrb[0].mxu0
        %v3011 = vadd.f32 0.0, %v3010
        %v3012 = vpop.f32.mrb[0].mxu0
        %v3013 = vadd.f32 0.0, %v3012
        %v3014 = vpop.f32.mrb[0].mxu0
        %v3015 = vadd.f32 0.0, %v3014
        %v3016 = vpop.f32.mrb[0].mxu0
        %v3017 = vadd.f32 0.0, %v3016
        %3018 = vmatprep.mubr.bf16.mxu0 0
        %3019 = vmatmul.mubr.bf16.gmra.mrb[0].mxu0 %v2741
        %v3020 = vpop.f32.mrb[0].mxu0
        %v3021 = vadd.f32 0.0, %v3020
        %v3022 = vpop.f32.mrb[0].mxu0
        %v3023 = vadd.f32 0.0, %v3022
        %v3024 = vpop.f32.mrb[0].mxu0
        %v3025 = vadd.f32 0.0, %v3024
        %v3026 = vpop.f32.mrb[0].mxu0
        %v3027 = vadd.f32 0.0, %v3026
        %3028 = vmatprep.mubr.bf16.mxu0 0
        %3029 = vmatmul.mubr.bf16.gmra.mrb[0].mxu0 %v2742
        %v3030 = vpop.f32.mrb[0].mxu0
        %v3031 = vadd.f32 0.0, %v3030
        %v3032 = vpop.f32.mrb[0].mxu0
        %v3033 = vadd.f32 0.0, %v3032
        %v3034 = vpop.f32.mrb[0].mxu0
        %v3035 = vadd.f32 0.0, %v3034
        %v3036 = vpop.f32.mrb[0].mxu0
        %v3037 = vadd.f32 0.0, %v3036
        %3038 = vmatprep.mubr.bf16.mxu0 0
        %3039 = vmatmul.mubr.bf16.gmra.mrb[0].mxu0 %v2743
        %v3040 = vpop.f32.mrb[0].mxu0
        %v3041 = vadd.f32 0.0, %v3040
        %v3042 = vpop.f32.mrb[0].mxu0
        %v3043 = vadd.f32 0.0, %v3042
        %v3044 = vpop.f32.mrb[0].mxu0
        %v3045 = vadd.f32 0.0, %v3044
        %v3046 = vpop.f32.mrb[0].mxu0
        %v3047 = vadd.f32 0.0, %v3046
        %3048 = vmatprep.mubr.bf16.mxu0 0
        %3049 = vmatmul.mubr.bf16.gmra.mrb[0].mxu0 %v2744
        %v3050 = vpop.f32.mrb[0].mxu0
        %v3051 = vadd.f32 0.0, %v3050
        %v3052 = vpop.f32.mrb[0].mxu0
        %v3053 = vadd.f32 0.0, %v3052
        %v3054 = vpop.f32.mrb[0].mxu0
        %v3055 = vadd.f32 0.0, %v3054
        %v3056 = vpop.f32.mrb[0].mxu0
        %v3057 = vadd.f32 0.0, %v3056
        %3058 = vmatprep.mubr.bf16.mxu0 0
        %3059 = vmatmul.mubr.bf16.gmra.mrb[0].mxu0 %v2745
        %v3060 = vpop.f32.mrb[0].mxu0
        %v3061 = vadd.f32 0.0, %v3060
        %v3062 = vpop.f32.mrb[0].mxu0
        %v3063 = vadd.f32 0.0, %v3062
        %v3064 = vpop.f32.mrb[0].mxu0
        %v3065 = vadd.f32 0.0, %v3064
        %v3066 = vpop.f32.mrb[0].mxu0
        %v3067 = vadd.f32 0.0, %v3066
        %3068 = vmatprep.mubr.bf16.mxu0 0
        %3069 = vmatmul.mubr.bf16.gmra.mrb[0].mxu0 %v2746
        %v3070 = vpop.f32.mrb[0].mxu0
        %v3071 = vadd.f32 0.0, %v3070
        %v3072 = vpop.f32.mrb[0].mxu0
        %v3073 = vadd.f32 0.0, %v3072
        %v3074 = vpop.f32.mrb[0].mxu0
        %v3075 = vadd.f32 0.0, %v3074
        %v3076 = vpop.f32.mrb[0].mxu0
        %v3077 = vadd.f32 0.0, %v3076
        %3078 = vmatprep.mubr.bf16.mxu0 0
        %3079 = vmatmul.mubr.bf16.gmra.mrb[0].mxu0 %v2747
        %v3080 = vpop.f32.mrb[0].mxu0
        %v3081 = vadd.f32 0.0, %v3080
        %v3082 = vpop.f32.mrb[0].mxu0
        %v3083 = vadd.f32 0.0, %v3082
        %v3084 = vpop.f32.mrb[0].mxu0
        %v3085 = vadd.f32 0.0, %v3084
        %v3086 = vpop.f32.mrb[0].mxu0
        %v3087 = vadd.f32 0.0, %v3086
        %3088 = vmatprep.mubr.bf16.mxu0 0
        %3089 = vmatmul.mubr.bf16.gmra.mrb[0].mxu0 %v2748
        %v3090 = vpop.f32.mrb[0].mxu0
        %v3091 = vadd.f32 0.0, %v3090
        %v3092 = vpop.f32.mrb[0].mxu0
        %v3093 = vadd.f32 0.0, %v3092
        %v3094 = vpop.f32.mrb[0].mxu0
        %v3095 = vadd.f32 0.0, %v3094
        %v3096 = vpop.f32.mrb[0].mxu0
        %v3097 = vadd.f32 0.0, %v3096
        %3098 = vmatprep.mubr.bf16.mxu0 0
        %3099 = vmatmul.mubr.bf16.gmra.mrb[0].mxu0 %v2749
        %v3100 = vpop.f32.mrb[0].mxu0
        %v3101 = vadd.f32 0.0, %v3100
        %v3102 = vpop.f32.mrb[0].mxu0
        %v3103 = vadd.f32 0.0, %v3102
        %v3104 = vpop.f32.mrb[0].mxu0
        %v3105 = vadd.f32 0.0, %v3104
        %v3106 = vpop.f32.mrb[0].mxu0
        %v3107 = vadd.f32 0.0, %v3106
        %3108 = vmatprep.mubr.bf16.mxu0 0
        %3109 = vmatmul.mubr.bf16.gmra.mrb[0].mxu0 %v2750
        %v3110 = vpop.f32.mrb[0].mxu0
        %v3111 = vadd.f32 0.0, %v3110
        %v3112 = vpop.f32.mrb[0].mxu0
        %v3113 = vadd.f32 0.0, %v3112
        %v3114 = vpop.f32.mrb[0].mxu0
        %v3115 = vadd.f32 0.0, %v3114
        %v3116 = vpop.f32.mrb[0].mxu0
        %v3117 = vadd.f32 0.0, %v3116
        %3118 = vmatprep.mubr.bf16.mxu0 0
        %3119 = vmatmul.mubr.bf16.gmra.mrb[0].mxu0 %v2751
        %v3120 = vpop.f32.mrb[0].mxu0
        %v3121 = vadd.f32 0.0, %v3120
        %v3122 = vpop.f32.mrb[0].mxu0
        %v3123 = vadd.f32 0.0, %v3122
        %v3124 = vpop.f32.mrb[0].mxu0
        %v3125 = vadd.f32 0.0, %v3124
        %v3126 = vpop.f32.mrb[0].mxu0
        %v3127 = vadd.f32 0.0, %v3126
        %3128 = vmatprep.mubr.bf16.mxu0 0
        %3129 = vmatmul.mubr.bf16.gmra.mrb[0].mxu0 %v2752
        %v3130 = vpop.f32.mrb[0].mxu0
        %v3131 = vadd.f32 0.0, %v3130
        %v3132 = vpop.f32.mrb[0].mxu0
        %v3133 = vadd.f32 0.0, %v3132
        %v3134 = vpop.f32.mrb[0].mxu0
        %v3135 = vadd.f32 0.0, %v3134
        %v3136 = vpop.f32.mrb[0].mxu0
        %v3137 = vadd.f32 0.0, %v3136
        %3138 = vmatprep.mubr.bf16.mxu0 0
        %3139 = vmatmul.mubr.bf16.gmra.mrb[0].mxu0 %v2753
        %v3140 = vpop.f32.mrb[0].mxu0
        %v3141 = vadd.f32 0.0, %v3140
        %v3142 = vpop.f32.mrb[0].mxu0
        %v3143 = vadd.f32 0.0, %v3142
        %v3144 = vpop.f32.mrb[0].mxu0
        %v3145 = vadd.f32 0.0, %v3144
        %v3146 = vpop.f32.mrb[0].mxu0
        %v3147 = vadd.f32 0.0, %v3146
        %3148 = vmatprep.mubr.bf16.mxu0 0
        %3149 = vmatmul.mubr.bf16.gmra.mrb[0].mxu0 %v2754
        %v3150 = vpop.f32.mrb[0].mxu0
        %v3151 = vadd.f32 0.0, %v3150
        %v3152 = vpop.f32.mrb[0].mxu0
        %v3153 = vadd.f32 0.0, %v3152
        %v3154 = vpop.f32.mrb[0].mxu0
        %v3155 = vadd.f32 0.0, %v3154
        %v3156 = vpop.f32.mrb[0].mxu0
        %v3157 = vadd.f32 0.0, %v3156
        %3158 = vmatprep.mubr.bf16.mxu0 0
        %3159 = vmatmul.mubr.bf16.gmra.mrb[0].mxu0 %v2755
        %v3160 = vpop.f32.mrb[0].mxu0
        %v3161 = vadd.f32 0.0, %v3160
        %v3162 = vpop.f32.mrb[0].mxu0
        %v3163 = vadd.f32 0.0, %v3162
        %v3164 = vpop.f32.mrb[0].mxu0
        %v3165 = vadd.f32 0.0, %v3164
        %v3166 = vpop.f32.mrb[0].mxu0
        %v3167 = vadd.f32 0.0, %v3166
        %3168 = vmatprep.mubr.bf16.mxu0 0
        %3169 = vmatmul.mubr.bf16.gmra.mrb[0].mxu0 %v2756
        %v3170 = vpop.f32.mrb[0].mxu0
        %v3171 = vadd.f32 0.0, %v3170
        %v3172 = vpop.f32.mrb[0].mxu0
        %v3173 = vadd.f32 0.0, %v3172
        %v3174 = vpop.f32.mrb[0].mxu0
        %v3175 = vadd.f32 0.0, %v3174
        %v3176 = vpop.f32.mrb[0].mxu0
        %v3177 = vadd.f32 0.0, %v3176
        %3178 = vmatprep.mubr.bf16.mxu0 0
        %3179 = vmatmul.mubr.bf16.gmra.mrb[0].mxu0 %v2757
        %v3180 = vpop.f32.mrb[0].mxu0
        %v3181 = vadd.f32 0.0, %v3180
        %v3182 = vpop.f32.mrb[0].mxu0
        %v3183 = vadd.f32 0.0, %v3182
        %v3184 = vpop.f32.mrb[0].mxu0
        %v3185 = vadd.f32 0.0, %v3184
        %v3186 = vpop.f32.mrb[0].mxu0
        %v3187 = vadd.f32 0.0, %v3186
        %3188 = vmatprep.mubr.bf16.mxu0 0
        %3189 = vmatmul.mubr.bf16.gmra.mrb[0].mxu0 %v2758
        %v3190 = vpop.f32.mrb[0].mxu0
        %v3191 = vadd.f32 0.0, %v3190
        %v3192 = vpop.f32.mrb[0].mxu0
        %v3193 = vadd.f32 0.0, %v3192
        %v3194 = vpop.f32.mrb[0].mxu0
        %v3195 = vadd.f32 0.0, %v3194
        %v3196 = vpop.f32.mrb[0].mxu0
        %v3197 = vadd.f32 0.0, %v3196
        %3198 = vmatprep.mubr.bf16.mxu0 0
        %3199 = vmatmul.mubr.bf16.gmra.mrb[0].mxu0 %v2759
        %v3200 = vpop.f32.mrb[0].mxu0
        %v3201 = vadd.f32 0.0, %v3200
        %v3202 = vpop.f32.mrb[0].mxu0
        %v3203 = vadd.f32 0.0, %v3202
        %v3204 = vpop.f32.mrb[0].mxu0
        %v3205 = vadd.f32 0.0, %v3204
        %v3206 = vpop.f32.mrb[0].mxu0
        %v3207 = vadd.f32 0.0, %v3206
        %3208 = vmatprep.mubr.bf16.mxu0 0
        %3209 = vmatmul.mubr.bf16.gmra.mrb[0].mxu0 %v2760
        %v3210 = vpop.f32.mrb[0].mxu0
        %v3211 = vadd.f32 0.0, %v3210
        %v3212 = vpop.f32.mrb[0].mxu0
        %v3213 = vadd.f32 0.0, %v3212
        %v3214 = vpop.f32.mrb[0].mxu0
        %v3215 = vadd.f32 0.0, %v3214
        %v3216 = vpop.f32.mrb[0].mxu0
        %v3217 = vadd.f32 0.0, %v3216
        %3218 = vmatprep.mubr.bf16.mxu0 0
        %3219 = vmatmul.mubr.bf16.gmra.mrb[0].mxu0 %v2761
        %v3220 = vpop.f32.mrb[0].mxu0
        %v3221 = vadd.f32 0.0, %v3220
        %v3222 = vpop.f32.mrb[0].mxu0
        %v3223 = vadd.f32 0.0, %v3222
        %v3224 = vpop.f32.mrb[0].mxu0
        %v3225 = vadd.f32 0.0, %v3224
        %v3226 = vpop.f32.mrb[0].mxu0
        %v3227 = vadd.f32 0.0, %v3226
        %3228 = vmatprep.mubr.bf16.mxu0 0
        %3229 = vmatmul.mubr.bf16.gmra.mrb[0].mxu0 %v2762
        %v3230 = vpop.f32.mrb[0].mxu0
        %v3231 = vadd.f32 0.0, %v3230
        %v3232 = vpop.f32.mrb[0].mxu0
        %v3233 = vadd.f32 0.0, %v3232
        %v3234 = vpop.f32.mrb[0].mxu0
        %v3235 = vadd.f32 0.0, %v3234
        %v3236 = vpop.f32.mrb[0].mxu0
        %v3237 = vadd.f32 0.0, %v3236
        %3238 = vmatprep.mubr.bf16.mxu0 0
        %3239 = vmatmul.mubr.bf16.gmra.mrb[0].mxu0 %v2763
        %v3240 = vpop.f32.mrb[0].mxu0
        %v3241 = vadd.f32 0.0, %v3240
        %v3242 = vpop.f32.mrb[0].mxu0
        %v3243 = vadd.f32 0.0, %v3242
        %v3244 = vpop.f32.mrb[0].mxu0
        %v3245 = vadd.f32 0.0, %v3244
        %v3246 = vpop.f32.mrb[0].mxu0
        %v3247 = vadd.f32 0.0, %v3246
        %3248 = vmatprep.mubr.bf16.mxu0 0
        %3249 = vmatmul.mubr.bf16.gmra.mrb[0].mxu0 %v2764
        %v3250 = vpop.f32.mrb[0].mxu0
        %v3251 = vadd.f32 0.0, %v3250
        %v3252 = vpop.f32.mrb[0].mxu0
        %v3253 = vadd.f32 0.0, %v3252
        %v3254 = vpop.f32.mrb[0].mxu0
        %v3255 = vadd.f32 0.0, %v3254
        %v3256 = vpop.f32.mrb[0].mxu0
        %v3257 = vadd.f32 0.0, %v3256
        %3258 = vmatprep.mubr.bf16.mxu0 0
        %3259 = vmatmul.mubr.bf16.gmra.mrb[0].mxu0 %v2765
        %v3260 = vpop.f32.mrb[0].mxu0
        %v3261 = vadd.f32 0.0, %v3260
        %v3262 = vpop.f32.mrb[0].mxu0
        %v3263 = vadd.f32 0.0, %v3262
        %v3264 = vpop.f32.mrb[0].mxu0
        %v3265 = vadd.f32 0.0, %v3264
        %v3266 = vpop.f32.mrb[0].mxu0
        %v3267 = vadd.f32 0.0, %v3266
        %3268 = vmatprep.mubr.bf16.mxu0 0
        %3269 = vmatmul.mubr.bf16.gmra.mrb[0].mxu0 %v2766
        %v3270 = vpop.f32.mrb[0].mxu0
        %v3271 = vadd.f32 0.0, %v3270
        %v3272 = vpop.f32.mrb[0].mxu0
        %v3273 = vadd.f32 0.0, %v3272
        %v3274 = vpop.f32.mrb[0].mxu0
        %v3275 = vadd.f32 0.0, %v3274
        %v3276 = vpop.f32.mrb[0].mxu0
        %v3277 = vadd.f32 0.0, %v3276
        %3278 = vmatprep.mubr.bf16.mxu0 0
        %3279 = vmatmul.mubr.bf16.gmra.mrb[0].mxu0 %v2767
        %v3280 = vpop.f32.mrb[0].mxu0
        %v3281 = vadd.f32 0.0, %v3280
        %v3282 = vpop.f32.mrb[0].mxu0
        %v3283 = vadd.f32 0.0, %v3282
        %v3284 = vpop.f32.mrb[0].mxu0
        %v3285 = vadd.f32 0.0, %v3284
        %v3286 = vpop.f32.mrb[0].mxu0
        %v3287 = vadd.f32 0.0, %v3286
        %3288 = vmatprep.mubr.bf16.mxu0 0
        %3289 = vmatmul.mubr.bf16.gmra.mrb[0].mxu0 %v2768
        %v3290 = vpop.f32.mrb[0].mxu0
        %v3291 = vadd.f32 0.0, %v3290
        %v3292 = vpop.f32.mrb[0].mxu0
        %v3293 = vadd.f32 0.0, %v3292
        %v3294 = vpop.f32.mrb[0].mxu0
        %v3295 = vadd.f32 0.0, %v3294
        %v3296 = vpop.f32.mrb[0].mxu0
        %v3297 = vadd.f32 0.0, %v3296
        %3298 = vmatprep.mubr.bf16.mxu0 0
        %3299 = vmatmul.mubr.bf16.gmra.mrb[0].mxu0 %v2769
        %v3300 = vpop.f32.mrb[0].mxu0
        %v3301 = vadd.f32 0.0, %v3300
        %v3302 = vpop.f32.mrb[0].mxu0
        %v3303 = vadd.f32 0.0, %v3302
        %v3304 = vpop.f32.mrb[0].mxu0
        %v3305 = vadd.f32 0.0, %v3304
        %v3306 = vpop.f32.mrb[0].mxu0
        %v3307 = vadd.f32 0.0, %v3306
        %3308 = vmatprep.mubr.bf16.mxu0 0
        %3309 = vmatmul.mubr.bf16.gmra.mrb[0].mxu0 %v2770
        %v3310 = vpop.f32.mrb[0].mxu0
        %v3311 = vadd.f32 0.0, %v3310
        %v3312 = vpop.f32.mrb[0].mxu0
        %v3313 = vadd.f32 0.0, %v3312
        %v3314 = vpop.f32.mrb[0].mxu0
        %v3315 = vadd.f32 0.0, %v3314
        %v3316 = vpop.f32.mrb[0].mxu0
        %v3317 = vadd.f32 0.0, %v3316
        %3318 = vmatprep.mubr.bf16.mxu0 0
        %3319 = vmatmul.mubr.bf16.gmra.mrb[0].mxu0 %v2771
        %v3320 = vpop.f32.mrb[0].mxu0
        %v3321 = vadd.f32 0.0, %v3320
        %v3322 = vpop.f32.mrb[0].mxu0
        %v3323 = vadd.f32 0.0, %v3322
        %v3324 = vpop.f32.mrb[0].mxu0
        %v3325 = vadd.f32 0.0, %v3324
        %v3326 = vpop.f32.mrb[0].mxu0
        %v3327 = vadd.f32 0.0, %v3326
        %3328 = vmatprep.mubr.bf16.mxu0 0
        %3329 = vmatmul.mubr.bf16.gmra.mrb[0].mxu0 %v2772
        %v3330 = vpop.f32.mrb[0].mxu0
        %v3331 = vadd.f32 0.0, %v3330
        %v3332 = vpop.f32.mrb[0].mxu0
        %v3333 = vadd.f32 0.0, %v3332
        %v3334 = vpop.f32.mrb[0].mxu0
        %v3335 = vadd.f32 0.0, %v3334
        %v3336 = vpop.f32.mrb[0].mxu0
        %v3337 = vadd.f32 0.0, %v3336
        %3338 = vmatprep.mubr.bf16.mxu0 0
        %3339 = vmatmul.mubr.bf16.gmra.mrb[0].mxu0 %v2773
        %v3340 = vpop.f32.mrb[0].mxu0
        %v3341 = vadd.f32 0.0, %v3340
        %v3342 = vpop.f32.mrb[0].mxu0
        %v3343 = vadd.f32 0.0, %v3342
        %v3344 = vpop.f32.mrb[0].mxu0
        %v3345 = vadd.f32 0.0, %v3344
        %v3346 = vpop.f32.mrb[0].mxu0
        %v3347 = vadd.f32 0.0, %v3346
        %3348 = vmatprep.mubr.bf16.mxu0 0
        %3349 = vmatmul.mubr.bf16.gmra.mrb[0].mxu0 %v2774
        %v3350 = vpop.f32.mrb[0].mxu0
        %v3351 = vadd.f32 0.0, %v3350
        %v3352 = vpop.f32.mrb[0].mxu0
        %v3353 = vadd.f32 0.0, %v3352
        %v3354 = vpop.f32.mrb[0].mxu0
        %v3355 = vadd.f32 0.0, %v3354
        %v3356 = vpop.f32.mrb[0].mxu0
        %v3357 = vadd.f32 0.0, %v3356
        %3358 = vmatprep.mubr.bf16.mxu0 0
        %3359 = vmatmul.mubr.bf16.gmra.mrb[0].mxu0 %v2775
        %v3360 = vpop.f32.mrb[0].mxu0
        %v3361 = vadd.f32 0.0, %v3360
        %v3362 = vpop.f32.mrb[0].mxu0
        %v3363 = vadd.f32 0.0, %v3362
        %v3364 = vpop.f32.mrb[0].mxu0
        %v3365 = vadd.f32 0.0, %v3364
        %v3366 = vpop.f32.mrb[0].mxu0
        %v3367 = vadd.f32 0.0, %v3366
        %3368 = vmatprep.mubr.bf16.mxu0 0
        %3369 = vmatmul.mubr.bf16.gmra.mrb[0].mxu0 %v2776
        %v3370 = vpop.f32.mrb[0].mxu0
        %v3371 = vadd.f32 0.0, %v3370
        %v3372 = vpop.f32.mrb[0].mxu0
        %v3373 = vadd.f32 0.0, %v3372
        %v3374 = vpop.f32.mrb[0].mxu0
        %v3375 = vadd.f32 0.0, %v3374
        %v3376 = vpop.f32.mrb[0].mxu0
        %v3377 = vadd.f32 0.0, %v3376
        %3378 = vmatprep.mubr.bf16.mxu0 0
        %3379 = vmatmul.mubr.bf16.gmra.mrb[0].mxu0 %v2777
        %v3380 = vpop.f32.mrb[0].mxu0
        %v3381 = vadd.f32 0.0, %v3380
        %v3382 = vpop.f32.mrb[0].mxu0
        %v3383 = vadd.f32 0.0, %v3382
        %v3384 = vpop.f32.mrb[0].mxu0
        %v3385 = vadd.f32 0.0, %v3384
        %v3386 = vpop.f32.mrb[0].mxu0
        %v3387 = vadd.f32 0.0, %v3386
        %3388 = vmatprep.mubr.bf16.mxu0 0
        %3389 = vmatmul.mubr.bf16.gmra.mrb[0].mxu0 %v2778
        %v3390 = vpop.f32.mrb[0].mxu0
        %v3391 = vadd.f32 0.0, %v3390
        %v3392 = vpop.f32.mrb[0].mxu0
        %v3393 = vadd.f32 0.0, %v3392
        %v3394 = vpop.f32.mrb[0].mxu0
        %v3395 = vadd.f32 0.0, %v3394
        %v3396 = vpop.f32.mrb[0].mxu0
        %v3397 = vadd.f32 0.0, %v3396
        %3398 = vmatprep.mubr.bf16.mxu0 0
        %3399 = vmatmul.mubr.bf16.gmra.mrb[0].mxu0 %v2779
        %v3400 = vpop.f32.mrb[0].mxu0
        %v3401 = vadd.f32 0.0, %v3400
        %v3402 = vpop.f32.mrb[0].mxu0
        %v3403 = vadd.f32 0.0, %v3402
        %v3404 = vpop.f32.mrb[0].mxu0
        %v3405 = vadd.f32 0.0, %v3404
        %v3406 = vpop.f32.mrb[0].mxu0
        %v3407 = vadd.f32 0.0, %v3406
        %3408 = vmatprep.mubr.bf16.mxu0 0
        %3409 = vmatmul.mubr.bf16.gmra.mrb[0].mxu0 %v2780
        %v3410 = vpop.f32.mrb[0].mxu0
        %v3411 = vadd.f32 0.0, %v3410
        %v3412 = vpop.f32.mrb[0].mxu0
        %v3413 = vadd.f32 0.0, %v3412
        %v3414 = vpop.f32.mrb[0].mxu0
        %v3415 = vadd.f32 0.0, %v3414
        %v3416 = vpop.f32.mrb[0].mxu0
        %v3417 = vadd.f32 0.0, %v3416
        %3418 = vmatprep.mubr.bf16.mxu0 0
        %3419 = vmatmul.mubr.bf16.gmra.mrb[0].mxu0 %v2781
        %v3420 = vpop.f32.mrb[0].mxu0
        %v3421 = vadd.f32 0.0, %v3420
        %v3422 = vpop.f32.mrb[0].mxu0
        %v3423 = vadd.f32 0.0, %v3422
        %v3424 = vpop.f32.mrb[0].mxu0
        %v3425 = vadd.f32 0.0, %v3424
        %v3426 = vpop.f32.mrb[0].mxu0
        %v3427 = vadd.f32 0.0, %v3426
        %3428 = vmatprep.mubr.bf16.mxu0 0
        %3429 = vmatmul.mubr.bf16.gmra.mrb[0].mxu0 %v2782
        %v3430 = vpop.f32.mrb[0].mxu0
        %v3431 = vadd.f32 0.0, %v3430
        %v3432 = vpop.f32.mrb[0].mxu0
        %v3433 = vadd.f32 0.0, %v3432
        %v3434 = vpop.f32.mrb[0].mxu0
        %v3435 = vadd.f32 0.0, %v3434
        %v3436 = vpop.f32.mrb[0].mxu0
        %v3437 = vadd.f32 0.0, %v3436
        %3438 = vmatprep.mubr.bf16.mxu0 0
        %3439 = vmatmul.mubr.bf16.gmra.mrb[0].mxu0 %v2783
        %v3440 = vpop.f32.mrb[0].mxu0
        %v3441 = vadd.f32 0.0, %v3440
        %v3442 = vpop.f32.mrb[0].mxu0
        %v3443 = vadd.f32 0.0, %v3442
        %v3444 = vpop.f32.mrb[0].mxu0
        %v3445 = vadd.f32 0.0, %v3444
        %v3446 = vpop.f32.mrb[0].mxu0
        %v3447 = vadd.f32 0.0, %v3446
        %3448 = vmatprep.mubr.bf16.mxu0 0
        %3449 = vmatmul.mubr.bf16.gmra.mrb[0].mxu0 %v2784
        %v3450 = vpop.f32.mrb[0].mxu0
        %v3451 = vadd.f32 0.0, %v3450
        %v3452 = vpop.f32.mrb[0].mxu0
        %v3453 = vadd.f32 0.0, %v3452
        %v3454 = vpop.f32.mrb[0].mxu0
        %v3455 = vadd.f32 0.0, %v3454
        %v3456 = vpop.f32.mrb[0].mxu0
        %v3457 = vadd.f32 0.0, %v3456
        %3458 = vmatprep.mubr.bf16.mxu0 0
        %3459 = vmatmul.mubr.bf16.gmra.mrb[0].mxu0 %v2785
        %v3460 = vpop.f32.mrb[0].mxu0
        %v3461 = vadd.f32 0.0, %v3460
        %v3462 = vpop.f32.mrb[0].mxu0
        %v3463 = vadd.f32 0.0, %v3462
        %v3464 = vpop.f32.mrb[0].mxu0
        %v3465 = vadd.f32 0.0, %v3464
        %v3466 = vpop.f32.mrb[0].mxu0
        %v3467 = vadd.f32 0.0, %v3466
        %3468 = vmatprep.mubr.bf16.mxu0 0
        %3469 = vmatmul.mubr.bf16.gmra.mrb[0].mxu0 %v2786
        %v3470 = vpop.f32.mrb[0].mxu0
        %v3471 = vadd.f32 0.0, %v3470
        %v3472 = vpop.f32.mrb[0].mxu0
        %v3473 = vadd.f32 0.0, %v3472
        %v3474 = vpop.f32.mrb[0].mxu0
        %v3475 = vadd.f32 0.0, %v3474
        %v3476 = vpop.f32.mrb[0].mxu0
        %v3477 = vadd.f32 0.0, %v3476
        %3478 = vmatprep.mubr.bf16.mxu0 0
        %3479 = vmatmul.mubr.bf16.gmra.mrb[0].mxu0 %v2787
        %v3480 = vpop.f32.mrb[0].mxu0
        %v3481 = vadd.f32 0.0, %v3480
        %v3482 = vpop.f32.mrb[0].mxu0
        %v3483 = vadd.f32 0.0, %v3482
        %v3484 = vpop.f32.mrb[0].mxu0
        %v3485 = vadd.f32 0.0, %v3484
        %v3486 = vpop.f32.mrb[0].mxu0
        %v3487 = vadd.f32 0.0, %v3486
        %3488 = vmatprep.mubr.bf16.mxu0 0
        %3489 = vmatmul.mubr.bf16.gmra.mrb[0].mxu0 %v2788
        %v3490 = vpop.f32.mrb[0].mxu0
        %v3491 = vadd.f32 0.0, %v3490
        %v3492 = vpop.f32.mrb[0].mxu0
        %v3493 = vadd.f32 0.0, %v3492
        %v3494 = vpop.f32.mrb[0].mxu0
        %v3495 = vadd.f32 0.0, %v3494
        %v3496 = vpop.f32.mrb[0].mxu0
        %v3497 = vadd.f32 0.0, %v3496
        %3498 = vmatprep.mubr.bf16.mxu0 0
        %3499 = vmatmul.mubr.bf16.gmra.mrb[0].mxu0 %v2789
        %v3500 = vpop.f32.mrb[0].mxu0
        %v3501 = vadd.f32 0.0, %v3500
        %v3502 = vpop.f32.mrb[0].mxu0
        %v3503 = vadd.f32 0.0, %v3502
        %v3504 = vpop.f32.mrb[0].mxu0
        %v3505 = vadd.f32 0.0, %v3504
        %v3506 = vpop.f32.mrb[0].mxu0
        %v3507 = vadd.f32 0.0, %v3506
        %3508 = vmatprep.mubr.bf16.mxu0 0
        %3509 = vmatmul.mubr.bf16.gmra.mrb[0].mxu0 %v2790
        %v3510 = vpop.f32.mrb[0].mxu0
        %v3511 = vadd.f32 0.0, %v3510
        %v3512 = vpop.f32.mrb[0].mxu0
        %v3513 = vadd.f32 0.0, %v3512
        %v3514 = vpop.f32.mrb[0].mxu0
        %v3515 = vadd.f32 0.0, %v3514
        %v3516 = vpop.f32.mrb[0].mxu0
        %v3517 = vadd.f32 0.0, %v3516
        %3518 = vmatprep.mubr.bf16.mxu0 0
        %3519 = vmatmul.mubr.bf16.gmra.mrb[0].mxu0 %v2791
        %v3520 = vpop.f32.mrb[0].mxu0
        %v3521 = vadd.f32 0.0, %v3520
        %v3522 = vpop.f32.mrb[0].mxu0
        %v3523 = vadd.f32 0.0, %v3522
        %v3524 = vpop.f32.mrb[0].mxu0
        %v3525 = vadd.f32 0.0, %v3524
        %v3526 = vpop.f32.mrb[0].mxu0
        %v3527 = vadd.f32 0.0, %v3526
        %3528 = vdwg.mxu0
        %3529 = vmatprep.subr.bf16.mxu0 %v2411
        %3530 = vmatpush1.bf16.msra.mxu0 %v2410
        %3531 = vmatprep.subr.bf16.mxu0 %v2419
        %3532 = vmatpush1.bf16.msra.mxu0 %v2418
        %3533 = vmatprep.subr.bf16.mxu0 %v2427
        %3534 = vmatpush1.bf16.msra.mxu0 %v2426
        %3535 = vmatprep.subr.bf16.mxu0 %v2435
        %3536 = vmatpush1.bf16.msra.mxu0 %v2434
        %3537 = vmatprep.subr.bf16.mxu0 %v2443
        %3538 = vmatpush1.bf16.msra.mxu0 %v2442
        %3539 = vmatprep.subr.bf16.mxu0 %v2451
        %3540 = vmatpush1.bf16.msra.mxu0 %v2450
        %3541 = vmatprep.subr.bf16.mxu0 %v2459
        %3542 = vmatpush1.bf16.msra.mxu0 %v2458
        %3543 = vmatprep.subr.bf16.mxu0 %v2467
        %3544 = vmatpush1.bf16.msra.mxu0 %v2466
        %3545 = vmatprep.subr.bf16.mxu0 0
        %3546 = vmatpush1.bf16.msra.mxu0 0
        %3547 = vmatprep.subr.bf16.mxu0 0
        %3548 = vmatpush1.bf16.msra.mxu0 0
        %3549 = vmatprep.subr.bf16.mxu0 0
        %3550 = vmatpush1.bf16.msra.mxu0 0
        %3551 = vmatprep.subr.bf16.mxu0 0
        %3552 = vmatpush1.bf16.msra.mxu0 0
        %3553 = vmatprep.subr.bf16.mxu0 0
        %3554 = vmatpush1.bf16.msra.mxu0 0
        %3555 = vmatprep.subr.bf16.mxu0 0
        %3556 = vmatpush1.bf16.msra.mxu0 0
        %3557 = vmatprep.subr.bf16.mxu0 0
        %3558 = vmatpush1.bf16.msra.mxu0 0
        %3559 = vmatprep.subr.bf16.mxu0 0
        %3560 = vmatpush1.bf16.msra.mxu0 0
        %3561 = vmatprep.mubr.bf16.mxu0 0
        %3562 = vmatmul.mubr.bf16.gmra.mrb[0].mxu0 %v2728
        %v3563 = vpop.f32.mrb[0].mxu0
        %v3564 = vadd.f32 0.0, %v3563
        %v3565 = vpop.f32.mrb[0].mxu0
        %v3566 = vadd.f32 0.0, %v3565
        %v3567 = vpop.f32.mrb[0].mxu0
        %v3568 = vadd.f32 0.0, %v3567
        %v3569 = vpop.f32.mrb[0].mxu0
        %v3570 = vadd.f32 0.0, %v3569
        %3571 = vmatprep.mubr.bf16.mxu0 0
        %3572 = vmatmul.mubr.bf16.gmra.mrb[0].mxu0 %v2729
        %v3573 = vpop.f32.mrb[0].mxu0
        %v3574 = vadd.f32 0.0, %v3573
        %v3575 = vpop.f32.mrb[0].mxu0
        %v3576 = vadd.f32 0.0, %v3575
        %v3577 = vpop.f32.mrb[0].mxu0
        %v3578 = vadd.f32 0.0, %v3577
        %v3579 = vpop.f32.mrb[0].mxu0
        %v3580 = vadd.f32 0.0, %v3579
        %3581 = vmatprep.mubr.bf16.mxu0 0
        %3582 = vmatmul.mubr.bf16.gmra.mrb[0].mxu0 %v2730
        %v3583 = vpop.f32.mrb[0].mxu0
        %v3584 = vadd.f32 0.0, %v3583
        %v3585 = vpop.f32.mrb[0].mxu0
        %v3586 = vadd.f32 0.0, %v3585
        %v3587 = vpop.f32.mrb[0].mxu0
        %v3588 = vadd.f32 0.0, %v3587
        %v3589 = vpop.f32.mrb[0].mxu0
        %v3590 = vadd.f32 0.0, %v3589
        %3591 = vmatprep.mubr.bf16.mxu0 0
        %3592 = vmatmul.mubr.bf16.gmra.mrb[0].mxu0 %v2731
        %v3593 = vpop.f32.mrb[0].mxu0
        %v3594 = vadd.f32 0.0, %v3593
        %v3595 = vpop.f32.mrb[0].mxu0
        %v3596 = vadd.f32 0.0, %v3595
        %v3597 = vpop.f32.mrb[0].mxu0
        %v3598 = vadd.f32 0.0, %v3597
        %v3599 = vpop.f32.mrb[0].mxu0
        %v3600 = vadd.f32 0.0, %v3599
        %3601 = vmatprep.mubr.bf16.mxu0 0
        %3602 = vmatmul.mubr.bf16.gmra.mrb[0].mxu0 %v2732
        %v3603 = vpop.f32.mrb[0].mxu0
        %v3604 = vadd.f32 0.0, %v3603
        %v3605 = vpop.f32.mrb[0].mxu0
        %v3606 = vadd.f32 0.0, %v3605
        %v3607 = vpop.f32.mrb[0].mxu0
        %v3608 = vadd.f32 0.0, %v3607
        %v3609 = vpop.f32.mrb[0].mxu0
        %v3610 = vadd.f32 0.0, %v3609
        %3611 = vmatprep.mubr.bf16.mxu0 0
        %3612 = vmatmul.mubr.bf16.gmra.mrb[0].mxu0 %v2733
        %v3613 = vpop.f32.mrb[0].mxu0
        %v3614 = vadd.f32 0.0, %v3613
        %v3615 = vpop.f32.mrb[0].mxu0
        %v3616 = vadd.f32 0.0, %v3615
        %v3617 = vpop.f32.mrb[0].mxu0
        %v3618 = vadd.f32 0.0, %v3617
        %v3619 = vpop.f32.mrb[0].mxu0
        %v3620 = vadd.f32 0.0, %v3619
        %3621 = vmatprep.mubr.bf16.mxu0 0
        %3622 = vmatmul.mubr.bf16.gmra.mrb[0].mxu0 %v2734
        %v3623 = vpop.f32.mrb[0].mxu0
        %v3624 = vadd.f32 0.0, %v3623
        %v3625 = vpop.f32.mrb[0].mxu0
        %v3626 = vadd.f32 0.0, %v3625
        %v3627 = vpop.f32.mrb[0].mxu0
        %v3628 = vadd.f32 0.0, %v3627
        %v3629 = vpop.f32.mrb[0].mxu0
        %v3630 = vadd.f32 0.0, %v3629
        %3631 = vmatprep.mubr.bf16.mxu0 0
        %3632 = vmatmul.mubr.bf16.gmra.mrb[0].mxu0 %v2735
        %v3633 = vpop.f32.mrb[0].mxu0
        %v3634 = vadd.f32 0.0, %v3633
        %v3635 = vpop.f32.mrb[0].mxu0
        %v3636 = vadd.f32 0.0, %v3635
        %v3637 = vpop.f32.mrb[0].mxu0
        %v3638 = vadd.f32 0.0, %v3637
        %v3639 = vpop.f32.mrb[0].mxu0
        %v3640 = vadd.f32 0.0, %v3639
        %3641 = vmatprep.mubr.bf16.mxu0 0
        %3642 = vmatmul.mubr.bf16.gmra.mrb[0].mxu0 %v2736
        %v3643 = vpop.f32.mrb[0].mxu0
        %v3644 = vadd.f32 0.0, %v3643
        %v3645 = vpop.f32.mrb[0].mxu0
        %v3646 = vadd.f32 0.0, %v3645
        %v3647 = vpop.f32.mrb[0].mxu0
        %v3648 = vadd.f32 0.0, %v3647
        %v3649 = vpop.f32.mrb[0].mxu0
        %v3650 = vadd.f32 0.0, %v3649
        %3651 = vmatprep.mubr.bf16.mxu0 0
        %3652 = vmatmul.mubr.bf16.gmra.mrb[0].mxu0 %v2737
        %v3653 = vpop.f32.mrb[0].mxu0
        %v3654 = vadd.f32 0.0, %v3653
        %v3655 = vpop.f32.mrb[0].mxu0
        %v3656 = vadd.f32 0.0, %v3655
        %v3657 = vpop.f32.mrb[0].mxu0
        %v3658 = vadd.f32 0.0, %v3657
        %v3659 = vpop.f32.mrb[0].mxu0
        %v3660 = vadd.f32 0.0, %v3659
        %3661 = vmatprep.mubr.bf16.mxu0 0
        %3662 = vmatmul.mubr.bf16.gmra.mrb[0].mxu0 %v2738
        %v3663 = vpop.f32.mrb[0].mxu0
        %v3664 = vadd.f32 0.0, %v3663
        %v3665 = vpop.f32.mrb[0].mxu0
        %v3666 = vadd.f32 0.0, %v3665
        %v3667 = vpop.f32.mrb[0].mxu0
        %v3668 = vadd.f32 0.0, %v3667
        %v3669 = vpop.f32.mrb[0].mxu0
        %v3670 = vadd.f32 0.0, %v3669
        %3671 = vmatprep.mubr.bf16.mxu0 0
        %3672 = vmatmul.mubr.bf16.gmra.mrb[0].mxu0 %v2739
        %v3673 = vpop.f32.mrb[0].mxu0
        %v3674 = vadd.f32 0.0, %v3673
        %v3675 = vpop.f32.mrb[0].mxu0
        %v3676 = vadd.f32 0.0, %v3675
        %v3677 = vpop.f32.mrb[0].mxu0
        %v3678 = vadd.f32 0.0, %v3677
        %v3679 = vpop.f32.mrb[0].mxu0
        %v3680 = vadd.f32 0.0, %v3679
        %3681 = vmatprep.mubr.bf16.mxu0 0
        %3682 = vmatmul.mubr.bf16.gmra.mrb[0].mxu0 %v2740
        %v3683 = vpop.f32.mrb[0].mxu0
        %v3684 = vadd.f32 0.0, %v3683
        %v3685 = vpop.f32.mrb[0].mxu0
        %v3686 = vadd.f32 0.0, %v3685
        %v3687 = vpop.f32.mrb[0].mxu0
        %v3688 = vadd.f32 0.0, %v3687
        %v3689 = vpop.f32.mrb[0].mxu0
        %v3690 = vadd.f32 0.0, %v3689
        %3691 = vmatprep.mubr.bf16.mxu0 0
        %3692 = vmatmul.mubr.bf16.gmra.mrb[0].mxu0 %v2741
        %v3693 = vpop.f32.mrb[0].mxu0
        %v3694 = vadd.f32 0.0, %v3693
        %v3695 = vpop.f32.mrb[0].mxu0
        %v3696 = vadd.f32 0.0, %v3695
        %v3697 = vpop.f32.mrb[0].mxu0
        %v3698 = vadd.f32 0.0, %v3697
        %v3699 = vpop.f32.mrb[0].mxu0
        %v3700 = vadd.f32 0.0, %v3699
        %3701 = vmatprep.mubr.bf16.mxu0 0
        %3702 = vmatmul.mubr.bf16.gmra.mrb[0].mxu0 %v2742
        %v3703 = vpop.f32.mrb[0].mxu0
        %v3704 = vadd.f32 0.0, %v3703
        %v3705 = vpop.f32.mrb[0].mxu0
        %v3706 = vadd.f32 0.0, %v3705
        %v3707 = vpop.f32.mrb[0].mxu0
        %v3708 = vadd.f32 0.0, %v3707
        %v3709 = vpop.f32.mrb[0].mxu0
        %v3710 = vadd.f32 0.0, %v3709
        %3711 = vmatprep.mubr.bf16.mxu0 0
        %3712 = vmatmul.mubr.bf16.gmra.mrb[0].mxu0 %v2743
        %v3713 = vpop.f32.mrb[0].mxu0
        %v3714 = vadd.f32 0.0, %v3713
        %v3715 = vpop.f32.mrb[0].mxu0
        %v3716 = vadd.f32 0.0, %v3715
        %v3717 = vpop.f32.mrb[0].mxu0
        %v3718 = vadd.f32 0.0, %v3717
        %v3719 = vpop.f32.mrb[0].mxu0
        %v3720 = vadd.f32 0.0, %v3719
        %3721 = vmatprep.mubr.bf16.mxu0 0
        %3722 = vmatmul.mubr.bf16.gmra.mrb[0].mxu0 %v2744
        %v3723 = vpop.f32.mrb[0].mxu0
        %v3724 = vadd.f32 0.0, %v3723
        %v3725 = vpop.f32.mrb[0].mxu0
        %v3726 = vadd.f32 0.0, %v3725
        %v3727 = vpop.f32.mrb[0].mxu0
        %v3728 = vadd.f32 0.0, %v3727
        %v3729 = vpop.f32.mrb[0].mxu0
        %v3730 = vadd.f32 0.0, %v3729
        %3731 = vmatprep.mubr.bf16.mxu0 0
        %3732 = vmatmul.mubr.bf16.gmra.mrb[0].mxu0 %v2745
        %v3733 = vpop.f32.mrb[0].mxu0
        %v3734 = vadd.f32 0.0, %v3733
        %v3735 = vpop.f32.mrb[0].mxu0
        %v3736 = vadd.f32 0.0, %v3735
        %v3737 = vpop.f32.mrb[0].mxu0
        %v3738 = vadd.f32 0.0, %v3737
        %v3739 = vpop.f32.mrb[0].mxu0
        %v3740 = vadd.f32 0.0, %v3739
        %3741 = vmatprep.mubr.bf16.mxu0 0
        %3742 = vmatmul.mubr.bf16.gmra.mrb[0].mxu0 %v2746
        %v3743 = vpop.f32.mrb[0].mxu0
        %v3744 = vadd.f32 0.0, %v3743
        %v3745 = vpop.f32.mrb[0].mxu0
        %v3746 = vadd.f32 0.0, %v3745
        %v3747 = vpop.f32.mrb[0].mxu0
        %v3748 = vadd.f32 0.0, %v3747
        %v3749 = vpop.f32.mrb[0].mxu0
        %v3750 = vadd.f32 0.0, %v3749
        %3751 = vmatprep.mubr.bf16.mxu0 0
        %3752 = vmatmul.mubr.bf16.gmra.mrb[0].mxu0 %v2747
        %v3753 = vpop.f32.mrb[0].mxu0
        %v3754 = vadd.f32 0.0, %v3753
        %v3755 = vpop.f32.mrb[0].mxu0
        %v3756 = vadd.f32 0.0, %v3755
        %v3757 = vpop.f32.mrb[0].mxu0
        %v3758 = vadd.f32 0.0, %v3757
        %v3759 = vpop.f32.mrb[0].mxu0
        %v3760 = vadd.f32 0.0, %v3759
        %3761 = vmatprep.mubr.bf16.mxu0 0
        %3762 = vmatmul.mubr.bf16.gmra.mrb[0].mxu0 %v2748
        %v3763 = vpop.f32.mrb[0].mxu0
        %v3764 = vadd.f32 0.0, %v3763
        %v3765 = vpop.f32.mrb[0].mxu0
        %v3766 = vadd.f32 0.0, %v3765
        %v3767 = vpop.f32.mrb[0].mxu0
        %v3768 = vadd.f32 0.0, %v3767
        %v3769 = vpop.f32.mrb[0].mxu0
        %v3770 = vadd.f32 0.0, %v3769
        %3771 = vmatprep.mubr.bf16.mxu0 0
        %3772 = vmatmul.mubr.bf16.gmra.mrb[0].mxu0 %v2749
        %v3773 = vpop.f32.mrb[0].mxu0
        %v3774 = vadd.f32 0.0, %v3773
        %v3775 = vpop.f32.mrb[0].mxu0
        %v3776 = vadd.f32 0.0, %v3775
        %v3777 = vpop.f32.mrb[0].mxu0
        %v3778 = vadd.f32 0.0, %v3777
        %v3779 = vpop.f32.mrb[0].mxu0
        %v3780 = vadd.f32 0.0, %v3779
        %3781 = vmatprep.mubr.bf16.mxu0 0
        %3782 = vmatmul.mubr.bf16.gmra.mrb[0].mxu0 %v2750
        %v3783 = vpop.f32.mrb[0].mxu0
        %v3784 = vadd.f32 0.0, %v3783
        %v3785 = vpop.f32.mrb[0].mxu0
        %v3786 = vadd.f32 0.0, %v3785
        %v3787 = vpop.f32.mrb[0].mxu0
        %v3788 = vadd.f32 0.0, %v3787
        %v3789 = vpop.f32.mrb[0].mxu0
        %v3790 = vadd.f32 0.0, %v3789
        %3791 = vmatprep.mubr.bf16.mxu0 0
        %3792 = vmatmul.mubr.bf16.gmra.mrb[0].mxu0 %v2751
        %v3793 = vpop.f32.mrb[0].mxu0
        %v3794 = vadd.f32 0.0, %v3793
        %v3795 = vpop.f32.mrb[0].mxu0
        %v3796 = vadd.f32 0.0, %v3795
        %v3797 = vpop.f32.mrb[0].mxu0
        %v3798 = vadd.f32 0.0, %v3797
        %v3799 = vpop.f32.mrb[0].mxu0
        %v3800 = vadd.f32 0.0, %v3799
        %3801 = vmatprep.mubr.bf16.mxu0 0
        %3802 = vmatmul.mubr.bf16.gmra.mrb[0].mxu0 %v2752
        %v3803 = vpop.f32.mrb[0].mxu0
        %v3804 = vadd.f32 0.0, %v3803
        %v3805 = vpop.f32.mrb[0].mxu0
        %v3806 = vadd.f32 0.0, %v3805
        %v3807 = vpop.f32.mrb[0].mxu0
        %v3808 = vadd.f32 0.0, %v3807
        %v3809 = vpop.f32.mrb[0].mxu0
        %v3810 = vadd.f32 0.0, %v3809
        %3811 = vmatprep.mubr.bf16.mxu0 0
        %3812 = vmatmul.mubr.bf16.gmra.mrb[0].mxu0 %v2753
        %v3813 = vpop.f32.mrb[0].mxu0
        %v3814 = vadd.f32 0.0, %v3813
        %v3815 = vpop.f32.mrb[0].mxu0
        %v3816 = vadd.f32 0.0, %v3815
        %v3817 = vpop.f32.mrb[0].mxu0
        %v3818 = vadd.f32 0.0, %v3817
        %v3819 = vpop.f32.mrb[0].mxu0
        %v3820 = vadd.f32 0.0, %v3819
        %3821 = vmatprep.mubr.bf16.mxu0 0
        %3822 = vmatmul.mubr.bf16.gmra.mrb[0].mxu0 %v2754
        %v3823 = vpop.f32.mrb[0].mxu0
        %v3824 = vadd.f32 0.0, %v3823
        %v3825 = vpop.f32.mrb[0].mxu0
        %v3826 = vadd.f32 0.0, %v3825
        %v3827 = vpop.f32.mrb[0].mxu0
        %v3828 = vadd.f32 0.0, %v3827
        %v3829 = vpop.f32.mrb[0].mxu0
        %v3830 = vadd.f32 0.0, %v3829
        %3831 = vmatprep.mubr.bf16.mxu0 0
        %3832 = vmatmul.mubr.bf16.gmra.mrb[0].mxu0 %v2755
        %v3833 = vpop.f32.mrb[0].mxu0
        %v3834 = vadd.f32 0.0, %v3833
        %v3835 = vpop.f32.mrb[0].mxu0
        %v3836 = vadd.f32 0.0, %v3835
        %v3837 = vpop.f32.mrb[0].mxu0
        %v3838 = vadd.f32 0.0, %v3837
        %v3839 = vpop.f32.mrb[0].mxu0
        %v3840 = vadd.f32 0.0, %v3839
        %3841 = vmatprep.mubr.bf16.mxu0 0
        %3842 = vmatmul.mubr.bf16.gmra.mrb[0].mxu0 %v2756
        %v3843 = vpop.f32.mrb[0].mxu0
        %v3844 = vadd.f32 0.0, %v3843
        %v3845 = vpop.f32.mrb[0].mxu0
        %v3846 = vadd.f32 0.0, %v3845
        %v3847 = vpop.f32.mrb[0].mxu0
        %v3848 = vadd.f32 0.0, %v3847
        %v3849 = vpop.f32.mrb[0].mxu0
        %v3850 = vadd.f32 0.0, %v3849
        %3851 = vmatprep.mubr.bf16.mxu0 0
        %3852 = vmatmul.mubr.bf16.gmra.mrb[0].mxu0 %v2757
        %v3853 = vpop.f32.mrb[0].mxu0
        %v3854 = vadd.f32 0.0, %v3853
        %v3855 = vpop.f32.mrb[0].mxu0
        %v3856 = vadd.f32 0.0, %v3855
        %v3857 = vpop.f32.mrb[0].mxu0
        %v3858 = vadd.f32 0.0, %v3857
        %v3859 = vpop.f32.mrb[0].mxu0
        %v3860 = vadd.f32 0.0, %v3859
        %3861 = vmatprep.mubr.bf16.mxu0 0
        %3862 = vmatmul.mubr.bf16.gmra.mrb[0].mxu0 %v2758
        %v3863 = vpop.f32.mrb[0].mxu0
        %v3864 = vadd.f32 0.0, %v3863
        %v3865 = vpop.f32.mrb[0].mxu0
        %v3866 = vadd.f32 0.0, %v3865
        %v3867 = vpop.f32.mrb[0].mxu0
        %v3868 = vadd.f32 0.0, %v3867
        %v3869 = vpop.f32.mrb[0].mxu0
        %v3870 = vadd.f32 0.0, %v3869
        %3871 = vmatprep.mubr.bf16.mxu0 0
        %3872 = vmatmul.mubr.bf16.gmra.mrb[0].mxu0 %v2759
        %v3873 = vpop.f32.mrb[0].mxu0
        %v3874 = vadd.f32 0.0, %v3873
        %v3875 = vpop.f32.mrb[0].mxu0
        %v3876 = vadd.f32 0.0, %v3875
        %v3877 = vpop.f32.mrb[0].mxu0
        %v3878 = vadd.f32 0.0, %v3877
        %v3879 = vpop.f32.mrb[0].mxu0
        %v3880 = vadd.f32 0.0, %v3879
        %3881 = vmatprep.mubr.bf16.mxu0 0
        %3882 = vmatmul.mubr.bf16.gmra.mrb[0].mxu0 %v2760
        %v3883 = vpop.f32.mrb[0].mxu0
        %v3884 = vadd.f32 0.0, %v3883
        %v3885 = vpop.f32.mrb[0].mxu0
        %v3886 = vadd.f32 0.0, %v3885
        %v3887 = vpop.f32.mrb[0].mxu0
        %v3888 = vadd.f32 0.0, %v3887
        %v3889 = vpop.f32.mrb[0].mxu0
        %v3890 = vadd.f32 0.0, %v3889
        %3891 = vmatprep.mubr.bf16.mxu0 0
        %3892 = vmatmul.mubr.bf16.gmra.mrb[0].mxu0 %v2761
        %v3893 = vpop.f32.mrb[0].mxu0
        %v3894 = vadd.f32 0.0, %v3893
        %v3895 = vpop.f32.mrb[0].mxu0
        %v3896 = vadd.f32 0.0, %v3895
        %v3897 = vpop.f32.mrb[0].mxu0
        %v3898 = vadd.f32 0.0, %v3897
        %v3899 = vpop.f32.mrb[0].mxu0
        %v3900 = vadd.f32 0.0, %v3899
        %3901 = vmatprep.mubr.bf16.mxu0 0
        %3902 = vmatmul.mubr.bf16.gmra.mrb[0].mxu0 %v2762
        %v3903 = vpop.f32.mrb[0].mxu0
        %v3904 = vadd.f32 0.0, %v3903
        %v3905 = vpop.f32.mrb[0].mxu0
        %v3906 = vadd.f32 0.0, %v3905
        %v3907 = vpop.f32.mrb[0].mxu0
        %v3908 = vadd.f32 0.0, %v3907
        %v3909 = vpop.f32.mrb[0].mxu0
        %v3910 = vadd.f32 0.0, %v3909
        %3911 = vmatprep.mubr.bf16.mxu0 0
        %3912 = vmatmul.mubr.bf16.gmra.mrb[0].mxu0 %v2763
        %v3913 = vpop.f32.mrb[0].mxu0
        %v3914 = vadd.f32 0.0, %v3913
        %v3915 = vpop.f32.mrb[0].mxu0
        %v3916 = vadd.f32 0.0, %v3915
        %v3917 = vpop.f32.mrb[0].mxu0
        %v3918 = vadd.f32 0.0, %v3917
        %v3919 = vpop.f32.mrb[0].mxu0
        %v3920 = vadd.f32 0.0, %v3919
        %3921 = vmatprep.mubr.bf16.mxu0 0
        %3922 = vmatmul.mubr.bf16.gmra.mrb[0].mxu0 %v2764
        %v3923 = vpop.f32.mrb[0].mxu0
        %v3924 = vadd.f32 0.0, %v3923
        %v3925 = vpop.f32.mrb[0].mxu0
        %v3926 = vadd.f32 0.0, %v3925
        %v3927 = vpop.f32.mrb[0].mxu0
        %v3928 = vadd.f32 0.0, %v3927
        %v3929 = vpop.f32.mrb[0].mxu0
        %v3930 = vadd.f32 0.0, %v3929
        %3931 = vmatprep.mubr.bf16.mxu0 0
        %3932 = vmatmul.mubr.bf16.gmra.mrb[0].mxu0 %v2765
        %v3933 = vpop.f32.mrb[0].mxu0
        %v3934 = vadd.f32 0.0, %v3933
        %v3935 = vpop.f32.mrb[0].mxu0
        %v3936 = vadd.f32 0.0, %v3935
        %v3937 = vpop.f32.mrb[0].mxu0
        %v3938 = vadd.f32 0.0, %v3937
        %v3939 = vpop.f32.mrb[0].mxu0
        %v3940 = vadd.f32 0.0, %v3939
        %3941 = vmatprep.mubr.bf16.mxu0 0
        %3942 = vmatmul.mubr.bf16.gmra.mrb[0].mxu0 %v2766
        %v3943 = vpop.f32.mrb[0].mxu0
        %v3944 = vadd.f32 0.0, %v3943
        %v3945 = vpop.f32.mrb[0].mxu0
        %v3946 = vadd.f32 0.0, %v3945
        %v3947 = vpop.f32.mrb[0].mxu0
        %v3948 = vadd.f32 0.0, %v3947
        %v3949 = vpop.f32.mrb[0].mxu0
        %v3950 = vadd.f32 0.0, %v3949
        %3951 = vmatprep.mubr.bf16.mxu0 0
        %3952 = vmatmul.mubr.bf16.gmra.mrb[0].mxu0 %v2767
        %v3953 = vpop.f32.mrb[0].mxu0
        %v3954 = vadd.f32 0.0, %v3953
        %v3955 = vpop.f32.mrb[0].mxu0
        %v3956 = vadd.f32 0.0, %v3955
        %v3957 = vpop.f32.mrb[0].mxu0
        %v3958 = vadd.f32 0.0, %v3957
        %v3959 = vpop.f32.mrb[0].mxu0
        %v3960 = vadd.f32 0.0, %v3959
        %3961 = vmatprep.mubr.bf16.mxu0 0
        %3962 = vmatmul.mubr.bf16.gmra.mrb[0].mxu0 %v2768
        %v3963 = vpop.f32.mrb[0].mxu0
        %v3964 = vadd.f32 0.0, %v3963
        %v3965 = vpop.f32.mrb[0].mxu0
        %v3966 = vadd.f32 0.0, %v3965
        %v3967 = vpop.f32.mrb[0].mxu0
        %v3968 = vadd.f32 0.0, %v3967
        %v3969 = vpop.f32.mrb[0].mxu0
        %v3970 = vadd.f32 0.0, %v3969
        %3971 = vmatprep.mubr.bf16.mxu0 0
        %3972 = vmatmul.mubr.bf16.gmra.mrb[0].mxu0 %v2769
        %v3973 = vpop.f32.mrb[0].mxu0
        %v3974 = vadd.f32 0.0, %v3973
        %v3975 = vpop.f32.mrb[0].mxu0
        %v3976 = vadd.f32 0.0, %v3975
        %v3977 = vpop.f32.mrb[0].mxu0
        %v3978 = vadd.f32 0.0, %v3977
        %v3979 = vpop.f32.mrb[0].mxu0
        %v3980 = vadd.f32 0.0, %v3979
        %3981 = vmatprep.mubr.bf16.mxu0 0
        %3982 = vmatmul.mubr.bf16.gmra.mrb[0].mxu0 %v2770
        %v3983 = vpop.f32.mrb[0].mxu0
        %v3984 = vadd.f32 0.0, %v3983
        %v3985 = vpop.f32.mrb[0].mxu0
        %v3986 = vadd.f32 0.0, %v3985
        %v3987 = vpop.f32.mrb[0].mxu0
        %v3988 = vadd.f32 0.0, %v3987
        %v3989 = vpop.f32.mrb[0].mxu0
        %v3990 = vadd.f32 0.0, %v3989
        %3991 = vmatprep.mubr.bf16.mxu0 0
        %3992 = vmatmul.mubr.bf16.gmra.mrb[0].mxu0 %v2771
        %v3993 = vpop.f32.mrb[0].mxu0
        %v3994 = vadd.f32 0.0, %v3993
        %v3995 = vpop.f32.mrb[0].mxu0
        %v3996 = vadd.f32 0.0, %v3995
        %v3997 = vpop.f32.mrb[0].mxu0
        %v3998 = vadd.f32 0.0, %v3997
        %v3999 = vpop.f32.mrb[0].mxu0
        %v4000 = vadd.f32 0.0, %v3999
        %4001 = vmatprep.mubr.bf16.mxu0 0
        %4002 = vmatmul.mubr.bf16.gmra.mrb[0].mxu0 %v2772
        %v4003 = vpop.f32.mrb[0].mxu0
        %v4004 = vadd.f32 0.0, %v4003
        %v4005 = vpop.f32.mrb[0].mxu0
        %v4006 = vadd.f32 0.0, %v4005
        %v4007 = vpop.f32.mrb[0].mxu0
        %v4008 = vadd.f32 0.0, %v4007
        %v4009 = vpop.f32.mrb[0].mxu0
        %v4010 = vadd.f32 0.0, %v4009
        %4011 = vmatprep.mubr.bf16.mxu0 0
        %4012 = vmatmul.mubr.bf16.gmra.mrb[0].mxu0 %v2773
        %v4013 = vpop.f32.mrb[0].mxu0
        %v4014 = vadd.f32 0.0, %v4013
        %v4015 = vpop.f32.mrb[0].mxu0
        %v4016 = vadd.f32 0.0, %v4015
        %v4017 = vpop.f32.mrb[0].mxu0
        %v4018 = vadd.f32 0.0, %v4017
        %v4019 = vpop.f32.mrb[0].mxu0
        %v4020 = vadd.f32 0.0, %v4019
        %4021 = vmatprep.mubr.bf16.mxu0 0
        %4022 = vmatmul.mubr.bf16.gmra.mrb[0].mxu0 %v2774
        %v4023 = vpop.f32.mrb[0].mxu0
        %v4024 = vadd.f32 0.0, %v4023
        %v4025 = vpop.f32.mrb[0].mxu0
        %v4026 = vadd.f32 0.0, %v4025
        %v4027 = vpop.f32.mrb[0].mxu0
        %v4028 = vadd.f32 0.0, %v4027
        %v4029 = vpop.f32.mrb[0].mxu0
        %v4030 = vadd.f32 0.0, %v4029
        %4031 = vmatprep.mubr.bf16.mxu0 0
        %4032 = vmatmul.mubr.bf16.gmra.mrb[0].mxu0 %v2775
        %v4033 = vpop.f32.mrb[0].mxu0
        %v4034 = vadd.f32 0.0, %v4033
        %v4035 = vpop.f32.mrb[0].mxu0
        %v4036 = vadd.f32 0.0, %v4035
        %v4037 = vpop.f32.mrb[0].mxu0
        %v4038 = vadd.f32 0.0, %v4037
        %v4039 = vpop.f32.mrb[0].mxu0
        %v4040 = vadd.f32 0.0, %v4039
        %4041 = vmatprep.mubr.bf16.mxu0 0
        %4042 = vmatmul.mubr.bf16.gmra.mrb[0].mxu0 %v2776
        %v4043 = vpop.f32.mrb[0].mxu0
        %v4044 = vadd.f32 0.0, %v4043
        %v4045 = vpop.f32.mrb[0].mxu0
        %v4046 = vadd.f32 0.0, %v4045
        %v4047 = vpop.f32.mrb[0].mxu0
        %v4048 = vadd.f32 0.0, %v4047
        %v4049 = vpop.f32.mrb[0].mxu0
        %v4050 = vadd.f32 0.0, %v4049
        %4051 = vmatprep.mubr.bf16.mxu0 0
        %4052 = vmatmul.mubr.bf16.gmra.mrb[0].mxu0 %v2777
        %v4053 = vpop.f32.mrb[0].mxu0
        %v4054 = vadd.f32 0.0, %v4053
        %v4055 = vpop.f32.mrb[0].mxu0
        %v4056 = vadd.f32 0.0, %v4055
        %v4057 = vpop.f32.mrb[0].mxu0
        %v4058 = vadd.f32 0.0, %v4057
        %v4059 = vpop.f32.mrb[0].mxu0
        %v4060 = vadd.f32 0.0, %v4059
        %4061 = vmatprep.mubr.bf16.mxu0 0
        %4062 = vmatmul.mubr.bf16.gmra.mrb[0].mxu0 %v2778
        %v4063 = vpop.f32.mrb[0].mxu0
        %v4064 = vadd.f32 0.0, %v4063
        %v4065 = vpop.f32.mrb[0].mxu0
        %v4066 = vadd.f32 0.0, %v4065
        %v4067 = vpop.f32.mrb[0].mxu0
        %v4068 = vadd.f32 0.0, %v4067
        %v4069 = vpop.f32.mrb[0].mxu0
        %v4070 = vadd.f32 0.0, %v4069
        %4071 = vmatprep.mubr.bf16.mxu0 0
        %4072 = vmatmul.mubr.bf16.gmra.mrb[0].mxu0 %v2779
        %v4073 = vpop.f32.mrb[0].mxu0
        %v4074 = vadd.f32 0.0, %v4073
        %v4075 = vpop.f32.mrb[0].mxu0
        %v4076 = vadd.f32 0.0, %v4075
        %v4077 = vpop.f32.mrb[0].mxu0
        %v4078 = vadd.f32 0.0, %v4077
        %v4079 = vpop.f32.mrb[0].mxu0
        %v4080 = vadd.f32 0.0, %v4079
        %4081 = vmatprep.mubr.bf16.mxu0 0
        %4082 = vmatmul.mubr.bf16.gmra.mrb[0].mxu0 %v2780
        %v4083 = vpop.f32.mrb[0].mxu0
        %v4084 = vadd.f32 0.0, %v4083
        %v4085 = vpop.f32.mrb[0].mxu0
        %v4086 = vadd.f32 0.0, %v4085
        %v4087 = vpop.f32.mrb[0].mxu0
        %v4088 = vadd.f32 0.0, %v4087
        %v4089 = vpop.f32.mrb[0].mxu0
        %v4090 = vadd.f32 0.0, %v4089
        %4091 = vmatprep.mubr.bf16.mxu0 0
        %4092 = vmatmul.mubr.bf16.gmra.mrb[0].mxu0 %v2781
        %v4093 = vpop.f32.mrb[0].mxu0
        %v4094 = vadd.f32 0.0, %v4093
        %v4095 = vpop.f32.mrb[0].mxu0
        %v4096 = vadd.f32 0.0, %v4095
        %v4097 = vpop.f32.mrb[0].mxu0
        %v4098 = vadd.f32 0.0, %v4097
        %v4099 = vpop.f32.mrb[0].mxu0
        %v4100 = vadd.f32 0.0, %v4099
        %4101 = vmatprep.mubr.bf16.mxu0 0
        %4102 = vmatmul.mubr.bf16.gmra.mrb[0].mxu0 %v2782
        %v4103 = vpop.f32.mrb[0].mxu0
        %v4104 = vadd.f32 0.0, %v4103
        %v4105 = vpop.f32.mrb[0].mxu0
        %v4106 = vadd.f32 0.0, %v4105
        %v4107 = vpop.f32.mrb[0].mxu0
        %v4108 = vadd.f32 0.0, %v4107
        %v4109 = vpop.f32.mrb[0].mxu0
        %v4110 = vadd.f32 0.0, %v4109
        %4111 = vmatprep.mubr.bf16.mxu0 0
        %4112 = vmatmul.mubr.bf16.gmra.mrb[0].mxu0 %v2783
        %v4113 = vpop.f32.mrb[0].mxu0
        %v4114 = vadd.f32 0.0, %v4113
        %v4115 = vpop.f32.mrb[0].mxu0
        %v4116 = vadd.f32 0.0, %v4115
        %v4117 = vpop.f32.mrb[0].mxu0
        %v4118 = vadd.f32 0.0, %v4117
        %v4119 = vpop.f32.mrb[0].mxu0
        %v4120 = vadd.f32 0.0, %v4119
        %4121 = vmatprep.mubr.bf16.mxu0 0
        %4122 = vmatmul.mubr.bf16.gmra.mrb[0].mxu0 %v2784
        %v4123 = vpop.f32.mrb[0].mxu0
        %v4124 = vadd.f32 0.0, %v4123
        %v4125 = vpop.f32.mrb[0].mxu0
        %v4126 = vadd.f32 0.0, %v4125
        %v4127 = vpop.f32.mrb[0].mxu0
        %v4128 = vadd.f32 0.0, %v4127
        %v4129 = vpop.f32.mrb[0].mxu0
        %v4130 = vadd.f32 0.0, %v4129
        %4131 = vmatprep.mubr.bf16.mxu0 0
        %4132 = vmatmul.mubr.bf16.gmra.mrb[0].mxu0 %v2785
        %v4133 = vpop.f32.mrb[0].mxu0
        %v4134 = vadd.f32 0.0, %v4133
        %v4135 = vpop.f32.mrb[0].mxu0
        %v4136 = vadd.f32 0.0, %v4135
        %v4137 = vpop.f32.mrb[0].mxu0
        %v4138 = vadd.f32 0.0, %v4137
        %v4139 = vpop.f32.mrb[0].mxu0
        %v4140 = vadd.f32 0.0, %v4139
        %4141 = vmatprep.mubr.bf16.mxu0 0
        %4142 = vmatmul.mubr.bf16.gmra.mrb[0].mxu0 %v2786
        %v4143 = vpop.f32.mrb[0].mxu0
        %v4144 = vadd.f32 0.0, %v4143
        %v4145 = vpop.f32.mrb[0].mxu0
        %v4146 = vadd.f32 0.0, %v4145
        %v4147 = vpop.f32.mrb[0].mxu0
        %v4148 = vadd.f32 0.0, %v4147
        %v4149 = vpop.f32.mrb[0].mxu0
        %v4150 = vadd.f32 0.0, %v4149
        %4151 = vmatprep.mubr.bf16.mxu0 0
        %4152 = vmatmul.mubr.bf16.gmra.mrb[0].mxu0 %v2787
        %v4153 = vpop.f32.mrb[0].mxu0
        %v4154 = vadd.f32 0.0, %v4153
        %v4155 = vpop.f32.mrb[0].mxu0
        %v4156 = vadd.f32 0.0, %v4155
        %v4157 = vpop.f32.mrb[0].mxu0
        %v4158 = vadd.f32 0.0, %v4157
        %v4159 = vpop.f32.mrb[0].mxu0
        %v4160 = vadd.f32 0.0, %v4159
        %4161 = vmatprep.mubr.bf16.mxu0 0
        %4162 = vmatmul.mubr.bf16.gmra.mrb[0].mxu0 %v2788
        %v4163 = vpop.f32.mrb[0].mxu0
        %v4164 = vadd.f32 0.0, %v4163
        %v4165 = vpop.f32.mrb[0].mxu0
        %v4166 = vadd.f32 0.0, %v4165
        %v4167 = vpop.f32.mrb[0].mxu0
        %v4168 = vadd.f32 0.0, %v4167
        %v4169 = vpop.f32.mrb[0].mxu0
        %v4170 = vadd.f32 0.0, %v4169
        %4171 = vmatprep.mubr.bf16.mxu0 0
        %4172 = vmatmul.mubr.bf16.gmra.mrb[0].mxu0 %v2789
        %v4173 = vpop.f32.mrb[0].mxu0
        %v4174 = vadd.f32 0.0, %v4173
        %v4175 = vpop.f32.mrb[0].mxu0
        %v4176 = vadd.f32 0.0, %v4175
        %v4177 = vpop.f32.mrb[0].mxu0
        %v4178 = vadd.f32 0.0, %v4177
        %v4179 = vpop.f32.mrb[0].mxu0
        %v4180 = vadd.f32 0.0, %v4179
        %4181 = vmatprep.mubr.bf16.mxu0 0
        %4182 = vmatmul.mubr.bf16.gmra.mrb[0].mxu0 %v2790
        %v4183 = vpop.f32.mrb[0].mxu0
        %v4184 = vadd.f32 0.0, %v4183
        %v4185 = vpop.f32.mrb[0].mxu0
        %v4186 = vadd.f32 0.0, %v4185
        %v4187 = vpop.f32.mrb[0].mxu0
        %v4188 = vadd.f32 0.0, %v4187
        %v4189 = vpop.f32.mrb[0].mxu0
        %v4190 = vadd.f32 0.0, %v4189
        %4191 = vmatprep.mubr.bf16.mxu0 0
        %4192 = vmatmul.mubr.bf16.gmra.mrb[0].mxu0 %v2791
        %v4193 = vpop.f32.mrb[0].mxu0
        %v4194 = vadd.f32 0.0, %v4193
        %v4195 = vpop.f32.mrb[0].mxu0
        %v4196 = vadd.f32 0.0, %v4195
        %v4197 = vpop.f32.mrb[0].mxu0
        %v4198 = vadd.f32 0.0, %v4197
        %v4199 = vpop.f32.mrb[0].mxu0
        %v4200 = vadd.f32 0.0, %v4199
        %4201 = vdwg.mxu0
        %4202 = vmatprep.subr.bf16.mxu0 %v2413
        %4203 = vmatpush1.bf16.msra.mxu0 %v2412
        %4204 = vmatprep.subr.bf16.mxu0 %v2421
        %4205 = vmatpush1.bf16.msra.mxu0 %v2420
        %4206 = vmatprep.subr.bf16.mxu0 %v2429
        %4207 = vmatpush1.bf16.msra.mxu0 %v2428
        %4208 = vmatprep.subr.bf16.mxu0 %v2437
        %4209 = vmatpush1.bf16.msra.mxu0 %v2436
        %4210 = vmatprep.subr.bf16.mxu0 %v2445
        %4211 = vmatpush1.bf16.msra.mxu0 %v2444
        %4212 = vmatprep.subr.bf16.mxu0 %v2453
        %4213 = vmatpush1.bf16.msra.mxu0 %v2452
        %4214 = vmatprep.subr.bf16.mxu0 %v2461
        %4215 = vmatpush1.bf16.msra.mxu0 %v2460
        %4216 = vmatprep.subr.bf16.mxu0 %v2469
        %4217 = vmatpush1.bf16.msra.mxu0 %v2468
        %4218 = vmatprep.subr.bf16.mxu0 0
        %4219 = vmatpush1.bf16.msra.mxu0 0
        %4220 = vmatprep.subr.bf16.mxu0 0
        %4221 = vmatpush1.bf16.msra.mxu0 0
        %4222 = vmatprep.subr.bf16.mxu0 0
        %4223 = vmatpush1.bf16.msra.mxu0 0
        %4224 = vmatprep.subr.bf16.mxu0 0
        %4225 = vmatpush1.bf16.msra.mxu0 0
        %4226 = vmatprep.subr.bf16.mxu0 0
        %4227 = vmatpush1.bf16.msra.mxu0 0
        %4228 = vmatprep.subr.bf16.mxu0 0
        %4229 = vmatpush1.bf16.msra.mxu0 0
        %4230 = vmatprep.subr.bf16.mxu0 0
        %4231 = vmatpush1.bf16.msra.mxu0 0
        %4232 = vmatprep.subr.bf16.mxu0 0
        %4233 = vmatpush1.bf16.msra.mxu0 0
        %4234 = vmatprep.mubr.bf16.mxu0 0
        %4235 = vmatmul.mubr.bf16.gmra.mrb[0].mxu0 %v2728
        %v4236 = vpop.f32.mrb[0].mxu0
        %v4237 = vadd.f32 0.0, %v4236
        %v4238 = vpop.f32.mrb[0].mxu0
        %v4239 = vadd.f32 0.0, %v4238
        %v4240 = vpop.f32.mrb[0].mxu0
        %v4241 = vadd.f32 0.0, %v4240
        %v4242 = vpop.f32.mrb[0].mxu0
        %v4243 = vadd.f32 0.0, %v4242
        %4244 = vmatprep.mubr.bf16.mxu0 0
        %4245 = vmatmul.mubr.bf16.gmra.mrb[0].mxu0 %v2729
        %v4246 = vpop.f32.mrb[0].mxu0
        %v4247 = vadd.f32 0.0, %v4246
        %v4248 = vpop.f32.mrb[0].mxu0
        %v4249 = vadd.f32 0.0, %v4248
        %v4250 = vpop.f32.mrb[0].mxu0
        %v4251 = vadd.f32 0.0, %v4250
        %v4252 = vpop.f32.mrb[0].mxu0
        %v4253 = vadd.f32 0.0, %v4252
        %4254 = vmatprep.mubr.bf16.mxu0 0
        %4255 = vmatmul.mubr.bf16.gmra.mrb[0].mxu0 %v2730
        %v4256 = vpop.f32.mrb[0].mxu0
        %v4257 = vadd.f32 0.0, %v4256
        %v4258 = vpop.f32.mrb[0].mxu0
        %v4259 = vadd.f32 0.0, %v4258
        %v4260 = vpop.f32.mrb[0].mxu0
        %v4261 = vadd.f32 0.0, %v4260
        %v4262 = vpop.f32.mrb[0].mxu0
        %v4263 = vadd.f32 0.0, %v4262
        %4264 = vmatprep.mubr.bf16.mxu0 0
        %4265 = vmatmul.mubr.bf16.gmra.mrb[0].mxu0 %v2731
        %v4266 = vpop.f32.mrb[0].mxu0
        %v4267 = vadd.f32 0.0, %v4266
        %v4268 = vpop.f32.mrb[0].mxu0
        %v4269 = vadd.f32 0.0, %v4268
        %v4270 = vpop.f32.mrb[0].mxu0
        %v4271 = vadd.f32 0.0, %v4270
        %v4272 = vpop.f32.mrb[0].mxu0
        %v4273 = vadd.f32 0.0, %v4272
        %4274 = vmatprep.mubr.bf16.mxu0 0
        %4275 = vmatmul.mubr.bf16.gmra.mrb[0].mxu0 %v2732
        %v4276 = vpop.f32.mrb[0].mxu0
        %v4277 = vadd.f32 0.0, %v4276
        %v4278 = vpop.f32.mrb[0].mxu0
        %v4279 = vadd.f32 0.0, %v4278
        %v4280 = vpop.f32.mrb[0].mxu0
        %v4281 = vadd.f32 0.0, %v4280
        %v4282 = vpop.f32.mrb[0].mxu0
        %v4283 = vadd.f32 0.0, %v4282
        %4284 = vmatprep.mubr.bf16.mxu0 0
        %4285 = vmatmul.mubr.bf16.gmra.mrb[0].mxu0 %v2733
        %v4286 = vpop.f32.mrb[0].mxu0
        %v4287 = vadd.f32 0.0, %v4286
        %v4288 = vpop.f32.mrb[0].mxu0
        %v4289 = vadd.f32 0.0, %v4288
        %v4290 = vpop.f32.mrb[0].mxu0
        %v4291 = vadd.f32 0.0, %v4290
        %v4292 = vpop.f32.mrb[0].mxu0
        %v4293 = vadd.f32 0.0, %v4292
        %4294 = vmatprep.mubr.bf16.mxu0 0
        %4295 = vmatmul.mubr.bf16.gmra.mrb[0].mxu0 %v2734
        %v4296 = vpop.f32.mrb[0].mxu0
        %v4297 = vadd.f32 0.0, %v4296
        %v4298 = vpop.f32.mrb[0].mxu0
        %v4299 = vadd.f32 0.0, %v4298
        %v4300 = vpop.f32.mrb[0].mxu0
        %v4301 = vadd.f32 0.0, %v4300
        %v4302 = vpop.f32.mrb[0].mxu0
        %v4303 = vadd.f32 0.0, %v4302
        %4304 = vmatprep.mubr.bf16.mxu0 0
        %4305 = vmatmul.mubr.bf16.gmra.mrb[0].mxu0 %v2735
        %v4306 = vpop.f32.mrb[0].mxu0
        %v4307 = vadd.f32 0.0, %v4306
        %v4308 = vpop.f32.mrb[0].mxu0
        %v4309 = vadd.f32 0.0, %v4308
        %v4310 = vpop.f32.mrb[0].mxu0
        %v4311 = vadd.f32 0.0, %v4310
        %v4312 = vpop.f32.mrb[0].mxu0
        %v4313 = vadd.f32 0.0, %v4312
        %4314 = vmatprep.mubr.bf16.mxu0 0
        %4315 = vmatmul.mubr.bf16.gmra.mrb[0].mxu0 %v2736
        %v4316 = vpop.f32.mrb[0].mxu0
        %v4317 = vadd.f32 0.0, %v4316
        %v4318 = vpop.f32.mrb[0].mxu0
        %v4319 = vadd.f32 0.0, %v4318
        %v4320 = vpop.f32.mrb[0].mxu0
        %v4321 = vadd.f32 0.0, %v4320
        %v4322 = vpop.f32.mrb[0].mxu0
        %v4323 = vadd.f32 0.0, %v4322
        %4324 = vmatprep.mubr.bf16.mxu0 0
        %4325 = vmatmul.mubr.bf16.gmra.mrb[0].mxu0 %v2737
        %v4326 = vpop.f32.mrb[0].mxu0
        %v4327 = vadd.f32 0.0, %v4326
        %v4328 = vpop.f32.mrb[0].mxu0
        %v4329 = vadd.f32 0.0, %v4328
        %v4330 = vpop.f32.mrb[0].mxu0
        %v4331 = vadd.f32 0.0, %v4330
        %v4332 = vpop.f32.mrb[0].mxu0
        %v4333 = vadd.f32 0.0, %v4332
        %4334 = vmatprep.mubr.bf16.mxu0 0
        %4335 = vmatmul.mubr.bf16.gmra.mrb[0].mxu0 %v2738
        %v4336 = vpop.f32.mrb[0].mxu0
        %v4337 = vadd.f32 0.0, %v4336
        %v4338 = vpop.f32.mrb[0].mxu0
        %v4339 = vadd.f32 0.0, %v4338
        %v4340 = vpop.f32.mrb[0].mxu0
        %v4341 = vadd.f32 0.0, %v4340
        %v4342 = vpop.f32.mrb[0].mxu0
        %v4343 = vadd.f32 0.0, %v4342
        %4344 = vmatprep.mubr.bf16.mxu0 0
        %4345 = vmatmul.mubr.bf16.gmra.mrb[0].mxu0 %v2739
        %v4346 = vpop.f32.mrb[0].mxu0
        %v4347 = vadd.f32 0.0, %v4346
        %v4348 = vpop.f32.mrb[0].mxu0
        %v4349 = vadd.f32 0.0, %v4348
        %v4350 = vpop.f32.mrb[0].mxu0
        %v4351 = vadd.f32 0.0, %v4350
        %v4352 = vpop.f32.mrb[0].mxu0
        %v4353 = vadd.f32 0.0, %v4352
        %4354 = vmatprep.mubr.bf16.mxu0 0
        %4355 = vmatmul.mubr.bf16.gmra.mrb[0].mxu0 %v2740
        %v4356 = vpop.f32.mrb[0].mxu0
        %v4357 = vadd.f32 0.0, %v4356
        %v4358 = vpop.f32.mrb[0].mxu0
        %v4359 = vadd.f32 0.0, %v4358
        %v4360 = vpop.f32.mrb[0].mxu0
        %v4361 = vadd.f32 0.0, %v4360
        %v4362 = vpop.f32.mrb[0].mxu0
        %v4363 = vadd.f32 0.0, %v4362
        %4364 = vmatprep.mubr.bf16.mxu0 0
        %4365 = vmatmul.mubr.bf16.gmra.mrb[0].mxu0 %v2741
        %v4366 = vpop.f32.mrb[0].mxu0
        %v4367 = vadd.f32 0.0, %v4366
        %v4368 = vpop.f32.mrb[0].mxu0
        %v4369 = vadd.f32 0.0, %v4368
        %v4370 = vpop.f32.mrb[0].mxu0
        %v4371 = vadd.f32 0.0, %v4370
        %v4372 = vpop.f32.mrb[0].mxu0
        %v4373 = vadd.f32 0.0, %v4372
        %4374 = vmatprep.mubr.bf16.mxu0 0
        %4375 = vmatmul.mubr.bf16.gmra.mrb[0].mxu0 %v2742
        %v4376 = vpop.f32.mrb[0].mxu0
        %v4377 = vadd.f32 0.0, %v4376
        %v4378 = vpop.f32.mrb[0].mxu0
        %v4379 = vadd.f32 0.0, %v4378
        %v4380 = vpop.f32.mrb[0].mxu0
        %v4381 = vadd.f32 0.0, %v4380
        %v4382 = vpop.f32.mrb[0].mxu0
        %v4383 = vadd.f32 0.0, %v4382
        %4384 = vmatprep.mubr.bf16.mxu0 0
        %4385 = vmatmul.mubr.bf16.gmra.mrb[0].mxu0 %v2743
        %v4386 = vpop.f32.mrb[0].mxu0
        %v4387 = vadd.f32 0.0, %v4386
        %v4388 = vpop.f32.mrb[0].mxu0
        %v4389 = vadd.f32 0.0, %v4388
        %v4390 = vpop.f32.mrb[0].mxu0
        %v4391 = vadd.f32 0.0, %v4390
        %v4392 = vpop.f32.mrb[0].mxu0
        %v4393 = vadd.f32 0.0, %v4392
        %4394 = vmatprep.mubr.bf16.mxu0 0
        %4395 = vmatmul.mubr.bf16.gmra.mrb[0].mxu0 %v2744
        %v4396 = vpop.f32.mrb[0].mxu0
        %v4397 = vadd.f32 0.0, %v4396
        %v4398 = vpop.f32.mrb[0].mxu0
        %v4399 = vadd.f32 0.0, %v4398
        %v4400 = vpop.f32.mrb[0].mxu0
        %v4401 = vadd.f32 0.0, %v4400
        %v4402 = vpop.f32.mrb[0].mxu0
        %v4403 = vadd.f32 0.0, %v4402
        %4404 = vmatprep.mubr.bf16.mxu0 0
        %4405 = vmatmul.mubr.bf16.gmra.mrb[0].mxu0 %v2745
        %v4406 = vpop.f32.mrb[0].mxu0
        %v4407 = vadd.f32 0.0, %v4406
        %v4408 = vpop.f32.mrb[0].mxu0
        %v4409 = vadd.f32 0.0, %v4408
        %v4410 = vpop.f32.mrb[0].mxu0
        %v4411 = vadd.f32 0.0, %v4410
        %v4412 = vpop.f32.mrb[0].mxu0
        %v4413 = vadd.f32 0.0, %v4412
        %4414 = vmatprep.mubr.bf16.mxu0 0
        %4415 = vmatmul.mubr.bf16.gmra.mrb[0].mxu0 %v2746
        %v4416 = vpop.f32.mrb[0].mxu0
        %v4417 = vadd.f32 0.0, %v4416
        %v4418 = vpop.f32.mrb[0].mxu0
        %v4419 = vadd.f32 0.0, %v4418
        %v4420 = vpop.f32.mrb[0].mxu0
        %v4421 = vadd.f32 0.0, %v4420
        %v4422 = vpop.f32.mrb[0].mxu0
        %v4423 = vadd.f32 0.0, %v4422
        %4424 = vmatprep.mubr.bf16.mxu0 0
        %4425 = vmatmul.mubr.bf16.gmra.mrb[0].mxu0 %v2747
        %v4426 = vpop.f32.mrb[0].mxu0
        %v4427 = vadd.f32 0.0, %v4426
        %v4428 = vpop.f32.mrb[0].mxu0
        %v4429 = vadd.f32 0.0, %v4428
        %v4430 = vpop.f32.mrb[0].mxu0
        %v4431 = vadd.f32 0.0, %v4430
        %v4432 = vpop.f32.mrb[0].mxu0
        %v4433 = vadd.f32 0.0, %v4432
        %4434 = vmatprep.mubr.bf16.mxu0 0
        %4435 = vmatmul.mubr.bf16.gmra.mrb[0].mxu0 %v2748
        %v4436 = vpop.f32.mrb[0].mxu0
        %v4437 = vadd.f32 0.0, %v4436
        %v4438 = vpop.f32.mrb[0].mxu0
        %v4439 = vadd.f32 0.0, %v4438
        %v4440 = vpop.f32.mrb[0].mxu0
        %v4441 = vadd.f32 0.0, %v4440
        %v4442 = vpop.f32.mrb[0].mxu0
        %v4443 = vadd.f32 0.0, %v4442
        %4444 = vmatprep.mubr.bf16.mxu0 0
        %4445 = vmatmul.mubr.bf16.gmra.mrb[0].mxu0 %v2749
        %v4446 = vpop.f32.mrb[0].mxu0
        %v4447 = vadd.f32 0.0, %v4446
        %v4448 = vpop.f32.mrb[0].mxu0
        %v4449 = vadd.f32 0.0, %v4448
        %v4450 = vpop.f32.mrb[0].mxu0
        %v4451 = vadd.f32 0.0, %v4450
        %v4452 = vpop.f32.mrb[0].mxu0
        %v4453 = vadd.f32 0.0, %v4452
        %4454 = vmatprep.mubr.bf16.mxu0 0
        %4455 = vmatmul.mubr.bf16.gmra.mrb[0].mxu0 %v2750
        %v4456 = vpop.f32.mrb[0].mxu0
        %v4457 = vadd.f32 0.0, %v4456
        %v4458 = vpop.f32.mrb[0].mxu0
        %v4459 = vadd.f32 0.0, %v4458
        %v4460 = vpop.f32.mrb[0].mxu0
        %v4461 = vadd.f32 0.0, %v4460
        %v4462 = vpop.f32.mrb[0].mxu0
        %v4463 = vadd.f32 0.0, %v4462
        %4464 = vmatprep.mubr.bf16.mxu0 0
        %4465 = vmatmul.mubr.bf16.gmra.mrb[0].mxu0 %v2751
        %v4466 = vpop.f32.mrb[0].mxu0
        %v4467 = vadd.f32 0.0, %v4466
        %v4468 = vpop.f32.mrb[0].mxu0
        %v4469 = vadd.f32 0.0, %v4468
        %v4470 = vpop.f32.mrb[0].mxu0
        %v4471 = vadd.f32 0.0, %v4470
        %v4472 = vpop.f32.mrb[0].mxu0
        %v4473 = vadd.f32 0.0, %v4472
        %4474 = vmatprep.mubr.bf16.mxu0 0
        %4475 = vmatmul.mubr.bf16.gmra.mrb[0].mxu0 %v2752
        %v4476 = vpop.f32.mrb[0].mxu0
        %v4477 = vadd.f32 0.0, %v4476
        %v4478 = vpop.f32.mrb[0].mxu0
        %v4479 = vadd.f32 0.0, %v4478
        %v4480 = vpop.f32.mrb[0].mxu0
        %v4481 = vadd.f32 0.0, %v4480
        %v4482 = vpop.f32.mrb[0].mxu0
        %v4483 = vadd.f32 0.0, %v4482
        %4484 = vmatprep.mubr.bf16.mxu0 0
        %4485 = vmatmul.mubr.bf16.gmra.mrb[0].mxu0 %v2753
        %v4486 = vpop.f32.mrb[0].mxu0
        %v4487 = vadd.f32 0.0, %v4486
        %v4488 = vpop.f32.mrb[0].mxu0
        %v4489 = vadd.f32 0.0, %v4488
        %v4490 = vpop.f32.mrb[0].mxu0
        %v4491 = vadd.f32 0.0, %v4490
        %v4492 = vpop.f32.mrb[0].mxu0
        %v4493 = vadd.f32 0.0, %v4492
        %4494 = vmatprep.mubr.bf16.mxu0 0
        %4495 = vmatmul.mubr.bf16.gmra.mrb[0].mxu0 %v2754
        %v4496 = vpop.f32.mrb[0].mxu0
        %v4497 = vadd.f32 0.0, %v4496
        %v4498 = vpop.f32.mrb[0].mxu0
        %v4499 = vadd.f32 0.0, %v4498
        %v4500 = vpop.f32.mrb[0].mxu0
        %v4501 = vadd.f32 0.0, %v4500
        %v4502 = vpop.f32.mrb[0].mxu0
        %v4503 = vadd.f32 0.0, %v4502
        %4504 = vmatprep.mubr.bf16.mxu0 0
        %4505 = vmatmul.mubr.bf16.gmra.mrb[0].mxu0 %v2755
        %v4506 = vpop.f32.mrb[0].mxu0
        %v4507 = vadd.f32 0.0, %v4506
        %v4508 = vpop.f32.mrb[0].mxu0
        %v4509 = vadd.f32 0.0, %v4508
        %v4510 = vpop.f32.mrb[0].mxu0
        %v4511 = vadd.f32 0.0, %v4510
        %v4512 = vpop.f32.mrb[0].mxu0
        %v4513 = vadd.f32 0.0, %v4512
        %4514 = vmatprep.mubr.bf16.mxu0 0
        %4515 = vmatmul.mubr.bf16.gmra.mrb[0].mxu0 %v2756
        %v4516 = vpop.f32.mrb[0].mxu0
        %v4517 = vadd.f32 0.0, %v4516
        %v4518 = vpop.f32.mrb[0].mxu0
        %v4519 = vadd.f32 0.0, %v4518
        %v4520 = vpop.f32.mrb[0].mxu0
        %v4521 = vadd.f32 0.0, %v4520
        %v4522 = vpop.f32.mrb[0].mxu0
        %v4523 = vadd.f32 0.0, %v4522
        %4524 = vmatprep.mubr.bf16.mxu0 0
        %4525 = vmatmul.mubr.bf16.gmra.mrb[0].mxu0 %v2757
        %v4526 = vpop.f32.mrb[0].mxu0
        %v4527 = vadd.f32 0.0, %v4526
        %v4528 = vpop.f32.mrb[0].mxu0
        %v4529 = vadd.f32 0.0, %v4528
        %v4530 = vpop.f32.mrb[0].mxu0
        %v4531 = vadd.f32 0.0, %v4530
        %v4532 = vpop.f32.mrb[0].mxu0
        %v4533 = vadd.f32 0.0, %v4532
        %4534 = vmatprep.mubr.bf16.mxu0 0
        %4535 = vmatmul.mubr.bf16.gmra.mrb[0].mxu0 %v2758
        %v4536 = vpop.f32.mrb[0].mxu0
        %v4537 = vadd.f32 0.0, %v4536
        %v4538 = vpop.f32.mrb[0].mxu0
        %v4539 = vadd.f32 0.0, %v4538
        %v4540 = vpop.f32.mrb[0].mxu0
        %v4541 = vadd.f32 0.0, %v4540
        %v4542 = vpop.f32.mrb[0].mxu0
        %v4543 = vadd.f32 0.0, %v4542
        %4544 = vmatprep.mubr.bf16.mxu0 0
        %4545 = vmatmul.mubr.bf16.gmra.mrb[0].mxu0 %v2759
        %v4546 = vpop.f32.mrb[0].mxu0
        %v4547 = vadd.f32 0.0, %v4546
        %v4548 = vpop.f32.mrb[0].mxu0
        %v4549 = vadd.f32 0.0, %v4548
        %v4550 = vpop.f32.mrb[0].mxu0
        %v4551 = vadd.f32 0.0, %v4550
        %v4552 = vpop.f32.mrb[0].mxu0
        %v4553 = vadd.f32 0.0, %v4552
        %4554 = vmatprep.mubr.bf16.mxu0 0
        %4555 = vmatmul.mubr.bf16.gmra.mrb[0].mxu0 %v2760
        %v4556 = vpop.f32.mrb[0].mxu0
        %v4557 = vadd.f32 0.0, %v4556
        %v4558 = vpop.f32.mrb[0].mxu0
        %v4559 = vadd.f32 0.0, %v4558
        %v4560 = vpop.f32.mrb[0].mxu0
        %v4561 = vadd.f32 0.0, %v4560
        %v4562 = vpop.f32.mrb[0].mxu0
        %v4563 = vadd.f32 0.0, %v4562
        %4564 = vmatprep.mubr.bf16.mxu0 0
        %4565 = vmatmul.mubr.bf16.gmra.mrb[0].mxu0 %v2761
        %v4566 = vpop.f32.mrb[0].mxu0
        %v4567 = vadd.f32 0.0, %v4566
        %v4568 = vpop.f32.mrb[0].mxu0
        %v4569 = vadd.f32 0.0, %v4568
        %v4570 = vpop.f32.mrb[0].mxu0
        %v4571 = vadd.f32 0.0, %v4570
        %v4572 = vpop.f32.mrb[0].mxu0
        %v4573 = vadd.f32 0.0, %v4572
        %4574 = vmatprep.mubr.bf16.mxu0 0
        %4575 = vmatmul.mubr.bf16.gmra.mrb[0].mxu0 %v2762
        %v4576 = vpop.f32.mrb[0].mxu0
        %v4577 = vadd.f32 0.0, %v4576
        %v4578 = vpop.f32.mrb[0].mxu0
        %v4579 = vadd.f32 0.0, %v4578
        %v4580 = vpop.f32.mrb[0].mxu0
        %v4581 = vadd.f32 0.0, %v4580
        %v4582 = vpop.f32.mrb[0].mxu0
        %v4583 = vadd.f32 0.0, %v4582
        %4584 = vmatprep.mubr.bf16.mxu0 0
        %4585 = vmatmul.mubr.bf16.gmra.mrb[0].mxu0 %v2763
        %v4586 = vpop.f32.mrb[0].mxu0
        %v4587 = vadd.f32 0.0, %v4586
        %v4588 = vpop.f32.mrb[0].mxu0
        %v4589 = vadd.f32 0.0, %v4588
        %v4590 = vpop.f32.mrb[0].mxu0
        %v4591 = vadd.f32 0.0, %v4590
        %v4592 = vpop.f32.mrb[0].mxu0
        %v4593 = vadd.f32 0.0, %v4592
        %4594 = vmatprep.mubr.bf16.mxu0 0
        %4595 = vmatmul.mubr.bf16.gmra.mrb[0].mxu0 %v2764
        %v4596 = vpop.f32.mrb[0].mxu0
        %v4597 = vadd.f32 0.0, %v4596
        %v4598 = vpop.f32.mrb[0].mxu0
        %v4599 = vadd.f32 0.0, %v4598
        %v4600 = vpop.f32.mrb[0].mxu0
        %v4601 = vadd.f32 0.0, %v4600
        %v4602 = vpop.f32.mrb[0].mxu0
        %v4603 = vadd.f32 0.0, %v4602
        %4604 = vmatprep.mubr.bf16.mxu0 0
        %4605 = vmatmul.mubr.bf16.gmra.mrb[0].mxu0 %v2765
        %v4606 = vpop.f32.mrb[0].mxu0
        %v4607 = vadd.f32 0.0, %v4606
        %v4608 = vpop.f32.mrb[0].mxu0
        %v4609 = vadd.f32 0.0, %v4608
        %v4610 = vpop.f32.mrb[0].mxu0
        %v4611 = vadd.f32 0.0, %v4610
        %v4612 = vpop.f32.mrb[0].mxu0
        %v4613 = vadd.f32 0.0, %v4612
        %4614 = vmatprep.mubr.bf16.mxu0 0
        %4615 = vmatmul.mubr.bf16.gmra.mrb[0].mxu0 %v2766
        %v4616 = vpop.f32.mrb[0].mxu0
        %v4617 = vadd.f32 0.0, %v4616
        %v4618 = vpop.f32.mrb[0].mxu0
        %v4619 = vadd.f32 0.0, %v4618
        %v4620 = vpop.f32.mrb[0].mxu0
        %v4621 = vadd.f32 0.0, %v4620
        %v4622 = vpop.f32.mrb[0].mxu0
        %v4623 = vadd.f32 0.0, %v4622
        %4624 = vmatprep.mubr.bf16.mxu0 0
        %4625 = vmatmul.mubr.bf16.gmra.mrb[0].mxu0 %v2767
        %v4626 = vpop.f32.mrb[0].mxu0
        %v4627 = vadd.f32 0.0, %v4626
        %v4628 = vpop.f32.mrb[0].mxu0
        %v4629 = vadd.f32 0.0, %v4628
        %v4630 = vpop.f32.mrb[0].mxu0
        %v4631 = vadd.f32 0.0, %v4630
        %v4632 = vpop.f32.mrb[0].mxu0
        %v4633 = vadd.f32 0.0, %v4632
        %4634 = vmatprep.mubr.bf16.mxu0 0
        %4635 = vmatmul.mubr.bf16.gmra.mrb[0].mxu0 %v2768
        %v4636 = vpop.f32.mrb[0].mxu0
        %v4637 = vadd.f32 0.0, %v4636
        %v4638 = vpop.f32.mrb[0].mxu0
        %v4639 = vadd.f32 0.0, %v4638
        %v4640 = vpop.f32.mrb[0].mxu0
        %v4641 = vadd.f32 0.0, %v4640
        %v4642 = vpop.f32.mrb[0].mxu0
        %v4643 = vadd.f32 0.0, %v4642
        %4644 = vmatprep.mubr.bf16.mxu0 0
        %4645 = vmatmul.mubr.bf16.gmra.mrb[0].mxu0 %v2769
        %v4646 = vpop.f32.mrb[0].mxu0
        %v4647 = vadd.f32 0.0, %v4646
        %v4648 = vpop.f32.mrb[0].mxu0
        %v4649 = vadd.f32 0.0, %v4648
        %v4650 = vpop.f32.mrb[0].mxu0
        %v4651 = vadd.f32 0.0, %v4650
        %v4652 = vpop.f32.mrb[0].mxu0
        %v4653 = vadd.f32 0.0, %v4652
        %4654 = vmatprep.mubr.bf16.mxu0 0
        %4655 = vmatmul.mubr.bf16.gmra.mrb[0].mxu0 %v2770
        %v4656 = vpop.f32.mrb[0].mxu0
        %v4657 = vadd.f32 0.0, %v4656
        %v4658 = vpop.f32.mrb[0].mxu0
        %v4659 = vadd.f32 0.0, %v4658
        %v4660 = vpop.f32.mrb[0].mxu0
        %v4661 = vadd.f32 0.0, %v4660
        %v4662 = vpop.f32.mrb[0].mxu0
        %v4663 = vadd.f32 0.0, %v4662
        %4664 = vmatprep.mubr.bf16.mxu0 0
        %4665 = vmatmul.mubr.bf16.gmra.mrb[0].mxu0 %v2771
        %v4666 = vpop.f32.mrb[0].mxu0
        %v4667 = vadd.f32 0.0, %v4666
        %v4668 = vpop.f32.mrb[0].mxu0
        %v4669 = vadd.f32 0.0, %v4668
        %v4670 = vpop.f32.mrb[0].mxu0
        %v4671 = vadd.f32 0.0, %v4670
        %v4672 = vpop.f32.mrb[0].mxu0
        %v4673 = vadd.f32 0.0, %v4672
        %4674 = vmatprep.mubr.bf16.mxu0 0
        %4675 = vmatmul.mubr.bf16.gmra.mrb[0].mxu0 %v2772
        %v4676 = vpop.f32.mrb[0].mxu0
        %v4677 = vadd.f32 0.0, %v4676
        %v4678 = vpop.f32.mrb[0].mxu0
        %v4679 = vadd.f32 0.0, %v4678
        %v4680 = vpop.f32.mrb[0].mxu0
        %v4681 = vadd.f32 0.0, %v4680
        %v4682 = vpop.f32.mrb[0].mxu0
        %v4683 = vadd.f32 0.0, %v4682
        %4684 = vmatprep.mubr.bf16.mxu0 0
        %4685 = vmatmul.mubr.bf16.gmra.mrb[0].mxu0 %v2773
        %v4686 = vpop.f32.mrb[0].mxu0
        %v4687 = vadd.f32 0.0, %v4686
        %v4688 = vpop.f32.mrb[0].mxu0
        %v4689 = vadd.f32 0.0, %v4688
        %v4690 = vpop.f32.mrb[0].mxu0
        %v4691 = vadd.f32 0.0, %v4690
        %v4692 = vpop.f32.mrb[0].mxu0
        %v4693 = vadd.f32 0.0, %v4692
        %4694 = vmatprep.mubr.bf16.mxu0 0
        %4695 = vmatmul.mubr.bf16.gmra.mrb[0].mxu0 %v2774
        %v4696 = vpop.f32.mrb[0].mxu0
        %v4697 = vadd.f32 0.0, %v4696
        %v4698 = vpop.f32.mrb[0].mxu0
        %v4699 = vadd.f32 0.0, %v4698
        %v4700 = vpop.f32.mrb[0].mxu0
        %v4701 = vadd.f32 0.0, %v4700
        %v4702 = vpop.f32.mrb[0].mxu0
        %v4703 = vadd.f32 0.0, %v4702
        %4704 = vmatprep.mubr.bf16.mxu0 0
        %4705 = vmatmul.mubr.bf16.gmra.mrb[0].mxu0 %v2775
        %v4706 = vpop.f32.mrb[0].mxu0
        %v4707 = vadd.f32 0.0, %v4706
        %v4708 = vpop.f32.mrb[0].mxu0
        %v4709 = vadd.f32 0.0, %v4708
        %v4710 = vpop.f32.mrb[0].mxu0
        %v4711 = vadd.f32 0.0, %v4710
        %v4712 = vpop.f32.mrb[0].mxu0
        %v4713 = vadd.f32 0.0, %v4712
        %4714 = vmatprep.mubr.bf16.mxu0 0
        %4715 = vmatmul.mubr.bf16.gmra.mrb[0].mxu0 %v2776
        %v4716 = vpop.f32.mrb[0].mxu0
        %v4717 = vadd.f32 0.0, %v4716
        %v4718 = vpop.f32.mrb[0].mxu0
        %v4719 = vadd.f32 0.0, %v4718
        %v4720 = vpop.f32.mrb[0].mxu0
        %v4721 = vadd.f32 0.0, %v4720
        %v4722 = vpop.f32.mrb[0].mxu0
        %v4723 = vadd.f32 0.0, %v4722
        %4724 = vmatprep.mubr.bf16.mxu0 0
        %4725 = vmatmul.mubr.bf16.gmra.mrb[0].mxu0 %v2777
        %v4726 = vpop.f32.mrb[0].mxu0
        %v4727 = vadd.f32 0.0, %v4726
        %v4728 = vpop.f32.mrb[0].mxu0
        %v4729 = vadd.f32 0.0, %v4728
        %v4730 = vpop.f32.mrb[0].mxu0
        %v4731 = vadd.f32 0.0, %v4730
        %v4732 = vpop.f32.mrb[0].mxu0
        %v4733 = vadd.f32 0.0, %v4732
        %4734 = vmatprep.mubr.bf16.mxu0 0
        %4735 = vmatmul.mubr.bf16.gmra.mrb[0].mxu0 %v2778
        %v4736 = vpop.f32.mrb[0].mxu0
        %v4737 = vadd.f32 0.0, %v4736
        %v4738 = vpop.f32.mrb[0].mxu0
        %v4739 = vadd.f32 0.0, %v4738
        %v4740 = vpop.f32.mrb[0].mxu0
        %v4741 = vadd.f32 0.0, %v4740
        %v4742 = vpop.f32.mrb[0].mxu0
        %v4743 = vadd.f32 0.0, %v4742
        %4744 = vmatprep.mubr.bf16.mxu0 0
        %4745 = vmatmul.mubr.bf16.gmra.mrb[0].mxu0 %v2779
        %v4746 = vpop.f32.mrb[0].mxu0
        %v4747 = vadd.f32 0.0, %v4746
        %v4748 = vpop.f32.mrb[0].mxu0
        %v4749 = vadd.f32 0.0, %v4748
        %v4750 = vpop.f32.mrb[0].mxu0
        %v4751 = vadd.f32 0.0, %v4750
        %v4752 = vpop.f32.mrb[0].mxu0
        %v4753 = vadd.f32 0.0, %v4752
        %4754 = vmatprep.mubr.bf16.mxu0 0
        %4755 = vmatmul.mubr.bf16.gmra.mrb[0].mxu0 %v2780
        %v4756 = vpop.f32.mrb[0].mxu0
        %v4757 = vadd.f32 0.0, %v4756
        %v4758 = vpop.f32.mrb[0].mxu0
        %v4759 = vadd.f32 0.0, %v4758
        %v4760 = vpop.f32.mrb[0].mxu0
        %v4761 = vadd.f32 0.0, %v4760
        %v4762 = vpop.f32.mrb[0].mxu0
        %v4763 = vadd.f32 0.0, %v4762
        %4764 = vmatprep.mubr.bf16.mxu0 0
        %4765 = vmatmul.mubr.bf16.gmra.mrb[0].mxu0 %v2781
        %v4766 = vpop.f32.mrb[0].mxu0
        %v4767 = vadd.f32 0.0, %v4766
        %v4768 = vpop.f32.mrb[0].mxu0
        %v4769 = vadd.f32 0.0, %v4768
        %v4770 = vpop.f32.mrb[0].mxu0
        %v4771 = vadd.f32 0.0, %v4770
        %v4772 = vpop.f32.mrb[0].mxu0
        %v4773 = vadd.f32 0.0, %v4772
        %4774 = vmatprep.mubr.bf16.mxu0 0
        %4775 = vmatmul.mubr.bf16.gmra.mrb[0].mxu0 %v2782
        %v4776 = vpop.f32.mrb[0].mxu0
        %v4777 = vadd.f32 0.0, %v4776
        %v4778 = vpop.f32.mrb[0].mxu0
        %v4779 = vadd.f32 0.0, %v4778
        %v4780 = vpop.f32.mrb[0].mxu0
        %v4781 = vadd.f32 0.0, %v4780
        %v4782 = vpop.f32.mrb[0].mxu0
        %v4783 = vadd.f32 0.0, %v4782
        %4784 = vmatprep.mubr.bf16.mxu0 0
        %4785 = vmatmul.mubr.bf16.gmra.mrb[0].mxu0 %v2783
        %v4786 = vpop.f32.mrb[0].mxu0
        %v4787 = vadd.f32 0.0, %v4786
        %v4788 = vpop.f32.mrb[0].mxu0
        %v4789 = vadd.f32 0.0, %v4788
        %v4790 = vpop.f32.mrb[0].mxu0
        %v4791 = vadd.f32 0.0, %v4790
        %v4792 = vpop.f32.mrb[0].mxu0
        %v4793 = vadd.f32 0.0, %v4792
        %4794 = vmatprep.mubr.bf16.mxu0 0
        %4795 = vmatmul.mubr.bf16.gmra.mrb[0].mxu0 %v2784
        %v4796 = vpop.f32.mrb[0].mxu0
        %v4797 = vadd.f32 0.0, %v4796
        %v4798 = vpop.f32.mrb[0].mxu0
        %v4799 = vadd.f32 0.0, %v4798
        %v4800 = vpop.f32.mrb[0].mxu0
        %v4801 = vadd.f32 0.0, %v4800
        %v4802 = vpop.f32.mrb[0].mxu0
        %v4803 = vadd.f32 0.0, %v4802
        %4804 = vmatprep.mubr.bf16.mxu0 0
        %4805 = vmatmul.mubr.bf16.gmra.mrb[0].mxu0 %v2785
        %v4806 = vpop.f32.mrb[0].mxu0
        %v4807 = vadd.f32 0.0, %v4806
        %v4808 = vpop.f32.mrb[0].mxu0
        %v4809 = vadd.f32 0.0, %v4808
        %v4810 = vpop.f32.mrb[0].mxu0
        %v4811 = vadd.f32 0.0, %v4810
        %v4812 = vpop.f32.mrb[0].mxu0
        %v4813 = vadd.f32 0.0, %v4812
        %4814 = vmatprep.mubr.bf16.mxu0 0
        %4815 = vmatmul.mubr.bf16.gmra.mrb[0].mxu0 %v2786
        %v4816 = vpop.f32.mrb[0].mxu0
        %v4817 = vadd.f32 0.0, %v4816
        %v4818 = vpop.f32.mrb[0].mxu0
        %v4819 = vadd.f32 0.0, %v4818
        %v4820 = vpop.f32.mrb[0].mxu0
        %v4821 = vadd.f32 0.0, %v4820
        %v4822 = vpop.f32.mrb[0].mxu0
        %v4823 = vadd.f32 0.0, %v4822
        %4824 = vmatprep.mubr.bf16.mxu0 0
        %4825 = vmatmul.mubr.bf16.gmra.mrb[0].mxu0 %v2787
        %v4826 = vpop.f32.mrb[0].mxu0
        %v4827 = vadd.f32 0.0, %v4826
        %v4828 = vpop.f32.mrb[0].mxu0
        %v4829 = vadd.f32 0.0, %v4828
        %v4830 = vpop.f32.mrb[0].mxu0
        %v4831 = vadd.f32 0.0, %v4830
        %v4832 = vpop.f32.mrb[0].mxu0
        %v4833 = vadd.f32 0.0, %v4832
        %4834 = vmatprep.mubr.bf16.mxu0 0
        %4835 = vmatmul.mubr.bf16.gmra.mrb[0].mxu0 %v2788
        %v4836 = vpop.f32.mrb[0].mxu0
        %v4837 = vadd.f32 0.0, %v4836
        %v4838 = vpop.f32.mrb[0].mxu0
        %v4839 = vadd.f32 0.0, %v4838
        %v4840 = vpop.f32.mrb[0].mxu0
        %v4841 = vadd.f32 0.0, %v4840
        %v4842 = vpop.f32.mrb[0].mxu0
        %v4843 = vadd.f32 0.0, %v4842
        %4844 = vmatprep.mubr.bf16.mxu0 0
        %4845 = vmatmul.mubr.bf16.gmra.mrb[0].mxu0 %v2789
        %v4846 = vpop.f32.mrb[0].mxu0
        %v4847 = vadd.f32 0.0, %v4846
        %v4848 = vpop.f32.mrb[0].mxu0
        %v4849 = vadd.f32 0.0, %v4848
        %v4850 = vpop.f32.mrb[0].mxu0
        %v4851 = vadd.f32 0.0, %v4850
        %v4852 = vpop.f32.mrb[0].mxu0
        %v4853 = vadd.f32 0.0, %v4852
        %4854 = vmatprep.mubr.bf16.mxu0 0
        %4855 = vmatmul.mubr.bf16.gmra.mrb[0].mxu0 %v2790
        %v4856 = vpop.f32.mrb[0].mxu0
        %v4857 = vadd.f32 0.0, %v4856
        %v4858 = vpop.f32.mrb[0].mxu0
        %v4859 = vadd.f32 0.0, %v4858
        %v4860 = vpop.f32.mrb[0].mxu0
        %v4861 = vadd.f32 0.0, %v4860
        %v4862 = vpop.f32.mrb[0].mxu0
        %v4863 = vadd.f32 0.0, %v4862
        %4864 = vmatprep.mubr.bf16.mxu0 0
        %4865 = vmatmul.mubr.bf16.gmra.mrb[0].mxu0 %v2791
        %v4866 = vpop.f32.mrb[0].mxu0
        %v4867 = vadd.f32 0.0, %v4866
        %v4868 = vpop.f32.mrb[0].mxu0
        %v4869 = vadd.f32 0.0, %v4868
        %v4870 = vpop.f32.mrb[0].mxu0
        %v4871 = vadd.f32 0.0, %v4870
        %v4872 = vpop.f32.mrb[0].mxu0
        %v4873 = vadd.f32 0.0, %v4872
        %4874 = vdwg.mxu0
        %4875 = vmatprep.subr.bf16.mxu0 %v2415
        %4876 = vmatpush1.bf16.msra.mxu0 %v2414
        %4877 = vmatprep.subr.bf16.mxu0 %v2423
        %4878 = vmatpush1.bf16.msra.mxu0 %v2422
        %4879 = vmatprep.subr.bf16.mxu0 %v2431
        %4880 = vmatpush1.bf16.msra.mxu0 %v2430
        %4881 = vmatprep.subr.bf16.mxu0 %v2439
        %4882 = vmatpush1.bf16.msra.mxu0 %v2438
        %4883 = vmatprep.subr.bf16.mxu0 %v2447
        %4884 = vmatpush1.bf16.msra.mxu0 %v2446
        %4885 = vmatprep.subr.bf16.mxu0 %v2455
        %4886 = vmatpush1.bf16.msra.mxu0 %v2454
        %4887 = vmatprep.subr.bf16.mxu0 %v2463
        %4888 = vmatpush1.bf16.msra.mxu0 %v2462
        %4889 = vmatprep.subr.bf16.mxu0 %v2471
        %4890 = vmatpush1.bf16.msra.mxu0 %v2470
        %4891 = vmatprep.subr.bf16.mxu0 0
        %4892 = vmatpush1.bf16.msra.mxu0 0
        %4893 = vmatprep.subr.bf16.mxu0 0
        %4894 = vmatpush1.bf16.msra.mxu0 0
        %4895 = vmatprep.subr.bf16.mxu0 0
        %4896 = vmatpush1.bf16.msra.mxu0 0
        %4897 = vmatprep.subr.bf16.mxu0 0
        %4898 = vmatpush1.bf16.msra.mxu0 0
        %4899 = vmatprep.subr.bf16.mxu0 0
        %4900 = vmatpush1.bf16.msra.mxu0 0
        %4901 = vmatprep.subr.bf16.mxu0 0
        %4902 = vmatpush1.bf16.msra.mxu0 0
        %4903 = vmatprep.subr.bf16.mxu0 0
        %4904 = vmatpush1.bf16.msra.mxu0 0
        %4905 = vmatprep.subr.bf16.mxu0 0
        %4906 = vmatpush1.bf16.msra.mxu0 0
        %4907 = vmatprep.mubr.bf16.mxu0 0
        %4908 = vmatmul.mubr.bf16.gmra.mrb[0].mxu0 %v2728
        %v4909 = vpop.f32.mrb[0].mxu0
        %v4910 = vadd.f32 0.0, %v4909
        %v4911 = vpop.f32.mrb[0].mxu0
        %v4912 = vadd.f32 0.0, %v4911
        %v4913 = vpop.f32.mrb[0].mxu0
        %v4914 = vadd.f32 0.0, %v4913
        %v4915 = vpop.f32.mrb[0].mxu0
        %v4916 = vadd.f32 0.0, %v4915
        %4917 = vmatprep.mubr.bf16.mxu0 0
        %4918 = vmatmul.mubr.bf16.gmra.mrb[0].mxu0 %v2729
        %v4919 = vpop.f32.mrb[0].mxu0
        %v4920 = vadd.f32 0.0, %v4919
        %v4921 = vpop.f32.mrb[0].mxu0
        %v4922 = vadd.f32 0.0, %v4921
        %v4923 = vpop.f32.mrb[0].mxu0
        %v4924 = vadd.f32 0.0, %v4923
        %v4925 = vpop.f32.mrb[0].mxu0
        %v4926 = vadd.f32 0.0, %v4925
        %4927 = vmatprep.mubr.bf16.mxu0 0
        %4928 = vmatmul.mubr.bf16.gmra.mrb[0].mxu0 %v2730
        %v4929 = vpop.f32.mrb[0].mxu0
        %v4930 = vadd.f32 0.0, %v4929
        %v4931 = vpop.f32.mrb[0].mxu0
        %v4932 = vadd.f32 0.0, %v4931
        %v4933 = vpop.f32.mrb[0].mxu0
        %v4934 = vadd.f32 0.0, %v4933
        %v4935 = vpop.f32.mrb[0].mxu0
        %v4936 = vadd.f32 0.0, %v4935
        %4937 = vmatprep.mubr.bf16.mxu0 0
        %4938 = vmatmul.mubr.bf16.gmra.mrb[0].mxu0 %v2731
        %v4939 = vpop.f32.mrb[0].mxu0
        %v4940 = vadd.f32 0.0, %v4939
        %v4941 = vpop.f32.mrb[0].mxu0
        %v4942 = vadd.f32 0.0, %v4941
        %v4943 = vpop.f32.mrb[0].mxu0
        %v4944 = vadd.f32 0.0, %v4943
        %v4945 = vpop.f32.mrb[0].mxu0
        %v4946 = vadd.f32 0.0, %v4945
        %4947 = vmatprep.mubr.bf16.mxu0 0
        %4948 = vmatmul.mubr.bf16.gmra.mrb[0].mxu0 %v2732
        %v4949 = vpop.f32.mrb[0].mxu0
        %v4950 = vadd.f32 0.0, %v4949
        %v4951 = vpop.f32.mrb[0].mxu0
        %v4952 = vadd.f32 0.0, %v4951
        %v4953 = vpop.f32.mrb[0].mxu0
        %v4954 = vadd.f32 0.0, %v4953
        %v4955 = vpop.f32.mrb[0].mxu0
        %v4956 = vadd.f32 0.0, %v4955
        %4957 = vmatprep.mubr.bf16.mxu0 0
        %4958 = vmatmul.mubr.bf16.gmra.mrb[0].mxu0 %v2733
        %v4959 = vpop.f32.mrb[0].mxu0
        %v4960 = vadd.f32 0.0, %v4959
        %v4961 = vpop.f32.mrb[0].mxu0
        %v4962 = vadd.f32 0.0, %v4961
        %v4963 = vpop.f32.mrb[0].mxu0
        %v4964 = vadd.f32 0.0, %v4963
        %v4965 = vpop.f32.mrb[0].mxu0
        %v4966 = vadd.f32 0.0, %v4965
        %4967 = vmatprep.mubr.bf16.mxu0 0
        %4968 = vmatmul.mubr.bf16.gmra.mrb[0].mxu0 %v2734
        %v4969 = vpop.f32.mrb[0].mxu0
        %v4970 = vadd.f32 0.0, %v4969
        %v4971 = vpop.f32.mrb[0].mxu0
        %v4972 = vadd.f32 0.0, %v4971
        %v4973 = vpop.f32.mrb[0].mxu0
        %v4974 = vadd.f32 0.0, %v4973
        %v4975 = vpop.f32.mrb[0].mxu0
        %v4976 = vadd.f32 0.0, %v4975
        %4977 = vmatprep.mubr.bf16.mxu0 0
        %4978 = vmatmul.mubr.bf16.gmra.mrb[0].mxu0 %v2735
        %v4979 = vpop.f32.mrb[0].mxu0
        %v4980 = vadd.f32 0.0, %v4979
        %v4981 = vpop.f32.mrb[0].mxu0
        %v4982 = vadd.f32 0.0, %v4981
        %v4983 = vpop.f32.mrb[0].mxu0
        %v4984 = vadd.f32 0.0, %v4983
        %v4985 = vpop.f32.mrb[0].mxu0
        %v4986 = vadd.f32 0.0, %v4985
        %4987 = vmatprep.mubr.bf16.mxu0 0
        %4988 = vmatmul.mubr.bf16.gmra.mrb[0].mxu0 %v2736
        %v4989 = vpop.f32.mrb[0].mxu0
        %v4990 = vadd.f32 0.0, %v4989
        %v4991 = vpop.f32.mrb[0].mxu0
        %v4992 = vadd.f32 0.0, %v4991
        %v4993 = vpop.f32.mrb[0].mxu0
        %v4994 = vadd.f32 0.0, %v4993
        %v4995 = vpop.f32.mrb[0].mxu0
        %v4996 = vadd.f32 0.0, %v4995
        %4997 = vmatprep.mubr.bf16.mxu0 0
        %4998 = vmatmul.mubr.bf16.gmra.mrb[0].mxu0 %v2737
        %v4999 = vpop.f32.mrb[0].mxu0
        %v5000 = vadd.f32 0.0, %v4999
        %v5001 = vpop.f32.mrb[0].mxu0
        %v5002 = vadd.f32 0.0, %v5001
        %v5003 = vpop.f32.mrb[0].mxu0
        %v5004 = vadd.f32 0.0, %v5003
        %v5005 = vpop.f32.mrb[0].mxu0
        %v5006 = vadd.f32 0.0, %v5005
        %5007 = vmatprep.mubr.bf16.mxu0 0
        %5008 = vmatmul.mubr.bf16.gmra.mrb[0].mxu0 %v2738
        %v5009 = vpop.f32.mrb[0].mxu0
        %v5010 = vadd.f32 0.0, %v5009
        %v5011 = vpop.f32.mrb[0].mxu0
        %v5012 = vadd.f32 0.0, %v5011
        %v5013 = vpop.f32.mrb[0].mxu0
        %v5014 = vadd.f32 0.0, %v5013
        %v5015 = vpop.f32.mrb[0].mxu0
        %v5016 = vadd.f32 0.0, %v5015
        %5017 = vmatprep.mubr.bf16.mxu0 0
        %5018 = vmatmul.mubr.bf16.gmra.mrb[0].mxu0 %v2739
        %v5019 = vpop.f32.mrb[0].mxu0
        %v5020 = vadd.f32 0.0, %v5019
        %v5021 = vpop.f32.mrb[0].mxu0
        %v5022 = vadd.f32 0.0, %v5021
        %v5023 = vpop.f32.mrb[0].mxu0
        %v5024 = vadd.f32 0.0, %v5023
        %v5025 = vpop.f32.mrb[0].mxu0
        %v5026 = vadd.f32 0.0, %v5025
        %5027 = vmatprep.mubr.bf16.mxu0 0
        %5028 = vmatmul.mubr.bf16.gmra.mrb[0].mxu0 %v2740
        %v5029 = vpop.f32.mrb[0].mxu0
        %v5030 = vadd.f32 0.0, %v5029
        %v5031 = vpop.f32.mrb[0].mxu0
        %v5032 = vadd.f32 0.0, %v5031
        %v5033 = vpop.f32.mrb[0].mxu0
        %v5034 = vadd.f32 0.0, %v5033
        %v5035 = vpop.f32.mrb[0].mxu0
        %v5036 = vadd.f32 0.0, %v5035
        %5037 = vmatprep.mubr.bf16.mxu0 0
        %5038 = vmatmul.mubr.bf16.gmra.mrb[0].mxu0 %v2741
        %v5039 = vpop.f32.mrb[0].mxu0
        %v5040 = vadd.f32 0.0, %v5039
        %v5041 = vpop.f32.mrb[0].mxu0
        %v5042 = vadd.f32 0.0, %v5041
        %v5043 = vpop.f32.mrb[0].mxu0
        %v5044 = vadd.f32 0.0, %v5043
        %v5045 = vpop.f32.mrb[0].mxu0
        %v5046 = vadd.f32 0.0, %v5045
        %5047 = vmatprep.mubr.bf16.mxu0 0
        %5048 = vmatmul.mubr.bf16.gmra.mrb[0].mxu0 %v2742
        %v5049 = vpop.f32.mrb[0].mxu0
        %v5050 = vadd.f32 0.0, %v5049
        %v5051 = vpop.f32.mrb[0].mxu0
        %v5052 = vadd.f32 0.0, %v5051
        %v5053 = vpop.f32.mrb[0].mxu0
        %v5054 = vadd.f32 0.0, %v5053
        %v5055 = vpop.f32.mrb[0].mxu0
        %v5056 = vadd.f32 0.0, %v5055
        %5057 = vmatprep.mubr.bf16.mxu0 0
        %5058 = vmatmul.mubr.bf16.gmra.mrb[0].mxu0 %v2743
        %v5059 = vpop.f32.mrb[0].mxu0
        %v5060 = vadd.f32 0.0, %v5059
        %v5061 = vpop.f32.mrb[0].mxu0
        %v5062 = vadd.f32 0.0, %v5061
        %v5063 = vpop.f32.mrb[0].mxu0
        %v5064 = vadd.f32 0.0, %v5063
        %v5065 = vpop.f32.mrb[0].mxu0
        %v5066 = vadd.f32 0.0, %v5065
        %5067 = vmatprep.mubr.bf16.mxu0 0
        %5068 = vmatmul.mubr.bf16.gmra.mrb[0].mxu0 %v2744
        %v5069 = vpop.f32.mrb[0].mxu0
        %v5070 = vadd.f32 0.0, %v5069
        %v5071 = vpop.f32.mrb[0].mxu0
        %v5072 = vadd.f32 0.0, %v5071
        %v5073 = vpop.f32.mrb[0].mxu0
        %v5074 = vadd.f32 0.0, %v5073
        %v5075 = vpop.f32.mrb[0].mxu0
        %v5076 = vadd.f32 0.0, %v5075
        %5077 = vmatprep.mubr.bf16.mxu0 0
        %5078 = vmatmul.mubr.bf16.gmra.mrb[0].mxu0 %v2745
        %v5079 = vpop.f32.mrb[0].mxu0
        %v5080 = vadd.f32 0.0, %v5079
        %v5081 = vpop.f32.mrb[0].mxu0
        %v5082 = vadd.f32 0.0, %v5081
        %v5083 = vpop.f32.mrb[0].mxu0
        %v5084 = vadd.f32 0.0, %v5083
        %v5085 = vpop.f32.mrb[0].mxu0
        %v5086 = vadd.f32 0.0, %v5085
        %5087 = vmatprep.mubr.bf16.mxu0 0
        %5088 = vmatmul.mubr.bf16.gmra.mrb[0].mxu0 %v2746
        %v5089 = vpop.f32.mrb[0].mxu0
        %v5090 = vadd.f32 0.0, %v5089
        %v5091 = vpop.f32.mrb[0].mxu0
        %v5092 = vadd.f32 0.0, %v5091
        %v5093 = vpop.f32.mrb[0].mxu0
        %v5094 = vadd.f32 0.0, %v5093
        %v5095 = vpop.f32.mrb[0].mxu0
        %v5096 = vadd.f32 0.0, %v5095
        %5097 = vmatprep.mubr.bf16.mxu0 0
        %5098 = vmatmul.mubr.bf16.gmra.mrb[0].mxu0 %v2747
        %v5099 = vpop.f32.mrb[0].mxu0
        %v5100 = vadd.f32 0.0, %v5099
        %v5101 = vpop.f32.mrb[0].mxu0
        %v5102 = vadd.f32 0.0, %v5101
        %v5103 = vpop.f32.mrb[0].mxu0
        %v5104 = vadd.f32 0.0, %v5103
        %v5105 = vpop.f32.mrb[0].mxu0
        %v5106 = vadd.f32 0.0, %v5105
        %5107 = vmatprep.mubr.bf16.mxu0 0
        %5108 = vmatmul.mubr.bf16.gmra.mrb[0].mxu0 %v2748
        %v5109 = vpop.f32.mrb[0].mxu0
        %v5110 = vadd.f32 0.0, %v5109
        %v5111 = vpop.f32.mrb[0].mxu0
        %v5112 = vadd.f32 0.0, %v5111
        %v5113 = vpop.f32.mrb[0].mxu0
        %v5114 = vadd.f32 0.0, %v5113
        %v5115 = vpop.f32.mrb[0].mxu0
        %v5116 = vadd.f32 0.0, %v5115
        %5117 = vmatprep.mubr.bf16.mxu0 0
        %5118 = vmatmul.mubr.bf16.gmra.mrb[0].mxu0 %v2749
        %v5119 = vpop.f32.mrb[0].mxu0
        %v5120 = vadd.f32 0.0, %v5119
        %v5121 = vpop.f32.mrb[0].mxu0
        %v5122 = vadd.f32 0.0, %v5121
        %v5123 = vpop.f32.mrb[0].mxu0
        %v5124 = vadd.f32 0.0, %v5123
        %v5125 = vpop.f32.mrb[0].mxu0
        %v5126 = vadd.f32 0.0, %v5125
        %5127 = vmatprep.mubr.bf16.mxu0 0
        %5128 = vmatmul.mubr.bf16.gmra.mrb[0].mxu0 %v2750
        %v5129 = vpop.f32.mrb[0].mxu0
        %v5130 = vadd.f32 0.0, %v5129
        %v5131 = vpop.f32.mrb[0].mxu0
        %v5132 = vadd.f32 0.0, %v5131
        %v5133 = vpop.f32.mrb[0].mxu0
        %v5134 = vadd.f32 0.0, %v5133
        %v5135 = vpop.f32.mrb[0].mxu0
        %v5136 = vadd.f32 0.0, %v5135
        %5137 = vmatprep.mubr.bf16.mxu0 0
        %5138 = vmatmul.mubr.bf16.gmra.mrb[0].mxu0 %v2751
        %v5139 = vpop.f32.mrb[0].mxu0
        %v5140 = vadd.f32 0.0, %v5139
        %v5141 = vpop.f32.mrb[0].mxu0
        %v5142 = vadd.f32 0.0, %v5141
        %v5143 = vpop.f32.mrb[0].mxu0
        %v5144 = vadd.f32 0.0, %v5143
        %v5145 = vpop.f32.mrb[0].mxu0
        %v5146 = vadd.f32 0.0, %v5145
        %5147 = vmatprep.mubr.bf16.mxu0 0
        %5148 = vmatmul.mubr.bf16.gmra.mrb[0].mxu0 %v2752
        %v5149 = vpop.f32.mrb[0].mxu0
        %v5150 = vadd.f32 0.0, %v5149
        %v5151 = vpop.f32.mrb[0].mxu0
        %v5152 = vadd.f32 0.0, %v5151
        %v5153 = vpop.f32.mrb[0].mxu0
        %v5154 = vadd.f32 0.0, %v5153
        %v5155 = vpop.f32.mrb[0].mxu0
        %v5156 = vadd.f32 0.0, %v5155
        %5157 = vmatprep.mubr.bf16.mxu0 0
        %5158 = vmatmul.mubr.bf16.gmra.mrb[0].mxu0 %v2753
        %v5159 = vpop.f32.mrb[0].mxu0
        %v5160 = vadd.f32 0.0, %v5159
        %v5161 = vpop.f32.mrb[0].mxu0
        %v5162 = vadd.f32 0.0, %v5161
        %v5163 = vpop.f32.mrb[0].mxu0
        %v5164 = vadd.f32 0.0, %v5163
        %v5165 = vpop.f32.mrb[0].mxu0
        %v5166 = vadd.f32 0.0, %v5165
        %5167 = vmatprep.mubr.bf16.mxu0 0
        %5168 = vmatmul.mubr.bf16.gmra.mrb[0].mxu0 %v2754
        %v5169 = vpop.f32.mrb[0].mxu0
        %v5170 = vadd.f32 0.0, %v5169
        %v5171 = vpop.f32.mrb[0].mxu0
        %v5172 = vadd.f32 0.0, %v5171
        %v5173 = vpop.f32.mrb[0].mxu0
        %v5174 = vadd.f32 0.0, %v5173
        %v5175 = vpop.f32.mrb[0].mxu0
        %v5176 = vadd.f32 0.0, %v5175
        %5177 = vmatprep.mubr.bf16.mxu0 0
        %5178 = vmatmul.mubr.bf16.gmra.mrb[0].mxu0 %v2755
        %v5179 = vpop.f32.mrb[0].mxu0
        %v5180 = vadd.f32 0.0, %v5179
        %v5181 = vpop.f32.mrb[0].mxu0
        %v5182 = vadd.f32 0.0, %v5181
        %v5183 = vpop.f32.mrb[0].mxu0
        %v5184 = vadd.f32 0.0, %v5183
        %v5185 = vpop.f32.mrb[0].mxu0
        %v5186 = vadd.f32 0.0, %v5185
        %5187 = vmatprep.mubr.bf16.mxu0 0
        %5188 = vmatmul.mubr.bf16.gmra.mrb[0].mxu0 %v2756
        %v5189 = vpop.f32.mrb[0].mxu0
        %v5190 = vadd.f32 0.0, %v5189
        %v5191 = vpop.f32.mrb[0].mxu0
        %v5192 = vadd.f32 0.0, %v5191
        %v5193 = vpop.f32.mrb[0].mxu0
        %v5194 = vadd.f32 0.0, %v5193
        %v5195 = vpop.f32.mrb[0].mxu0
        %v5196 = vadd.f32 0.0, %v5195
        %5197 = vmatprep.mubr.bf16.mxu0 0
        %5198 = vmatmul.mubr.bf16.gmra.mrb[0].mxu0 %v2757
        %v5199 = vpop.f32.mrb[0].mxu0
        %v5200 = vadd.f32 0.0, %v5199
        %v5201 = vpop.f32.mrb[0].mxu0
        %v5202 = vadd.f32 0.0, %v5201
        %v5203 = vpop.f32.mrb[0].mxu0
        %v5204 = vadd.f32 0.0, %v5203
        %v5205 = vpop.f32.mrb[0].mxu0
        %v5206 = vadd.f32 0.0, %v5205
        %5207 = vmatprep.mubr.bf16.mxu0 0
        %5208 = vmatmul.mubr.bf16.gmra.mrb[0].mxu0 %v2758
        %v5209 = vpop.f32.mrb[0].mxu0
        %v5210 = vadd.f32 0.0, %v5209
        %v5211 = vpop.f32.mrb[0].mxu0
        %v5212 = vadd.f32 0.0, %v5211
        %v5213 = vpop.f32.mrb[0].mxu0
        %v5214 = vadd.f32 0.0, %v5213
        %v5215 = vpop.f32.mrb[0].mxu0
        %v5216 = vadd.f32 0.0, %v5215
        %5217 = vmatprep.mubr.bf16.mxu0 0
        %5218 = vmatmul.mubr.bf16.gmra.mrb[0].mxu0 %v2759
        %v5219 = vpop.f32.mrb[0].mxu0
        %v5220 = vadd.f32 0.0, %v5219
        %v5221 = vpop.f32.mrb[0].mxu0
        %v5222 = vadd.f32 0.0, %v5221
        %v5223 = vpop.f32.mrb[0].mxu0
        %v5224 = vadd.f32 0.0, %v5223
        %v5225 = vpop.f32.mrb[0].mxu0
        %v5226 = vadd.f32 0.0, %v5225
        %5227 = vmatprep.mubr.bf16.mxu0 0
        %5228 = vmatmul.mubr.bf16.gmra.mrb[0].mxu0 %v2760
        %v5229 = vpop.f32.mrb[0].mxu0
        %v5230 = vadd.f32 0.0, %v5229
        %v5231 = vpop.f32.mrb[0].mxu0
        %v5232 = vadd.f32 0.0, %v5231
        %v5233 = vpop.f32.mrb[0].mxu0
        %v5234 = vadd.f32 0.0, %v5233
        %v5235 = vpop.f32.mrb[0].mxu0
        %v5236 = vadd.f32 0.0, %v5235
        %5237 = vmatprep.mubr.bf16.mxu0 0
        %5238 = vmatmul.mubr.bf16.gmra.mrb[0].mxu0 %v2761
        %v5239 = vpop.f32.mrb[0].mxu0
        %v5240 = vadd.f32 0.0, %v5239
        %v5241 = vpop.f32.mrb[0].mxu0
        %v5242 = vadd.f32 0.0, %v5241
        %v5243 = vpop.f32.mrb[0].mxu0
        %v5244 = vadd.f32 0.0, %v5243
        %v5245 = vpop.f32.mrb[0].mxu0
        %v5246 = vadd.f32 0.0, %v5245
        %5247 = vmatprep.mubr.bf16.mxu0 0
        %5248 = vmatmul.mubr.bf16.gmra.mrb[0].mxu0 %v2762
        %v5249 = vpop.f32.mrb[0].mxu0
        %v5250 = vadd.f32 0.0, %v5249
        %v5251 = vpop.f32.mrb[0].mxu0
        %v5252 = vadd.f32 0.0, %v5251
        %v5253 = vpop.f32.mrb[0].mxu0
        %v5254 = vadd.f32 0.0, %v5253
        %v5255 = vpop.f32.mrb[0].mxu0
        %v5256 = vadd.f32 0.0, %v5255
        %5257 = vmatprep.mubr.bf16.mxu0 0
        %5258 = vmatmul.mubr.bf16.gmra.mrb[0].mxu0 %v2763
        %v5259 = vpop.f32.mrb[0].mxu0
        %v5260 = vadd.f32 0.0, %v5259
        %v5261 = vpop.f32.mrb[0].mxu0
        %v5262 = vadd.f32 0.0, %v5261
        %v5263 = vpop.f32.mrb[0].mxu0
        %v5264 = vadd.f32 0.0, %v5263
        %v5265 = vpop.f32.mrb[0].mxu0
        %v5266 = vadd.f32 0.0, %v5265
        %5267 = vmatprep.mubr.bf16.mxu0 0
        %5268 = vmatmul.mubr.bf16.gmra.mrb[0].mxu0 %v2764
        %v5269 = vpop.f32.mrb[0].mxu0
        %v5270 = vadd.f32 0.0, %v5269
        %v5271 = vpop.f32.mrb[0].mxu0
        %v5272 = vadd.f32 0.0, %v5271
        %v5273 = vpop.f32.mrb[0].mxu0
        %v5274 = vadd.f32 0.0, %v5273
        %v5275 = vpop.f32.mrb[0].mxu0
        %v5276 = vadd.f32 0.0, %v5275
        %5277 = vmatprep.mubr.bf16.mxu0 0
        %5278 = vmatmul.mubr.bf16.gmra.mrb[0].mxu0 %v2765
        %v5279 = vpop.f32.mrb[0].mxu0
        %v5280 = vadd.f32 0.0, %v5279
        %v5281 = vpop.f32.mrb[0].mxu0
        %v5282 = vadd.f32 0.0, %v5281
        %v5283 = vpop.f32.mrb[0].mxu0
        %v5284 = vadd.f32 0.0, %v5283
        %v5285 = vpop.f32.mrb[0].mxu0
        %v5286 = vadd.f32 0.0, %v5285
        %5287 = vmatprep.mubr.bf16.mxu0 0
        %5288 = vmatmul.mubr.bf16.gmra.mrb[0].mxu0 %v2766
        %v5289 = vpop.f32.mrb[0].mxu0
        %v5290 = vadd.f32 0.0, %v5289
        %v5291 = vpop.f32.mrb[0].mxu0
        %v5292 = vadd.f32 0.0, %v5291
        %v5293 = vpop.f32.mrb[0].mxu0
        %v5294 = vadd.f32 0.0, %v5293
        %v5295 = vpop.f32.mrb[0].mxu0
        %v5296 = vadd.f32 0.0, %v5295
        %5297 = vmatprep.mubr.bf16.mxu0 0
        %5298 = vmatmul.mubr.bf16.gmra.mrb[0].mxu0 %v2767
        %v5299 = vpop.f32.mrb[0].mxu0
        %v5300 = vadd.f32 0.0, %v5299
        %v5301 = vpop.f32.mrb[0].mxu0
        %v5302 = vadd.f32 0.0, %v5301
        %v5303 = vpop.f32.mrb[0].mxu0
        %v5304 = vadd.f32 0.0, %v5303
        %v5305 = vpop.f32.mrb[0].mxu0
        %v5306 = vadd.f32 0.0, %v5305
        %5307 = vmatprep.mubr.bf16.mxu0 0
        %5308 = vmatmul.mubr.bf16.gmra.mrb[0].mxu0 %v2768
        %v5309 = vpop.f32.mrb[0].mxu0
        %v5310 = vadd.f32 0.0, %v5309
        %v5311 = vpop.f32.mrb[0].mxu0
        %v5312 = vadd.f32 0.0, %v5311
        %v5313 = vpop.f32.mrb[0].mxu0
        %v5314 = vadd.f32 0.0, %v5313
        %v5315 = vpop.f32.mrb[0].mxu0
        %v5316 = vadd.f32 0.0, %v5315
        %5317 = vmatprep.mubr.bf16.mxu0 0
        %5318 = vmatmul.mubr.bf16.gmra.mrb[0].mxu0 %v2769
        %v5319 = vpop.f32.mrb[0].mxu0
        %v5320 = vadd.f32 0.0, %v5319
        %v5321 = vpop.f32.mrb[0].mxu0
        %v5322 = vadd.f32 0.0, %v5321
        %v5323 = vpop.f32.mrb[0].mxu0
        %v5324 = vadd.f32 0.0, %v5323
        %v5325 = vpop.f32.mrb[0].mxu0
        %v5326 = vadd.f32 0.0, %v5325
        %5327 = vmatprep.mubr.bf16.mxu0 0
        %5328 = vmatmul.mubr.bf16.gmra.mrb[0].mxu0 %v2770
        %v5329 = vpop.f32.mrb[0].mxu0
        %v5330 = vadd.f32 0.0, %v5329
        %v5331 = vpop.f32.mrb[0].mxu0
        %v5332 = vadd.f32 0.0, %v5331
        %v5333 = vpop.f32.mrb[0].mxu0
        %v5334 = vadd.f32 0.0, %v5333
        %v5335 = vpop.f32.mrb[0].mxu0
        %v5336 = vadd.f32 0.0, %v5335
        %5337 = vmatprep.mubr.bf16.mxu0 0
        %5338 = vmatmul.mubr.bf16.gmra.mrb[0].mxu0 %v2771
        %v5339 = vpop.f32.mrb[0].mxu0
        %v5340 = vadd.f32 0.0, %v5339
        %v5341 = vpop.f32.mrb[0].mxu0
        %v5342 = vadd.f32 0.0, %v5341
        %v5343 = vpop.f32.mrb[0].mxu0
        %v5344 = vadd.f32 0.0, %v5343
        %v5345 = vpop.f32.mrb[0].mxu0
        %v5346 = vadd.f32 0.0, %v5345
        %5347 = vmatprep.mubr.bf16.mxu0 0
        %5348 = vmatmul.mubr.bf16.gmra.mrb[0].mxu0 %v2772
        %v5349 = vpop.f32.mrb[0].mxu0
        %v5350 = vadd.f32 0.0, %v5349
        %v5351 = vpop.f32.mrb[0].mxu0
        %v5352 = vadd.f32 0.0, %v5351
        %v5353 = vpop.f32.mrb[0].mxu0
        %v5354 = vadd.f32 0.0, %v5353
        %v5355 = vpop.f32.mrb[0].mxu0
        %v5356 = vadd.f32 0.0, %v5355
        %5357 = vmatprep.mubr.bf16.mxu0 0
        %5358 = vmatmul.mubr.bf16.gmra.mrb[0].mxu0 %v2773
        %v5359 = vpop.f32.mrb[0].mxu0
        %v5360 = vadd.f32 0.0, %v5359
        %v5361 = vpop.f32.mrb[0].mxu0
        %v5362 = vadd.f32 0.0, %v5361
        %v5363 = vpop.f32.mrb[0].mxu0
        %v5364 = vadd.f32 0.0, %v5363
        %v5365 = vpop.f32.mrb[0].mxu0
        %v5366 = vadd.f32 0.0, %v5365
        %5367 = vmatprep.mubr.bf16.mxu0 0
        %5368 = vmatmul.mubr.bf16.gmra.mrb[0].mxu0 %v2774
        %v5369 = vpop.f32.mrb[0].mxu0
        %v5370 = vadd.f32 0.0, %v5369
        %v5371 = vpop.f32.mrb[0].mxu0
        %v5372 = vadd.f32 0.0, %v5371
        %v5373 = vpop.f32.mrb[0].mxu0
        %v5374 = vadd.f32 0.0, %v5373
        %v5375 = vpop.f32.mrb[0].mxu0
        %v5376 = vadd.f32 0.0, %v5375
        %5377 = vmatprep.mubr.bf16.mxu0 0
        %5378 = vmatmul.mubr.bf16.gmra.mrb[0].mxu0 %v2775
        %v5379 = vpop.f32.mrb[0].mxu0
        %v5380 = vadd.f32 0.0, %v5379
        %v5381 = vpop.f32.mrb[0].mxu0
        %v5382 = vadd.f32 0.0, %v5381
        %v5383 = vpop.f32.mrb[0].mxu0
        %v5384 = vadd.f32 0.0, %v5383
        %v5385 = vpop.f32.mrb[0].mxu0
        %v5386 = vadd.f32 0.0, %v5385
        %5387 = vmatprep.mubr.bf16.mxu0 0
        %5388 = vmatmul.mubr.bf16.gmra.mrb[0].mxu0 %v2776
        %v5389 = vpop.f32.mrb[0].mxu0
        %v5390 = vadd.f32 0.0, %v5389
        %v5391 = vpop.f32.mrb[0].mxu0
        %v5392 = vadd.f32 0.0, %v5391
        %v5393 = vpop.f32.mrb[0].mxu0
        %v5394 = vadd.f32 0.0, %v5393
        %v5395 = vpop.f32.mrb[0].mxu0
        %v5396 = vadd.f32 0.0, %v5395
        %5397 = vmatprep.mubr.bf16.mxu0 0
        %5398 = vmatmul.mubr.bf16.gmra.mrb[0].mxu0 %v2777
        %v5399 = vpop.f32.mrb[0].mxu0
        %v5400 = vadd.f32 0.0, %v5399
        %v5401 = vpop.f32.mrb[0].mxu0
        %v5402 = vadd.f32 0.0, %v5401
        %v5403 = vpop.f32.mrb[0].mxu0
        %v5404 = vadd.f32 0.0, %v5403
        %v5405 = vpop.f32.mrb[0].mxu0
        %v5406 = vadd.f32 0.0, %v5405
        %5407 = vmatprep.mubr.bf16.mxu0 0
        %5408 = vmatmul.mubr.bf16.gmra.mrb[0].mxu0 %v2778
        %v5409 = vpop.f32.mrb[0].mxu0
        %v5410 = vadd.f32 0.0, %v5409
        %v5411 = vpop.f32.mrb[0].mxu0
        %v5412 = vadd.f32 0.0, %v5411
        %v5413 = vpop.f32.mrb[0].mxu0
        %v5414 = vadd.f32 0.0, %v5413
        %v5415 = vpop.f32.mrb[0].mxu0
        %v5416 = vadd.f32 0.0, %v5415
        %5417 = vmatprep.mubr.bf16.mxu0 0
        %5418 = vmatmul.mubr.bf16.gmra.mrb[0].mxu0 %v2779
        %v5419 = vpop.f32.mrb[0].mxu0
        %v5420 = vadd.f32 0.0, %v5419
        %v5421 = vpop.f32.mrb[0].mxu0
        %v5422 = vadd.f32 0.0, %v5421
        %v5423 = vpop.f32.mrb[0].mxu0
        %v5424 = vadd.f32 0.0, %v5423
        %v5425 = vpop.f32.mrb[0].mxu0
        %v5426 = vadd.f32 0.0, %v5425
        %5427 = vmatprep.mubr.bf16.mxu0 0
        %5428 = vmatmul.mubr.bf16.gmra.mrb[0].mxu0 %v2780
        %v5429 = vpop.f32.mrb[0].mxu0
        %v5430 = vadd.f32 0.0, %v5429
        %v5431 = vpop.f32.mrb[0].mxu0
        %v5432 = vadd.f32 0.0, %v5431
        %v5433 = vpop.f32.mrb[0].mxu0
        %v5434 = vadd.f32 0.0, %v5433
        %v5435 = vpop.f32.mrb[0].mxu0
        %v5436 = vadd.f32 0.0, %v5435
        %5437 = vmatprep.mubr.bf16.mxu0 0
        %5438 = vmatmul.mubr.bf16.gmra.mrb[0].mxu0 %v2781
        %v5439 = vpop.f32.mrb[0].mxu0
        %v5440 = vadd.f32 0.0, %v5439
        %v5441 = vpop.f32.mrb[0].mxu0
        %v5442 = vadd.f32 0.0, %v5441
        %v5443 = vpop.f32.mrb[0].mxu0
        %v5444 = vadd.f32 0.0, %v5443
        %v5445 = vpop.f32.mrb[0].mxu0
        %v5446 = vadd.f32 0.0, %v5445
        %5447 = vmatprep.mubr.bf16.mxu0 0
        %5448 = vmatmul.mubr.bf16.gmra.mrb[0].mxu0 %v2782
        %v5449 = vpop.f32.mrb[0].mxu0
        %v5450 = vadd.f32 0.0, %v5449
        %v5451 = vpop.f32.mrb[0].mxu0
        %v5452 = vadd.f32 0.0, %v5451
        %v5453 = vpop.f32.mrb[0].mxu0
        %v5454 = vadd.f32 0.0, %v5453
        %v5455 = vpop.f32.mrb[0].mxu0
        %v5456 = vadd.f32 0.0, %v5455
        %5457 = vmatprep.mubr.bf16.mxu0 0
        %5458 = vmatmul.mubr.bf16.gmra.mrb[0].mxu0 %v2783
        %v5459 = vpop.f32.mrb[0].mxu0
        %v5460 = vadd.f32 0.0, %v5459
        %v5461 = vpop.f32.mrb[0].mxu0
        %v5462 = vadd.f32 0.0, %v5461
        %v5463 = vpop.f32.mrb[0].mxu0
        %v5464 = vadd.f32 0.0, %v5463
        %v5465 = vpop.f32.mrb[0].mxu0
        %v5466 = vadd.f32 0.0, %v5465
        %5467 = vmatprep.mubr.bf16.mxu0 0
        %5468 = vmatmul.mubr.bf16.gmra.mrb[0].mxu0 %v2784
        %v5469 = vpop.f32.mrb[0].mxu0
        %v5470 = vadd.f32 0.0, %v5469
        %v5471 = vpop.f32.mrb[0].mxu0
        %v5472 = vadd.f32 0.0, %v5471
        %v5473 = vpop.f32.mrb[0].mxu0
        %v5474 = vadd.f32 0.0, %v5473
        %v5475 = vpop.f32.mrb[0].mxu0
        %v5476 = vadd.f32 0.0, %v5475
        %5477 = vmatprep.mubr.bf16.mxu0 0
        %5478 = vmatmul.mubr.bf16.gmra.mrb[0].mxu0 %v2785
        %v5479 = vpop.f32.mrb[0].mxu0
        %v5480 = vadd.f32 0.0, %v5479
        %v5481 = vpop.f32.mrb[0].mxu0
        %v5482 = vadd.f32 0.0, %v5481
        %v5483 = vpop.f32.mrb[0].mxu0
        %v5484 = vadd.f32 0.0, %v5483
        %v5485 = vpop.f32.mrb[0].mxu0
        %v5486 = vadd.f32 0.0, %v5485
        %5487 = vmatprep.mubr.bf16.mxu0 0
        %5488 = vmatmul.mubr.bf16.gmra.mrb[0].mxu0 %v2786
        %v5489 = vpop.f32.mrb[0].mxu0
        %v5490 = vadd.f32 0.0, %v5489
        %v5491 = vpop.f32.mrb[0].mxu0
        %v5492 = vadd.f32 0.0, %v5491
        %v5493 = vpop.f32.mrb[0].mxu0
        %v5494 = vadd.f32 0.0, %v5493
        %v5495 = vpop.f32.mrb[0].mxu0
        %v5496 = vadd.f32 0.0, %v5495
        %5497 = vmatprep.mubr.bf16.mxu0 0
        %5498 = vmatmul.mubr.bf16.gmra.mrb[0].mxu0 %v2787
        %v5499 = vpop.f32.mrb[0].mxu0
        %v5500 = vadd.f32 0.0, %v5499
        %v5501 = vpop.f32.mrb[0].mxu0
        %v5502 = vadd.f32 0.0, %v5501
        %v5503 = vpop.f32.mrb[0].mxu0
        %v5504 = vadd.f32 0.0, %v5503
        %v5505 = vpop.f32.mrb[0].mxu0
        %v5506 = vadd.f32 0.0, %v5505
        %5507 = vmatprep.mubr.bf16.mxu0 0
        %5508 = vmatmul.mubr.bf16.gmra.mrb[0].mxu0 %v2788
        %v5509 = vpop.f32.mrb[0].mxu0
        %v5510 = vadd.f32 0.0, %v5509
        %v5511 = vpop.f32.mrb[0].mxu0
        %v5512 = vadd.f32 0.0, %v5511
        %v5513 = vpop.f32.mrb[0].mxu0
        %v5514 = vadd.f32 0.0, %v5513
        %v5515 = vpop.f32.mrb[0].mxu0
        %v5516 = vadd.f32 0.0, %v5515
        %5517 = vmatprep.mubr.bf16.mxu0 0
        %5518 = vmatmul.mubr.bf16.gmra.mrb[0].mxu0 %v2789
        %v5519 = vpop.f32.mrb[0].mxu0
        %v5520 = vadd.f32 0.0, %v5519
        %v5521 = vpop.f32.mrb[0].mxu0
        %v5522 = vadd.f32 0.0, %v5521
        %v5523 = vpop.f32.mrb[0].mxu0
        %v5524 = vadd.f32 0.0, %v5523
        %v5525 = vpop.f32.mrb[0].mxu0
        %v5526 = vadd.f32 0.0, %v5525
        %5527 = vmatprep.mubr.bf16.mxu0 0
        %5528 = vmatmul.mubr.bf16.gmra.mrb[0].mxu0 %v2790
        %v5529 = vpop.f32.mrb[0].mxu0
        %v5530 = vadd.f32 0.0, %v5529
        %v5531 = vpop.f32.mrb[0].mxu0
        %v5532 = vadd.f32 0.0, %v5531
        %v5533 = vpop.f32.mrb[0].mxu0
        %v5534 = vadd.f32 0.0, %v5533
        %v5535 = vpop.f32.mrb[0].mxu0
        %v5536 = vadd.f32 0.0, %v5535
        %5537 = vmatprep.mubr.bf16.mxu0 0
        %5538 = vmatmul.mubr.bf16.gmra.mrb[0].mxu0 %v2791
        %v5539 = vpop.f32.mrb[0].mxu0
        %v5540 = vadd.f32 0.0, %v5539
        %v5541 = vpop.f32.mrb[0].mxu0
        %v5542 = vadd.f32 0.0, %v5541
        %v5543 = vpop.f32.mrb[0].mxu0
        %v5544 = vadd.f32 0.0, %v5543
        %v5545 = vpop.f32.mrb[0].mxu0
        %v5546 = vadd.f32 0.0, %v5545
        %5547 = vdwg.mxu0
        %v5548 = vmax.f32 %v2891, %v2893
        %v5549 = vmax.f32 %v2895, %v2897
        %v5550 = vmax.f32 %v2901, %v2903
        %v5551 = vmax.f32 %v2905, %v2907
        %v5552 = vmax.f32 %v2911, %v2913
        %v5553 = vmax.f32 %v2915, %v2917
        %v5554 = vmax.f32 %v2921, %v2923
        %v5555 = vmax.f32 %v2925, %v2927
        %v5556 = vmax.f32 %v2931, %v2933
        %v5557 = vmax.f32 %v2935, %v2937
        %v5558 = vmax.f32 %v2941, %v2943
        %v5559 = vmax.f32 %v2945, %v2947
        %v5560 = vmax.f32 %v2951, %v2953
        %v5561 = vmax.f32 %v2955, %v2957
        %v5562 = vmax.f32 %v2961, %v2963
        %v5563 = vmax.f32 %v2965, %v2967
        %v5564 = vmax.f32 %v2971, %v2973
        %v5565 = vmax.f32 %v2975, %v2977
        %v5566 = vmax.f32 %v2981, %v2983
        %v5567 = vmax.f32 %v2985, %v2987
        %v5568 = vmax.f32 %v2991, %v2993
        %v5569 = vmax.f32 %v2995, %v2997
        %v5570 = vmax.f32 %v3001, %v3003
        %v5571 = vmax.f32 %v3005, %v3007
        %v5572 = vmax.f32 %v3011, %v3013
        %v5573 = vmax.f32 %v3015, %v3017
        %v5574 = vmax.f32 %v3021, %v3023
        %v5575 = vmax.f32 %v3025, %v3027
        %v5576 = vmax.f32 %v3031, %v3033
        %v5577 = vmax.f32 %v3035, %v3037
        %v5578 = vmax.f32 %v3041, %v3043
        %v5579 = vmax.f32 %v3045, %v3047
        %v5580 = vmax.f32 %v3051, %v3053
        %v5581 = vmax.f32 %v3055, %v3057
        %v5582 = vmax.f32 %v3061, %v3063
        %v5583 = vmax.f32 %v3065, %v3067
        %v5584 = vmax.f32 %v3071, %v3073
        %v5585 = vmax.f32 %v3075, %v3077
        %v5586 = vmax.f32 %v3081, %v3083
        %v5587 = vmax.f32 %v3085, %v3087
        %v5588 = vmax.f32 %v3091, %v3093
        %v5589 = vmax.f32 %v3095, %v3097
        %v5590 = vmax.f32 %v3101, %v3103
        %v5591 = vmax.f32 %v3105, %v3107
        %v5592 = vmax.f32 %v3111, %v3113
        %v5593 = vmax.f32 %v3115, %v3117
        %v5594 = vmax.f32 %v3121, %v3123
        %v5595 = vmax.f32 %v3125, %v3127
        %v5596 = vmax.f32 %v3131, %v3133
        %v5597 = vmax.f32 %v3135, %v3137
        %v5598 = vmax.f32 %v3141, %v3143
        %v5599 = vmax.f32 %v3145, %v3147
        %v5600 = vmax.f32 %v3151, %v3153
        %v5601 = vmax.f32 %v3155, %v3157
        %v5602 = vmax.f32 %v3161, %v3163
        %v5603 = vmax.f32 %v3165, %v3167
        %v5604 = vmax.f32 %v3171, %v3173
        %v5605 = vmax.f32 %v3175, %v3177
        %v5606 = vmax.f32 %v3181, %v3183
        %v5607 = vmax.f32 %v3185, %v3187
        %v5608 = vmax.f32 %v3191, %v3193
        %v5609 = vmax.f32 %v3195, %v3197
        %v5610 = vmax.f32 %v3201, %v3203
        %v5611 = vmax.f32 %v3205, %v3207
        %v5612 = vmax.f32 %v3211, %v3213
        %v5613 = vmax.f32 %v3215, %v3217
        %v5614 = vmax.f32 %v3221, %v3223
        %v5615 = vmax.f32 %v3225, %v3227
        %v5616 = vmax.f32 %v3231, %v3233
        %v5617 = vmax.f32 %v3235, %v3237
        %v5618 = vmax.f32 %v3241, %v3243
        %v5619 = vmax.f32 %v3245, %v3247
        %v5620 = vmax.f32 %v3251, %v3253
        %v5621 = vmax.f32 %v3255, %v3257
        %v5622 = vmax.f32 %v3261, %v3263
        %v5623 = vmax.f32 %v3265, %v3267
        %v5624 = vmax.f32 %v3271, %v3273
        %v5625 = vmax.f32 %v3275, %v3277
        %v5626 = vmax.f32 %v3281, %v3283
        %v5627 = vmax.f32 %v3285, %v3287
        %v5628 = vmax.f32 %v3291, %v3293
        %v5629 = vmax.f32 %v3295, %v3297
        %v5630 = vmax.f32 %v3301, %v3303
        %v5631 = vmax.f32 %v3305, %v3307
        %v5632 = vmax.f32 %v3311, %v3313
        %v5633 = vmax.f32 %v3315, %v3317
        %v5634 = vmax.f32 %v3321, %v3323
        %v5635 = vmax.f32 %v3325, %v3327
        %v5636 = vmax.f32 %v3331, %v3333
        %v5637 = vmax.f32 %v3335, %v3337
        %v5638 = vmax.f32 %v3341, %v3343
        %v5639 = vmax.f32 %v3345, %v3347
        %v5640 = vmax.f32 %v3351, %v3353
        %v5641 = vmax.f32 %v3355, %v3357
        %v5642 = vmax.f32 %v3361, %v3363
        %v5643 = vmax.f32 %v3365, %v3367
        %v5644 = vmax.f32 %v3371, %v3373
        %v5645 = vmax.f32 %v3375, %v3377
        %v5646 = vmax.f32 %v3381, %v3383
        %v5647 = vmax.f32 %v3385, %v3387
        %v5648 = vmax.f32 %v3391, %v3393
        %v5649 = vmax.f32 %v3395, %v3397
        %v5650 = vmax.f32 %v3401, %v3403
        %v5651 = vmax.f32 %v3405, %v3407
        %v5652 = vmax.f32 %v3411, %v3413
        %v5653 = vmax.f32 %v3415, %v3417
        %v5654 = vmax.f32 %v3421, %v3423
        %v5655 = vmax.f32 %v3425, %v3427
        %v5656 = vmax.f32 %v3431, %v3433
        %v5657 = vmax.f32 %v3435, %v3437
        %v5658 = vmax.f32 %v3441, %v3443
        %v5659 = vmax.f32 %v3445, %v3447
        %v5660 = vmax.f32 %v3451, %v3453
        %v5661 = vmax.f32 %v3455, %v3457
        %v5662 = vmax.f32 %v3461, %v3463
        %v5663 = vmax.f32 %v3465, %v3467
        %v5664 = vmax.f32 %v3471, %v3473
        %v5665 = vmax.f32 %v3475, %v3477
        %v5666 = vmax.f32 %v3481, %v3483
        %v5667 = vmax.f32 %v3485, %v3487
        %v5668 = vmax.f32 %v3491, %v3493
        %v5669 = vmax.f32 %v3495, %v3497
        %v5670 = vmax.f32 %v3501, %v3503
        %v5671 = vmax.f32 %v3505, %v3507
        %v5672 = vmax.f32 %v3511, %v3513
        %v5673 = vmax.f32 %v3515, %v3517
        %v5674 = vmax.f32 %v3521, %v3523
        %v5675 = vmax.f32 %v3525, %v3527
        %v5676 = vmax.f32 %v5548, %v3564
        %v5677 = vmax.f32 %v5549, %v3568
        %v5678 = vmax.f32 %v5550, %v3574
        %v5679 = vmax.f32 %v5551, %v3578
        %v5680 = vmax.f32 %v5552, %v3584
        %v5681 = vmax.f32 %v5553, %v3588
        %v5682 = vmax.f32 %v5554, %v3594
        %v5683 = vmax.f32 %v5555, %v3598
        %v5684 = vmax.f32 %v5556, %v3604
        %v5685 = vmax.f32 %v5557, %v3608
        %v5686 = vmax.f32 %v5558, %v3614
        %v5687 = vmax.f32 %v5559, %v3618
        %v5688 = vmax.f32 %v5560, %v3624
        %v5689 = vmax.f32 %v5561, %v3628
        %v5690 = vmax.f32 %v5562, %v3634
        %v5691 = vmax.f32 %v5563, %v3638
        %v5692 = vmax.f32 %v5564, %v3644
        %v5693 = vmax.f32 %v5565, %v3648
        %v5694 = vmax.f32 %v5566, %v3654
        %v5695 = vmax.f32 %v5567, %v3658
        %v5696 = vmax.f32 %v5568, %v3664
        %v5697 = vmax.f32 %v5569, %v3668
        %v5698 = vmax.f32 %v5570, %v3674
        %v5699 = vmax.f32 %v5571, %v3678
        %v5700 = vmax.f32 %v5572, %v3684
        %v5701 = vmax.f32 %v5573, %v3688
        %v5702 = vmax.f32 %v5574, %v3694
        %v5703 = vmax.f32 %v5575, %v3698
        %v5704 = vmax.f32 %v5576, %v3704
        %v5705 = vmax.f32 %v5577, %v3708
        %v5706 = vmax.f32 %v5578, %v3714
        %v5707 = vmax.f32 %v5579, %v3718
        %v5708 = vmax.f32 %v5580, %v3724
        %v5709 = vmax.f32 %v5581, %v3728
        %v5710 = vmax.f32 %v5582, %v3734
        %v5711 = vmax.f32 %v5583, %v3738
        %v5712 = vmax.f32 %v5584, %v3744
        %v5713 = vmax.f32 %v5585, %v3748
        %v5714 = vmax.f32 %v5586, %v3754
        %v5715 = vmax.f32 %v5587, %v3758
        %v5716 = vmax.f32 %v5588, %v3764
        %v5717 = vmax.f32 %v5589, %v3768
        %v5718 = vmax.f32 %v5590, %v3774
        %v5719 = vmax.f32 %v5591, %v3778
        %v5720 = vmax.f32 %v5592, %v3784
        %v5721 = vmax.f32 %v5593, %v3788
        %v5722 = vmax.f32 %v5594, %v3794
        %v5723 = vmax.f32 %v5595, %v3798
        %v5724 = vmax.f32 %v5596, %v3804
        %v5725 = vmax.f32 %v5597, %v3808
        %v5726 = vmax.f32 %v5598, %v3814
        %v5727 = vmax.f32 %v5599, %v3818
        %v5728 = vmax.f32 %v5600, %v3824
        %v5729 = vmax.f32 %v5601, %v3828
        %v5730 = vmax.f32 %v5602, %v3834
        %v5731 = vmax.f32 %v5603, %v3838
        %v5732 = vmax.f32 %v5604, %v3844
        %v5733 = vmax.f32 %v5605, %v3848
        %v5734 = vmax.f32 %v5606, %v3854
        %v5735 = vmax.f32 %v5607, %v3858
        %v5736 = vmax.f32 %v5608, %v3864
        %v5737 = vmax.f32 %v5609, %v3868
        %v5738 = vmax.f32 %v5610, %v3874
        %v5739 = vmax.f32 %v5611, %v3878
        %v5740 = vmax.f32 %v5612, %v3884
        %v5741 = vmax.f32 %v5613, %v3888
        %v5742 = vmax.f32 %v5614, %v3894
        %v5743 = vmax.f32 %v5615, %v3898
        %v5744 = vmax.f32 %v5616, %v3904
        %v5745 = vmax.f32 %v5617, %v3908
        %v5746 = vmax.f32 %v5618, %v3914
        %v5747 = vmax.f32 %v5619, %v3918
        %v5748 = vmax.f32 %v5620, %v3924
        %v5749 = vmax.f32 %v5621, %v3928
        %v5750 = vmax.f32 %v5622, %v3934
        %v5751 = vmax.f32 %v5623, %v3938
        %v5752 = vmax.f32 %v5624, %v3944
        %v5753 = vmax.f32 %v5625, %v3948
        %v5754 = vmax.f32 %v5626, %v3954
        %v5755 = vmax.f32 %v5627, %v3958
        %v5756 = vmax.f32 %v5628, %v3964
        %v5757 = vmax.f32 %v5629, %v3968
        %v5758 = vmax.f32 %v5630, %v3974
        %v5759 = vmax.f32 %v5631, %v3978
        %v5760 = vmax.f32 %v5632, %v3984
        %v5761 = vmax.f32 %v5633, %v3988
        %v5762 = vmax.f32 %v5634, %v3994
        %v5763 = vmax.f32 %v5635, %v3998
        %v5764 = vmax.f32 %v5636, %v4004
        %v5765 = vmax.f32 %v5637, %v4008
        %v5766 = vmax.f32 %v5638, %v4014
        %v5767 = vmax.f32 %v5639, %v4018
        %v5768 = vmax.f32 %v5640, %v4024
        %v5769 = vmax.f32 %v5641, %v4028
        %v5770 = vmax.f32 %v5642, %v4034
        %v5771 = vmax.f32 %v5643, %v4038
        %v5772 = vmax.f32 %v5644, %v4044
        %v5773 = vmax.f32 %v5645, %v4048
        %v5774 = vmax.f32 %v5646, %v4054
        %v5775 = vmax.f32 %v5647, %v4058
        %v5776 = vmax.f32 %v5648, %v4064
        %v5777 = vmax.f32 %v5649, %v4068
        %v5778 = vmax.f32 %v5650, %v4074
        %v5779 = vmax.f32 %v5651, %v4078
        %v5780 = vmax.f32 %v5652, %v4084
        %v5781 = vmax.f32 %v5653, %v4088
        %v5782 = vmax.f32 %v5654, %v4094
        %v5783 = vmax.f32 %v5655, %v4098
        %v5784 = vmax.f32 %v5656, %v4104
        %v5785 = vmax.f32 %v5657, %v4108
        %v5786 = vmax.f32 %v5658, %v4114
        %v5787 = vmax.f32 %v5659, %v4118
        %v5788 = vmax.f32 %v5660, %v4124
        %v5789 = vmax.f32 %v5661, %v4128
        %v5790 = vmax.f32 %v5662, %v4134
        %v5791 = vmax.f32 %v5663, %v4138
        %v5792 = vmax.f32 %v5664, %v4144
        %v5793 = vmax.f32 %v5665, %v4148
        %v5794 = vmax.f32 %v5666, %v4154
        %v5795 = vmax.f32 %v5667, %v4158
        %v5796 = vmax.f32 %v5668, %v4164
        %v5797 = vmax.f32 %v5669, %v4168
        %v5798 = vmax.f32 %v5670, %v4174
        %v5799 = vmax.f32 %v5671, %v4178
        %v5800 = vmax.f32 %v5672, %v4184
        %v5801 = vmax.f32 %v5673, %v4188
        %v5802 = vmax.f32 %v5674, %v4194
        %v5803 = vmax.f32 %v5675, %v4198
        %v5804 = vmax.f32 %v5676, %v3566
        %v5805 = vmax.f32 %v5677, %v3570
        %v5806 = vmax.f32 %v5678, %v3576
        %v5807 = vmax.f32 %v5679, %v3580
        %v5808 = vmax.f32 %v5680, %v3586
        %v5809 = vmax.f32 %v5681, %v3590
        %v5810 = vmax.f32 %v5682, %v3596
        %v5811 = vmax.f32 %v5683, %v3600
        %v5812 = vmax.f32 %v5684, %v3606
        %v5813 = vmax.f32 %v5685, %v3610
        %v5814 = vmax.f32 %v5686, %v3616
        %v5815 = vmax.f32 %v5687, %v3620
        %v5816 = vmax.f32 %v5688, %v3626
        %v5817 = vmax.f32 %v5689, %v3630
        %v5818 = vmax.f32 %v5690, %v3636
        %v5819 = vmax.f32 %v5691, %v3640
        %v5820 = vmax.f32 %v5692, %v3646
        %v5821 = vmax.f32 %v5693, %v3650
        %v5822 = vmax.f32 %v5694, %v3656
        %v5823 = vmax.f32 %v5695, %v3660
        %v5824 = vmax.f32 %v5696, %v3666
        %v5825 = vmax.f32 %v5697, %v3670
        %v5826 = vmax.f32 %v5698, %v3676
        %v5827 = vmax.f32 %v5699, %v3680
        %v5828 = vmax.f32 %v5700, %v3686
        %v5829 = vmax.f32 %v5701, %v3690
        %v5830 = vmax.f32 %v5702, %v3696
        %v5831 = vmax.f32 %v5703, %v3700
        %v5832 = vmax.f32 %v5704, %v3706
        %v5833 = vmax.f32 %v5705, %v3710
        %v5834 = vmax.f32 %v5706, %v3716
        %v5835 = vmax.f32 %v5707, %v3720
        %v5836 = vmax.f32 %v5708, %v3726
        %v5837 = vmax.f32 %v5709, %v3730
        %v5838 = vmax.f32 %v5710, %v3736
        %v5839 = vmax.f32 %v5711, %v3740
        %v5840 = vmax.f32 %v5712, %v3746
        %v5841 = vmax.f32 %v5713, %v3750
        %v5842 = vmax.f32 %v5714, %v3756
        %v5843 = vmax.f32 %v5715, %v3760
        %v5844 = vmax.f32 %v5716, %v3766
        %v5845 = vmax.f32 %v5717, %v3770
        %v5846 = vmax.f32 %v5718, %v3776
        %v5847 = vmax.f32 %v5719, %v3780
        %v5848 = vmax.f32 %v5720, %v3786
        %v5849 = vmax.f32 %v5721, %v3790
        %v5850 = vmax.f32 %v5722, %v3796
        %v5851 = vmax.f32 %v5723, %v3800
        %v5852 = vmax.f32 %v5724, %v3806
        %v5853 = vmax.f32 %v5725, %v3810
        %v5854 = vmax.f32 %v5726, %v3816
        %v5855 = vmax.f32 %v5727, %v3820
        %v5856 = vmax.f32 %v5728, %v3826
        %v5857 = vmax.f32 %v5729, %v3830
        %v5858 = vmax.f32 %v5730, %v3836
        %v5859 = vmax.f32 %v5731, %v3840
        %v5860 = vmax.f32 %v5732, %v3846
        %v5861 = vmax.f32 %v5733, %v3850
        %v5862 = vmax.f32 %v5734, %v3856
        %v5863 = vmax.f32 %v5735, %v3860
        %v5864 = vmax.f32 %v5736, %v3866
        %v5865 = vmax.f32 %v5737, %v3870
        %v5866 = vmax.f32 %v5738, %v3876
        %v5867 = vmax.f32 %v5739, %v3880
        %v5868 = vmax.f32 %v5740, %v3886
        %v5869 = vmax.f32 %v5741, %v3890
        %v5870 = vmax.f32 %v5742, %v3896
        %v5871 = vmax.f32 %v5743, %v3900
        %v5872 = vmax.f32 %v5744, %v3906
        %v5873 = vmax.f32 %v5745, %v3910
        %v5874 = vmax.f32 %v5746, %v3916
        %v5875 = vmax.f32 %v5747, %v3920
        %v5876 = vmax.f32 %v5748, %v3926
        %v5877 = vmax.f32 %v5749, %v3930
        %v5878 = vmax.f32 %v5750, %v3936
        %v5879 = vmax.f32 %v5751, %v3940
        %v5880 = vmax.f32 %v5752, %v3946
        %v5881 = vmax.f32 %v5753, %v3950
        %v5882 = vmax.f32 %v5754, %v3956
        %v5883 = vmax.f32 %v5755, %v3960
        %v5884 = vmax.f32 %v5756, %v3966
        %v5885 = vmax.f32 %v5757, %v3970
        %v5886 = vmax.f32 %v5758, %v3976
        %v5887 = vmax.f32 %v5759, %v3980
        %v5888 = vmax.f32 %v5760, %v3986
        %v5889 = vmax.f32 %v5761, %v3990
        %v5890 = vmax.f32 %v5762, %v3996
        %v5891 = vmax.f32 %v5763, %v4000
        %v5892 = vmax.f32 %v5764, %v4006
        %v5893 = vmax.f32 %v5765, %v4010
        %v5894 = vmax.f32 %v5766, %v4016
        %v5895 = vmax.f32 %v5767, %v4020
        %v5896 = vmax.f32 %v5768, %v4026
        %v5897 = vmax.f32 %v5769, %v4030
        %v5898 = vmax.f32 %v5770, %v4036
        %v5899 = vmax.f32 %v5771, %v4040
        %v5900 = vmax.f32 %v5772, %v4046
        %v5901 = vmax.f32 %v5773, %v4050
        %v5902 = vmax.f32 %v5774, %v4056
        %v5903 = vmax.f32 %v5775, %v4060
        %v5904 = vmax.f32 %v5776, %v4066
        %v5905 = vmax.f32 %v5777, %v4070
        %v5906 = vmax.f32 %v5778, %v4076
        %v5907 = vmax.f32 %v5779, %v4080
        %v5908 = vmax.f32 %v5780, %v4086
        %v5909 = vmax.f32 %v5781, %v4090
        %v5910 = vmax.f32 %v5782, %v4096
        %v5911 = vmax.f32 %v5783, %v4100
        %v5912 = vmax.f32 %v5784, %v4106
        %v5913 = vmax.f32 %v5785, %v4110
        %v5914 = vmax.f32 %v5786, %v4116
        %v5915 = vmax.f32 %v5787, %v4120
        %v5916 = vmax.f32 %v5788, %v4126
        %v5917 = vmax.f32 %v5789, %v4130
        %v5918 = vmax.f32 %v5790, %v4136
        %v5919 = vmax.f32 %v5791, %v4140
        %v5920 = vmax.f32 %v5792, %v4146
        %v5921 = vmax.f32 %v5793, %v4150
        %v5922 = vmax.f32 %v5794, %v4156
        %v5923 = vmax.f32 %v5795, %v4160
        %v5924 = vmax.f32 %v5796, %v4166
        %v5925 = vmax.f32 %v5797, %v4170
        %v5926 = vmax.f32 %v5798, %v4176
        %v5927 = vmax.f32 %v5799, %v4180
        %v5928 = vmax.f32 %v5800, %v4186
        %v5929 = vmax.f32 %v5801, %v4190
        %v5930 = vmax.f32 %v5802, %v4196
        %v5931 = vmax.f32 %v5803, %v4200
        %v5932 = vmax.f32 %v5804, %v4237
        %v5933 = vmax.f32 %v5805, %v4241
        %v5934 = vmax.f32 %v5806, %v4247
        %v5935 = vmax.f32 %v5807, %v4251
        %v5936 = vmax.f32 %v5808, %v4257
        %v5937 = vmax.f32 %v5809, %v4261
        %v5938 = vmax.f32 %v5810, %v4267
        %v5939 = vmax.f32 %v5811, %v4271
        %v5940 = vmax.f32 %v5812, %v4277
        %v5941 = vmax.f32 %v5813, %v4281
        %v5942 = vmax.f32 %v5814, %v4287
        %v5943 = vmax.f32 %v5815, %v4291
        %v5944 = vmax.f32 %v5816, %v4297
        %v5945 = vmax.f32 %v5817, %v4301
        %v5946 = vmax.f32 %v5818, %v4307
        %v5947 = vmax.f32 %v5819, %v4311
        %v5948 = vmax.f32 %v5820, %v4317
        %v5949 = vmax.f32 %v5821, %v4321
        %v5950 = vmax.f32 %v5822, %v4327
        %v5951 = vmax.f32 %v5823, %v4331
        %v5952 = vmax.f32 %v5824, %v4337
        %v5953 = vmax.f32 %v5825, %v4341
        %v5954 = vmax.f32 %v5826, %v4347
        %v5955 = vmax.f32 %v5827, %v4351
        %v5956 = vmax.f32 %v5828, %v4357
        %v5957 = vmax.f32 %v5829, %v4361
        %v5958 = vmax.f32 %v5830, %v4367
        %v5959 = vmax.f32 %v5831, %v4371
        %v5960 = vmax.f32 %v5832, %v4377
        %v5961 = vmax.f32 %v5833, %v4381
        %v5962 = vmax.f32 %v5834, %v4387
        %v5963 = vmax.f32 %v5835, %v4391
        %v5964 = vmax.f32 %v5836, %v4397
        %v5965 = vmax.f32 %v5837, %v4401
        %v5966 = vmax.f32 %v5838, %v4407
        %v5967 = vmax.f32 %v5839, %v4411
        %v5968 = vmax.f32 %v5840, %v4417
        %v5969 = vmax.f32 %v5841, %v4421
        %v5970 = vmax.f32 %v5842, %v4427
        %v5971 = vmax.f32 %v5843, %v4431
        %v5972 = vmax.f32 %v5844, %v4437
        %v5973 = vmax.f32 %v5845, %v4441
        %v5974 = vmax.f32 %v5846, %v4447
        %v5975 = vmax.f32 %v5847, %v4451
        %v5976 = vmax.f32 %v5848, %v4457
        %v5977 = vmax.f32 %v5849, %v4461
        %v5978 = vmax.f32 %v5850, %v4467
        %v5979 = vmax.f32 %v5851, %v4471
        %v5980 = vmax.f32 %v5852, %v4477
        %v5981 = vmax.f32 %v5853, %v4481
        %v5982 = vmax.f32 %v5854, %v4487
        %v5983 = vmax.f32 %v5855, %v4491
        %v5984 = vmax.f32 %v5856, %v4497
        %v5985 = vmax.f32 %v5857, %v4501
        %v5986 = vmax.f32 %v5858, %v4507
        %v5987 = vmax.f32 %v5859, %v4511
        %v5988 = vmax.f32 %v5860, %v4517
        %v5989 = vmax.f32 %v5861, %v4521
        %v5990 = vmax.f32 %v5862, %v4527
        %v5991 = vmax.f32 %v5863, %v4531
        %v5992 = vmax.f32 %v5864, %v4537
        %v5993 = vmax.f32 %v5865, %v4541
        %v5994 = vmax.f32 %v5866, %v4547
        %v5995 = vmax.f32 %v5867, %v4551
        %v5996 = vmax.f32 %v5868, %v4557
        %v5997 = vmax.f32 %v5869, %v4561
        %v5998 = vmax.f32 %v5870, %v4567
        %v5999 = vmax.f32 %v5871, %v4571
        %v6000 = vmax.f32 %v5872, %v4577
        %v6001 = vmax.f32 %v5873, %v4581
        %v6002 = vmax.f32 %v5874, %v4587
        %v6003 = vmax.f32 %v5875, %v4591
        %v6004 = vmax.f32 %v5876, %v4597
        %v6005 = vmax.f32 %v5877, %v4601
        %v6006 = vmax.f32 %v5878, %v4607
        %v6007 = vmax.f32 %v5879, %v4611
        %v6008 = vmax.f32 %v5880, %v4617
        %v6009 = vmax.f32 %v5881, %v4621
        %v6010 = vmax.f32 %v5882, %v4627
        %v6011 = vmax.f32 %v5883, %v4631
        %v6012 = vmax.f32 %v5884, %v4637
        %v6013 = vmax.f32 %v5885, %v4641
        %v6014 = vmax.f32 %v5886, %v4647
        %v6015 = vmax.f32 %v5887, %v4651
        %v6016 = vmax.f32 %v5888, %v4657
        %v6017 = vmax.f32 %v5889, %v4661
        %v6018 = vmax.f32 %v5890, %v4667
        %v6019 = vmax.f32 %v5891, %v4671
        %v6020 = vmax.f32 %v5892, %v4677
        %v6021 = vmax.f32 %v5893, %v4681
        %v6022 = vmax.f32 %v5894, %v4687
        %v6023 = vmax.f32 %v5895, %v4691
        %v6024 = vmax.f32 %v5896, %v4697
        %v6025 = vmax.f32 %v5897, %v4701
        %v6026 = vmax.f32 %v5898, %v4707
        %v6027 = vmax.f32 %v5899, %v4711
        %v6028 = vmax.f32 %v5900, %v4717
        %v6029 = vmax.f32 %v5901, %v4721
        %v6030 = vmax.f32 %v5902, %v4727
        %v6031 = vmax.f32 %v5903, %v4731
        %v6032 = vmax.f32 %v5904, %v4737
        %v6033 = vmax.f32 %v5905, %v4741
        %v6034 = vmax.f32 %v5906, %v4747
        %v6035 = vmax.f32 %v5907, %v4751
        %v6036 = vmax.f32 %v5908, %v4757
        %v6037 = vmax.f32 %v5909, %v4761
        %v6038 = vmax.f32 %v5910, %v4767
        %v6039 = vmax.f32 %v5911, %v4771
        %v6040 = vmax.f32 %v5912, %v4777
        %v6041 = vmax.f32 %v5913, %v4781
        %v6042 = vmax.f32 %v5914, %v4787
        %v6043 = vmax.f32 %v5915, %v4791
        %v6044 = vmax.f32 %v5916, %v4797
        %v6045 = vmax.f32 %v5917, %v4801
        %v6046 = vmax.f32 %v5918, %v4807
        %v6047 = vmax.f32 %v5919, %v4811
        %v6048 = vmax.f32 %v5920, %v4817
        %v6049 = vmax.f32 %v5921, %v4821
        %v6050 = vmax.f32 %v5922, %v4827
        %v6051 = vmax.f32 %v5923, %v4831
        %v6052 = vmax.f32 %v5924, %v4837
        %v6053 = vmax.f32 %v5925, %v4841
        %v6054 = vmax.f32 %v5926, %v4847
        %v6055 = vmax.f32 %v5927, %v4851
        %v6056 = vmax.f32 %v5928, %v4857
        %v6057 = vmax.f32 %v5929, %v4861
        %v6058 = vmax.f32 %v5930, %v4867
        %v6059 = vmax.f32 %v5931, %v4871
        %v6060 = vmax.f32 %v5932, %v4239
        %v6061 = vmax.f32 %v5933, %v4243
        %v6062 = vmax.f32 %v5934, %v4249
        %v6063 = vmax.f32 %v5935, %v4253
        %v6064 = vmax.f32 %v5936, %v4259
        %v6065 = vmax.f32 %v5937, %v4263
        %v6066 = vmax.f32 %v5938, %v4269
        %v6067 = vmax.f32 %v5939, %v4273
        %v6068 = vmax.f32 %v5940, %v4279
        %v6069 = vmax.f32 %v5941, %v4283
        %v6070 = vmax.f32 %v5942, %v4289
        %v6071 = vmax.f32 %v5943, %v4293
        %v6072 = vmax.f32 %v5944, %v4299
        %v6073 = vmax.f32 %v5945, %v4303
        %v6074 = vmax.f32 %v5946, %v4309
        %v6075 = vmax.f32 %v5947, %v4313
        %v6076 = vmax.f32 %v5948, %v4319
        %v6077 = vmax.f32 %v5949, %v4323
        %v6078 = vmax.f32 %v5950, %v4329
        %v6079 = vmax.f32 %v5951, %v4333
        %v6080 = vmax.f32 %v5952, %v4339
        %v6081 = vmax.f32 %v5953, %v4343
        %v6082 = vmax.f32 %v5954, %v4349
        %v6083 = vmax.f32 %v5955, %v4353
        %v6084 = vmax.f32 %v5956, %v4359
        %v6085 = vmax.f32 %v5957, %v4363
        %v6086 = vmax.f32 %v5958, %v4369
        %v6087 = vmax.f32 %v5959, %v4373
        %v6088 = vmax.f32 %v5960, %v4379
        %v6089 = vmax.f32 %v5961, %v4383
        %v6090 = vmax.f32 %v5962, %v4389
        %v6091 = vmax.f32 %v5963, %v4393
        %v6092 = vmax.f32 %v5964, %v4399
        %v6093 = vmax.f32 %v5965, %v4403
        %v6094 = vmax.f32 %v5966, %v4409
        %v6095 = vmax.f32 %v5967, %v4413
        %v6096 = vmax.f32 %v5968, %v4419
        %v6097 = vmax.f32 %v5969, %v4423
        %v6098 = vmax.f32 %v5970, %v4429
        %v6099 = vmax.f32 %v5971, %v4433
        %v6100 = vmax.f32 %v5972, %v4439
        %v6101 = vmax.f32 %v5973, %v4443
        %v6102 = vmax.f32 %v5974, %v4449
        %v6103 = vmax.f32 %v5975, %v4453
        %v6104 = vmax.f32 %v5976, %v4459
        %v6105 = vmax.f32 %v5977, %v4463
        %v6106 = vmax.f32 %v5978, %v4469
        %v6107 = vmax.f32 %v5979, %v4473
        %v6108 = vmax.f32 %v5980, %v4479
        %v6109 = vmax.f32 %v5981, %v4483
        %v6110 = vmax.f32 %v5982, %v4489
        %v6111 = vmax.f32 %v5983, %v4493
        %v6112 = vmax.f32 %v5984, %v4499
        %v6113 = vmax.f32 %v5985, %v4503
        %v6114 = vmax.f32 %v5986, %v4509
        %v6115 = vmax.f32 %v5987, %v4513
        %v6116 = vmax.f32 %v5988, %v4519
        %v6117 = vmax.f32 %v5989, %v4523
        %v6118 = vmax.f32 %v5990, %v4529
        %v6119 = vmax.f32 %v5991, %v4533
        %v6120 = vmax.f32 %v5992, %v4539
        %v6121 = vmax.f32 %v5993, %v4543
        %v6122 = vmax.f32 %v5994, %v4549
        %v6123 = vmax.f32 %v5995, %v4553
        %v6124 = vmax.f32 %v5996, %v4559
        %v6125 = vmax.f32 %v5997, %v4563
        %v6126 = vmax.f32 %v5998, %v4569
        %v6127 = vmax.f32 %v5999, %v4573
        %v6128 = vmax.f32 %v6000, %v4579
        %v6129 = vmax.f32 %v6001, %v4583
        %v6130 = vmax.f32 %v6002, %v4589
        %v6131 = vmax.f32 %v6003, %v4593
        %v6132 = vmax.f32 %v6004, %v4599
        %v6133 = vmax.f32 %v6005, %v4603
        %v6134 = vmax.f32 %v6006, %v4609
        %v6135 = vmax.f32 %v6007, %v4613
        %v6136 = vmax.f32 %v6008, %v4619
        %v6137 = vmax.f32 %v6009, %v4623
        %v6138 = vmax.f32 %v6010, %v4629
        %v6139 = vmax.f32 %v6011, %v4633
        %v6140 = vmax.f32 %v6012, %v4639
        %v6141 = vmax.f32 %v6013, %v4643
        %v6142 = vmax.f32 %v6014, %v4649
        %v6143 = vmax.f32 %v6015, %v4653
        %v6144 = vmax.f32 %v6016, %v4659
        %v6145 = vmax.f32 %v6017, %v4663
        %v6146 = vmax.f32 %v6018, %v4669
        %v6147 = vmax.f32 %v6019, %v4673
        %v6148 = vmax.f32 %v6020, %v4679
        %v6149 = vmax.f32 %v6021, %v4683
        %v6150 = vmax.f32 %v6022, %v4689
        %v6151 = vmax.f32 %v6023, %v4693
        %v6152 = vmax.f32 %v6024, %v4699
        %v6153 = vmax.f32 %v6025, %v4703
        %v6154 = vmax.f32 %v6026, %v4709
        %v6155 = vmax.f32 %v6027, %v4713
        %v6156 = vmax.f32 %v6028, %v4719
        %v6157 = vmax.f32 %v6029, %v4723
        %v6158 = vmax.f32 %v6030, %v4729
        %v6159 = vmax.f32 %v6031, %v4733
        %v6160 = vmax.f32 %v6032, %v4739
        %v6161 = vmax.f32 %v6033, %v4743
        %v6162 = vmax.f32 %v6034, %v4749
        %v6163 = vmax.f32 %v6035, %v4753
        %v6164 = vmax.f32 %v6036, %v4759
        %v6165 = vmax.f32 %v6037, %v4763
        %v6166 = vmax.f32 %v6038, %v4769
        %v6167 = vmax.f32 %v6039, %v4773
        %v6168 = vmax.f32 %v6040, %v4779
        %v6169 = vmax.f32 %v6041, %v4783
        %v6170 = vmax.f32 %v6042, %v4789
        %v6171 = vmax.f32 %v6043, %v4793
        %v6172 = vmax.f32 %v6044, %v4799
        %v6173 = vmax.f32 %v6045, %v4803
        %v6174 = vmax.f32 %v6046, %v4809
        %v6175 = vmax.f32 %v6047, %v4813
        %v6176 = vmax.f32 %v6048, %v4819
        %v6177 = vmax.f32 %v6049, %v4823
        %v6178 = vmax.f32 %v6050, %v4829
        %v6179 = vmax.f32 %v6051, %v4833
        %v6180 = vmax.f32 %v6052, %v4839
        %v6181 = vmax.f32 %v6053, %v4843
        %v6182 = vmax.f32 %v6054, %v4849
        %v6183 = vmax.f32 %v6055, %v4853
        %v6184 = vmax.f32 %v6056, %v4859
        %v6185 = vmax.f32 %v6057, %v4863
        %v6186 = vmax.f32 %v6058, %v4869
        %v6187 = vmax.f32 %v6059, %v4873
        %v6188 = vmax.f32 %v6060, %v4910
        %v6189 = vmax.f32 %v6061, %v4914
        %v6190 = vmax.f32 %v6062, %v4920
        %v6191 = vmax.f32 %v6063, %v4924
        %v6192 = vmax.f32 %v6064, %v4930
        %v6193 = vmax.f32 %v6065, %v4934
        %v6194 = vmax.f32 %v6066, %v4940
        %v6195 = vmax.f32 %v6067, %v4944
        %v6196 = vmax.f32 %v6068, %v4950
        %v6197 = vmax.f32 %v6069, %v4954
        %v6198 = vmax.f32 %v6070, %v4960
        %v6199 = vmax.f32 %v6071, %v4964
        %v6200 = vmax.f32 %v6072, %v4970
        %v6201 = vmax.f32 %v6073, %v4974
        %v6202 = vmax.f32 %v6074, %v4980
        %v6203 = vmax.f32 %v6075, %v4984
        %v6204 = vmax.f32 %v6076, %v4990
        %v6205 = vmax.f32 %v6077, %v4994
        %v6206 = vmax.f32 %v6078, %v5000
        %v6207 = vmax.f32 %v6079, %v5004
        %v6208 = vmax.f32 %v6080, %v5010
        %v6209 = vmax.f32 %v6081, %v5014
        %v6210 = vmax.f32 %v6082, %v5020
        %v6211 = vmax.f32 %v6083, %v5024
        %v6212 = vmax.f32 %v6084, %v5030
        %v6213 = vmax.f32 %v6085, %v5034
        %v6214 = vmax.f32 %v6086, %v5040
        %v6215 = vmax.f32 %v6087, %v5044
        %v6216 = vmax.f32 %v6088, %v5050
        %v6217 = vmax.f32 %v6089, %v5054
        %v6218 = vmax.f32 %v6090, %v5060
        %v6219 = vmax.f32 %v6091, %v5064
        %v6220 = vmax.f32 %v6092, %v5070
        %v6221 = vmax.f32 %v6093, %v5074
        %v6222 = vmax.f32 %v6094, %v5080
        %v6223 = vmax.f32 %v6095, %v5084
        %v6224 = vmax.f32 %v6096, %v5090
        %v6225 = vmax.f32 %v6097, %v5094
        %v6226 = vmax.f32 %v6098, %v5100
        %v6227 = vmax.f32 %v6099, %v5104
        %v6228 = vmax.f32 %v6100, %v5110
        %v6229 = vmax.f32 %v6101, %v5114
        %v6230 = vmax.f32 %v6102, %v5120
        %v6231 = vmax.f32 %v6103, %v5124
        %v6232 = vmax.f32 %v6104, %v5130
        %v6233 = vmax.f32 %v6105, %v5134
        %v6234 = vmax.f32 %v6106, %v5140
        %v6235 = vmax.f32 %v6107, %v5144
        %v6236 = vmax.f32 %v6108, %v5150
        %v6237 = vmax.f32 %v6109, %v5154
        %v6238 = vmax.f32 %v6110, %v5160
        %v6239 = vmax.f32 %v6111, %v5164
        %v6240 = vmax.f32 %v6112, %v5170
        %v6241 = vmax.f32 %v6113, %v5174
        %v6242 = vmax.f32 %v6114, %v5180
        %v6243 = vmax.f32 %v6115, %v5184
        %v6244 = vmax.f32 %v6116, %v5190
        %v6245 = vmax.f32 %v6117, %v5194
        %v6246 = vmax.f32 %v6118, %v5200
        %v6247 = vmax.f32 %v6119, %v5204
        %v6248 = vmax.f32 %v6120, %v5210
        %v6249 = vmax.f32 %v6121, %v5214
        %v6250 = vmax.f32 %v6122, %v5220
        %v6251 = vmax.f32 %v6123, %v5224
        %v6252 = vmax.f32 %v6124, %v5230
        %v6253 = vmax.f32 %v6125, %v5234
        %v6254 = vmax.f32 %v6126, %v5240
        %v6255 = vmax.f32 %v6127, %v5244
        %v6256 = vmax.f32 %v6128, %v5250
        %v6257 = vmax.f32 %v6129, %v5254
        %v6258 = vmax.f32 %v6130, %v5260
        %v6259 = vmax.f32 %v6131, %v5264
        %v6260 = vmax.f32 %v6132, %v5270
        %v6261 = vmax.f32 %v6133, %v5274
        %v6262 = vmax.f32 %v6134, %v5280
        %v6263 = vmax.f32 %v6135, %v5284
        %v6264 = vmax.f32 %v6136, %v5290
        %v6265 = vmax.f32 %v6137, %v5294
        %v6266 = vmax.f32 %v6138, %v5300
        %v6267 = vmax.f32 %v6139, %v5304
        %v6268 = vmax.f32 %v6140, %v5310
        %v6269 = vmax.f32 %v6141, %v5314
        %v6270 = vmax.f32 %v6142, %v5320
        %v6271 = vmax.f32 %v6143, %v5324
        %v6272 = vmax.f32 %v6144, %v5330
        %v6273 = vmax.f32 %v6145, %v5334
        %v6274 = vmax.f32 %v6146, %v5340
        %v6275 = vmax.f32 %v6147, %v5344
        %v6276 = vmax.f32 %v6148, %v5350
        %v6277 = vmax.f32 %v6149, %v5354
        %v6278 = vmax.f32 %v6150, %v5360
        %v6279 = vmax.f32 %v6151, %v5364
        %v6280 = vmax.f32 %v6152, %v5370
        %v6281 = vmax.f32 %v6153, %v5374
        %v6282 = vmax.f32 %v6154, %v5380
        %v6283 = vmax.f32 %v6155, %v5384
        %v6284 = vmax.f32 %v6156, %v5390
        %v6285 = vmax.f32 %v6157, %v5394
        %v6286 = vmax.f32 %v6158, %v5400
        %v6287 = vmax.f32 %v6159, %v5404
        %v6288 = vmax.f32 %v6160, %v5410
        %v6289 = vmax.f32 %v6161, %v5414
        %v6290 = vmax.f32 %v6162, %v5420
        %v6291 = vmax.f32 %v6163, %v5424
        %v6292 = vmax.f32 %v6164, %v5430
        %v6293 = vmax.f32 %v6165, %v5434
        %v6294 = vmax.f32 %v6166, %v5440
        %v6295 = vmax.f32 %v6167, %v5444
        %v6296 = vmax.f32 %v6168, %v5450
        %v6297 = vmax.f32 %v6169, %v5454
        %v6298 = vmax.f32 %v6170, %v5460
        %v6299 = vmax.f32 %v6171, %v5464
        %v6300 = vmax.f32 %v6172, %v5470
        %v6301 = vmax.f32 %v6173, %v5474
        %v6302 = vmax.f32 %v6174, %v5480
        %v6303 = vmax.f32 %v6175, %v5484
        %v6304 = vmax.f32 %v6176, %v5490
        %v6305 = vmax.f32 %v6177, %v5494
        %v6306 = vmax.f32 %v6178, %v5500
        %v6307 = vmax.f32 %v6179, %v5504
        %v6308 = vmax.f32 %v6180, %v5510
        %v6309 = vmax.f32 %v6181, %v5514
        %v6310 = vmax.f32 %v6182, %v5520
        %v6311 = vmax.f32 %v6183, %v5524
        %v6312 = vmax.f32 %v6184, %v5530
        %v6313 = vmax.f32 %v6185, %v5534
        %v6314 = vmax.f32 %v6186, %v5540
        %v6315 = vmax.f32 %v6187, %v5544
        %v6316 = vmax.f32 %v6188, %v4912
        %v6317 = vmax.f32 %v6189, %v4916
        %v6318 = vmax.f32 %v6190, %v4922
        %v6319 = vmax.f32 %v6191, %v4926
        %v6320 = vmax.f32 %v6192, %v4932
        %v6321 = vmax.f32 %v6193, %v4936
        %v6322 = vmax.f32 %v6194, %v4942
        %v6323 = vmax.f32 %v6195, %v4946
        %v6324 = vmax.f32 %v6196, %v4952
        %v6325 = vmax.f32 %v6197, %v4956
        %v6326 = vmax.f32 %v6198, %v4962
        %v6327 = vmax.f32 %v6199, %v4966
        %v6328 = vmax.f32 %v6200, %v4972
        %v6329 = vmax.f32 %v6201, %v4976
        %v6330 = vmax.f32 %v6202, %v4982
        %v6331 = vmax.f32 %v6203, %v4986
        %v6332 = vmax.f32 %v6204, %v4992
        %v6333 = vmax.f32 %v6205, %v4996
        %v6334 = vmax.f32 %v6206, %v5002
        %v6335 = vmax.f32 %v6207, %v5006
        %v6336 = vmax.f32 %v6208, %v5012
        %v6337 = vmax.f32 %v6209, %v5016
        %v6338 = vmax.f32 %v6210, %v5022
        %v6339 = vmax.f32 %v6211, %v5026
        %v6340 = vmax.f32 %v6212, %v5032
        %v6341 = vmax.f32 %v6213, %v5036
        %v6342 = vmax.f32 %v6214, %v5042
        %v6343 = vmax.f32 %v6215, %v5046
        %v6344 = vmax.f32 %v6216, %v5052
        %v6345 = vmax.f32 %v6217, %v5056
        %v6346 = vmax.f32 %v6218, %v5062
        %v6347 = vmax.f32 %v6219, %v5066
        %v6348 = vmax.f32 %v6220, %v5072
        %v6349 = vmax.f32 %v6221, %v5076
        %v6350 = vmax.f32 %v6222, %v5082
        %v6351 = vmax.f32 %v6223, %v5086
        %v6352 = vmax.f32 %v6224, %v5092
        %v6353 = vmax.f32 %v6225, %v5096
        %v6354 = vmax.f32 %v6226, %v5102
        %v6355 = vmax.f32 %v6227, %v5106
        %v6356 = vmax.f32 %v6228, %v5112
        %v6357 = vmax.f32 %v6229, %v5116
        %v6358 = vmax.f32 %v6230, %v5122
        %v6359 = vmax.f32 %v6231, %v5126
        %v6360 = vmax.f32 %v6232, %v5132
        %v6361 = vmax.f32 %v6233, %v5136
        %v6362 = vmax.f32 %v6234, %v5142
        %v6363 = vmax.f32 %v6235, %v5146
        %v6364 = vmax.f32 %v6236, %v5152
        %v6365 = vmax.f32 %v6237, %v5156
        %v6366 = vmax.f32 %v6238, %v5162
        %v6367 = vmax.f32 %v6239, %v5166
        %v6368 = vmax.f32 %v6240, %v5172
        %v6369 = vmax.f32 %v6241, %v5176
        %v6370 = vmax.f32 %v6242, %v5182
        %v6371 = vmax.f32 %v6243, %v5186
        %v6372 = vmax.f32 %v6244, %v5192
        %v6373 = vmax.f32 %v6245, %v5196
        %v6374 = vmax.f32 %v6246, %v5202
        %v6375 = vmax.f32 %v6247, %v5206
        %v6376 = vmax.f32 %v6248, %v5212
        %v6377 = vmax.f32 %v6249, %v5216
        %v6378 = vmax.f32 %v6250, %v5222
        %v6379 = vmax.f32 %v6251, %v5226
        %v6380 = vmax.f32 %v6252, %v5232
        %v6381 = vmax.f32 %v6253, %v5236
        %v6382 = vmax.f32 %v6254, %v5242
        %v6383 = vmax.f32 %v6255, %v5246
        %v6384 = vmax.f32 %v6256, %v5252
        %v6385 = vmax.f32 %v6257, %v5256
        %v6386 = vmax.f32 %v6258, %v5262
        %v6387 = vmax.f32 %v6259, %v5266
        %v6388 = vmax.f32 %v6260, %v5272
        %v6389 = vmax.f32 %v6261, %v5276
        %v6390 = vmax.f32 %v6262, %v5282
        %v6391 = vmax.f32 %v6263, %v5286
        %v6392 = vmax.f32 %v6264, %v5292
        %v6393 = vmax.f32 %v6265, %v5296
        %v6394 = vmax.f32 %v6266, %v5302
        %v6395 = vmax.f32 %v6267, %v5306
        %v6396 = vmax.f32 %v6268, %v5312
        %v6397 = vmax.f32 %v6269, %v5316
        %v6398 = vmax.f32 %v6270, %v5322
        %v6399 = vmax.f32 %v6271, %v5326
        %v6400 = vmax.f32 %v6272, %v5332
        %v6401 = vmax.f32 %v6273, %v5336
        %v6402 = vmax.f32 %v6274, %v5342
        %v6403 = vmax.f32 %v6275, %v5346
        %v6404 = vmax.f32 %v6276, %v5352
        %v6405 = vmax.f32 %v6277, %v5356
        %v6406 = vmax.f32 %v6278, %v5362
        %v6407 = vmax.f32 %v6279, %v5366
        %v6408 = vmax.f32 %v6280, %v5372
        %v6409 = vmax.f32 %v6281, %v5376
        %v6410 = vmax.f32 %v6282, %v5382
        %v6411 = vmax.f32 %v6283, %v5386
        %v6412 = vmax.f32 %v6284, %v5392
        %v6413 = vmax.f32 %v6285, %v5396
        %v6414 = vmax.f32 %v6286, %v5402
        %v6415 = vmax.f32 %v6287, %v5406
        %v6416 = vmax.f32 %v6288, %v5412
        %v6417 = vmax.f32 %v6289, %v5416
        %v6418 = vmax.f32 %v6290, %v5422
        %v6419 = vmax.f32 %v6291, %v5426
        %v6420 = vmax.f32 %v6292, %v5432
        %v6421 = vmax.f32 %v6293, %v5436
        %v6422 = vmax.f32 %v6294, %v5442
        %v6423 = vmax.f32 %v6295, %v5446
        %v6424 = vmax.f32 %v6296, %v5452
        %v6425 = vmax.f32 %v6297, %v5456
        %v6426 = vmax.f32 %v6298, %v5462
        %v6427 = vmax.f32 %v6299, %v5466
        %v6428 = vmax.f32 %v6300, %v5472
        %v6429 = vmax.f32 %v6301, %v5476
        %v6430 = vmax.f32 %v6302, %v5482
        %v6431 = vmax.f32 %v6303, %v5486
        %v6432 = vmax.f32 %v6304, %v5492
        %v6433 = vmax.f32 %v6305, %v5496
        %v6434 = vmax.f32 %v6306, %v5502
        %v6435 = vmax.f32 %v6307, %v5506
        %v6436 = vmax.f32 %v6308, %v5512
        %v6437 = vmax.f32 %v6309, %v5516
        %v6438 = vmax.f32 %v6310, %v5522
        %v6439 = vmax.f32 %v6311, %v5526
        %v6440 = vmax.f32 %v6312, %v5532
        %v6441 = vmax.f32 %v6313, %v5536
        %v6442 = vmax.f32 %v6314, %v5542
        %v6443 = vmax.f32 %v6315, %v5546
        %v6444 = vld [vmem:[#allocation2] sm:$0xff]
        %v6445 = vld [vmem:[#allocation2 + $0x8] sm:$0xff]
        %v6446 = vld [vmem:[#allocation2 + $0x10] sm:$0xff]
        %v6447 = vld [vmem:[#allocation2 + $0x18] sm:$0xff]
        %v6448 = vld [vmem:[#allocation2 + $0x20] sm:$0xff]
        %v6449 = vld [vmem:[#allocation2 + $0x28] sm:$0xff]
        %v6450 = vld [vmem:[#allocation2 + $0x30] sm:$0xff]
        %v6451 = vld [vmem:[#allocation2 + $0x38] sm:$0xff]
        %v6452 = vld [vmem:[#allocation2 + $0x40] sm:$0xff]
        %v6453 = vld [vmem:[#allocation2 + $0x48] sm:$0xff]
        %v6454 = vld [vmem:[#allocation2 + $0x50] sm:$0xff]
        %v6455 = vld [vmem:[#allocation2 + $0x58] sm:$0xff]
        %v6456 = vld [vmem:[#allocation2 + $0x60] sm:$0xff]
        %v6457 = vld [vmem:[#allocation2 + $0x68] sm:$0xff]
        %v6458 = vld [vmem:[#allocation2 + $0x70] sm:$0xff]
        %v6459 = vld [vmem:[#allocation2 + $0x78] sm:$0xff]
        %v6460 = vld [vmem:[#allocation2 + $0x80] sm:$0xff]
        %v6461 = vld [vmem:[#allocation2 + $0x88] sm:$0xff]
        %v6462 = vld [vmem:[#allocation2 + $0x90] sm:$0xff]
        %v6463 = vld [vmem:[#allocation2 + $0x98] sm:$0xff]
        %v6464 = vld [vmem:[#allocation2 + $0xa0] sm:$0xff]
        %v6465 = vld [vmem:[#allocation2 + $0xa8] sm:$0xff]
        %v6466 = vld [vmem:[#allocation2 + $0xb0] sm:$0xff]
        %v6467 = vld [vmem:[#allocation2 + $0xb8] sm:$0xff]
        %v6468 = vld [vmem:[#allocation2 + $0xc0] sm:$0xff]
        %v6469 = vld [vmem:[#allocation2 + $0xc8] sm:$0xff]
        %v6470 = vld [vmem:[#allocation2 + $0xd0] sm:$0xff]
        %v6471 = vld [vmem:[#allocation2 + $0xd8] sm:$0xff]
        %v6472 = vld [vmem:[#allocation2 + $0xe0] sm:$0xff]
        %v6473 = vld [vmem:[#allocation2 + $0xe8] sm:$0xff]
        %v6474 = vld [vmem:[#allocation2 + $0xf0] sm:$0xff]
        %v6475 = vld [vmem:[#allocation2 + $0xf8] sm:$0xff]
        %v6476 = vld [vmem:[#allocation2 + $0x100] sm:$0xff]
        %v6477 = vld [vmem:[#allocation2 + $0x108] sm:$0xff]
        %v6478 = vld [vmem:[#allocation2 + $0x110] sm:$0xff]
        %v6479 = vld [vmem:[#allocation2 + $0x118] sm:$0xff]
        %v6480 = vld [vmem:[#allocation2 + $0x120] sm:$0xff]
        %v6481 = vld [vmem:[#allocation2 + $0x128] sm:$0xff]
        %v6482 = vld [vmem:[#allocation2 + $0x130] sm:$0xff]
        %v6483 = vld [vmem:[#allocation2 + $0x138] sm:$0xff]
        %v6484 = vld [vmem:[#allocation2 + $0x140] sm:$0xff]
        %v6485 = vld [vmem:[#allocation2 + $0x148] sm:$0xff]
        %v6486 = vld [vmem:[#allocation2 + $0x150] sm:$0xff]
        %v6487 = vld [vmem:[#allocation2 + $0x158] sm:$0xff]
        %v6488 = vld [vmem:[#allocation2 + $0x160] sm:$0xff]
        %v6489 = vld [vmem:[#allocation2 + $0x168] sm:$0xff]
        %v6490 = vld [vmem:[#allocation2 + $0x170] sm:$0xff]
        %v6491 = vld [vmem:[#allocation2 + $0x178] sm:$0xff]
        %v6492 = vld [vmem:[#allocation2 + $0x180] sm:$0xff]
        %v6493 = vld [vmem:[#allocation2 + $0x188] sm:$0xff]
        %v6494 = vld [vmem:[#allocation2 + $0x190] sm:$0xff]
        %v6495 = vld [vmem:[#allocation2 + $0x198] sm:$0xff]
        %v6496 = vld [vmem:[#allocation2 + $0x1a0] sm:$0xff]
        %v6497 = vld [vmem:[#allocation2 + $0x1a8] sm:$0xff]
        %v6498 = vld [vmem:[#allocation2 + $0x1b0] sm:$0xff]
        %v6499 = vld [vmem:[#allocation2 + $0x1b8] sm:$0xff]
        %v6500 = vld [vmem:[#allocation2 + $0x1c0] sm:$0xff]
        %v6501 = vld [vmem:[#allocation2 + $0x1c8] sm:$0xff]
        %v6502 = vld [vmem:[#allocation2 + $0x1d0] sm:$0xff]
        %v6503 = vld [vmem:[#allocation2 + $0x1d8] sm:$0xff]
        %v6504 = vld [vmem:[#allocation2 + $0x1e0] sm:$0xff]
        %v6505 = vld [vmem:[#allocation2 + $0x1e8] sm:$0xff]
        %v6506 = vld [vmem:[#allocation2 + $0x1f0] sm:$0xff]
        %v6507 = vld [vmem:[#allocation2 + $0x1f8] sm:$0xff]
        %v6508 = vld [vmem:[#allocation2 + $0x200] sm:$0xff]
        %v6509 = vld [vmem:[#allocation2 + $0x208] sm:$0xff]
        %v6510 = vld [vmem:[#allocation2 + $0x210] sm:$0xff]
        %v6511 = vld [vmem:[#allocation2 + $0x218] sm:$0xff]
        %v6512 = vld [vmem:[#allocation2 + $0x220] sm:$0xff]
        %v6513 = vld [vmem:[#allocation2 + $0x228] sm:$0xff]
        %v6514 = vld [vmem:[#allocation2 + $0x230] sm:$0xff]
        %v6515 = vld [vmem:[#allocation2 + $0x238] sm:$0xff]
        %v6516 = vld [vmem:[#allocation2 + $0x240] sm:$0xff]
        %v6517 = vld [vmem:[#allocation2 + $0x248] sm:$0xff]
        %v6518 = vld [vmem:[#allocation2 + $0x250] sm:$0xff]
        %v6519 = vld [vmem:[#allocation2 + $0x258] sm:$0xff]
        %v6520 = vld [vmem:[#allocation2 + $0x260] sm:$0xff]
        %v6521 = vld [vmem:[#allocation2 + $0x268] sm:$0xff]
        %v6522 = vld [vmem:[#allocation2 + $0x270] sm:$0xff]
        %v6523 = vld [vmem:[#allocation2 + $0x278] sm:$0xff]
        %v6524 = vld [vmem:[#allocation2 + $0x280] sm:$0xff]
        %v6525 = vld [vmem:[#allocation2 + $0x288] sm:$0xff]
        %v6526 = vld [vmem:[#allocation2 + $0x290] sm:$0xff]
        %v6527 = vld [vmem:[#allocation2 + $0x298] sm:$0xff]
        %v6528 = vld [vmem:[#allocation2 + $0x2a0] sm:$0xff]
        %v6529 = vld [vmem:[#allocation2 + $0x2a8] sm:$0xff]
        %v6530 = vld [vmem:[#allocation2 + $0x2b0] sm:$0xff]
        %v6531 = vld [vmem:[#allocation2 + $0x2b8] sm:$0xff]
        %v6532 = vld [vmem:[#allocation2 + $0x2c0] sm:$0xff]
        %v6533 = vld [vmem:[#allocation2 + $0x2c8] sm:$0xff]
        %v6534 = vld [vmem:[#allocation2 + $0x2d0] sm:$0xff]
        %v6535 = vld [vmem:[#allocation2 + $0x2d8] sm:$0xff]
        %v6536 = vld [vmem:[#allocation2 + $0x2e0] sm:$0xff]
        %v6537 = vld [vmem:[#allocation2 + $0x2e8] sm:$0xff]
        %v6538 = vld [vmem:[#allocation2 + $0x2f0] sm:$0xff]
        %v6539 = vld [vmem:[#allocation2 + $0x2f8] sm:$0xff]
        %v6540 = vld [vmem:[#allocation2 + $0x300] sm:$0xff]
        %v6541 = vld [vmem:[#allocation2 + $0x308] sm:$0xff]
        %v6542 = vld [vmem:[#allocation2 + $0x310] sm:$0xff]
        %v6543 = vld [vmem:[#allocation2 + $0x318] sm:$0xff]
        %v6544 = vld [vmem:[#allocation2 + $0x320] sm:$0xff]
        %v6545 = vld [vmem:[#allocation2 + $0x328] sm:$0xff]
        %v6546 = vld [vmem:[#allocation2 + $0x330] sm:$0xff]
        %v6547 = vld [vmem:[#allocation2 + $0x338] sm:$0xff]
        %v6548 = vld [vmem:[#allocation2 + $0x340] sm:$0xff]
        %v6549 = vld [vmem:[#allocation2 + $0x348] sm:$0xff]
        %v6550 = vld [vmem:[#allocation2 + $0x350] sm:$0xff]
        %v6551 = vld [vmem:[#allocation2 + $0x358] sm:$0xff]
        %v6552 = vld [vmem:[#allocation2 + $0x360] sm:$0xff]
        %v6553 = vld [vmem:[#allocation2 + $0x368] sm:$0xff]
        %v6554 = vld [vmem:[#allocation2 + $0x370] sm:$0xff]
        %v6555 = vld [vmem:[#allocation2 + $0x378] sm:$0xff]
        %v6556 = vld [vmem:[#allocation2 + $0x380] sm:$0xff]
        %v6557 = vld [vmem:[#allocation2 + $0x388] sm:$0xff]
        %v6558 = vld [vmem:[#allocation2 + $0x390] sm:$0xff]
        %v6559 = vld [vmem:[#allocation2 + $0x398] sm:$0xff]
        %v6560 = vld [vmem:[#allocation2 + $0x3a0] sm:$0xff]
        %v6561 = vld [vmem:[#allocation2 + $0x3a8] sm:$0xff]
        %v6562 = vld [vmem:[#allocation2 + $0x3b0] sm:$0xff]
        %v6563 = vld [vmem:[#allocation2 + $0x3b8] sm:$0xff]
        %v6564 = vld [vmem:[#allocation2 + $0x3c0] sm:$0xff]
        %v6565 = vld [vmem:[#allocation2 + $0x3c8] sm:$0xff]
        %v6566 = vld [vmem:[#allocation2 + $0x3d0] sm:$0xff]
        %v6567 = vld [vmem:[#allocation2 + $0x3d8] sm:$0xff]
        %v6568 = vld [vmem:[#allocation2 + $0x3e0] sm:$0xff]
        %v6569 = vld [vmem:[#allocation2 + $0x3e8] sm:$0xff]
        %v6570 = vld [vmem:[#allocation2 + $0x3f0] sm:$0xff]
        %v6571 = vld [vmem:[#allocation2 + $0x3f8] sm:$0xff]
        %v6572 = vmax.f32 %v6444, %v6316
        %v6573 = vmax.f32 %v6445, %v6317
        %v6574 = vmax.f32 %v6446, %v6318
        %v6575 = vmax.f32 %v6447, %v6319
        %v6576 = vmax.f32 %v6448, %v6320
        %v6577 = vmax.f32 %v6449, %v6321
        %v6578 = vmax.f32 %v6450, %v6322
        %v6579 = vmax.f32 %v6451, %v6323
        %v6580 = vmax.f32 %v6452, %v6324
        %v6581 = vmax.f32 %v6453, %v6325
        %v6582 = vmax.f32 %v6454, %v6326
        %v6583 = vmax.f32 %v6455, %v6327
        %v6584 = vmax.f32 %v6456, %v6328
        %v6585 = vmax.f32 %v6457, %v6329
        %v6586 = vmax.f32 %v6458, %v6330
        %v6587 = vmax.f32 %v6459, %v6331
        %v6588 = vmax.f32 %v6460, %v6332
        %v6589 = vmax.f32 %v6461, %v6333
        %v6590 = vmax.f32 %v6462, %v6334
        %v6591 = vmax.f32 %v6463, %v6335
        %v6592 = vmax.f32 %v6464, %v6336
        %v6593 = vmax.f32 %v6465, %v6337
        %v6594 = vmax.f32 %v6466, %v6338
        %v6595 = vmax.f32 %v6467, %v6339
        %v6596 = vmax.f32 %v6468, %v6340
        %v6597 = vmax.f32 %v6469, %v6341
        %v6598 = vmax.f32 %v6470, %v6342
        %v6599 = vmax.f32 %v6471, %v6343
        %v6600 = vmax.f32 %v6472, %v6344
        %v6601 = vmax.f32 %v6473, %v6345
        %v6602 = vmax.f32 %v6474, %v6346
        %v6603 = vmax.f32 %v6475, %v6347
        %v6604 = vmax.f32 %v6476, %v6348
        %v6605 = vmax.f32 %v6477, %v6349
        %v6606 = vmax.f32 %v6478, %v6350
        %v6607 = vmax.f32 %v6479, %v6351
        %v6608 = vmax.f32 %v6480, %v6352
        %v6609 = vmax.f32 %v6481, %v6353
        %v6610 = vmax.f32 %v6482, %v6354
        %v6611 = vmax.f32 %v6483, %v6355
        %v6612 = vmax.f32 %v6484, %v6356
        %v6613 = vmax.f32 %v6485, %v6357
        %v6614 = vmax.f32 %v6486, %v6358
        %v6615 = vmax.f32 %v6487, %v6359
        %v6616 = vmax.f32 %v6488, %v6360
        %v6617 = vmax.f32 %v6489, %v6361
        %v6618 = vmax.f32 %v6490, %v6362
        %v6619 = vmax.f32 %v6491, %v6363
        %v6620 = vmax.f32 %v6492, %v6364
        %v6621 = vmax.f32 %v6493, %v6365
        %v6622 = vmax.f32 %v6494, %v6366
        %v6623 = vmax.f32 %v6495, %v6367
        %v6624 = vmax.f32 %v6496, %v6368
        %v6625 = vmax.f32 %v6497, %v6369
        %v6626 = vmax.f32 %v6498, %v6370
        %v6627 = vmax.f32 %v6499, %v6371
        %v6628 = vmax.f32 %v6500, %v6372
        %v6629 = vmax.f32 %v6501, %v6373
        %v6630 = vmax.f32 %v6502, %v6374
        %v6631 = vmax.f32 %v6503, %v6375
        %v6632 = vmax.f32 %v6504, %v6376
        %v6633 = vmax.f32 %v6505, %v6377
        %v6634 = vmax.f32 %v6506, %v6378
        %v6635 = vmax.f32 %v6507, %v6379
        %v6636 = vmax.f32 %v6508, %v6380
        %v6637 = vmax.f32 %v6509, %v6381
        %v6638 = vmax.f32 %v6510, %v6382
        %v6639 = vmax.f32 %v6511, %v6383
        %v6640 = vmax.f32 %v6512, %v6384
        %v6641 = vmax.f32 %v6513, %v6385
        %v6642 = vmax.f32 %v6514, %v6386
        %v6643 = vmax.f32 %v6515, %v6387
        %v6644 = vmax.f32 %v6516, %v6388
        %v6645 = vmax.f32 %v6517, %v6389
        %v6646 = vmax.f32 %v6518, %v6390
        %v6647 = vmax.f32 %v6519, %v6391
        %v6648 = vmax.f32 %v6520, %v6392
        %v6649 = vmax.f32 %v6521, %v6393
        %v6650 = vmax.f32 %v6522, %v6394
        %v6651 = vmax.f32 %v6523, %v6395
        %v6652 = vmax.f32 %v6524, %v6396
        %v6653 = vmax.f32 %v6525, %v6397
        %v6654 = vmax.f32 %v6526, %v6398
        %v6655 = vmax.f32 %v6527, %v6399
        %v6656 = vmax.f32 %v6528, %v6400
        %v6657 = vmax.f32 %v6529, %v6401
        %v6658 = vmax.f32 %v6530, %v6402
        %v6659 = vmax.f32 %v6531, %v6403
        %v6660 = vmax.f32 %v6532, %v6404
        %v6661 = vmax.f32 %v6533, %v6405
        %v6662 = vmax.f32 %v6534, %v6406
        %v6663 = vmax.f32 %v6535, %v6407
        %v6664 = vmax.f32 %v6536, %v6408
        %v6665 = vmax.f32 %v6537, %v6409
        %v6666 = vmax.f32 %v6538, %v6410
        %v6667 = vmax.f32 %v6539, %v6411
        %v6668 = vmax.f32 %v6540, %v6412
        %v6669 = vmax.f32 %v6541, %v6413
        %v6670 = vmax.f32 %v6542, %v6414
        %v6671 = vmax.f32 %v6543, %v6415
        %v6672 = vmax.f32 %v6544, %v6416
        %v6673 = vmax.f32 %v6545, %v6417
        %v6674 = vmax.f32 %v6546, %v6418
        %v6675 = vmax.f32 %v6547, %v6419
        %v6676 = vmax.f32 %v6548, %v6420
        %v6677 = vmax.f32 %v6549, %v6421
        %v6678 = vmax.f32 %v6550, %v6422
        %v6679 = vmax.f32 %v6551, %v6423
        %v6680 = vmax.f32 %v6552, %v6424
        %v6681 = vmax.f32 %v6553, %v6425
        %v6682 = vmax.f32 %v6554, %v6426
        %v6683 = vmax.f32 %v6555, %v6427
        %v6684 = vmax.f32 %v6556, %v6428
        %v6685 = vmax.f32 %v6557, %v6429
        %v6686 = vmax.f32 %v6558, %v6430
        %v6687 = vmax.f32 %v6559, %v6431
        %v6688 = vmax.f32 %v6560, %v6432
        %v6689 = vmax.f32 %v6561, %v6433
        %v6690 = vmax.f32 %v6562, %v6434
        %v6691 = vmax.f32 %v6563, %v6435
        %v6692 = vmax.f32 %v6564, %v6436
        %v6693 = vmax.f32 %v6565, %v6437
        %v6694 = vmax.f32 %v6566, %v6438
        %v6695 = vmax.f32 %v6567, %v6439
        %v6696 = vmax.f32 %v6568, %v6440
        %v6697 = vmax.f32 %v6569, %v6441
        %v6698 = vmax.f32 %v6570, %v6442
        %v6699 = vmax.f32 %v6571, %v6443
        %6700 = vst [vmem:[#allocation2] sm:$0xff] %v6572
        %6701 = vst [vmem:[#allocation2 + $0x8] sm:$0xff] %v6573
        %6702 = vst [vmem:[#allocation2 + $0x10] sm:$0xff] %v6574
        %6703 = vst [vmem:[#allocation2 + $0x18] sm:$0xff] %v6575
        %6704 = vst [vmem:[#allocation2 + $0x20] sm:$0xff] %v6576
        %6705 = vst [vmem:[#allocation2 + $0x28] sm:$0xff] %v6577
        %6706 = vst [vmem:[#allocation2 + $0x30] sm:$0xff] %v6578
        %6707 = vst [vmem:[#allocation2 + $0x38] sm:$0xff] %v6579
        %6708 = vst [vmem:[#allocation2 + $0x40] sm:$0xff] %v6580
        %6709 = vst [vmem:[#allocation2 + $0x48] sm:$0xff] %v6581
        %6710 = vst [vmem:[#allocation2 + $0x50] sm:$0xff] %v6582
        %6711 = vst [vmem:[#allocation2 + $0x58] sm:$0xff] %v6583
        %6712 = vst [vmem:[#allocation2 + $0x60] sm:$0xff] %v6584
        %6713 = vst [vmem:[#allocation2 + $0x68] sm:$0xff] %v6585
        %6714 = vst [vmem:[#allocation2 + $0x70] sm:$0xff] %v6586
        %6715 = vst [vmem:[#allocation2 + $0x78] sm:$0xff] %v6587
        %6716 = vst [vmem:[#allocation2 + $0x80] sm:$0xff] %v6588
        %6717 = vst [vmem:[#allocation2 + $0x88] sm:$0xff] %v6589
        %6718 = vst [vmem:[#allocation2 + $0x90] sm:$0xff] %v6590
        %6719 = vst [vmem:[#allocation2 + $0x98] sm:$0xff] %v6591
        %6720 = vst [vmem:[#allocation2 + $0xa0] sm:$0xff] %v6592
        %6721 = vst [vmem:[#allocation2 + $0xa8] sm:$0xff] %v6593
        %6722 = vst [vmem:[#allocation2 + $0xb0] sm:$0xff] %v6594
        %6723 = vst [vmem:[#allocation2 + $0xb8] sm:$0xff] %v6595
        %6724 = vst [vmem:[#allocation2 + $0xc0] sm:$0xff] %v6596
        %6725 = vst [vmem:[#allocation2 + $0xc8] sm:$0xff] %v6597
        %6726 = vst [vmem:[#allocation2 + $0xd0] sm:$0xff] %v6598
        %6727 = vst [vmem:[#allocation2 + $0xd8] sm:$0xff] %v6599
        %6728 = vst [vmem:[#allocation2 + $0xe0] sm:$0xff] %v6600
        %6729 = vst [vmem:[#allocation2 + $0xe8] sm:$0xff] %v6601
        %6730 = vst [vmem:[#allocation2 + $0xf0] sm:$0xff] %v6602
        %6731 = vst [vmem:[#allocation2 + $0xf8] sm:$0xff] %v6603
        %6732 = vst [vmem:[#allocation2 + $0x100] sm:$0xff] %v6604
        %6733 = vst [vmem:[#allocation2 + $0x108] sm:$0xff] %v6605
        %6734 = vst [vmem:[#allocation2 + $0x110] sm:$0xff] %v6606
        %6735 = vst [vmem:[#allocation2 + $0x118] sm:$0xff] %v6607
        %6736 = vst [vmem:[#allocation2 + $0x120] sm:$0xff] %v6608
        %6737 = vst [vmem:[#allocation2 + $0x128] sm:$0xff] %v6609
        %6738 = vst [vmem:[#allocation2 + $0x130] sm:$0xff] %v6610
        %6739 = vst [vmem:[#allocation2 + $0x138] sm:$0xff] %v6611
        %6740 = vst [vmem:[#allocation2 + $0x140] sm:$0xff] %v6612
        %6741 = vst [vmem:[#allocation2 + $0x148] sm:$0xff] %v6613
        %6742 = vst [vmem:[#allocation2 + $0x150] sm:$0xff] %v6614
        %6743 = vst [vmem:[#allocation2 + $0x158] sm:$0xff] %v6615
        %6744 = vst [vmem:[#allocation2 + $0x160] sm:$0xff] %v6616
        %6745 = vst [vmem:[#allocation2 + $0x168] sm:$0xff] %v6617
        %6746 = vst [vmem:[#allocation2 + $0x170] sm:$0xff] %v6618
        %6747 = vst [vmem:[#allocation2 + $0x178] sm:$0xff] %v6619
        %6748 = vst [vmem:[#allocation2 + $0x180] sm:$0xff] %v6620
        %6749 = vst [vmem:[#allocation2 + $0x188] sm:$0xff] %v6621
        %6750 = vst [vmem:[#allocation2 + $0x190] sm:$0xff] %v6622
        %6751 = vst [vmem:[#allocation2 + $0x198] sm:$0xff] %v6623
        %6752 = vst [vmem:[#allocation2 + $0x1a0] sm:$0xff] %v6624
        %6753 = vst [vmem:[#allocation2 + $0x1a8] sm:$0xff] %v6625
        %6754 = vst [vmem:[#allocation2 + $0x1b0] sm:$0xff] %v6626
        %6755 = vst [vmem:[#allocation2 + $0x1b8] sm:$0xff] %v6627
        %6756 = vst [vmem:[#allocation2 + $0x1c0] sm:$0xff] %v6628
        %6757 = vst [vmem:[#allocation2 + $0x1c8] sm:$0xff] %v6629
        %6758 = vst [vmem:[#allocation2 + $0x1d0] sm:$0xff] %v6630
        %6759 = vst [vmem:[#allocation2 + $0x1d8] sm:$0xff] %v6631
        %6760 = vst [vmem:[#allocation2 + $0x1e0] sm:$0xff] %v6632
        %6761 = vst [vmem:[#allocation2 + $0x1e8] sm:$0xff] %v6633
        %6762 = vst [vmem:[#allocation2 + $0x1f0] sm:$0xff] %v6634
        %6763 = vst [vmem:[#allocation2 + $0x1f8] sm:$0xff] %v6635
        %6764 = vst [vmem:[#allocation2 + $0x200] sm:$0xff] %v6636
        %6765 = vst [vmem:[#allocation2 + $0x208] sm:$0xff] %v6637
        %6766 = vst [vmem:[#allocation2 + $0x210] sm:$0xff] %v6638
        %6767 = vst [vmem:[#allocation2 + $0x218] sm:$0xff] %v6639
        %6768 = vst [vmem:[#allocation2 + $0x220] sm:$0xff] %v6640
        %6769 = vst [vmem:[#allocation2 + $0x228] sm:$0xff] %v6641
        %6770 = vst [vmem:[#allocation2 + $0x230] sm:$0xff] %v6642
        %6771 = vst [vmem:[#allocation2 + $0x238] sm:$0xff] %v6643
        %6772 = vst [vmem:[#allocation2 + $0x240] sm:$0xff] %v6644
        %6773 = vst [vmem:[#allocation2 + $0x248] sm:$0xff] %v6645
        %6774 = vst [vmem:[#allocation2 + $0x250] sm:$0xff] %v6646
        %6775 = vst [vmem:[#allocation2 + $0x258] sm:$0xff] %v6647
        %6776 = vst [vmem:[#allocation2 + $0x260] sm:$0xff] %v6648
        %6777 = vst [vmem:[#allocation2 + $0x268] sm:$0xff] %v6649
        %6778 = vst [vmem:[#allocation2 + $0x270] sm:$0xff] %v6650
        %6779 = vst [vmem:[#allocation2 + $0x278] sm:$0xff] %v6651
        %6780 = vst [vmem:[#allocation2 + $0x280] sm:$0xff] %v6652
        %6781 = vst [vmem:[#allocation2 + $0x288] sm:$0xff] %v6653
        %6782 = vst [vmem:[#allocation2 + $0x290] sm:$0xff] %v6654
        %6783 = vst [vmem:[#allocation2 + $0x298] sm:$0xff] %v6655
        %6784 = vst [vmem:[#allocation2 + $0x2a0] sm:$0xff] %v6656
        %6785 = vst [vmem:[#allocation2 + $0x2a8] sm:$0xff] %v6657
        %6786 = vst [vmem:[#allocation2 + $0x2b0] sm:$0xff] %v6658
        %6787 = vst [vmem:[#allocation2 + $0x2b8] sm:$0xff] %v6659
        %6788 = vst [vmem:[#allocation2 + $0x2c0] sm:$0xff] %v6660
        %6789 = vst [vmem:[#allocation2 + $0x2c8] sm:$0xff] %v6661
        %6790 = vst [vmem:[#allocation2 + $0x2d0] sm:$0xff] %v6662
        %6791 = vst [vmem:[#allocation2 + $0x2d8] sm:$0xff] %v6663
        %6792 = vst [vmem:[#allocation2 + $0x2e0] sm:$0xff] %v6664
        %6793 = vst [vmem:[#allocation2 + $0x2e8] sm:$0xff] %v6665
        %6794 = vst [vmem:[#allocation2 + $0x2f0] sm:$0xff] %v6666
        %6795 = vst [vmem:[#allocation2 + $0x2f8] sm:$0xff] %v6667
        %6796 = vst [vmem:[#allocation2 + $0x300] sm:$0xff] %v6668
        %6797 = vst [vmem:[#allocation2 + $0x308] sm:$0xff] %v6669
        %6798 = vst [vmem:[#allocation2 + $0x310] sm:$0xff] %v6670
        %6799 = vst [vmem:[#allocation2 + $0x318] sm:$0xff] %v6671
        %6800 = vst [vmem:[#allocation2 + $0x320] sm:$0xff] %v6672
        %6801 = vst [vmem:[#allocation2 + $0x328] sm:$0xff] %v6673
        %6802 = vst [vmem:[#allocation2 + $0x330] sm:$0xff] %v6674
        %6803 = vst [vmem:[#allocation2 + $0x338] sm:$0xff] %v6675
        %6804 = vst [vmem:[#allocation2 + $0x340] sm:$0xff] %v6676
        %6805 = vst [vmem:[#allocation2 + $0x348] sm:$0xff] %v6677
        %6806 = vst [vmem:[#allocation2 + $0x350] sm:$0xff] %v6678
        %6807 = vst [vmem:[#allocation2 + $0x358] sm:$0xff] %v6679
        %6808 = vst [vmem:[#allocation2 + $0x360] sm:$0xff] %v6680
        %6809 = vst [vmem:[#allocation2 + $0x368] sm:$0xff] %v6681
        %6810 = vst [vmem:[#allocation2 + $0x370] sm:$0xff] %v6682
        %6811 = vst [vmem:[#allocation2 + $0x378] sm:$0xff] %v6683
        %6812 = vst [vmem:[#allocation2 + $0x380] sm:$0xff] %v6684
        %6813 = vst [vmem:[#allocation2 + $0x388] sm:$0xff] %v6685
        %6814 = vst [vmem:[#allocation2 + $0x390] sm:$0xff] %v6686
        %6815 = vst [vmem:[#allocation2 + $0x398] sm:$0xff] %v6687
        %6816 = vst [vmem:[#allocation2 + $0x3a0] sm:$0xff] %v6688
        %6817 = vst [vmem:[#allocation2 + $0x3a8] sm:$0xff] %v6689
        %6818 = vst [vmem:[#allocation2 + $0x3b0] sm:$0xff] %v6690
        %6819 = vst [vmem:[#allocation2 + $0x3b8] sm:$0xff] %v6691
        %6820 = vst [vmem:[#allocation2 + $0x3c0] sm:$0xff] %v6692
        %6821 = vst [vmem:[#allocation2 + $0x3c8] sm:$0xff] %v6693
        %6822 = vst [vmem:[#allocation2 + $0x3d0] sm:$0xff] %v6694
        %6823 = vst [vmem:[#allocation2 + $0x3d8] sm:$0xff] %v6695
        %6824 = vst [vmem:[#allocation2 + $0x3e0] sm:$0xff] %v6696
        %6825 = vst [vmem:[#allocation2 + $0x3e8] sm:$0xff] %v6697
        %6826 = vst [vmem:[#allocation2 + $0x3f0] sm:$0xff] %v6698
        %6827 = vst [vmem:[#allocation2 + $0x3f8] sm:$0xff] %v6699
        // Predicated region
        $region89: #{tpu_custom_call.1} parent=75 // pred_check
          %p6828 = pneg %p527
        $region90: #{tpu_custom_call.1} parent=75 // pred_check_branch
          %6830 = sbr.rel (%p6828) target = $region92
        $region91: #{tpu_custom_call.1} parent=75 // pred_region
          %v6831 = vld [vmem:[#allocation2] sm:$0xff]
          %v6832 = vld [vmem:[#allocation2 + $0x8] sm:$0xff]
          %v6833 = vld [vmem:[#allocation2 + $0x10] sm:$0xff]
          %v6834 = vld [vmem:[#allocation2 + $0x18] sm:$0xff]
          %v6835 = vld [vmem:[#allocation2 + $0x20] sm:$0xff]
          %v6836 = vld [vmem:[#allocation2 + $0x28] sm:$0xff]
          %v6837 = vld [vmem:[#allocation2 + $0x30] sm:$0xff]
          %v6838 = vld [vmem:[#allocation2 + $0x38] sm:$0xff]
          %v6839 = vld [vmem:[#allocation2 + $0x40] sm:$0xff]
          %v6840 = vld [vmem:[#allocation2 + $0x48] sm:$0xff]
          %v6841 = vld [vmem:[#allocation2 + $0x50] sm:$0xff]
          %v6842 = vld [vmem:[#allocation2 + $0x58] sm:$0xff]
          %v6843 = vld [vmem:[#allocation2 + $0x60] sm:$0xff]
          %v6844 = vld [vmem:[#allocation2 + $0x68] sm:$0xff]
          %v6845 = vld [vmem:[#allocation2 + $0x70] sm:$0xff]
          %v6846 = vld [vmem:[#allocation2 + $0x78] sm:$0xff]
          %v6847 = vld [vmem:[#allocation2 + $0x80] sm:$0xff]
          %v6848 = vld [vmem:[#allocation2 + $0x88] sm:$0xff]
          %v6849 = vld [vmem:[#allocation2 + $0x90] sm:$0xff]
          %v6850 = vld [vmem:[#allocation2 + $0x98] sm:$0xff]
          %v6851 = vld [vmem:[#allocation2 + $0xa0] sm:$0xff]
          %v6852 = vld [vmem:[#allocation2 + $0xa8] sm:$0xff]
          %v6853 = vld [vmem:[#allocation2 + $0xb0] sm:$0xff]
          %v6854 = vld [vmem:[#allocation2 + $0xb8] sm:$0xff]
          %v6855 = vld [vmem:[#allocation2 + $0xc0] sm:$0xff]
          %v6856 = vld [vmem:[#allocation2 + $0xc8] sm:$0xff]
          %v6857 = vld [vmem:[#allocation2 + $0xd0] sm:$0xff]
          %v6858 = vld [vmem:[#allocation2 + $0xd8] sm:$0xff]
          %v6859 = vld [vmem:[#allocation2 + $0xe0] sm:$0xff]
          %v6860 = vld [vmem:[#allocation2 + $0xe8] sm:$0xff]
          %v6861 = vld [vmem:[#allocation2 + $0xf0] sm:$0xff]
          %v6862 = vld [vmem:[#allocation2 + $0xf8] sm:$0xff]
          %v6863 = vld [vmem:[#allocation2 + $0x100] sm:$0xff]
          %v6864 = vld [vmem:[#allocation2 + $0x108] sm:$0xff]
          %v6865 = vld [vmem:[#allocation2 + $0x110] sm:$0xff]
          %v6866 = vld [vmem:[#allocation2 + $0x118] sm:$0xff]
          %v6867 = vld [vmem:[#allocation2 + $0x120] sm:$0xff]
          %v6868 = vld [vmem:[#allocation2 + $0x128] sm:$0xff]
          %v6869 = vld [vmem:[#allocation2 + $0x130] sm:$0xff]
          %v6870 = vld [vmem:[#allocation2 + $0x138] sm:$0xff]
          %v6871 = vld [vmem:[#allocation2 + $0x140] sm:$0xff]
          %v6872 = vld [vmem:[#allocation2 + $0x148] sm:$0xff]
          %v6873 = vld [vmem:[#allocation2 + $0x150] sm:$0xff]
          %v6874 = vld [vmem:[#allocation2 + $0x158] sm:$0xff]
          %v6875 = vld [vmem:[#allocation2 + $0x160] sm:$0xff]
          %v6876 = vld [vmem:[#allocation2 + $0x168] sm:$0xff]
          %v6877 = vld [vmem:[#allocation2 + $0x170] sm:$0xff]
          %v6878 = vld [vmem:[#allocation2 + $0x178] sm:$0xff]
          %v6879 = vld [vmem:[#allocation2 + $0x180] sm:$0xff]
          %v6880 = vld [vmem:[#allocation2 + $0x188] sm:$0xff]
          %v6881 = vld [vmem:[#allocation2 + $0x190] sm:$0xff]
          %v6882 = vld [vmem:[#allocation2 + $0x198] sm:$0xff]
          %v6883 = vld [vmem:[#allocation2 + $0x1a0] sm:$0xff]
          %v6884 = vld [vmem:[#allocation2 + $0x1a8] sm:$0xff]
          %v6885 = vld [vmem:[#allocation2 + $0x1b0] sm:$0xff]
          %v6886 = vld [vmem:[#allocation2 + $0x1b8] sm:$0xff]
          %v6887 = vld [vmem:[#allocation2 + $0x1c0] sm:$0xff]
          %v6888 = vld [vmem:[#allocation2 + $0x1c8] sm:$0xff]
          %v6889 = vld [vmem:[#allocation2 + $0x1d0] sm:$0xff]
          %v6890 = vld [vmem:[#allocation2 + $0x1d8] sm:$0xff]
          %v6891 = vld [vmem:[#allocation2 + $0x1e0] sm:$0xff]
          %v6892 = vld [vmem:[#allocation2 + $0x1e8] sm:$0xff]
          %v6893 = vld [vmem:[#allocation2 + $0x1f0] sm:$0xff]
          %v6894 = vld [vmem:[#allocation2 + $0x1f8] sm:$0xff]
          %v6895 = vld [vmem:[#allocation2 + $0x200] sm:$0xff]
          %v6896 = vld [vmem:[#allocation2 + $0x208] sm:$0xff]
          %v6897 = vld [vmem:[#allocation2 + $0x210] sm:$0xff]
          %v6898 = vld [vmem:[#allocation2 + $0x218] sm:$0xff]
          %v6899 = vld [vmem:[#allocation2 + $0x220] sm:$0xff]
          %v6900 = vld [vmem:[#allocation2 + $0x228] sm:$0xff]
          %v6901 = vld [vmem:[#allocation2 + $0x230] sm:$0xff]
          %v6902 = vld [vmem:[#allocation2 + $0x238] sm:$0xff]
          %v6903 = vld [vmem:[#allocation2 + $0x240] sm:$0xff]
          %v6904 = vld [vmem:[#allocation2 + $0x248] sm:$0xff]
          %v6905 = vld [vmem:[#allocation2 + $0x250] sm:$0xff]
          %v6906 = vld [vmem:[#allocation2 + $0x258] sm:$0xff]
          %v6907 = vld [vmem:[#allocation2 + $0x260] sm:$0xff]
          %v6908 = vld [vmem:[#allocation2 + $0x268] sm:$0xff]
          %v6909 = vld [vmem:[#allocation2 + $0x270] sm:$0xff]
          %v6910 = vld [vmem:[#allocation2 + $0x278] sm:$0xff]
          %v6911 = vld [vmem:[#allocation2 + $0x280] sm:$0xff]
          %v6912 = vld [vmem:[#allocation2 + $0x288] sm:$0xff]
          %v6913 = vld [vmem:[#allocation2 + $0x290] sm:$0xff]
          %v6914 = vld [vmem:[#allocation2 + $0x298] sm:$0xff]
          %v6915 = vld [vmem:[#allocation2 + $0x2a0] sm:$0xff]
          %v6916 = vld [vmem:[#allocation2 + $0x2a8] sm:$0xff]
          %v6917 = vld [vmem:[#allocation2 + $0x2b0] sm:$0xff]
          %v6918 = vld [vmem:[#allocation2 + $0x2b8] sm:$0xff]
          %v6919 = vld [vmem:[#allocation2 + $0x2c0] sm:$0xff]
          %v6920 = vld [vmem:[#allocation2 + $0x2c8] sm:$0xff]
          %v6921 = vld [vmem:[#allocation2 + $0x2d0] sm:$0xff]
          %v6922 = vld [vmem:[#allocation2 + $0x2d8] sm:$0xff]
          %v6923 = vld [vmem:[#allocation2 + $0x2e0] sm:$0xff]
          %v6924 = vld [vmem:[#allocation2 + $0x2e8] sm:$0xff]
          %v6925 = vld [vmem:[#allocation2 + $0x2f0] sm:$0xff]
          %v6926 = vld [vmem:[#allocation2 + $0x2f8] sm:$0xff]
          %v6927 = vld [vmem:[#allocation2 + $0x300] sm:$0xff]
          %v6928 = vld [vmem:[#allocation2 + $0x308] sm:$0xff]
          %v6929 = vld [vmem:[#allocation2 + $0x310] sm:$0xff]
          %v6930 = vld [vmem:[#allocation2 + $0x318] sm:$0xff]
          %v6931 = vld [vmem:[#allocation2 + $0x320] sm:$0xff]
          %v6932 = vld [vmem:[#allocation2 + $0x328] sm:$0xff]
          %v6933 = vld [vmem:[#allocation2 + $0x330] sm:$0xff]
          %v6934 = vld [vmem:[#allocation2 + $0x338] sm:$0xff]
          %v6935 = vld [vmem:[#allocation2 + $0x340] sm:$0xff]
          %v6936 = vld [vmem:[#allocation2 + $0x348] sm:$0xff]
          %v6937 = vld [vmem:[#allocation2 + $0x350] sm:$0xff]
          %v6938 = vld [vmem:[#allocation2 + $0x358] sm:$0xff]
          %v6939 = vld [vmem:[#allocation2 + $0x360] sm:$0xff]
          %v6940 = vld [vmem:[#allocation2 + $0x368] sm:$0xff]
          %v6941 = vld [vmem:[#allocation2 + $0x370] sm:$0xff]
          %v6942 = vld [vmem:[#allocation2 + $0x378] sm:$0xff]
          %v6943 = vld [vmem:[#allocation2 + $0x380] sm:$0xff]
          %v6944 = vld [vmem:[#allocation2 + $0x388] sm:$0xff]
          %v6945 = vld [vmem:[#allocation2 + $0x390] sm:$0xff]
          %v6946 = vld [vmem:[#allocation2 + $0x398] sm:$0xff]
          %v6947 = vld [vmem:[#allocation2 + $0x3a0] sm:$0xff]
          %v6948 = vld [vmem:[#allocation2 + $0x3a8] sm:$0xff]
          %v6949 = vld [vmem:[#allocation2 + $0x3b0] sm:$0xff]
          %v6950 = vld [vmem:[#allocation2 + $0x3b8] sm:$0xff]
          %v6951 = vld [vmem:[#allocation2 + $0x3c0] sm:$0xff]
          %v6952 = vld [vmem:[#allocation2 + $0x3c8] sm:$0xff]
          %v6953 = vld [vmem:[#allocation2 + $0x3d0] sm:$0xff]
          %v6954 = vld [vmem:[#allocation2 + $0x3d8] sm:$0xff]
          %v6955 = vld [vmem:[#allocation2 + $0x3e0] sm:$0xff]
          %v6956 = vld [vmem:[#allocation2 + $0x3e8] sm:$0xff]
          %v6957 = vld [vmem:[#allocation2 + $0x3f0] sm:$0xff]
          %v6958 = vld [vmem:[#allocation2 + $0x3f8] sm:$0xff]
          %6959 = vmax.xlane.f32.xlu0 %v6831
          %v6960 = vpop.xlane.xlu0 %6959
          %6961 = vmax.xlane.f32.xlu0 %v6832
          %v6962 = vpop.xlane.xlu0 %6961
          %6963 = vmax.xlane.f32.xlu0 %v6833
          %v6964 = vpop.xlane.xlu0 %6963
          %6965 = vmax.xlane.f32.xlu0 %v6834
          %v6966 = vpop.xlane.xlu0 %6965
          %6967 = vmax.xlane.f32.xlu0 %v6835
          %v6968 = vpop.xlane.xlu0 %6967
          %6969 = vmax.xlane.f32.xlu0 %v6836
          %v6970 = vpop.xlane.xlu0 %6969
          %6971 = vmax.xlane.f32.xlu0 %v6837
          %v6972 = vpop.xlane.xlu0 %6971
          %6973 = vmax.xlane.f32.xlu0 %v6838
          %v6974 = vpop.xlane.xlu0 %6973
          %6975 = vmax.xlane.f32.xlu0 %v6839
          %v6976 = vpop.xlane.xlu0 %6975
          %6977 = vmax.xlane.f32.xlu0 %v6840
          %v6978 = vpop.xlane.xlu0 %6977
          %6979 = vmax.xlane.f32.xlu0 %v6841
          %v6980 = vpop.xlane.xlu0 %6979
          %6981 = vmax.xlane.f32.xlu0 %v6842
          %v6982 = vpop.xlane.xlu0 %6981
          %6983 = vmax.xlane.f32.xlu0 %v6843
          %v6984 = vpop.xlane.xlu0 %6983
          %6985 = vmax.xlane.f32.xlu0 %v6844
          %v6986 = vpop.xlane.xlu0 %6985
          %6987 = vmax.xlane.f32.xlu0 %v6845
          %v6988 = vpop.xlane.xlu0 %6987
          %6989 = vmax.xlane.f32.xlu0 %v6846
          %v6990 = vpop.xlane.xlu0 %6989
          %6991 = vmax.xlane.f32.xlu0 %v6847
          %v6992 = vpop.xlane.xlu0 %6991
          %6993 = vmax.xlane.f32.xlu0 %v6848
          %v6994 = vpop.xlane.xlu0 %6993
          %6995 = vmax.xlane.f32.xlu0 %v6849
          %v6996 = vpop.xlane.xlu0 %6995
          %6997 = vmax.xlane.f32.xlu0 %v6850
          %v6998 = vpop.xlane.xlu0 %6997
          %6999 = vmax.xlane.f32.xlu0 %v6851
          %v7000 = vpop.xlane.xlu0 %6999
          %7001 = vmax.xlane.f32.xlu0 %v6852
          %v7002 = vpop.xlane.xlu0 %7001
          %7003 = vmax.xlane.f32.xlu0 %v6853
          %v7004 = vpop.xlane.xlu0 %7003
          %7005 = vmax.xlane.f32.xlu0 %v6854
          %v7006 = vpop.xlane.xlu0 %7005
          %7007 = vmax.xlane.f32.xlu0 %v6855
          %v7008 = vpop.xlane.xlu0 %7007
          %7009 = vmax.xlane.f32.xlu0 %v6856
          %v7010 = vpop.xlane.xlu0 %7009
          %7011 = vmax.xlane.f32.xlu0 %v6857
          %v7012 = vpop.xlane.xlu0 %7011
          %7013 = vmax.xlane.f32.xlu0 %v6858
          %v7014 = vpop.xlane.xlu0 %7013
          %7015 = vmax.xlane.f32.xlu0 %v6859
          %v7016 = vpop.xlane.xlu0 %7015
          %7017 = vmax.xlane.f32.xlu0 %v6860
          %v7018 = vpop.xlane.xlu0 %7017
          %7019 = vmax.xlane.f32.xlu0 %v6861
          %v7020 = vpop.xlane.xlu0 %7019
          %7021 = vmax.xlane.f32.xlu0 %v6862
          %v7022 = vpop.xlane.xlu0 %7021
          %7023 = vmax.xlane.f32.xlu0 %v6863
          %v7024 = vpop.xlane.xlu0 %7023
          %7025 = vmax.xlane.f32.xlu0 %v6864
          %v7026 = vpop.xlane.xlu0 %7025
          %7027 = vmax.xlane.f32.xlu0 %v6865
          %v7028 = vpop.xlane.xlu0 %7027
          %7029 = vmax.xlane.f32.xlu0 %v6866
          %v7030 = vpop.xlane.xlu0 %7029
          %7031 = vmax.xlane.f32.xlu0 %v6867
          %v7032 = vpop.xlane.xlu0 %7031
          %7033 = vmax.xlane.f32.xlu0 %v6868
          %v7034 = vpop.xlane.xlu0 %7033
          %7035 = vmax.xlane.f32.xlu0 %v6869
          %v7036 = vpop.xlane.xlu0 %7035
          %7037 = vmax.xlane.f32.xlu0 %v6870
          %v7038 = vpop.xlane.xlu0 %7037
          %7039 = vmax.xlane.f32.xlu0 %v6871
          %v7040 = vpop.xlane.xlu0 %7039
          %7041 = vmax.xlane.f32.xlu0 %v6872
          %v7042 = vpop.xlane.xlu0 %7041
          %7043 = vmax.xlane.f32.xlu0 %v6873
          %v7044 = vpop.xlane.xlu0 %7043
          %7045 = vmax.xlane.f32.xlu0 %v6874
          %v7046 = vpop.xlane.xlu0 %7045
          %7047 = vmax.xlane.f32.xlu0 %v6875
          %v7048 = vpop.xlane.xlu0 %7047
          %7049 = vmax.xlane.f32.xlu0 %v6876
          %v7050 = vpop.xlane.xlu0 %7049
          %7051 = vmax.xlane.f32.xlu0 %v6877
          %v7052 = vpop.xlane.xlu0 %7051
          %7053 = vmax.xlane.f32.xlu0 %v6878
          %v7054 = vpop.xlane.xlu0 %7053
          %7055 = vmax.xlane.f32.xlu0 %v6879
          %v7056 = vpop.xlane.xlu0 %7055
          %7057 = vmax.xlane.f32.xlu0 %v6880
          %v7058 = vpop.xlane.xlu0 %7057
          %7059 = vmax.xlane.f32.xlu0 %v6881
          %v7060 = vpop.xlane.xlu0 %7059
          %7061 = vmax.xlane.f32.xlu0 %v6882
          %v7062 = vpop.xlane.xlu0 %7061
          %7063 = vmax.xlane.f32.xlu0 %v6883
          %v7064 = vpop.xlane.xlu0 %7063
          %7065 = vmax.xlane.f32.xlu0 %v6884
          %v7066 = vpop.xlane.xlu0 %7065
          %7067 = vmax.xlane.f32.xlu0 %v6885
          %v7068 = vpop.xlane.xlu0 %7067
          %7069 = vmax.xlane.f32.xlu0 %v6886
          %v7070 = vpop.xlane.xlu0 %7069
          %7071 = vmax.xlane.f32.xlu0 %v6887
          %v7072 = vpop.xlane.xlu0 %7071
          %7073 = vmax.xlane.f32.xlu0 %v6888
          %v7074 = vpop.xlane.xlu0 %7073
          %7075 = vmax.xlane.f32.xlu0 %v6889
          %v7076 = vpop.xlane.xlu0 %7075
          %7077 = vmax.xlane.f32.xlu0 %v6890
          %v7078 = vpop.xlane.xlu0 %7077
          %7079 = vmax.xlane.f32.xlu0 %v6891
          %v7080 = vpop.xlane.xlu0 %7079
          %7081 = vmax.xlane.f32.xlu0 %v6892
          %v7082 = vpop.xlane.xlu0 %7081
          %7083 = vmax.xlane.f32.xlu0 %v6893
          %v7084 = vpop.xlane.xlu0 %7083
          %7085 = vmax.xlane.f32.xlu0 %v6894
          %v7086 = vpop.xlane.xlu0 %7085
          %7087 = vmax.xlane.f32.xlu0 %v6895
          %v7088 = vpop.xlane.xlu0 %7087
          %7089 = vmax.xlane.f32.xlu0 %v6896
          %v7090 = vpop.xlane.xlu0 %7089
          %7091 = vmax.xlane.f32.xlu0 %v6897
          %v7092 = vpop.xlane.xlu0 %7091
          %7093 = vmax.xlane.f32.xlu0 %v6898
          %v7094 = vpop.xlane.xlu0 %7093
          %7095 = vmax.xlane.f32.xlu0 %v6899
          %v7096 = vpop.xlane.xlu0 %7095
          %7097 = vmax.xlane.f32.xlu0 %v6900
          %v7098 = vpop.xlane.xlu0 %7097
          %7099 = vmax.xlane.f32.xlu0 %v6901
          %v7100 = vpop.xlane.xlu0 %7099
          %7101 = vmax.xlane.f32.xlu0 %v6902
          %v7102 = vpop.xlane.xlu0 %7101
          %7103 = vmax.xlane.f32.xlu0 %v6903
          %v7104 = vpop.xlane.xlu0 %7103
          %7105 = vmax.xlane.f32.xlu0 %v6904
          %v7106 = vpop.xlane.xlu0 %7105
          %7107 = vmax.xlane.f32.xlu0 %v6905
          %v7108 = vpop.xlane.xlu0 %7107
          %7109 = vmax.xlane.f32.xlu0 %v6906
          %v7110 = vpop.xlane.xlu0 %7109
          %7111 = vmax.xlane.f32.xlu0 %v6907
          %v7112 = vpop.xlane.xlu0 %7111
          %7113 = vmax.xlane.f32.xlu0 %v6908
          %v7114 = vpop.xlane.xlu0 %7113
          %7115 = vmax.xlane.f32.xlu0 %v6909
          %v7116 = vpop.xlane.xlu0 %7115
          %7117 = vmax.xlane.f32.xlu0 %v6910
          %v7118 = vpop.xlane.xlu0 %7117
          %7119 = vmax.xlane.f32.xlu0 %v6911
          %v7120 = vpop.xlane.xlu0 %7119
          %7121 = vmax.xlane.f32.xlu0 %v6912
          %v7122 = vpop.xlane.xlu0 %7121
          %7123 = vmax.xlane.f32.xlu0 %v6913
          %v7124 = vpop.xlane.xlu0 %7123
          %7125 = vmax.xlane.f32.xlu0 %v6914
          %v7126 = vpop.xlane.xlu0 %7125
          %7127 = vmax.xlane.f32.xlu0 %v6915
          %v7128 = vpop.xlane.xlu0 %7127
          %7129 = vmax.xlane.f32.xlu0 %v6916
          %v7130 = vpop.xlane.xlu0 %7129
          %7131 = vmax.xlane.f32.xlu0 %v6917
          %v7132 = vpop.xlane.xlu0 %7131
          %7133 = vmax.xlane.f32.xlu0 %v6918
          %v7134 = vpop.xlane.xlu0 %7133
          %7135 = vmax.xlane.f32.xlu0 %v6919
          %v7136 = vpop.xlane.xlu0 %7135
          %7137 = vmax.xlane.f32.xlu0 %v6920
          %v7138 = vpop.xlane.xlu0 %7137
          %7139 = vmax.xlane.f32.xlu0 %v6921
          %v7140 = vpop.xlane.xlu0 %7139
          %7141 = vmax.xlane.f32.xlu0 %v6922
          %v7142 = vpop.xlane.xlu0 %7141
          %7143 = vmax.xlane.f32.xlu0 %v6923
          %v7144 = vpop.xlane.xlu0 %7143
          %7145 = vmax.xlane.f32.xlu0 %v6924
          %v7146 = vpop.xlane.xlu0 %7145
          %7147 = vmax.xlane.f32.xlu0 %v6925
          %v7148 = vpop.xlane.xlu0 %7147
          %7149 = vmax.xlane.f32.xlu0 %v6926
          %v7150 = vpop.xlane.xlu0 %7149
          %7151 = vmax.xlane.f32.xlu0 %v6927
          %v7152 = vpop.xlane.xlu0 %7151
          %7153 = vmax.xlane.f32.xlu0 %v6928
          %v7154 = vpop.xlane.xlu0 %7153
          %7155 = vmax.xlane.f32.xlu0 %v6929
          %v7156 = vpop.xlane.xlu0 %7155
          %7157 = vmax.xlane.f32.xlu0 %v6930
          %v7158 = vpop.xlane.xlu0 %7157
          %7159 = vmax.xlane.f32.xlu0 %v6931
          %v7160 = vpop.xlane.xlu0 %7159
          %7161 = vmax.xlane.f32.xlu0 %v6932
          %v7162 = vpop.xlane.xlu0 %7161
          %7163 = vmax.xlane.f32.xlu0 %v6933
          %v7164 = vpop.xlane.xlu0 %7163
          %7165 = vmax.xlane.f32.xlu0 %v6934
          %v7166 = vpop.xlane.xlu0 %7165
          %7167 = vmax.xlane.f32.xlu0 %v6935
          %v7168 = vpop.xlane.xlu0 %7167
          %7169 = vmax.xlane.f32.xlu0 %v6936
          %v7170 = vpop.xlane.xlu0 %7169
          %7171 = vmax.xlane.f32.xlu0 %v6937
          %v7172 = vpop.xlane.xlu0 %7171
          %7173 = vmax.xlane.f32.xlu0 %v6938
          %v7174 = vpop.xlane.xlu0 %7173
          %7175 = vmax.xlane.f32.xlu0 %v6939
          %v7176 = vpop.xlane.xlu0 %7175
          %7177 = vmax.xlane.f32.xlu0 %v6940
          %v7178 = vpop.xlane.xlu0 %7177
          %7179 = vmax.xlane.f32.xlu0 %v6941
          %v7180 = vpop.xlane.xlu0 %7179
          %7181 = vmax.xlane.f32.xlu0 %v6942
          %v7182 = vpop.xlane.xlu0 %7181
          %7183 = vmax.xlane.f32.xlu0 %v6943
          %v7184 = vpop.xlane.xlu0 %7183
          %7185 = vmax.xlane.f32.xlu0 %v6944
          %v7186 = vpop.xlane.xlu0 %7185
          %7187 = vmax.xlane.f32.xlu0 %v6945
          %v7188 = vpop.xlane.xlu0 %7187
          %7189 = vmax.xlane.f32.xlu0 %v6946
          %v7190 = vpop.xlane.xlu0 %7189
          %7191 = vmax.xlane.f32.xlu0 %v6947
          %v7192 = vpop.xlane.xlu0 %7191
          %7193 = vmax.xlane.f32.xlu0 %v6948
          %v7194 = vpop.xlane.xlu0 %7193
          %7195 = vmax.xlane.f32.xlu0 %v6949
          %v7196 = vpop.xlane.xlu0 %7195
          %7197 = vmax.xlane.f32.xlu0 %v6950
          %v7198 = vpop.xlane.xlu0 %7197
          %7199 = vmax.xlane.f32.xlu0 %v6951
          %v7200 = vpop.xlane.xlu0 %7199
          %7201 = vmax.xlane.f32.xlu0 %v6952
          %v7202 = vpop.xlane.xlu0 %7201
          %7203 = vmax.xlane.f32.xlu0 %v6953
          %v7204 = vpop.xlane.xlu0 %7203
          %7205 = vmax.xlane.f32.xlu0 %v6954
          %v7206 = vpop.xlane.xlu0 %7205
          %7207 = vmax.xlane.f32.xlu0 %v6955
          %v7208 = vpop.xlane.xlu0 %7207
          %7209 = vmax.xlane.f32.xlu0 %v6956
          %v7210 = vpop.xlane.xlu0 %7209
          %7211 = vmax.xlane.f32.xlu0 %v6957
          %v7212 = vpop.xlane.xlu0 %7211
          %7213 = vmax.xlane.f32.xlu0 %v6958
          %v7214 = vpop.xlane.xlu0 %7213
          %v7215 = vld [vmem:[%s6] sm:$0xff]
          %v7216 = vld [vmem:[%s6 + $0x8] sm:$0xff]
          %v7217 = vld [vmem:[%s6 + $0x10] sm:$0xff]
          %v7218 = vld [vmem:[%s6 + $0x18] sm:$0xff]
          %v7219 = vld [vmem:[%s6 + $0x20] sm:$0xff]
          %v7220 = vld [vmem:[%s6 + $0x28] sm:$0xff]
          %v7221 = vld [vmem:[%s6 + $0x30] sm:$0xff]
          %v7222 = vld [vmem:[%s6 + $0x38] sm:$0xff]
          %v7223 = vld [vmem:[%s6 + $0x40] sm:$0xff]
          %v7224 = vld [vmem:[%s6 + $0x48] sm:$0xff]
          %v7225 = vld [vmem:[%s6 + $0x50] sm:$0xff]
          %v7226 = vld [vmem:[%s6 + $0x58] sm:$0xff]
          %v7227 = vld [vmem:[%s6 + $0x60] sm:$0xff]
          %v7228 = vld [vmem:[%s6 + $0x68] sm:$0xff]
          %v7229 = vld [vmem:[%s6 + $0x70] sm:$0xff]
          %v7230 = vld [vmem:[%s6 + $0x78] sm:$0xff]
          %v7231 = vld [vmem:[%s6 + $0x80] sm:$0xff]
          %v7232 = vld [vmem:[%s6 + $0x88] sm:$0xff]
          %v7233 = vld [vmem:[%s6 + $0x90] sm:$0xff]
          %v7234 = vld [vmem:[%s6 + $0x98] sm:$0xff]
          %v7235 = vld [vmem:[%s6 + $0xa0] sm:$0xff]
          %v7236 = vld [vmem:[%s6 + $0xa8] sm:$0xff]
          %v7237 = vld [vmem:[%s6 + $0xb0] sm:$0xff]
          %v7238 = vld [vmem:[%s6 + $0xb8] sm:$0xff]
          %v7239 = vld [vmem:[%s6 + $0xc0] sm:$0xff]
          %v7240 = vld [vmem:[%s6 + $0xc8] sm:$0xff]
          %v7241 = vld [vmem:[%s6 + $0xd0] sm:$0xff]
          %v7242 = vld [vmem:[%s6 + $0xd8] sm:$0xff]
          %v7243 = vld [vmem:[%s6 + $0xe0] sm:$0xff]
          %v7244 = vld [vmem:[%s6 + $0xe8] sm:$0xff]
          %v7245 = vld [vmem:[%s6 + $0xf0] sm:$0xff]
          %v7246 = vld [vmem:[%s6 + $0xf8] sm:$0xff]
          %v7247 = vld [vmem:[%s6 + $0x100] sm:$0xff]
          %v7248 = vld [vmem:[%s6 + $0x108] sm:$0xff]
          %v7249 = vld [vmem:[%s6 + $0x110] sm:$0xff]
          %v7250 = vld [vmem:[%s6 + $0x118] sm:$0xff]
          %v7251 = vld [vmem:[%s6 + $0x120] sm:$0xff]
          %v7252 = vld [vmem:[%s6 + $0x128] sm:$0xff]
          %v7253 = vld [vmem:[%s6 + $0x130] sm:$0xff]
          %v7254 = vld [vmem:[%s6 + $0x138] sm:$0xff]
          %v7255 = vld [vmem:[%s6 + $0x140] sm:$0xff]
          %v7256 = vld [vmem:[%s6 + $0x148] sm:$0xff]
          %v7257 = vld [vmem:[%s6 + $0x150] sm:$0xff]
          %v7258 = vld [vmem:[%s6 + $0x158] sm:$0xff]
          %v7259 = vld [vmem:[%s6 + $0x160] sm:$0xff]
          %v7260 = vld [vmem:[%s6 + $0x168] sm:$0xff]
          %v7261 = vld [vmem:[%s6 + $0x170] sm:$0xff]
          %v7262 = vld [vmem:[%s6 + $0x178] sm:$0xff]
          %v7263 = vld [vmem:[%s6 + $0x180] sm:$0xff]
          %v7264 = vld [vmem:[%s6 + $0x188] sm:$0xff]
          %v7265 = vld [vmem:[%s6 + $0x190] sm:$0xff]
          %v7266 = vld [vmem:[%s6 + $0x198] sm:$0xff]
          %v7267 = vld [vmem:[%s6 + $0x1a0] sm:$0xff]
          %v7268 = vld [vmem:[%s6 + $0x1a8] sm:$0xff]
          %v7269 = vld [vmem:[%s6 + $0x1b0] sm:$0xff]
          %v7270 = vld [vmem:[%s6 + $0x1b8] sm:$0xff]
          %v7271 = vld [vmem:[%s6 + $0x1c0] sm:$0xff]
          %v7272 = vld [vmem:[%s6 + $0x1c8] sm:$0xff]
          %v7273 = vld [vmem:[%s6 + $0x1d0] sm:$0xff]
          %v7274 = vld [vmem:[%s6 + $0x1d8] sm:$0xff]
          %v7275 = vld [vmem:[%s6 + $0x1e0] sm:$0xff]
          %v7276 = vld [vmem:[%s6 + $0x1e8] sm:$0xff]
          %v7277 = vld [vmem:[%s6 + $0x1f0] sm:$0xff]
          %v7278 = vld [vmem:[%s6 + $0x1f8] sm:$0xff]
          %v7279 = vld [vmem:[%s6 + $0x200] sm:$0xff]
          %v7280 = vld [vmem:[%s6 + $0x208] sm:$0xff]
          %v7281 = vld [vmem:[%s6 + $0x210] sm:$0xff]
          %v7282 = vld [vmem:[%s6 + $0x218] sm:$0xff]
          %v7283 = vld [vmem:[%s6 + $0x220] sm:$0xff]
          %v7284 = vld [vmem:[%s6 + $0x228] sm:$0xff]
          %v7285 = vld [vmem:[%s6 + $0x230] sm:$0xff]
          %v7286 = vld [vmem:[%s6 + $0x238] sm:$0xff]
          %v7287 = vld [vmem:[%s6 + $0x240] sm:$0xff]
          %v7288 = vld [vmem:[%s6 + $0x248] sm:$0xff]
          %v7289 = vld [vmem:[%s6 + $0x250] sm:$0xff]
          %v7290 = vld [vmem:[%s6 + $0x258] sm:$0xff]
          %v7291 = vld [vmem:[%s6 + $0x260] sm:$0xff]
          %v7292 = vld [vmem:[%s6 + $0x268] sm:$0xff]
          %v7293 = vld [vmem:[%s6 + $0x270] sm:$0xff]
          %v7294 = vld [vmem:[%s6 + $0x278] sm:$0xff]
          %v7295 = vld [vmem:[%s6 + $0x280] sm:$0xff]
          %v7296 = vld [vmem:[%s6 + $0x288] sm:$0xff]
          %v7297 = vld [vmem:[%s6 + $0x290] sm:$0xff]
          %v7298 = vld [vmem:[%s6 + $0x298] sm:$0xff]
          %v7299 = vld [vmem:[%s6 + $0x2a0] sm:$0xff]
          %v7300 = vld [vmem:[%s6 + $0x2a8] sm:$0xff]
          %v7301 = vld [vmem:[%s6 + $0x2b0] sm:$0xff]
          %v7302 = vld [vmem:[%s6 + $0x2b8] sm:$0xff]
          %v7303 = vld [vmem:[%s6 + $0x2c0] sm:$0xff]
          %v7304 = vld [vmem:[%s6 + $0x2c8] sm:$0xff]
          %v7305 = vld [vmem:[%s6 + $0x2d0] sm:$0xff]
          %v7306 = vld [vmem:[%s6 + $0x2d8] sm:$0xff]
          %v7307 = vld [vmem:[%s6 + $0x2e0] sm:$0xff]
          %v7308 = vld [vmem:[%s6 + $0x2e8] sm:$0xff]
          %v7309 = vld [vmem:[%s6 + $0x2f0] sm:$0xff]
          %v7310 = vld [vmem:[%s6 + $0x2f8] sm:$0xff]
          %v7311 = vld [vmem:[%s6 + $0x300] sm:$0xff]
          %v7312 = vld [vmem:[%s6 + $0x308] sm:$0xff]
          %v7313 = vld [vmem:[%s6 + $0x310] sm:$0xff]
          %v7314 = vld [vmem:[%s6 + $0x318] sm:$0xff]
          %v7315 = vld [vmem:[%s6 + $0x320] sm:$0xff]
          %v7316 = vld [vmem:[%s6 + $0x328] sm:$0xff]
          %v7317 = vld [vmem:[%s6 + $0x330] sm:$0xff]
          %v7318 = vld [vmem:[%s6 + $0x338] sm:$0xff]
          %v7319 = vld [vmem:[%s6 + $0x340] sm:$0xff]
          %v7320 = vld [vmem:[%s6 + $0x348] sm:$0xff]
          %v7321 = vld [vmem:[%s6 + $0x350] sm:$0xff]
          %v7322 = vld [vmem:[%s6 + $0x358] sm:$0xff]
          %v7323 = vld [vmem:[%s6 + $0x360] sm:$0xff]
          %v7324 = vld [vmem:[%s6 + $0x368] sm:$0xff]
          %v7325 = vld [vmem:[%s6 + $0x370] sm:$0xff]
          %v7326 = vld [vmem:[%s6 + $0x378] sm:$0xff]
          %v7327 = vld [vmem:[%s6 + $0x380] sm:$0xff]
          %v7328 = vld [vmem:[%s6 + $0x388] sm:$0xff]
          %v7329 = vld [vmem:[%s6 + $0x390] sm:$0xff]
          %v7330 = vld [vmem:[%s6 + $0x398] sm:$0xff]
          %v7331 = vld [vmem:[%s6 + $0x3a0] sm:$0xff]
          %v7332 = vld [vmem:[%s6 + $0x3a8] sm:$0xff]
          %v7333 = vld [vmem:[%s6 + $0x3b0] sm:$0xff]
          %v7334 = vld [vmem:[%s6 + $0x3b8] sm:$0xff]
          %v7335 = vld [vmem:[%s6 + $0x3c0] sm:$0xff]
          %v7336 = vld [vmem:[%s6 + $0x3c8] sm:$0xff]
          %v7337 = vld [vmem:[%s6 + $0x3d0] sm:$0xff]
          %v7338 = vld [vmem:[%s6 + $0x3d8] sm:$0xff]
          %v7339 = vld [vmem:[%s6 + $0x3e0] sm:$0xff]
          %v7340 = vld [vmem:[%s6 + $0x3e8] sm:$0xff]
          %v7341 = vld [vmem:[%s6 + $0x3f0] sm:$0xff]
          %v7342 = vld [vmem:[%s6 + $0x3f8] sm:$0xff]
          %v7343 = vadd.f32 %v6960, %v7215
          %v7344 = vadd.f32 %v6962, %v7216
          %v7345 = vadd.f32 %v6964, %v7217
          %v7346 = vadd.f32 %v6966, %v7218
          %v7347 = vadd.f32 %v6968, %v7219
          %v7348 = vadd.f32 %v6970, %v7220
          %v7349 = vadd.f32 %v6972, %v7221
          %v7350 = vadd.f32 %v6974, %v7222
          %v7351 = vadd.f32 %v6976, %v7223
          %v7352 = vadd.f32 %v6978, %v7224
          %v7353 = vadd.f32 %v6980, %v7225
          %v7354 = vadd.f32 %v6982, %v7226
          %v7355 = vadd.f32 %v6984, %v7227
          %v7356 = vadd.f32 %v6986, %v7228
          %v7357 = vadd.f32 %v6988, %v7229
          %v7358 = vadd.f32 %v6990, %v7230
          %v7359 = vadd.f32 %v6992, %v7231
          %v7360 = vadd.f32 %v6994, %v7232
          %v7361 = vadd.f32 %v6996, %v7233
          %v7362 = vadd.f32 %v6998, %v7234
          %v7363 = vadd.f32 %v7000, %v7235
          %v7364 = vadd.f32 %v7002, %v7236
          %v7365 = vadd.f32 %v7004, %v7237
          %v7366 = vadd.f32 %v7006, %v7238
          %v7367 = vadd.f32 %v7008, %v7239
          %v7368 = vadd.f32 %v7010, %v7240
          %v7369 = vadd.f32 %v7012, %v7241
          %v7370 = vadd.f32 %v7014, %v7242
          %v7371 = vadd.f32 %v7016, %v7243
          %v7372 = vadd.f32 %v7018, %v7244
          %v7373 = vadd.f32 %v7020, %v7245
          %v7374 = vadd.f32 %v7022, %v7246
          %v7375 = vadd.f32 %v7024, %v7247
          %v7376 = vadd.f32 %v7026, %v7248
          %v7377 = vadd.f32 %v7028, %v7249
          %v7378 = vadd.f32 %v7030, %v7250
          %v7379 = vadd.f32 %v7032, %v7251
          %v7380 = vadd.f32 %v7034, %v7252
          %v7381 = vadd.f32 %v7036, %v7253
          %v7382 = vadd.f32 %v7038, %v7254
          %v7383 = vadd.f32 %v7040, %v7255
          %v7384 = vadd.f32 %v7042, %v7256
          %v7385 = vadd.f32 %v7044, %v7257
          %v7386 = vadd.f32 %v7046, %v7258
          %v7387 = vadd.f32 %v7048, %v7259
          %v7388 = vadd.f32 %v7050, %v7260
          %v7389 = vadd.f32 %v7052, %v7261
          %v7390 = vadd.f32 %v7054, %v7262
          %v7391 = vadd.f32 %v7056, %v7263
          %v7392 = vadd.f32 %v7058, %v7264
          %v7393 = vadd.f32 %v7060, %v7265
          %v7394 = vadd.f32 %v7062, %v7266
          %v7395 = vadd.f32 %v7064, %v7267
          %v7396 = vadd.f32 %v7066, %v7268
          %v7397 = vadd.f32 %v7068, %v7269
          %v7398 = vadd.f32 %v7070, %v7270
          %v7399 = vadd.f32 %v7072, %v7271
          %v7400 = vadd.f32 %v7074, %v7272
          %v7401 = vadd.f32 %v7076, %v7273
          %v7402 = vadd.f32 %v7078, %v7274
          %v7403 = vadd.f32 %v7080, %v7275
          %v7404 = vadd.f32 %v7082, %v7276
          %v7405 = vadd.f32 %v7084, %v7277
          %v7406 = vadd.f32 %v7086, %v7278
          %v7407 = vadd.f32 %v7088, %v7279
          %v7408 = vadd.f32 %v7090, %v7280
          %v7409 = vadd.f32 %v7092, %v7281
          %v7410 = vadd.f32 %v7094, %v7282
          %v7411 = vadd.f32 %v7096, %v7283
          %v7412 = vadd.f32 %v7098, %v7284
          %v7413 = vadd.f32 %v7100, %v7285
          %v7414 = vadd.f32 %v7102, %v7286
          %v7415 = vadd.f32 %v7104, %v7287
          %v7416 = vadd.f32 %v7106, %v7288
          %v7417 = vadd.f32 %v7108, %v7289
          %v7418 = vadd.f32 %v7110, %v7290
          %v7419 = vadd.f32 %v7112, %v7291
          %v7420 = vadd.f32 %v7114, %v7292
          %v7421 = vadd.f32 %v7116, %v7293
          %v7422 = vadd.f32 %v7118, %v7294
          %v7423 = vadd.f32 %v7120, %v7295
          %v7424 = vadd.f32 %v7122, %v7296
          %v7425 = vadd.f32 %v7124, %v7297
          %v7426 = vadd.f32 %v7126, %v7298
          %v7427 = vadd.f32 %v7128, %v7299
          %v7428 = vadd.f32 %v7130, %v7300
          %v7429 = vadd.f32 %v7132, %v7301
          %v7430 = vadd.f32 %v7134, %v7302
          %v7431 = vadd.f32 %v7136, %v7303
          %v7432 = vadd.f32 %v7138, %v7304
          %v7433 = vadd.f32 %v7140, %v7305
          %v7434 = vadd.f32 %v7142, %v7306
          %v7435 = vadd.f32 %v7144, %v7307
          %v7436 = vadd.f32 %v7146, %v7308
          %v7437 = vadd.f32 %v7148, %v7309
          %v7438 = vadd.f32 %v7150, %v7310
          %v7439 = vadd.f32 %v7152, %v7311
          %v7440 = vadd.f32 %v7154, %v7312
          %v7441 = vadd.f32 %v7156, %v7313
          %v7442 = vadd.f32 %v7158, %v7314
          %v7443 = vadd.f32 %v7160, %v7315
          %v7444 = vadd.f32 %v7162, %v7316
          %v7445 = vadd.f32 %v7164, %v7317
          %v7446 = vadd.f32 %v7166, %v7318
          %v7447 = vadd.f32 %v7168, %v7319
          %v7448 = vadd.f32 %v7170, %v7320
          %v7449 = vadd.f32 %v7172, %v7321
          %v7450 = vadd.f32 %v7174, %v7322
          %v7451 = vadd.f32 %v7176, %v7323
          %v7452 = vadd.f32 %v7178, %v7324
          %v7453 = vadd.f32 %v7180, %v7325
          %v7454 = vadd.f32 %v7182, %v7326
          %v7455 = vadd.f32 %v7184, %v7327
          %v7456 = vadd.f32 %v7186, %v7328
          %v7457 = vadd.f32 %v7188, %v7329
          %v7458 = vadd.f32 %v7190, %v7330
          %v7459 = vadd.f32 %v7192, %v7331
          %v7460 = vadd.f32 %v7194, %v7332
          %v7461 = vadd.f32 %v7196, %v7333
          %v7462 = vadd.f32 %v7198, %v7334
          %v7463 = vadd.f32 %v7200, %v7335
          %v7464 = vadd.f32 %v7202, %v7336
          %v7465 = vadd.f32 %v7204, %v7337
          %v7466 = vadd.f32 %v7206, %v7338
          %v7467 = vadd.f32 %v7208, %v7339
          %v7468 = vadd.f32 %v7210, %v7340
          %v7469 = vadd.f32 %v7212, %v7341
          %v7470 = vadd.f32 %v7214, %v7342
          %v7471 = vmax.f32 %v7343, 0.0
          %v7472 = vmax.f32 %v7344, 0.0
          %v7473 = vmax.f32 %v7345, 0.0
          %v7474 = vmax.f32 %v7346, 0.0
          %v7475 = vmax.f32 %v7347, 0.0
          %v7476 = vmax.f32 %v7348, 0.0
          %v7477 = vmax.f32 %v7349, 0.0
          %v7478 = vmax.f32 %v7350, 0.0
          %v7479 = vmax.f32 %v7351, 0.0
          %v7480 = vmax.f32 %v7352, 0.0
          %v7481 = vmax.f32 %v7353, 0.0
          %v7482 = vmax.f32 %v7354, 0.0
          %v7483 = vmax.f32 %v7355, 0.0
          %v7484 = vmax.f32 %v7356, 0.0
          %v7485 = vmax.f32 %v7357, 0.0
          %v7486 = vmax.f32 %v7358, 0.0
          %v7487 = vmax.f32 %v7359, 0.0
          %v7488 = vmax.f32 %v7360, 0.0
          %v7489 = vmax.f32 %v7361, 0.0
          %v7490 = vmax.f32 %v7362, 0.0
          %v7491 = vmax.f32 %v7363, 0.0
          %v7492 = vmax.f32 %v7364, 0.0
          %v7493 = vmax.f32 %v7365, 0.0
          %v7494 = vmax.f32 %v7366, 0.0
          %v7495 = vmax.f32 %v7367, 0.0
          %v7496 = vmax.f32 %v7368, 0.0
          %v7497 = vmax.f32 %v7369, 0.0
          %v7498 = vmax.f32 %v7370, 0.0
          %v7499 = vmax.f32 %v7371, 0.0
          %v7500 = vmax.f32 %v7372, 0.0
          %v7501 = vmax.f32 %v7373, 0.0
          %v7502 = vmax.f32 %v7374, 0.0
          %v7503 = vmax.f32 %v7375, 0.0
          %v7504 = vmax.f32 %v7376, 0.0
          %v7505 = vmax.f32 %v7377, 0.0
          %v7506 = vmax.f32 %v7378, 0.0
          %v7507 = vmax.f32 %v7379, 0.0
          %v7508 = vmax.f32 %v7380, 0.0
          %v7509 = vmax.f32 %v7381, 0.0
          %v7510 = vmax.f32 %v7382, 0.0
          %v7511 = vmax.f32 %v7383, 0.0
          %v7512 = vmax.f32 %v7384, 0.0
          %v7513 = vmax.f32 %v7385, 0.0
          %v7514 = vmax.f32 %v7386, 0.0
          %v7515 = vmax.f32 %v7387, 0.0
          %v7516 = vmax.f32 %v7388, 0.0
          %v7517 = vmax.f32 %v7389, 0.0
          %v7518 = vmax.f32 %v7390, 0.0
          %v7519 = vmax.f32 %v7391, 0.0
          %v7520 = vmax.f32 %v7392, 0.0
          %v7521 = vmax.f32 %v7393, 0.0
          %v7522 = vmax.f32 %v7394, 0.0
          %v7523 = vmax.f32 %v7395, 0.0
          %v7524 = vmax.f32 %v7396, 0.0
          %v7525 = vmax.f32 %v7397, 0.0
          %v7526 = vmax.f32 %v7398, 0.0
          %v7527 = vmax.f32 %v7399, 0.0
          %v7528 = vmax.f32 %v7400, 0.0
          %v7529 = vmax.f32 %v7401, 0.0
          %v7530 = vmax.f32 %v7402, 0.0
          %v7531 = vmax.f32 %v7403, 0.0
          %v7532 = vmax.f32 %v7404, 0.0
          %v7533 = vmax.f32 %v7405, 0.0
          %v7534 = vmax.f32 %v7406, 0.0
          %v7535 = vmax.f32 %v7407, 0.0
          %v7536 = vmax.f32 %v7408, 0.0
          %v7537 = vmax.f32 %v7409, 0.0
          %v7538 = vmax.f32 %v7410, 0.0
          %v7539 = vmax.f32 %v7411, 0.0
          %v7540 = vmax.f32 %v7412, 0.0
          %v7541 = vmax.f32 %v7413, 0.0
          %v7542 = vmax.f32 %v7414, 0.0
          %v7543 = vmax.f32 %v7415, 0.0
          %v7544 = vmax.f32 %v7416, 0.0
          %v7545 = vmax.f32 %v7417, 0.0
          %v7546 = vmax.f32 %v7418, 0.0
          %v7547 = vmax.f32 %v7419, 0.0
          %v7548 = vmax.f32 %v7420, 0.0
          %v7549 = vmax.f32 %v7421, 0.0
          %v7550 = vmax.f32 %v7422, 0.0
          %v7551 = vmax.f32 %v7423, 0.0
          %v7552 = vmax.f32 %v7424, 0.0
          %v7553 = vmax.f32 %v7425, 0.0
          %v7554 = vmax.f32 %v7426, 0.0
          %v7555 = vmax.f32 %v7427, 0.0
          %v7556 = vmax.f32 %v7428, 0.0
          %v7557 = vmax.f32 %v7429, 0.0
          %v7558 = vmax.f32 %v7430, 0.0
          %v7559 = vmax.f32 %v7431, 0.0
          %v7560 = vmax.f32 %v7432, 0.0
          %v7561 = vmax.f32 %v7433, 0.0
          %v7562 = vmax.f32 %v7434, 0.0
          %v7563 = vmax.f32 %v7435, 0.0
          %v7564 = vmax.f32 %v7436, 0.0
          %v7565 = vmax.f32 %v7437, 0.0
          %v7566 = vmax.f32 %v7438, 0.0
          %v7567 = vmax.f32 %v7439, 0.0
          %v7568 = vmax.f32 %v7440, 0.0
          %v7569 = vmax.f32 %v7441, 0.0
          %v7570 = vmax.f32 %v7442, 0.0
          %v7571 = vmax.f32 %v7443, 0.0
          %v7572 = vmax.f32 %v7444, 0.0
          %v7573 = vmax.f32 %v7445, 0.0
          %v7574 = vmax.f32 %v7446, 0.0
          %v7575 = vmax.f32 %v7447, 0.0
          %v7576 = vmax.f32 %v7448, 0.0
          %v7577 = vmax.f32 %v7449, 0.0
          %v7578 = vmax.f32 %v7450, 0.0
          %v7579 = vmax.f32 %v7451, 0.0
          %v7580 = vmax.f32 %v7452, 0.0
          %v7581 = vmax.f32 %v7453, 0.0
          %v7582 = vmax.f32 %v7454, 0.0
          %v7583 = vmax.f32 %v7455, 0.0
          %v7584 = vmax.f32 %v7456, 0.0
          %v7585 = vmax.f32 %v7457, 0.0
          %v7586 = vmax.f32 %v7458, 0.0
          %v7587 = vmax.f32 %v7459, 0.0
          %v7588 = vmax.f32 %v7460, 0.0
          %v7589 = vmax.f32 %v7461, 0.0
          %v7590 = vmax.f32 %v7462, 0.0
          %v7591 = vmax.f32 %v7463, 0.0
          %v7592 = vmax.f32 %v7464, 0.0
          %v7593 = vmax.f32 %v7465, 0.0
          %v7594 = vmax.f32 %v7466, 0.0
          %v7595 = vmax.f32 %v7467, 0.0
          %v7596 = vmax.f32 %v7468, 0.0
          %v7597 = vmax.f32 %v7469, 0.0
          %v7598 = vmax.f32 %v7470, 0.0
          %v7599 = vpack.c.bf16 %v7472, %v7471
          %v7600 = vpack.c.bf16 %v7474, %v7473
          %v7601 = vpack.c.bf16 %v7476, %v7475
          %v7602 = vpack.c.bf16 %v7478, %v7477
          %v7603 = vpack.c.bf16 %v7480, %v7479
          %v7604 = vpack.c.bf16 %v7482, %v7481
          %v7605 = vpack.c.bf16 %v7484, %v7483
          %v7606 = vpack.c.bf16 %v7486, %v7485
          %v7607 = vpack.c.bf16 %v7488, %v7487
          %v7608 = vpack.c.bf16 %v7490, %v7489
          %v7609 = vpack.c.bf16 %v7492, %v7491
          %v7610 = vpack.c.bf16 %v7494, %v7493
          %v7611 = vpack.c.bf16 %v7496, %v7495
          %v7612 = vpack.c.bf16 %v7498, %v7497
          %v7613 = vpack.c.bf16 %v7500, %v7499
          %v7614 = vpack.c.bf16 %v7502, %v7501
          %v7615 = vpack.c.bf16 %v7504, %v7503
          %v7616 = vpack.c.bf16 %v7506, %v7505
          %v7617 = vpack.c.bf16 %v7508, %v7507
          %v7618 = vpack.c.bf16 %v7510, %v7509
          %v7619 = vpack.c.bf16 %v7512, %v7511
          %v7620 = vpack.c.bf16 %v7514, %v7513
          %v7621 = vpack.c.bf16 %v7516, %v7515
          %v7622 = vpack.c.bf16 %v7518, %v7517
          %v7623 = vpack.c.bf16 %v7520, %v7519
          %v7624 = vpack.c.bf16 %v7522, %v7521
          %v7625 = vpack.c.bf16 %v7524, %v7523
          %v7626 = vpack.c.bf16 %v7526, %v7525
          %v7627 = vpack.c.bf16 %v7528, %v7527
          %v7628 = vpack.c.bf16 %v7530, %v7529
          %v7629 = vpack.c.bf16 %v7532, %v7531
          %v7630 = vpack.c.bf16 %v7534, %v7533
          %v7631 = vpack.c.bf16 %v7536, %v7535
          %v7632 = vpack.c.bf16 %v7538, %v7537
          %v7633 = vpack.c.bf16 %v7540, %v7539
          %v7634 = vpack.c.bf16 %v7542, %v7541
          %v7635 = vpack.c.bf16 %v7544, %v7543
          %v7636 = vpack.c.bf16 %v7546, %v7545
          %v7637 = vpack.c.bf16 %v7548, %v7547
          %v7638 = vpack.c.bf16 %v7550, %v7549
          %v7639 = vpack.c.bf16 %v7552, %v7551
          %v7640 = vpack.c.bf16 %v7554, %v7553
          %v7641 = vpack.c.bf16 %v7556, %v7555
          %v7642 = vpack.c.bf16 %v7558, %v7557
          %v7643 = vpack.c.bf16 %v7560, %v7559
          %v7644 = vpack.c.bf16 %v7562, %v7561
          %v7645 = vpack.c.bf16 %v7564, %v7563
          %v7646 = vpack.c.bf16 %v7566, %v7565
          %v7647 = vpack.c.bf16 %v7568, %v7567
          %v7648 = vpack.c.bf16 %v7570, %v7569
          %v7649 = vpack.c.bf16 %v7572, %v7571
          %v7650 = vpack.c.bf16 %v7574, %v7573
          %v7651 = vpack.c.bf16 %v7576, %v7575
          %v7652 = vpack.c.bf16 %v7578, %v7577
          %v7653 = vpack.c.bf16 %v7580, %v7579
          %v7654 = vpack.c.bf16 %v7582, %v7581
          %v7655 = vpack.c.bf16 %v7584, %v7583
          %v7656 = vpack.c.bf16 %v7586, %v7585
          %v7657 = vpack.c.bf16 %v7588, %v7587
          %v7658 = vpack.c.bf16 %v7590, %v7589
          %v7659 = vpack.c.bf16 %v7592, %v7591
          %v7660 = vpack.c.bf16 %v7594, %v7593
          %v7661 = vpack.c.bf16 %v7596, %v7595
          %v7662 = vpack.c.bf16 %v7598, %v7597
          %v7663 = vld [vmem:[%s7] sm:$0xff]
          %v7664 = vld [vmem:[%s7 + $0x8] sm:$0xff]
          %v7665 = vld [vmem:[%s7 + $0x10] sm:$0xff]
          %v7666 = vld [vmem:[%s7 + $0x18] sm:$0xff]
          %v7667 = vld [vmem:[%s7 + $0x20] sm:$0xff]
          %v7668 = vld [vmem:[%s7 + $0x28] sm:$0xff]
          %v7669 = vld [vmem:[%s7 + $0x30] sm:$0xff]
          %v7670 = vld [vmem:[%s7 + $0x38] sm:$0xff]
          %v7671 = vld [vmem:[%s7 + $0x40] sm:$0xff]
          %v7672 = vld [vmem:[%s7 + $0x48] sm:$0xff]
          %v7673 = vld [vmem:[%s7 + $0x50] sm:$0xff]
          %v7674 = vld [vmem:[%s7 + $0x58] sm:$0xff]
          %v7675 = vld [vmem:[%s7 + $0x60] sm:$0xff]
          %v7676 = vld [vmem:[%s7 + $0x68] sm:$0xff]
          %v7677 = vld [vmem:[%s7 + $0x70] sm:$0xff]
          %v7678 = vld [vmem:[%s7 + $0x78] sm:$0xff]
          %v7679 = vld [vmem:[%s7 + $0x80] sm:$0xff]
          %v7680 = vld [vmem:[%s7 + $0x88] sm:$0xff]
          %v7681 = vld [vmem:[%s7 + $0x90] sm:$0xff]
          %v7682 = vld [vmem:[%s7 + $0x98] sm:$0xff]
          %v7683 = vld [vmem:[%s7 + $0xa0] sm:$0xff]
          %v7684 = vld [vmem:[%s7 + $0xa8] sm:$0xff]
          %v7685 = vld [vmem:[%s7 + $0xb0] sm:$0xff]
          %v7686 = vld [vmem:[%s7 + $0xb8] sm:$0xff]
          %v7687 = vld [vmem:[%s7 + $0xc0] sm:$0xff]
          %v7688 = vld [vmem:[%s7 + $0xc8] sm:$0xff]
          %v7689 = vld [vmem:[%s7 + $0xd0] sm:$0xff]
          %v7690 = vld [vmem:[%s7 + $0xd8] sm:$0xff]
          %v7691 = vld [vmem:[%s7 + $0xe0] sm:$0xff]
          %v7692 = vld [vmem:[%s7 + $0xe8] sm:$0xff]
          %v7693 = vld [vmem:[%s7 + $0xf0] sm:$0xff]
          %v7694 = vld [vmem:[%s7 + $0xf8] sm:$0xff]
          %v7695 = vld [vmem:[%s7 + $0x100] sm:$0xff]
          %v7696 = vld [vmem:[%s7 + $0x108] sm:$0xff]
          %v7697 = vld [vmem:[%s7 + $0x110] sm:$0xff]
          %v7698 = vld [vmem:[%s7 + $0x118] sm:$0xff]
          %v7699 = vld [vmem:[%s7 + $0x120] sm:$0xff]
          %v7700 = vld [vmem:[%s7 + $0x128] sm:$0xff]
          %v7701 = vld [vmem:[%s7 + $0x130] sm:$0xff]
          %v7702 = vld [vmem:[%s7 + $0x138] sm:$0xff]
          %v7703 = vld [vmem:[%s7 + $0x140] sm:$0xff]
          %v7704 = vld [vmem:[%s7 + $0x148] sm:$0xff]
          %v7705 = vld [vmem:[%s7 + $0x150] sm:$0xff]
          %v7706 = vld [vmem:[%s7 + $0x158] sm:$0xff]
          %v7707 = vld [vmem:[%s7 + $0x160] sm:$0xff]
          %v7708 = vld [vmem:[%s7 + $0x168] sm:$0xff]
          %v7709 = vld [vmem:[%s7 + $0x170] sm:$0xff]
          %v7710 = vld [vmem:[%s7 + $0x178] sm:$0xff]
          %v7711 = vld [vmem:[%s7 + $0x180] sm:$0xff]
          %v7712 = vld [vmem:[%s7 + $0x188] sm:$0xff]
          %v7713 = vld [vmem:[%s7 + $0x190] sm:$0xff]
          %v7714 = vld [vmem:[%s7 + $0x198] sm:$0xff]
          %v7715 = vld [vmem:[%s7 + $0x1a0] sm:$0xff]
          %v7716 = vld [vmem:[%s7 + $0x1a8] sm:$0xff]
          %v7717 = vld [vmem:[%s7 + $0x1b0] sm:$0xff]
          %v7718 = vld [vmem:[%s7 + $0x1b8] sm:$0xff]
          %v7719 = vld [vmem:[%s7 + $0x1c0] sm:$0xff]
          %v7720 = vld [vmem:[%s7 + $0x1c8] sm:$0xff]
          %v7721 = vld [vmem:[%s7 + $0x1d0] sm:$0xff]
          %v7722 = vld [vmem:[%s7 + $0x1d8] sm:$0xff]
          %v7723 = vld [vmem:[%s7 + $0x1e0] sm:$0xff]
          %v7724 = vld [vmem:[%s7 + $0x1e8] sm:$0xff]
          %v7725 = vld [vmem:[%s7 + $0x1f0] sm:$0xff]
          %v7726 = vld [vmem:[%s7 + $0x1f8] sm:$0xff]
          %v7727 = vld [vmem:[%s7 + $0x200] sm:$0xff]
          %v7728 = vld [vmem:[%s7 + $0x208] sm:$0xff]
          %v7729 = vld [vmem:[%s7 + $0x210] sm:$0xff]
          %v7730 = vld [vmem:[%s7 + $0x218] sm:$0xff]
          %v7731 = vld [vmem:[%s7 + $0x220] sm:$0xff]
          %v7732 = vld [vmem:[%s7 + $0x228] sm:$0xff]
          %v7733 = vld [vmem:[%s7 + $0x230] sm:$0xff]
          %v7734 = vld [vmem:[%s7 + $0x238] sm:$0xff]
          %v7735 = vld [vmem:[%s7 + $0x240] sm:$0xff]
          %v7736 = vld [vmem:[%s7 + $0x248] sm:$0xff]
          %v7737 = vld [vmem:[%s7 + $0x250] sm:$0xff]
          %v7738 = vld [vmem:[%s7 + $0x258] sm:$0xff]
          %v7739 = vld [vmem:[%s7 + $0x260] sm:$0xff]
          %v7740 = vld [vmem:[%s7 + $0x268] sm:$0xff]
          %v7741 = vld [vmem:[%s7 + $0x270] sm:$0xff]
          %v7742 = vld [vmem:[%s7 + $0x278] sm:$0xff]
          %v7743 = vld [vmem:[%s7 + $0x280] sm:$0xff]
          %v7744 = vld [vmem:[%s7 + $0x288] sm:$0xff]
          %v7745 = vld [vmem:[%s7 + $0x290] sm:$0xff]
          %v7746 = vld [vmem:[%s7 + $0x298] sm:$0xff]
          %v7747 = vld [vmem:[%s7 + $0x2a0] sm:$0xff]
          %v7748 = vld [vmem:[%s7 + $0x2a8] sm:$0xff]
          %v7749 = vld [vmem:[%s7 + $0x2b0] sm:$0xff]
          %v7750 = vld [vmem:[%s7 + $0x2b8] sm:$0xff]
          %v7751 = vld [vmem:[%s7 + $0x2c0] sm:$0xff]
          %v7752 = vld [vmem:[%s7 + $0x2c8] sm:$0xff]
          %v7753 = vld [vmem:[%s7 + $0x2d0] sm:$0xff]
          %v7754 = vld [vmem:[%s7 + $0x2d8] sm:$0xff]
          %v7755 = vld [vmem:[%s7 + $0x2e0] sm:$0xff]
          %v7756 = vld [vmem:[%s7 + $0x2e8] sm:$0xff]
          %v7757 = vld [vmem:[%s7 + $0x2f0] sm:$0xff]
          %v7758 = vld [vmem:[%s7 + $0x2f8] sm:$0xff]
          %v7759 = vld [vmem:[%s7 + $0x300] sm:$0xff]
          %v7760 = vld [vmem:[%s7 + $0x308] sm:$0xff]
          %v7761 = vld [vmem:[%s7 + $0x310] sm:$0xff]
          %v7762 = vld [vmem:[%s7 + $0x318] sm:$0xff]
          %v7763 = vld [vmem:[%s7 + $0x320] sm:$0xff]
          %v7764 = vld [vmem:[%s7 + $0x328] sm:$0xff]
          %v7765 = vld [vmem:[%s7 + $0x330] sm:$0xff]
          %v7766 = vld [vmem:[%s7 + $0x338] sm:$0xff]
          %v7767 = vld [vmem:[%s7 + $0x340] sm:$0xff]
          %v7768 = vld [vmem:[%s7 + $0x348] sm:$0xff]
          %v7769 = vld [vmem:[%s7 + $0x350] sm:$0xff]
          %v7770 = vld [vmem:[%s7 + $0x358] sm:$0xff]
          %v7771 = vld [vmem:[%s7 + $0x360] sm:$0xff]
          %v7772 = vld [vmem:[%s7 + $0x368] sm:$0xff]
          %v7773 = vld [vmem:[%s7 + $0x370] sm:$0xff]
          %v7774 = vld [vmem:[%s7 + $0x378] sm:$0xff]
          %v7775 = vld [vmem:[%s7 + $0x380] sm:$0xff]
          %v7776 = vld [vmem:[%s7 + $0x388] sm:$0xff]
          %v7777 = vld [vmem:[%s7 + $0x390] sm:$0xff]
          %v7778 = vld [vmem:[%s7 + $0x398] sm:$0xff]
          %v7779 = vld [vmem:[%s7 + $0x3a0] sm:$0xff]
          %v7780 = vld [vmem:[%s7 + $0x3a8] sm:$0xff]
          %v7781 = vld [vmem:[%s7 + $0x3b0] sm:$0xff]
          %v7782 = vld [vmem:[%s7 + $0x3b8] sm:$0xff]
          %v7783 = vld [vmem:[%s7 + $0x3c0] sm:$0xff]
          %v7784 = vld [vmem:[%s7 + $0x3c8] sm:$0xff]
          %v7785 = vld [vmem:[%s7 + $0x3d0] sm:$0xff]
          %v7786 = vld [vmem:[%s7 + $0x3d8] sm:$0xff]
          %v7787 = vld [vmem:[%s7 + $0x3e0] sm:$0xff]
          %v7788 = vld [vmem:[%s7 + $0x3e8] sm:$0xff]
          %v7789 = vld [vmem:[%s7 + $0x3f0] sm:$0xff]
          %v7790 = vld [vmem:[%s7 + $0x3f8] sm:$0xff]
          %v7791 = vld [vmem:[%s7 + $0x400] sm:$0xff]
          %v7792 = vld [vmem:[%s7 + $0x408] sm:$0xff]
          %v7793 = vld [vmem:[%s7 + $0x410] sm:$0xff]
          %v7794 = vld [vmem:[%s7 + $0x418] sm:$0xff]
          %v7795 = vld [vmem:[%s7 + $0x420] sm:$0xff]
          %v7796 = vld [vmem:[%s7 + $0x428] sm:$0xff]
          %v7797 = vld [vmem:[%s7 + $0x430] sm:$0xff]
          %v7798 = vld [vmem:[%s7 + $0x438] sm:$0xff]
          %v7799 = vld [vmem:[%s7 + $0x440] sm:$0xff]
          %v7800 = vld [vmem:[%s7 + $0x448] sm:$0xff]
          %v7801 = vld [vmem:[%s7 + $0x450] sm:$0xff]
          %v7802 = vld [vmem:[%s7 + $0x458] sm:$0xff]
          %v7803 = vld [vmem:[%s7 + $0x460] sm:$0xff]
          %v7804 = vld [vmem:[%s7 + $0x468] sm:$0xff]
          %v7805 = vld [vmem:[%s7 + $0x470] sm:$0xff]
          %v7806 = vld [vmem:[%s7 + $0x478] sm:$0xff]
          %v7807 = vld [vmem:[%s7 + $0x480] sm:$0xff]
          %v7808 = vld [vmem:[%s7 + $0x488] sm:$0xff]
          %v7809 = vld [vmem:[%s7 + $0x490] sm:$0xff]
          %v7810 = vld [vmem:[%s7 + $0x498] sm:$0xff]
          %v7811 = vld [vmem:[%s7 + $0x4a0] sm:$0xff]
          %v7812 = vld [vmem:[%s7 + $0x4a8] sm:$0xff]
          %v7813 = vld [vmem:[%s7 + $0x4b0] sm:$0xff]
          %v7814 = vld [vmem:[%s7 + $0x4b8] sm:$0xff]
          %v7815 = vld [vmem:[%s7 + $0x4c0] sm:$0xff]
          %v7816 = vld [vmem:[%s7 + $0x4c8] sm:$0xff]
          %v7817 = vld [vmem:[%s7 + $0x4d0] sm:$0xff]
          %v7818 = vld [vmem:[%s7 + $0x4d8] sm:$0xff]
          %v7819 = vld [vmem:[%s7 + $0x4e0] sm:$0xff]
          %v7820 = vld [vmem:[%s7 + $0x4e8] sm:$0xff]
          %v7821 = vld [vmem:[%s7 + $0x4f0] sm:$0xff]
          %v7822 = vld [vmem:[%s7 + $0x4f8] sm:$0xff]
          %v7823 = vld [vmem:[%s7 + $0x500] sm:$0xff]
          %v7824 = vld [vmem:[%s7 + $0x508] sm:$0xff]
          %v7825 = vld [vmem:[%s7 + $0x510] sm:$0xff]
          %v7826 = vld [vmem:[%s7 + $0x518] sm:$0xff]
          %v7827 = vld [vmem:[%s7 + $0x520] sm:$0xff]
          %v7828 = vld [vmem:[%s7 + $0x528] sm:$0xff]
          %v7829 = vld [vmem:[%s7 + $0x530] sm:$0xff]
          %v7830 = vld [vmem:[%s7 + $0x538] sm:$0xff]
          %v7831 = vld [vmem:[%s7 + $0x540] sm:$0xff]
          %v7832 = vld [vmem:[%s7 + $0x548] sm:$0xff]
          %v7833 = vld [vmem:[%s7 + $0x550] sm:$0xff]
          %v7834 = vld [vmem:[%s7 + $0x558] sm:$0xff]
          %v7835 = vld [vmem:[%s7 + $0x560] sm:$0xff]
          %v7836 = vld [vmem:[%s7 + $0x568] sm:$0xff]
          %v7837 = vld [vmem:[%s7 + $0x570] sm:$0xff]
          %v7838 = vld [vmem:[%s7 + $0x578] sm:$0xff]
          %v7839 = vld [vmem:[%s7 + $0x580] sm:$0xff]
          %v7840 = vld [vmem:[%s7 + $0x588] sm:$0xff]
          %v7841 = vld [vmem:[%s7 + $0x590] sm:$0xff]
          %v7842 = vld [vmem:[%s7 + $0x598] sm:$0xff]
          %v7843 = vld [vmem:[%s7 + $0x5a0] sm:$0xff]
          %v7844 = vld [vmem:[%s7 + $0x5a8] sm:$0xff]
          %v7845 = vld [vmem:[%s7 + $0x5b0] sm:$0xff]
          %v7846 = vld [vmem:[%s7 + $0x5b8] sm:$0xff]
          %v7847 = vld [vmem:[%s7 + $0x5c0] sm:$0xff]
          %v7848 = vld [vmem:[%s7 + $0x5c8] sm:$0xff]
          %v7849 = vld [vmem:[%s7 + $0x5d0] sm:$0xff]
          %v7850 = vld [vmem:[%s7 + $0x5d8] sm:$0xff]
          %v7851 = vld [vmem:[%s7 + $0x5e0] sm:$0xff]
          %v7852 = vld [vmem:[%s7 + $0x5e8] sm:$0xff]
          %v7853 = vld [vmem:[%s7 + $0x5f0] sm:$0xff]
          %v7854 = vld [vmem:[%s7 + $0x5f8] sm:$0xff]
          %v7855 = vld [vmem:[%s7 + $0x600] sm:$0xff]
          %v7856 = vld [vmem:[%s7 + $0x608] sm:$0xff]
          %v7857 = vld [vmem:[%s7 + $0x610] sm:$0xff]
          %v7858 = vld [vmem:[%s7 + $0x618] sm:$0xff]
          %v7859 = vld [vmem:[%s7 + $0x620] sm:$0xff]
          %v7860 = vld [vmem:[%s7 + $0x628] sm:$0xff]
          %v7861 = vld [vmem:[%s7 + $0x630] sm:$0xff]
          %v7862 = vld [vmem:[%s7 + $0x638] sm:$0xff]
          %v7863 = vld [vmem:[%s7 + $0x640] sm:$0xff]
          %v7864 = vld [vmem:[%s7 + $0x648] sm:$0xff]
          %v7865 = vld [vmem:[%s7 + $0x650] sm:$0xff]
          %v7866 = vld [vmem:[%s7 + $0x658] sm:$0xff]
          %v7867 = vld [vmem:[%s7 + $0x660] sm:$0xff]
          %v7868 = vld [vmem:[%s7 + $0x668] sm:$0xff]
          %v7869 = vld [vmem:[%s7 + $0x670] sm:$0xff]
          %v7870 = vld [vmem:[%s7 + $0x678] sm:$0xff]
          %v7871 = vld [vmem:[%s7 + $0x680] sm:$0xff]
          %v7872 = vld [vmem:[%s7 + $0x688] sm:$0xff]
          %v7873 = vld [vmem:[%s7 + $0x690] sm:$0xff]
          %v7874 = vld [vmem:[%s7 + $0x698] sm:$0xff]
          %v7875 = vld [vmem:[%s7 + $0x6a0] sm:$0xff]
          %v7876 = vld [vmem:[%s7 + $0x6a8] sm:$0xff]
          %v7877 = vld [vmem:[%s7 + $0x6b0] sm:$0xff]
          %v7878 = vld [vmem:[%s7 + $0x6b8] sm:$0xff]
          %v7879 = vld [vmem:[%s7 + $0x6c0] sm:$0xff]
          %v7880 = vld [vmem:[%s7 + $0x6c8] sm:$0xff]
          %v7881 = vld [vmem:[%s7 + $0x6d0] sm:$0xff]
          %v7882 = vld [vmem:[%s7 + $0x6d8] sm:$0xff]
          %v7883 = vld [vmem:[%s7 + $0x6e0] sm:$0xff]
          %v7884 = vld [vmem:[%s7 + $0x6e8] sm:$0xff]
          %v7885 = vld [vmem:[%s7 + $0x6f0] sm:$0xff]
          %v7886 = vld [vmem:[%s7 + $0x6f8] sm:$0xff]
          %v7887 = vld [vmem:[%s7 + $0x700] sm:$0xff]
          %v7888 = vld [vmem:[%s7 + $0x708] sm:$0xff]
          %v7889 = vld [vmem:[%s7 + $0x710] sm:$0xff]
          %v7890 = vld [vmem:[%s7 + $0x718] sm:$0xff]
          %v7891 = vld [vmem:[%s7 + $0x720] sm:$0xff]
          %v7892 = vld [vmem:[%s7 + $0x728] sm:$0xff]
          %v7893 = vld [vmem:[%s7 + $0x730] sm:$0xff]
          %v7894 = vld [vmem:[%s7 + $0x738] sm:$0xff]
          %v7895 = vld [vmem:[%s7 + $0x740] sm:$0xff]
          %v7896 = vld [vmem:[%s7 + $0x748] sm:$0xff]
          %v7897 = vld [vmem:[%s7 + $0x750] sm:$0xff]
          %v7898 = vld [vmem:[%s7 + $0x758] sm:$0xff]
          %v7899 = vld [vmem:[%s7 + $0x760] sm:$0xff]
          %v7900 = vld [vmem:[%s7 + $0x768] sm:$0xff]
          %v7901 = vld [vmem:[%s7 + $0x770] sm:$0xff]
          %v7902 = vld [vmem:[%s7 + $0x778] sm:$0xff]
          %v7903 = vld [vmem:[%s7 + $0x780] sm:$0xff]
          %v7904 = vld [vmem:[%s7 + $0x788] sm:$0xff]
          %v7905 = vld [vmem:[%s7 + $0x790] sm:$0xff]
          %v7906 = vld [vmem:[%s7 + $0x798] sm:$0xff]
          %v7907 = vld [vmem:[%s7 + $0x7a0] sm:$0xff]
          %v7908 = vld [vmem:[%s7 + $0x7a8] sm:$0xff]
          %v7909 = vld [vmem:[%s7 + $0x7b0] sm:$0xff]
          %v7910 = vld [vmem:[%s7 + $0x7b8] sm:$0xff]
          %v7911 = vld [vmem:[%s7 + $0x7c0] sm:$0xff]
          %v7912 = vld [vmem:[%s7 + $0x7c8] sm:$0xff]
          %v7913 = vld [vmem:[%s7 + $0x7d0] sm:$0xff]
          %v7914 = vld [vmem:[%s7 + $0x7d8] sm:$0xff]
          %v7915 = vld [vmem:[%s7 + $0x7e0] sm:$0xff]
          %v7916 = vld [vmem:[%s7 + $0x7e8] sm:$0xff]
          %v7917 = vld [vmem:[%s7 + $0x7f0] sm:$0xff]
          %v7918 = vld [vmem:[%s7 + $0x7f8] sm:$0xff]
          %v7919 = vld [vmem:[%s8] sm:$0xff]
          %v7920 = vld [vmem:[%s8 + $0x8] sm:$0xff]
          %v7921 = vld [vmem:[%s8 + $0x10] sm:$0xff]
          %v7922 = vld [vmem:[%s8 + $0x18] sm:$0xff]
          %v7923 = vld [vmem:[%s8 + $0x20] sm:$0xff]
          %v7924 = vld [vmem:[%s8 + $0x28] sm:$0xff]
          %v7925 = vld [vmem:[%s8 + $0x30] sm:$0xff]
          %v7926 = vld [vmem:[%s8 + $0x38] sm:$0xff]
          %v7927 = vld [vmem:[%s8 + $0x40] sm:$0xff]
          %v7928 = vld [vmem:[%s8 + $0x48] sm:$0xff]
          %v7929 = vld [vmem:[%s8 + $0x50] sm:$0xff]
          %v7930 = vld [vmem:[%s8 + $0x58] sm:$0xff]
          %v7931 = vld [vmem:[%s8 + $0x60] sm:$0xff]
          %v7932 = vld [vmem:[%s8 + $0x68] sm:$0xff]
          %v7933 = vld [vmem:[%s8 + $0x70] sm:$0xff]
          %v7934 = vld [vmem:[%s8 + $0x78] sm:$0xff]
          %v7935 = vld [vmem:[%s8 + $0x80] sm:$0xff]
          %v7936 = vld [vmem:[%s8 + $0x88] sm:$0xff]
          %v7937 = vld [vmem:[%s8 + $0x90] sm:$0xff]
          %v7938 = vld [vmem:[%s8 + $0x98] sm:$0xff]
          %v7939 = vld [vmem:[%s8 + $0xa0] sm:$0xff]
          %v7940 = vld [vmem:[%s8 + $0xa8] sm:$0xff]
          %v7941 = vld [vmem:[%s8 + $0xb0] sm:$0xff]
          %v7942 = vld [vmem:[%s8 + $0xb8] sm:$0xff]
          %v7943 = vld [vmem:[%s8 + $0xc0] sm:$0xff]
          %v7944 = vld [vmem:[%s8 + $0xc8] sm:$0xff]
          %v7945 = vld [vmem:[%s8 + $0xd0] sm:$0xff]
          %v7946 = vld [vmem:[%s8 + $0xd8] sm:$0xff]
          %v7947 = vld [vmem:[%s8 + $0xe0] sm:$0xff]
          %v7948 = vld [vmem:[%s8 + $0xe8] sm:$0xff]
          %v7949 = vld [vmem:[%s8 + $0xf0] sm:$0xff]
          %v7950 = vld [vmem:[%s8 + $0xf8] sm:$0xff]
          %v7951 = vld [vmem:[%s8 + $0x100] sm:$0xff]
          %v7952 = vld [vmem:[%s8 + $0x108] sm:$0xff]
          %v7953 = vld [vmem:[%s8 + $0x110] sm:$0xff]
          %v7954 = vld [vmem:[%s8 + $0x118] sm:$0xff]
          %v7955 = vld [vmem:[%s8 + $0x120] sm:$0xff]
          %v7956 = vld [vmem:[%s8 + $0x128] sm:$0xff]
          %v7957 = vld [vmem:[%s8 + $0x130] sm:$0xff]
          %v7958 = vld [vmem:[%s8 + $0x138] sm:$0xff]
          %v7959 = vld [vmem:[%s8 + $0x140] sm:$0xff]
          %v7960 = vld [vmem:[%s8 + $0x148] sm:$0xff]
          %v7961 = vld [vmem:[%s8 + $0x150] sm:$0xff]
          %v7962 = vld [vmem:[%s8 + $0x158] sm:$0xff]
          %v7963 = vld [vmem:[%s8 + $0x160] sm:$0xff]
          %v7964 = vld [vmem:[%s8 + $0x168] sm:$0xff]
          %v7965 = vld [vmem:[%s8 + $0x170] sm:$0xff]
          %v7966 = vld [vmem:[%s8 + $0x178] sm:$0xff]
          %v7967 = vld [vmem:[%s8 + $0x180] sm:$0xff]
          %v7968 = vld [vmem:[%s8 + $0x188] sm:$0xff]
          %v7969 = vld [vmem:[%s8 + $0x190] sm:$0xff]
          %v7970 = vld [vmem:[%s8 + $0x198] sm:$0xff]
          %v7971 = vld [vmem:[%s8 + $0x1a0] sm:$0xff]
          %v7972 = vld [vmem:[%s8 + $0x1a8] sm:$0xff]
          %v7973 = vld [vmem:[%s8 + $0x1b0] sm:$0xff]
          %v7974 = vld [vmem:[%s8 + $0x1b8] sm:$0xff]
          %v7975 = vld [vmem:[%s8 + $0x1c0] sm:$0xff]
          %v7976 = vld [vmem:[%s8 + $0x1c8] sm:$0xff]
          %v7977 = vld [vmem:[%s8 + $0x1d0] sm:$0xff]
          %v7978 = vld [vmem:[%s8 + $0x1d8] sm:$0xff]
          %v7979 = vld [vmem:[%s8 + $0x1e0] sm:$0xff]
          %v7980 = vld [vmem:[%s8 + $0x1e8] sm:$0xff]
          %v7981 = vld [vmem:[%s8 + $0x1f0] sm:$0xff]
          %v7982 = vld [vmem:[%s8 + $0x1f8] sm:$0xff]
          %v8239 = vunpack.c.l.b16 %v7663
          %v8240 = vunpack.c.h.b16 %v7663
          %v8241 = vunpack.c.l.b16 %v7664
          %v8242 = vunpack.c.h.b16 %v7664
          %v8243 = vunpack.c.l.b16 %v7665
          %v8244 = vunpack.c.h.b16 %v7665
          %v8245 = vunpack.c.l.b16 %v7666
          %v8246 = vunpack.c.h.b16 %v7666
          %v8247 = vunpack.c.l.b16 %v7667
          %v8248 = vunpack.c.h.b16 %v7667
          %v8249 = vunpack.c.l.b16 %v7668
          %v8250 = vunpack.c.h.b16 %v7668
          %v8251 = vunpack.c.l.b16 %v7669
          %v8252 = vunpack.c.h.b16 %v7669
          %v8253 = vunpack.c.l.b16 %v7670
          %v8254 = vunpack.c.h.b16 %v7670
          %v8255 = vunpack.c.l.b16 %v7671
          %v8256 = vunpack.c.h.b16 %v7671
          %v8257 = vunpack.c.l.b16 %v7672
          %v8258 = vunpack.c.h.b16 %v7672
          %v8259 = vunpack.c.l.b16 %v7673
          %v8260 = vunpack.c.h.b16 %v7673
          %v8261 = vunpack.c.l.b16 %v7674
          %v8262 = vunpack.c.h.b16 %v7674
          %v8263 = vunpack.c.l.b16 %v7675
          %v8264 = vunpack.c.h.b16 %v7675
          %v8265 = vunpack.c.l.b16 %v7676
          %v8266 = vunpack.c.h.b16 %v7676
          %v8267 = vunpack.c.l.b16 %v7677
          %v8268 = vunpack.c.h.b16 %v7677
          %v8269 = vunpack.c.l.b16 %v7678
          %v8270 = vunpack.c.h.b16 %v7678
          %v8271 = vunpack.c.l.b16 %v7679
          %v8272 = vunpack.c.h.b16 %v7679
          %v8273 = vunpack.c.l.b16 %v7680
          %v8274 = vunpack.c.h.b16 %v7680
          %v8275 = vunpack.c.l.b16 %v7681
          %v8276 = vunpack.c.h.b16 %v7681
          %v8277 = vunpack.c.l.b16 %v7682
          %v8278 = vunpack.c.h.b16 %v7682
          %v8279 = vunpack.c.l.b16 %v7683
          %v8280 = vunpack.c.h.b16 %v7683
          %v8281 = vunpack.c.l.b16 %v7684
          %v8282 = vunpack.c.h.b16 %v7684
          %v8283 = vunpack.c.l.b16 %v7685
          %v8284 = vunpack.c.h.b16 %v7685
          %v8285 = vunpack.c.l.b16 %v7686
          %v8286 = vunpack.c.h.b16 %v7686
          %v8287 = vunpack.c.l.b16 %v7687
          %v8288 = vunpack.c.h.b16 %v7687
          %v8289 = vunpack.c.l.b16 %v7688
          %v8290 = vunpack.c.h.b16 %v7688
          %v8291 = vunpack.c.l.b16 %v7689
          %v8292 = vunpack.c.h.b16 %v7689
          %v8293 = vunpack.c.l.b16 %v7690
          %v8294 = vunpack.c.h.b16 %v7690
          %v8295 = vunpack.c.l.b16 %v7691
          %v8296 = vunpack.c.h.b16 %v7691
          %v8297 = vunpack.c.l.b16 %v7692
          %v8298 = vunpack.c.h.b16 %v7692
          %v8299 = vunpack.c.l.b16 %v7693
          %v8300 = vunpack.c.h.b16 %v7693
          %v8301 = vunpack.c.l.b16 %v7694
          %v8302 = vunpack.c.h.b16 %v7694
          %v8303 = vunpack.c.l.b16 %v7695
          %v8304 = vunpack.c.h.b16 %v7695
          %v8305 = vunpack.c.l.b16 %v7696
          %v8306 = vunpack.c.h.b16 %v7696
          %v8307 = vunpack.c.l.b16 %v7697
          %v8308 = vunpack.c.h.b16 %v7697
          %v8309 = vunpack.c.l.b16 %v7698
          %v8310 = vunpack.c.h.b16 %v7698
          %v8311 = vunpack.c.l.b16 %v7699
          %v8312 = vunpack.c.h.b16 %v7699
          %v8313 = vunpack.c.l.b16 %v7700
          %v8314 = vunpack.c.h.b16 %v7700
          %v8315 = vunpack.c.l.b16 %v7701
          %v8316 = vunpack.c.h.b16 %v7701
          %v8317 = vunpack.c.l.b16 %v7702
          %v8318 = vunpack.c.h.b16 %v7702
          %v8319 = vunpack.c.l.b16 %v7703
          %v8320 = vunpack.c.h.b16 %v7703
          %v8321 = vunpack.c.l.b16 %v7704
          %v8322 = vunpack.c.h.b16 %v7704
          %v8323 = vunpack.c.l.b16 %v7705
          %v8324 = vunpack.c.h.b16 %v7705
          %v8325 = vunpack.c.l.b16 %v7706
          %v8326 = vunpack.c.h.b16 %v7706
          %v8327 = vunpack.c.l.b16 %v7707
          %v8328 = vunpack.c.h.b16 %v7707
          %v8329 = vunpack.c.l.b16 %v7708
          %v8330 = vunpack.c.h.b16 %v7708
          %v8331 = vunpack.c.l.b16 %v7709
          %v8332 = vunpack.c.h.b16 %v7709
          %v8333 = vunpack.c.l.b16 %v7710
          %v8334 = vunpack.c.h.b16 %v7710
          %v8335 = vunpack.c.l.b16 %v7711
          %v8336 = vunpack.c.h.b16 %v7711
          %v8337 = vunpack.c.l.b16 %v7712
          %v8338 = vunpack.c.h.b16 %v7712
          %v8339 = vunpack.c.l.b16 %v7713
          %v8340 = vunpack.c.h.b16 %v7713
          %v8341 = vunpack.c.l.b16 %v7714
          %v8342 = vunpack.c.h.b16 %v7714
          %v8343 = vunpack.c.l.b16 %v7715
          %v8344 = vunpack.c.h.b16 %v7715
          %v8345 = vunpack.c.l.b16 %v7716
          %v8346 = vunpack.c.h.b16 %v7716
          %v8347 = vunpack.c.l.b16 %v7717
          %v8348 = vunpack.c.h.b16 %v7717
          %v8349 = vunpack.c.l.b16 %v7718
          %v8350 = vunpack.c.h.b16 %v7718
          %v8351 = vunpack.c.l.b16 %v7719
          %v8352 = vunpack.c.h.b16 %v7719
          %v8353 = vunpack.c.l.b16 %v7720
          %v8354 = vunpack.c.h.b16 %v7720
          %v8355 = vunpack.c.l.b16 %v7721
          %v8356 = vunpack.c.h.b16 %v7721
          %v8357 = vunpack.c.l.b16 %v7722
          %v8358 = vunpack.c.h.b16 %v7722
          %v8359 = vunpack.c.l.b16 %v7723
          %v8360 = vunpack.c.h.b16 %v7723
          %v8361 = vunpack.c.l.b16 %v7724
          %v8362 = vunpack.c.h.b16 %v7724
          %v8363 = vunpack.c.l.b16 %v7725
          %v8364 = vunpack.c.h.b16 %v7725
          %v8365 = vunpack.c.l.b16 %v7726
          %v8366 = vunpack.c.h.b16 %v7726
          %v8367 = vunpack.c.l.b16 %v7727
          %v8368 = vunpack.c.h.b16 %v7727
          %v8369 = vunpack.c.l.b16 %v7728
          %v8370 = vunpack.c.h.b16 %v7728
          %v8371 = vunpack.c.l.b16 %v7729
          %v8372 = vunpack.c.h.b16 %v7729
          %v8373 = vunpack.c.l.b16 %v7730
          %v8374 = vunpack.c.h.b16 %v7730
          %v8375 = vunpack.c.l.b16 %v7731
          %v8376 = vunpack.c.h.b16 %v7731
          %v8377 = vunpack.c.l.b16 %v7732
          %v8378 = vunpack.c.h.b16 %v7732
          %v8379 = vunpack.c.l.b16 %v7733
          %v8380 = vunpack.c.h.b16 %v7733
          %v8381 = vunpack.c.l.b16 %v7734
          %v8382 = vunpack.c.h.b16 %v7734
          %v8383 = vunpack.c.l.b16 %v7735
          %v8384 = vunpack.c.h.b16 %v7735
          %v8385 = vunpack.c.l.b16 %v7736
          %v8386 = vunpack.c.h.b16 %v7736
          %v8387 = vunpack.c.l.b16 %v7737
          %v8388 = vunpack.c.h.b16 %v7737
          %v8389 = vunpack.c.l.b16 %v7738
          %v8390 = vunpack.c.h.b16 %v7738
          %v8391 = vunpack.c.l.b16 %v7739
          %v8392 = vunpack.c.h.b16 %v7739
          %v8393 = vunpack.c.l.b16 %v7740
          %v8394 = vunpack.c.h.b16 %v7740
          %v8395 = vunpack.c.l.b16 %v7741
          %v8396 = vunpack.c.h.b16 %v7741
          %v8397 = vunpack.c.l.b16 %v7742
          %v8398 = vunpack.c.h.b16 %v7742
          %v8399 = vunpack.c.l.b16 %v7743
          %v8400 = vunpack.c.h.b16 %v7743
          %v8401 = vunpack.c.l.b16 %v7744
          %v8402 = vunpack.c.h.b16 %v7744
          %v8403 = vunpack.c.l.b16 %v7745
          %v8404 = vunpack.c.h.b16 %v7745
          %v8405 = vunpack.c.l.b16 %v7746
          %v8406 = vunpack.c.h.b16 %v7746
          %v8407 = vunpack.c.l.b16 %v7747
          %v8408 = vunpack.c.h.b16 %v7747
          %v8409 = vunpack.c.l.b16 %v7748
          %v8410 = vunpack.c.h.b16 %v7748
          %v8411 = vunpack.c.l.b16 %v7749
          %v8412 = vunpack.c.h.b16 %v7749
          %v8413 = vunpack.c.l.b16 %v7750
          %v8414 = vunpack.c.h.b16 %v7750
          %v8415 = vunpack.c.l.b16 %v7751
          %v8416 = vunpack.c.h.b16 %v7751
          %v8417 = vunpack.c.l.b16 %v7752
          %v8418 = vunpack.c.h.b16 %v7752
          %v8419 = vunpack.c.l.b16 %v7753
          %v8420 = vunpack.c.h.b16 %v7753
          %v8421 = vunpack.c.l.b16 %v7754
          %v8422 = vunpack.c.h.b16 %v7754
          %v8423 = vunpack.c.l.b16 %v7755
          %v8424 = vunpack.c.h.b16 %v7755
          %v8425 = vunpack.c.l.b16 %v7756
          %v8426 = vunpack.c.h.b16 %v7756
          %v8427 = vunpack.c.l.b16 %v7757
          %v8428 = vunpack.c.h.b16 %v7757
          %v8429 = vunpack.c.l.b16 %v7758
          %v8430 = vunpack.c.h.b16 %v7758
          %v8431 = vunpack.c.l.b16 %v7759
          %v8432 = vunpack.c.h.b16 %v7759
          %v8433 = vunpack.c.l.b16 %v7760
          %v8434 = vunpack.c.h.b16 %v7760
          %v8435 = vunpack.c.l.b16 %v7761
          %v8436 = vunpack.c.h.b16 %v7761
          %v8437 = vunpack.c.l.b16 %v7762
          %v8438 = vunpack.c.h.b16 %v7762
          %v8439 = vunpack.c.l.b16 %v7763
          %v8440 = vunpack.c.h.b16 %v7763
          %v8441 = vunpack.c.l.b16 %v7764
          %v8442 = vunpack.c.h.b16 %v7764
          %v8443 = vunpack.c.l.b16 %v7765
          %v8444 = vunpack.c.h.b16 %v7765
          %v8445 = vunpack.c.l.b16 %v7766
          %v8446 = vunpack.c.h.b16 %v7766
          %v8447 = vunpack.c.l.b16 %v7767
          %v8448 = vunpack.c.h.b16 %v7767
          %v8449 = vunpack.c.l.b16 %v7768
          %v8450 = vunpack.c.h.b16 %v7768
          %v8451 = vunpack.c.l.b16 %v7769
          %v8452 = vunpack.c.h.b16 %v7769
          %v8453 = vunpack.c.l.b16 %v7770
          %v8454 = vunpack.c.h.b16 %v7770
          %v8455 = vunpack.c.l.b16 %v7771
          %v8456 = vunpack.c.h.b16 %v7771
          %v8457 = vunpack.c.l.b16 %v7772
          %v8458 = vunpack.c.h.b16 %v7772
          %v8459 = vunpack.c.l.b16 %v7773
          %v8460 = vunpack.c.h.b16 %v7773
          %v8461 = vunpack.c.l.b16 %v7774
          %v8462 = vunpack.c.h.b16 %v7774
          %v8463 = vunpack.c.l.b16 %v7775
          %v8464 = vunpack.c.h.b16 %v7775
          %v8465 = vunpack.c.l.b16 %v7776
          %v8466 = vunpack.c.h.b16 %v7776
          %v8467 = vunpack.c.l.b16 %v7777
          %v8468 = vunpack.c.h.b16 %v7777
          %v8469 = vunpack.c.l.b16 %v7778
          %v8470 = vunpack.c.h.b16 %v7778
          %v8471 = vunpack.c.l.b16 %v7779
          %v8472 = vunpack.c.h.b16 %v7779
          %v8473 = vunpack.c.l.b16 %v7780
          %v8474 = vunpack.c.h.b16 %v7780
          %v8475 = vunpack.c.l.b16 %v7781
          %v8476 = vunpack.c.h.b16 %v7781
          %v8477 = vunpack.c.l.b16 %v7782
          %v8478 = vunpack.c.h.b16 %v7782
          %v8479 = vunpack.c.l.b16 %v7783
          %v8480 = vunpack.c.h.b16 %v7783
          %v8481 = vunpack.c.l.b16 %v7784
          %v8482 = vunpack.c.h.b16 %v7784
          %v8483 = vunpack.c.l.b16 %v7785
          %v8484 = vunpack.c.h.b16 %v7785
          %v8485 = vunpack.c.l.b16 %v7786
          %v8486 = vunpack.c.h.b16 %v7786
          %v8487 = vunpack.c.l.b16 %v7787
          %v8488 = vunpack.c.h.b16 %v7787
          %v8489 = vunpack.c.l.b16 %v7788
          %v8490 = vunpack.c.h.b16 %v7788
          %v8491 = vunpack.c.l.b16 %v7789
          %v8492 = vunpack.c.h.b16 %v7789
          %v8493 = vunpack.c.l.b16 %v7790
          %v8494 = vunpack.c.h.b16 %v7790
          %v8495 = vunpack.c.l.b16 %v7791
          %v8496 = vunpack.c.h.b16 %v7791
          %v8497 = vunpack.c.l.b16 %v7792
          %v8498 = vunpack.c.h.b16 %v7792
          %v8499 = vunpack.c.l.b16 %v7793
          %v8500 = vunpack.c.h.b16 %v7793
          %v8501 = vunpack.c.l.b16 %v7794
          %v8502 = vunpack.c.h.b16 %v7794
          %v8503 = vunpack.c.l.b16 %v7795
          %v8504 = vunpack.c.h.b16 %v7795
          %v8505 = vunpack.c.l.b16 %v7796
          %v8506 = vunpack.c.h.b16 %v7796
          %v8507 = vunpack.c.l.b16 %v7797
          %v8508 = vunpack.c.h.b16 %v7797
          %v8509 = vunpack.c.l.b16 %v7798
          %v8510 = vunpack.c.h.b16 %v7798
          %v8511 = vunpack.c.l.b16 %v7799
          %v8512 = vunpack.c.h.b16 %v7799
          %v8513 = vunpack.c.l.b16 %v7800
          %v8514 = vunpack.c.h.b16 %v7800
          %v8515 = vunpack.c.l.b16 %v7801
          %v8516 = vunpack.c.h.b16 %v7801
          %v8517 = vunpack.c.l.b16 %v7802
          %v8518 = vunpack.c.h.b16 %v7802
          %v8519 = vunpack.c.l.b16 %v7803
          %v8520 = vunpack.c.h.b16 %v7803
          %v8521 = vunpack.c.l.b16 %v7804
          %v8522 = vunpack.c.h.b16 %v7804
          %v8523 = vunpack.c.l.b16 %v7805
          %v8524 = vunpack.c.h.b16 %v7805
          %v8525 = vunpack.c.l.b16 %v7806
          %v8526 = vunpack.c.h.b16 %v7806
          %v8527 = vunpack.c.l.b16 %v7807
          %v8528 = vunpack.c.h.b16 %v7807
          %v8529 = vunpack.c.l.b16 %v7808
          %v8530 = vunpack.c.h.b16 %v7808
          %v8531 = vunpack.c.l.b16 %v7809
          %v8532 = vunpack.c.h.b16 %v7809
          %v8533 = vunpack.c.l.b16 %v7810
          %v8534 = vunpack.c.h.b16 %v7810
          %v8535 = vunpack.c.l.b16 %v7811
          %v8536 = vunpack.c.h.b16 %v7811
          %v8537 = vunpack.c.l.b16 %v7812
          %v8538 = vunpack.c.h.b16 %v7812
          %v8539 = vunpack.c.l.b16 %v7813
          %v8540 = vunpack.c.h.b16 %v7813
          %v8541 = vunpack.c.l.b16 %v7814
          %v8542 = vunpack.c.h.b16 %v7814
          %v8543 = vunpack.c.l.b16 %v7815
          %v8544 = vunpack.c.h.b16 %v7815
          %v8545 = vunpack.c.l.b16 %v7816
          %v8546 = vunpack.c.h.b16 %v7816
          %v8547 = vunpack.c.l.b16 %v7817
          %v8548 = vunpack.c.h.b16 %v7817
          %v8549 = vunpack.c.l.b16 %v7818
          %v8550 = vunpack.c.h.b16 %v7818
          %v8551 = vunpack.c.l.b16 %v7819
          %v8552 = vunpack.c.h.b16 %v7819
          %v8553 = vunpack.c.l.b16 %v7820
          %v8554 = vunpack.c.h.b16 %v7820
          %v8555 = vunpack.c.l.b16 %v7821
          %v8556 = vunpack.c.h.b16 %v7821
          %v8557 = vunpack.c.l.b16 %v7822
          %v8558 = vunpack.c.h.b16 %v7822
          %v8559 = vunpack.c.l.b16 %v7823
          %v8560 = vunpack.c.h.b16 %v7823
          %v8561 = vunpack.c.l.b16 %v7824
          %v8562 = vunpack.c.h.b16 %v7824
          %v8563 = vunpack.c.l.b16 %v7825
          %v8564 = vunpack.c.h.b16 %v7825
          %v8565 = vunpack.c.l.b16 %v7826
          %v8566 = vunpack.c.h.b16 %v7826
          %v8567 = vunpack.c.l.b16 %v7827
          %v8568 = vunpack.c.h.b16 %v7827
          %v8569 = vunpack.c.l.b16 %v7828
          %v8570 = vunpack.c.h.b16 %v7828
          %v8571 = vunpack.c.l.b16 %v7829
          %v8572 = vunpack.c.h.b16 %v7829
          %v8573 = vunpack.c.l.b16 %v7830
          %v8574 = vunpack.c.h.b16 %v7830
          %v8575 = vunpack.c.l.b16 %v7831
          %v8576 = vunpack.c.h.b16 %v7831
          %v8577 = vunpack.c.l.b16 %v7832
          %v8578 = vunpack.c.h.b16 %v7832
          %v8579 = vunpack.c.l.b16 %v7833
          %v8580 = vunpack.c.h.b16 %v7833
          %v8581 = vunpack.c.l.b16 %v7834
          %v8582 = vunpack.c.h.b16 %v7834
          %v8583 = vunpack.c.l.b16 %v7835
          %v8584 = vunpack.c.h.b16 %v7835
          %v8585 = vunpack.c.l.b16 %v7836
          %v8586 = vunpack.c.h.b16 %v7836
          %v8587 = vunpack.c.l.b16 %v7837
          %v8588 = vunpack.c.h.b16 %v7837
          %v8589 = vunpack.c.l.b16 %v7838
          %v8590 = vunpack.c.h.b16 %v7838
          %v8591 = vunpack.c.l.b16 %v7839
          %v8592 = vunpack.c.h.b16 %v7839
          %v8593 = vunpack.c.l.b16 %v7840
          %v8594 = vunpack.c.h.b16 %v7840
          %v8595 = vunpack.c.l.b16 %v7841
          %v8596 = vunpack.c.h.b16 %v7841
          %v8597 = vunpack.c.l.b16 %v7842
          %v8598 = vunpack.c.h.b16 %v7842
          %v8599 = vunpack.c.l.b16 %v7843
          %v8600 = vunpack.c.h.b16 %v7843
          %v8601 = vunpack.c.l.b16 %v7844
          %v8602 = vunpack.c.h.b16 %v7844
          %v8603 = vunpack.c.l.b16 %v7845
          %v8604 = vunpack.c.h.b16 %v7845
          %v8605 = vunpack.c.l.b16 %v7846
          %v8606 = vunpack.c.h.b16 %v7846
          %v8607 = vunpack.c.l.b16 %v7847
          %v8608 = vunpack.c.h.b16 %v7847
          %v8609 = vunpack.c.l.b16 %v7848
          %v8610 = vunpack.c.h.b16 %v7848
          %v8611 = vunpack.c.l.b16 %v7849
          %v8612 = vunpack.c.h.b16 %v7849
          %v8613 = vunpack.c.l.b16 %v7850
          %v8614 = vunpack.c.h.b16 %v7850
          %v8615 = vunpack.c.l.b16 %v7851
          %v8616 = vunpack.c.h.b16 %v7851
          %v8617 = vunpack.c.l.b16 %v7852
          %v8618 = vunpack.c.h.b16 %v7852
          %v8619 = vunpack.c.l.b16 %v7853
          %v8620 = vunpack.c.h.b16 %v7853
          %v8621 = vunpack.c.l.b16 %v7854
          %v8622 = vunpack.c.h.b16 %v7854
          %v8623 = vunpack.c.l.b16 %v7855
          %v8624 = vunpack.c.h.b16 %v7855
          %v8625 = vunpack.c.l.b16 %v7856
          %v8626 = vunpack.c.h.b16 %v7856
          %v8627 = vunpack.c.l.b16 %v7857
          %v8628 = vunpack.c.h.b16 %v7857
          %v8629 = vunpack.c.l.b16 %v7858
          %v8630 = vunpack.c.h.b16 %v7858
          %v8631 = vunpack.c.l.b16 %v7859
          %v8632 = vunpack.c.h.b16 %v7859
          %v8633 = vunpack.c.l.b16 %v7860
          %v8634 = vunpack.c.h.b16 %v7860
          %v8635 = vunpack.c.l.b16 %v7861
          %v8636 = vunpack.c.h.b16 %v7861
          %v8637 = vunpack.c.l.b16 %v7862
          %v8638 = vunpack.c.h.b16 %v7862
          %v8639 = vunpack.c.l.b16 %v7863
          %v8640 = vunpack.c.h.b16 %v7863
          %v8641 = vunpack.c.l.b16 %v7864
          %v8642 = vunpack.c.h.b16 %v7864
          %v8643 = vunpack.c.l.b16 %v7865
          %v8644 = vunpack.c.h.b16 %v7865
          %v8645 = vunpack.c.l.b16 %v7866
          %v8646 = vunpack.c.h.b16 %v7866
          %v8647 = vunpack.c.l.b16 %v7867
          %v8648 = vunpack.c.h.b16 %v7867
          %v8649 = vunpack.c.l.b16 %v7868
          %v8650 = vunpack.c.h.b16 %v7868
          %v8651 = vunpack.c.l.b16 %v7869
          %v8652 = vunpack.c.h.b16 %v7869
          %v8653 = vunpack.c.l.b16 %v7870
          %v8654 = vunpack.c.h.b16 %v7870
          %v8655 = vunpack.c.l.b16 %v7871
          %v8656 = vunpack.c.h.b16 %v7871
          %v8657 = vunpack.c.l.b16 %v7872
          %v8658 = vunpack.c.h.b16 %v7872
          %v8659 = vunpack.c.l.b16 %v7873
          %v8660 = vunpack.c.h.b16 %v7873
          %v8661 = vunpack.c.l.b16 %v7874
          %v8662 = vunpack.c.h.b16 %v7874
          %v8663 = vunpack.c.l.b16 %v7875
          %v8664 = vunpack.c.h.b16 %v7875
          %v8665 = vunpack.c.l.b16 %v7876
          %v8666 = vunpack.c.h.b16 %v7876
          %v8667 = vunpack.c.l.b16 %v7877
          %v8668 = vunpack.c.h.b16 %v7877
          %v8669 = vunpack.c.l.b16 %v7878
          %v8670 = vunpack.c.h.b16 %v7878
          %v8671 = vunpack.c.l.b16 %v7879
          %v8672 = vunpack.c.h.b16 %v7879
          %v8673 = vunpack.c.l.b16 %v7880
          %v8674 = vunpack.c.h.b16 %v7880
          %v8675 = vunpack.c.l.b16 %v7881
          %v8676 = vunpack.c.h.b16 %v7881
          %v8677 = vunpack.c.l.b16 %v7882
          %v8678 = vunpack.c.h.b16 %v7882
          %v8679 = vunpack.c.l.b16 %v7883
          %v8680 = vunpack.c.h.b16 %v7883
          %v8681 = vunpack.c.l.b16 %v7884
          %v8682 = vunpack.c.h.b16 %v7884
          %v8683 = vunpack.c.l.b16 %v7885
          %v8684 = vunpack.c.h.b16 %v7885
          %v8685 = vunpack.c.l.b16 %v7886
          %v8686 = vunpack.c.h.b16 %v7886
          %v8687 = vunpack.c.l.b16 %v7887
          %v8688 = vunpack.c.h.b16 %v7887
          %v8689 = vunpack.c.l.b16 %v7888
          %v8690 = vunpack.c.h.b16 %v7888
          %v8691 = vunpack.c.l.b16 %v7889
          %v8692 = vunpack.c.h.b16 %v7889
          %v8693 = vunpack.c.l.b16 %v7890
          %v8694 = vunpack.c.h.b16 %v7890
          %v8695 = vunpack.c.l.b16 %v7891
          %v8696 = vunpack.c.h.b16 %v7891
          %v8697 = vunpack.c.l.b16 %v7892
          %v8698 = vunpack.c.h.b16 %v7892
          %v8699 = vunpack.c.l.b16 %v7893
          %v8700 = vunpack.c.h.b16 %v7893
          %v8701 = vunpack.c.l.b16 %v7894
          %v8702 = vunpack.c.h.b16 %v7894
          %v8703 = vunpack.c.l.b16 %v7895
          %v8704 = vunpack.c.h.b16 %v7895
          %v8705 = vunpack.c.l.b16 %v7896
          %v8706 = vunpack.c.h.b16 %v7896
          %v8707 = vunpack.c.l.b16 %v7897
          %v8708 = vunpack.c.h.b16 %v7897
          %v8709 = vunpack.c.l.b16 %v7898
          %v8710 = vunpack.c.h.b16 %v7898
          %v8711 = vunpack.c.l.b16 %v7899
          %v8712 = vunpack.c.h.b16 %v7899
          %v8713 = vunpack.c.l.b16 %v7900
          %v8714 = vunpack.c.h.b16 %v7900
          %v8715 = vunpack.c.l.b16 %v7901
          %v8716 = vunpack.c.h.b16 %v7901
          %v8717 = vunpack.c.l.b16 %v7902
          %v8718 = vunpack.c.h.b16 %v7902
          %v8719 = vunpack.c.l.b16 %v7903
          %v8720 = vunpack.c.h.b16 %v7903
          %v8721 = vunpack.c.l.b16 %v7904
          %v8722 = vunpack.c.h.b16 %v7904
          %v8723 = vunpack.c.l.b16 %v7905
          %v8724 = vunpack.c.h.b16 %v7905
          %v8725 = vunpack.c.l.b16 %v7906
          %v8726 = vunpack.c.h.b16 %v7906
          %v8727 = vunpack.c.l.b16 %v7907
          %v8728 = vunpack.c.h.b16 %v7907
          %v8729 = vunpack.c.l.b16 %v7908
          %v8730 = vunpack.c.h.b16 %v7908
          %v8731 = vunpack.c.l.b16 %v7909
          %v8732 = vunpack.c.h.b16 %v7909
          %v8733 = vunpack.c.l.b16 %v7910
          %v8734 = vunpack.c.h.b16 %v7910
          %v8735 = vunpack.c.l.b16 %v7911
          %v8736 = vunpack.c.h.b16 %v7911
          %v8737 = vunpack.c.l.b16 %v7912
          %v8738 = vunpack.c.h.b16 %v7912
          %v8739 = vunpack.c.l.b16 %v7913
          %v8740 = vunpack.c.h.b16 %v7913
          %v8741 = vunpack.c.l.b16 %v7914
          %v8742 = vunpack.c.h.b16 %v7914
          %v8743 = vunpack.c.l.b16 %v7915
          %v8744 = vunpack.c.h.b16 %v7915
          %v8745 = vunpack.c.l.b16 %v7916
          %v8746 = vunpack.c.h.b16 %v7916
          %v8747 = vunpack.c.l.b16 %v7917
          %v8748 = vunpack.c.h.b16 %v7917
          %v8749 = vunpack.c.l.b16 %v7918
          %v8750 = vunpack.c.h.b16 %v7918
          %v8751 = vpack.c.b16 %v8247, %v8239
          %v8752 = vpack.c.b16 %v8248, %v8240
          %v8753 = vpack.c.b16 %v8249, %v8241
          %v8754 = vpack.c.b16 %v8250, %v8242
          %v8755 = vpack.c.b16 %v8251, %v8243
          %v8756 = vpack.c.b16 %v8252, %v8244
          %v8757 = vpack.c.b16 %v8253, %v8245
          %v8758 = vpack.c.b16 %v8254, %v8246
          %v8759 = vpack.c.b16 %v8263, %v8255
          %v8760 = vpack.c.b16 %v8264, %v8256
          %v8761 = vpack.c.b16 %v8265, %v8257
          %v8762 = vpack.c.b16 %v8266, %v8258
          %v8763 = vpack.c.b16 %v8267, %v8259
          %v8764 = vpack.c.b16 %v8268, %v8260
          %v8765 = vpack.c.b16 %v8269, %v8261
          %v8766 = vpack.c.b16 %v8270, %v8262
          %v8767 = vpack.c.b16 %v8279, %v8271
          %v8768 = vpack.c.b16 %v8280, %v8272
          %v8769 = vpack.c.b16 %v8281, %v8273
          %v8770 = vpack.c.b16 %v8282, %v8274
          %v8771 = vpack.c.b16 %v8283, %v8275
          %v8772 = vpack.c.b16 %v8284, %v8276
          %v8773 = vpack.c.b16 %v8285, %v8277
          %v8774 = vpack.c.b16 %v8286, %v8278
          %v8775 = vpack.c.b16 %v8295, %v8287
          %v8776 = vpack.c.b16 %v8296, %v8288
          %v8777 = vpack.c.b16 %v8297, %v8289
          %v8778 = vpack.c.b16 %v8298, %v8290
          %v8779 = vpack.c.b16 %v8299, %v8291
          %v8780 = vpack.c.b16 %v8300, %v8292
          %v8781 = vpack.c.b16 %v8301, %v8293
          %v8782 = vpack.c.b16 %v8302, %v8294
          %v8783 = vpack.c.b16 %v8311, %v8303
          %v8784 = vpack.c.b16 %v8312, %v8304
          %v8785 = vpack.c.b16 %v8313, %v8305
          %v8786 = vpack.c.b16 %v8314, %v8306
          %v8787 = vpack.c.b16 %v8315, %v8307
          %v8788 = vpack.c.b16 %v8316, %v8308
          %v8789 = vpack.c.b16 %v8317, %v8309
          %v8790 = vpack.c.b16 %v8318, %v8310
          %v8791 = vpack.c.b16 %v8327, %v8319
          %v8792 = vpack.c.b16 %v8328, %v8320
          %v8793 = vpack.c.b16 %v8329, %v8321
          %v8794 = vpack.c.b16 %v8330, %v8322
          %v8795 = vpack.c.b16 %v8331, %v8323
          %v8796 = vpack.c.b16 %v8332, %v8324
          %v8797 = vpack.c.b16 %v8333, %v8325
          %v8798 = vpack.c.b16 %v8334, %v8326
          %v8799 = vpack.c.b16 %v8343, %v8335
          %v8800 = vpack.c.b16 %v8344, %v8336
          %v8801 = vpack.c.b16 %v8345, %v8337
          %v8802 = vpack.c.b16 %v8346, %v8338
          %v8803 = vpack.c.b16 %v8347, %v8339
          %v8804 = vpack.c.b16 %v8348, %v8340
          %v8805 = vpack.c.b16 %v8349, %v8341
          %v8806 = vpack.c.b16 %v8350, %v8342
          %v8807 = vpack.c.b16 %v8359, %v8351
          %v8808 = vpack.c.b16 %v8360, %v8352
          %v8809 = vpack.c.b16 %v8361, %v8353
          %v8810 = vpack.c.b16 %v8362, %v8354
          %v8811 = vpack.c.b16 %v8363, %v8355
          %v8812 = vpack.c.b16 %v8364, %v8356
          %v8813 = vpack.c.b16 %v8365, %v8357
          %v8814 = vpack.c.b16 %v8366, %v8358
          %v8815 = vpack.c.b16 %v8375, %v8367
          %v8816 = vpack.c.b16 %v8376, %v8368
          %v8817 = vpack.c.b16 %v8377, %v8369
          %v8818 = vpack.c.b16 %v8378, %v8370
          %v8819 = vpack.c.b16 %v8379, %v8371
          %v8820 = vpack.c.b16 %v8380, %v8372
          %v8821 = vpack.c.b16 %v8381, %v8373
          %v8822 = vpack.c.b16 %v8382, %v8374
          %v8823 = vpack.c.b16 %v8391, %v8383
          %v8824 = vpack.c.b16 %v8392, %v8384
          %v8825 = vpack.c.b16 %v8393, %v8385
          %v8826 = vpack.c.b16 %v8394, %v8386
          %v8827 = vpack.c.b16 %v8395, %v8387
          %v8828 = vpack.c.b16 %v8396, %v8388
          %v8829 = vpack.c.b16 %v8397, %v8389
          %v8830 = vpack.c.b16 %v8398, %v8390
          %v8831 = vpack.c.b16 %v8407, %v8399
          %v8832 = vpack.c.b16 %v8408, %v8400
          %v8833 = vpack.c.b16 %v8409, %v8401
          %v8834 = vpack.c.b16 %v8410, %v8402
          %v8835 = vpack.c.b16 %v8411, %v8403
          %v8836 = vpack.c.b16 %v8412, %v8404
          %v8837 = vpack.c.b16 %v8413, %v8405
          %v8838 = vpack.c.b16 %v8414, %v8406
          %v8839 = vpack.c.b16 %v8423, %v8415
          %v8840 = vpack.c.b16 %v8424, %v8416
          %v8841 = vpack.c.b16 %v8425, %v8417
          %v8842 = vpack.c.b16 %v8426, %v8418
          %v8843 = vpack.c.b16 %v8427, %v8419
          %v8844 = vpack.c.b16 %v8428, %v8420
          %v8845 = vpack.c.b16 %v8429, %v8421
          %v8846 = vpack.c.b16 %v8430, %v8422
          %v8847 = vpack.c.b16 %v8439, %v8431
          %v8848 = vpack.c.b16 %v8440, %v8432
          %v8849 = vpack.c.b16 %v8441, %v8433
          %v8850 = vpack.c.b16 %v8442, %v8434
          %v8851 = vpack.c.b16 %v8443, %v8435
          %v8852 = vpack.c.b16 %v8444, %v8436
          %v8853 = vpack.c.b16 %v8445, %v8437
          %v8854 = vpack.c.b16 %v8446, %v8438
          %v8855 = vpack.c.b16 %v8455, %v8447
          %v8856 = vpack.c.b16 %v8456, %v8448
          %v8857 = vpack.c.b16 %v8457, %v8449
          %v8858 = vpack.c.b16 %v8458, %v8450
          %v8859 = vpack.c.b16 %v8459, %v8451
          %v8860 = vpack.c.b16 %v8460, %v8452
          %v8861 = vpack.c.b16 %v8461, %v8453
          %v8862 = vpack.c.b16 %v8462, %v8454
          %v8863 = vpack.c.b16 %v8471, %v8463
          %v8864 = vpack.c.b16 %v8472, %v8464
          %v8865 = vpack.c.b16 %v8473, %v8465
          %v8866 = vpack.c.b16 %v8474, %v8466
          %v8867 = vpack.c.b16 %v8475, %v8467
          %v8868 = vpack.c.b16 %v8476, %v8468
          %v8869 = vpack.c.b16 %v8477, %v8469
          %v8870 = vpack.c.b16 %v8478, %v8470
          %v8871 = vpack.c.b16 %v8487, %v8479
          %v8872 = vpack.c.b16 %v8488, %v8480
          %v8873 = vpack.c.b16 %v8489, %v8481
          %v8874 = vpack.c.b16 %v8490, %v8482
          %v8875 = vpack.c.b16 %v8491, %v8483
          %v8876 = vpack.c.b16 %v8492, %v8484
          %v8877 = vpack.c.b16 %v8493, %v8485
          %v8878 = vpack.c.b16 %v8494, %v8486
          %v8879 = vpack.c.b16 %v8503, %v8495
          %v8880 = vpack.c.b16 %v8504, %v8496
          %v8881 = vpack.c.b16 %v8505, %v8497
          %v8882 = vpack.c.b16 %v8506, %v8498
          %v8883 = vpack.c.b16 %v8507, %v8499
          %v8884 = vpack.c.b16 %v8508, %v8500
          %v8885 = vpack.c.b16 %v8509, %v8501
          %v8886 = vpack.c.b16 %v8510, %v8502
          %v8887 = vpack.c.b16 %v8519, %v8511
          %v8888 = vpack.c.b16 %v8520, %v8512
          %v8889 = vpack.c.b16 %v8521, %v8513
          %v8890 = vpack.c.b16 %v8522, %v8514
          %v8891 = vpack.c.b16 %v8523, %v8515
          %v8892 = vpack.c.b16 %v8524, %v8516
          %v8893 = vpack.c.b16 %v8525, %v8517
          %v8894 = vpack.c.b16 %v8526, %v8518
          %v8895 = vpack.c.b16 %v8535, %v8527
          %v8896 = vpack.c.b16 %v8536, %v8528
          %v8897 = vpack.c.b16 %v8537, %v8529
          %v8898 = vpack.c.b16 %v8538, %v8530
          %v8899 = vpack.c.b16 %v8539, %v8531
          %v8900 = vpack.c.b16 %v8540, %v8532
          %v8901 = vpack.c.b16 %v8541, %v8533
          %v8902 = vpack.c.b16 %v8542, %v8534
          %v8903 = vpack.c.b16 %v8551, %v8543
          %v8904 = vpack.c.b16 %v8552, %v8544
          %v8905 = vpack.c.b16 %v8553, %v8545
          %v8906 = vpack.c.b16 %v8554, %v8546
          %v8907 = vpack.c.b16 %v8555, %v8547
          %v8908 = vpack.c.b16 %v8556, %v8548
          %v8909 = vpack.c.b16 %v8557, %v8549
          %v8910 = vpack.c.b16 %v8558, %v8550
          %v8911 = vpack.c.b16 %v8567, %v8559
          %v8912 = vpack.c.b16 %v8568, %v8560
          %v8913 = vpack.c.b16 %v8569, %v8561
          %v8914 = vpack.c.b16 %v8570, %v8562
          %v8915 = vpack.c.b16 %v8571, %v8563
          %v8916 = vpack.c.b16 %v8572, %v8564
          %v8917 = vpack.c.b16 %v8573, %v8565
          %v8918 = vpack.c.b16 %v8574, %v8566
          %v8919 = vpack.c.b16 %v8583, %v8575
          %v8920 = vpack.c.b16 %v8584, %v8576
          %v8921 = vpack.c.b16 %v8585, %v8577
          %v8922 = vpack.c.b16 %v8586, %v8578
          %v8923 = vpack.c.b16 %v8587, %v8579
          %v8924 = vpack.c.b16 %v8588, %v8580
          %v8925 = vpack.c.b16 %v8589, %v8581
          %v8926 = vpack.c.b16 %v8590, %v8582
          %v8927 = vpack.c.b16 %v8599, %v8591
          %v8928 = vpack.c.b16 %v8600, %v8592
          %v8929 = vpack.c.b16 %v8601, %v8593
          %v8930 = vpack.c.b16 %v8602, %v8594
          %v8931 = vpack.c.b16 %v8603, %v8595
          %v8932 = vpack.c.b16 %v8604, %v8596
          %v8933 = vpack.c.b16 %v8605, %v8597
          %v8934 = vpack.c.b16 %v8606, %v8598
          %v8935 = vpack.c.b16 %v8615, %v8607
          %v8936 = vpack.c.b16 %v8616, %v8608
          %v8937 = vpack.c.b16 %v8617, %v8609
          %v8938 = vpack.c.b16 %v8618, %v8610
          %v8939 = vpack.c.b16 %v8619, %v8611
          %v8940 = vpack.c.b16 %v8620, %v8612
          %v8941 = vpack.c.b16 %v8621, %v8613
          %v8942 = vpack.c.b16 %v8622, %v8614
          %v8943 = vpack.c.b16 %v8631, %v8623
          %v8944 = vpack.c.b16 %v8632, %v8624
          %v8945 = vpack.c.b16 %v8633, %v8625
          %v8946 = vpack.c.b16 %v8634, %v8626
          %v8947 = vpack.c.b16 %v8635, %v8627
          %v8948 = vpack.c.b16 %v8636, %v8628
          %v8949 = vpack.c.b16 %v8637, %v8629
          %v8950 = vpack.c.b16 %v8638, %v8630
          %v8951 = vpack.c.b16 %v8647, %v8639
          %v8952 = vpack.c.b16 %v8648, %v8640
          %v8953 = vpack.c.b16 %v8649, %v8641
          %v8954 = vpack.c.b16 %v8650, %v8642
          %v8955 = vpack.c.b16 %v8651, %v8643
          %v8956 = vpack.c.b16 %v8652, %v8644
          %v8957 = vpack.c.b16 %v8653, %v8645
          %v8958 = vpack.c.b16 %v8654, %v8646
          %v8959 = vpack.c.b16 %v8663, %v8655
          %v8960 = vpack.c.b16 %v8664, %v8656
          %v8961 = vpack.c.b16 %v8665, %v8657
          %v8962 = vpack.c.b16 %v8666, %v8658
          %v8963 = vpack.c.b16 %v8667, %v8659
          %v8964 = vpack.c.b16 %v8668, %v8660
          %v8965 = vpack.c.b16 %v8669, %v8661
          %v8966 = vpack.c.b16 %v8670, %v8662
          %v8967 = vpack.c.b16 %v8679, %v8671
          %v8968 = vpack.c.b16 %v8680, %v8672
          %v8969 = vpack.c.b16 %v8681, %v8673
          %v8970 = vpack.c.b16 %v8682, %v8674
          %v8971 = vpack.c.b16 %v8683, %v8675
          %v8972 = vpack.c.b16 %v8684, %v8676
          %v8973 = vpack.c.b16 %v8685, %v8677
          %v8974 = vpack.c.b16 %v8686, %v8678
          %v8975 = vpack.c.b16 %v8695, %v8687
          %v8976 = vpack.c.b16 %v8696, %v8688
          %v8977 = vpack.c.b16 %v8697, %v8689
          %v8978 = vpack.c.b16 %v8698, %v8690
          %v8979 = vpack.c.b16 %v8699, %v8691
          %v8980 = vpack.c.b16 %v8700, %v8692
          %v8981 = vpack.c.b16 %v8701, %v8693
          %v8982 = vpack.c.b16 %v8702, %v8694
          %v8983 = vpack.c.b16 %v8711, %v8703
          %v8984 = vpack.c.b16 %v8712, %v8704
          %v8985 = vpack.c.b16 %v8713, %v8705
          %v8986 = vpack.c.b16 %v8714, %v8706
          %v8987 = vpack.c.b16 %v8715, %v8707
          %v8988 = vpack.c.b16 %v8716, %v8708
          %v8989 = vpack.c.b16 %v8717, %v8709
          %v8990 = vpack.c.b16 %v8718, %v8710
          %v8991 = vpack.c.b16 %v8727, %v8719
          %v8992 = vpack.c.b16 %v8728, %v8720
          %v8993 = vpack.c.b16 %v8729, %v8721
          %v8994 = vpack.c.b16 %v8730, %v8722
          %v8995 = vpack.c.b16 %v8731, %v8723
          %v8996 = vpack.c.b16 %v8732, %v8724
          %v8997 = vpack.c.b16 %v8733, %v8725
          %v8998 = vpack.c.b16 %v8734, %v8726
          %v8999 = vpack.c.b16 %v8743, %v8735
          %v9000 = vpack.c.b16 %v8744, %v8736
          %v9001 = vpack.c.b16 %v8745, %v8737
          %v9002 = vpack.c.b16 %v8746, %v8738
          %v9003 = vpack.c.b16 %v8747, %v8739
          %v9004 = vpack.c.b16 %v8748, %v8740
          %v9005 = vpack.c.b16 %v8749, %v8741
          %v9006 = vpack.c.b16 %v8750, %v8742
          %9263 = vmatprep.subr.bf16.mxu0 0
          %9264 = vmatpush1.bf16.msra.mxu0 %v7599
          %9265 = vmatprep.subr.bf16.mxu0 0
          %9266 = vmatpush1.bf16.msra.mxu0 %v7600
          %9267 = vmatprep.subr.bf16.mxu0 0
          %9268 = vmatpush1.bf16.msra.mxu0 %v7601
          %9269 = vmatprep.subr.bf16.mxu0 0
          %9270 = vmatpush1.bf16.msra.mxu0 %v7602
          %9271 = vmatprep.subr.bf16.mxu0 0
          %9272 = vmatpush1.bf16.msra.mxu0 %v7603
          %9273 = vmatprep.subr.bf16.mxu0 0
          %9274 = vmatpush1.bf16.msra.mxu0 %v7604
          %9275 = vmatprep.subr.bf16.mxu0 0
          %9276 = vmatpush1.bf16.msra.mxu0 %v7605
          %9277 = vmatprep.subr.bf16.mxu0 0
          %9278 = vmatpush1.bf16.msra.mxu0 %v7606
          %9279 = vmatprep.subr.bf16.mxu0 0
          %9280 = vmatpush1.bf16.msra.mxu0 %v7607
          %9281 = vmatprep.subr.bf16.mxu0 0
          %9282 = vmatpush1.bf16.msra.mxu0 %v7608
          %9283 = vmatprep.subr.bf16.mxu0 0
          %9284 = vmatpush1.bf16.msra.mxu0 %v7609
          %9285 = vmatprep.subr.bf16.mxu0 0
          %9286 = vmatpush1.bf16.msra.mxu0 %v7610
          %9287 = vmatprep.subr.bf16.mxu0 0
          %9288 = vmatpush1.bf16.msra.mxu0 %v7611
          %9289 = vmatprep.subr.bf16.mxu0 0
          %9290 = vmatpush1.bf16.msra.mxu0 %v7612
          %9291 = vmatprep.subr.bf16.mxu0 0
          %9292 = vmatpush1.bf16.msra.mxu0 %v7613
          %9293 = vmatprep.subr.bf16.mxu0 0
          %9294 = vmatpush1.bf16.msra.mxu0 %v7614
          %9295 = vmatprep.mubr.bf16.mxu0 %v8752
          %9296 = vmatmul.mubr.bf16.gmra.mrb[0].mxu0 %v8751
          %v9297 = vpop.f32.mrb[0].mxu0
          %v9298 = vadd.f32 %v7919, %v9297
          %v9299 = vpop.f32.mrb[0].mxu0
          %v9300 = vpop.f32.mrb[0].mxu0
          %v9301 = vadd.f32 %v7920, %v9300
          %v9302 = vpop.f32.mrb[0].mxu0
          %9303 = vmatprep.mubr.bf16.mxu0 %v8760
          %9304 = vmatmul.mubr.bf16.gmra.mrb[0].mxu0 %v8759
          %v9305 = vpop.f32.mrb[0].mxu0
          %v9306 = vadd.f32 %v7921, %v9305
          %v9307 = vpop.f32.mrb[0].mxu0
          %v9308 = vpop.f32.mrb[0].mxu0
          %v9309 = vadd.f32 %v7922, %v9308
          %v9310 = vpop.f32.mrb[0].mxu0
          %9311 = vmatprep.mubr.bf16.mxu0 %v8768
          %9312 = vmatmul.mubr.bf16.gmra.mrb[0].mxu0 %v8767
          %v9313 = vpop.f32.mrb[0].mxu0
          %v9314 = vadd.f32 %v7923, %v9313
          %v9315 = vpop.f32.mrb[0].mxu0
          %v9316 = vpop.f32.mrb[0].mxu0
          %v9317 = vadd.f32 %v7924, %v9316
          %v9318 = vpop.f32.mrb[0].mxu0
          %9319 = vmatprep.mubr.bf16.mxu0 %v8776
          %9320 = vmatmul.mubr.bf16.gmra.mrb[0].mxu0 %v8775
          %v9321 = vpop.f32.mrb[0].mxu0
          %v9322 = vadd.f32 %v7925, %v9321
          %v9323 = vpop.f32.mrb[0].mxu0
          %v9324 = vpop.f32.mrb[0].mxu0
          %v9325 = vadd.f32 %v7926, %v9324
          %v9326 = vpop.f32.mrb[0].mxu0
          %9327 = vmatprep.mubr.bf16.mxu0 %v8784
          %9328 = vmatmul.mubr.bf16.gmra.mrb[0].mxu0 %v8783
          %v9329 = vpop.f32.mrb[0].mxu0
          %v9330 = vadd.f32 %v7927, %v9329
          %v9331 = vpop.f32.mrb[0].mxu0
          %v9332 = vpop.f32.mrb[0].mxu0
          %v9333 = vadd.f32 %v7928, %v9332
          %v9334 = vpop.f32.mrb[0].mxu0
          %9335 = vmatprep.mubr.bf16.mxu0 %v8792
          %9336 = vmatmul.mubr.bf16.gmra.mrb[0].mxu0 %v8791
          %v9337 = vpop.f32.mrb[0].mxu0
          %v9338 = vadd.f32 %v7929, %v9337
          %v9339 = vpop.f32.mrb[0].mxu0
          %v9340 = vpop.f32.mrb[0].mxu0
          %v9341 = vadd.f32 %v7930, %v9340
          %v9342 = vpop.f32.mrb[0].mxu0
          %9343 = vmatprep.mubr.bf16.mxu0 %v8800
          %9344 = vmatmul.mubr.bf16.gmra.mrb[0].mxu0 %v8799
          %v9345 = vpop.f32.mrb[0].mxu0
          %v9346 = vadd.f32 %v7931, %v9345
          %v9347 = vpop.f32.mrb[0].mxu0
          %v9348 = vpop.f32.mrb[0].mxu0
          %v9349 = vadd.f32 %v7932, %v9348
          %v9350 = vpop.f32.mrb[0].mxu0
          %9351 = vmatprep.mubr.bf16.mxu0 %v8808
          %9352 = vmatmul.mubr.bf16.gmra.mrb[0].mxu0 %v8807
          %v9353 = vpop.f32.mrb[0].mxu0
          %v9354 = vadd.f32 %v7933, %v9353
          %v9355 = vpop.f32.mrb[0].mxu0
          %v9356 = vpop.f32.mrb[0].mxu0
          %v9357 = vadd.f32 %v7934, %v9356
          %v9358 = vpop.f32.mrb[0].mxu0
          %9359 = vmatprep.mubr.bf16.mxu0 %v8816
          %9360 = vmatmul.mubr.bf16.gmra.mrb[0].mxu0 %v8815
          %v9361 = vpop.f32.mrb[0].mxu0
          %v9362 = vadd.f32 %v7935, %v9361
          %v9363 = vpop.f32.mrb[0].mxu0
          %v9364 = vpop.f32.mrb[0].mxu0
          %v9365 = vadd.f32 %v7936, %v9364
          %v9366 = vpop.f32.mrb[0].mxu0
          %9367 = vmatprep.mubr.bf16.mxu0 %v8824
          %9368 = vmatmul.mubr.bf16.gmra.mrb[0].mxu0 %v8823
          %v9369 = vpop.f32.mrb[0].mxu0
          %v9370 = vadd.f32 %v7937, %v9369
          %v9371 = vpop.f32.mrb[0].mxu0
          %v9372 = vpop.f32.mrb[0].mxu0
          %v9373 = vadd.f32 %v7938, %v9372
          %v9374 = vpop.f32.mrb[0].mxu0
          %9375 = vmatprep.mubr.bf16.mxu0 %v8832
          %9376 = vmatmul.mubr.bf16.gmra.mrb[0].mxu0 %v8831
          %v9377 = vpop.f32.mrb[0].mxu0
          %v9378 = vadd.f32 %v7939, %v9377
          %v9379 = vpop.f32.mrb[0].mxu0
          %v9380 = vpop.f32.mrb[0].mxu0
          %v9381 = vadd.f32 %v7940, %v9380
          %v9382 = vpop.f32.mrb[0].mxu0
          %9383 = vmatprep.mubr.bf16.mxu0 %v8840
          %9384 = vmatmul.mubr.bf16.gmra.mrb[0].mxu0 %v8839
          %v9385 = vpop.f32.mrb[0].mxu0
          %v9386 = vadd.f32 %v7941, %v9385
          %v9387 = vpop.f32.mrb[0].mxu0
          %v9388 = vpop.f32.mrb[0].mxu0
          %v9389 = vadd.f32 %v7942, %v9388
          %v9390 = vpop.f32.mrb[0].mxu0
          %9391 = vmatprep.mubr.bf16.mxu0 %v8848
          %9392 = vmatmul.mubr.bf16.gmra.mrb[0].mxu0 %v8847
          %v9393 = vpop.f32.mrb[0].mxu0
          %v9394 = vadd.f32 %v7943, %v9393
          %v9395 = vpop.f32.mrb[0].mxu0
          %v9396 = vpop.f32.mrb[0].mxu0
          %v9397 = vadd.f32 %v7944, %v9396
          %v9398 = vpop.f32.mrb[0].mxu0
          %9399 = vmatprep.mubr.bf16.mxu0 %v8856
          %9400 = vmatmul.mubr.bf16.gmra.mrb[0].mxu0 %v8855
          %v9401 = vpop.f32.mrb[0].mxu0
          %v9402 = vadd.f32 %v7945, %v9401
          %v9403 = vpop.f32.mrb[0].mxu0
          %v9404 = vpop.f32.mrb[0].mxu0
          %v9405 = vadd.f32 %v7946, %v9404
          %v9406 = vpop.f32.mrb[0].mxu0
          %9407 = vmatprep.mubr.bf16.mxu0 %v8864
          %9408 = vmatmul.mubr.bf16.gmra.mrb[0].mxu0 %v8863
          %v9409 = vpop.f32.mrb[0].mxu0
          %v9410 = vadd.f32 %v7947, %v9409
          %v9411 = vpop.f32.mrb[0].mxu0
          %v9412 = vpop.f32.mrb[0].mxu0
          %v9413 = vadd.f32 %v7948, %v9412
          %v9414 = vpop.f32.mrb[0].mxu0
          %9415 = vmatprep.mubr.bf16.mxu0 %v8872
          %9416 = vmatmul.mubr.bf16.gmra.mrb[0].mxu0 %v8871
          %v9417 = vpop.f32.mrb[0].mxu0
          %v9418 = vadd.f32 %v7949, %v9417
          %v9419 = vpop.f32.mrb[0].mxu0
          %v9420 = vpop.f32.mrb[0].mxu0
          %v9421 = vadd.f32 %v7950, %v9420
          %v9422 = vpop.f32.mrb[0].mxu0
          %9423 = vmatprep.mubr.bf16.mxu0 %v8880
          %9424 = vmatmul.mubr.bf16.gmra.mrb[0].mxu0 %v8879
          %v9425 = vpop.f32.mrb[0].mxu0
          %v9426 = vadd.f32 %v7951, %v9425
          %v9427 = vpop.f32.mrb[0].mxu0
          %v9428 = vpop.f32.mrb[0].mxu0
          %v9429 = vadd.f32 %v7952, %v9428
          %v9430 = vpop.f32.mrb[0].mxu0
          %9431 = vmatprep.mubr.bf16.mxu0 %v8888
          %9432 = vmatmul.mubr.bf16.gmra.mrb[0].mxu0 %v8887
          %v9433 = vpop.f32.mrb[0].mxu0
          %v9434 = vadd.f32 %v7953, %v9433
          %v9435 = vpop.f32.mrb[0].mxu0
          %v9436 = vpop.f32.mrb[0].mxu0
          %v9437 = vadd.f32 %v7954, %v9436
          %v9438 = vpop.f32.mrb[0].mxu0
          %9439 = vmatprep.mubr.bf16.mxu0 %v8896
          %9440 = vmatmul.mubr.bf16.gmra.mrb[0].mxu0 %v8895
          %v9441 = vpop.f32.mrb[0].mxu0
          %v9442 = vadd.f32 %v7955, %v9441
          %v9443 = vpop.f32.mrb[0].mxu0
          %v9444 = vpop.f32.mrb[0].mxu0
          %v9445 = vadd.f32 %v7956, %v9444
          %v9446 = vpop.f32.mrb[0].mxu0
          %9447 = vmatprep.mubr.bf16.mxu0 %v8904
          %9448 = vmatmul.mubr.bf16.gmra.mrb[0].mxu0 %v8903
          %v9449 = vpop.f32.mrb[0].mxu0
          %v9450 = vadd.f32 %v7957, %v9449
          %v9451 = vpop.f32.mrb[0].mxu0
          %v9452 = vpop.f32.mrb[0].mxu0
          %v9453 = vadd.f32 %v7958, %v9452
          %v9454 = vpop.f32.mrb[0].mxu0
          %9455 = vmatprep.mubr.bf16.mxu0 %v8912
          %9456 = vmatmul.mubr.bf16.gmra.mrb[0].mxu0 %v8911
          %v9457 = vpop.f32.mrb[0].mxu0
          %v9458 = vadd.f32 %v7959, %v9457
          %v9459 = vpop.f32.mrb[0].mxu0
          %v9460 = vpop.f32.mrb[0].mxu0
          %v9461 = vadd.f32 %v7960, %v9460
          %v9462 = vpop.f32.mrb[0].mxu0
          %9463 = vmatprep.mubr.bf16.mxu0 %v8920
          %9464 = vmatmul.mubr.bf16.gmra.mrb[0].mxu0 %v8919
          %v9465 = vpop.f32.mrb[0].mxu0
          %v9466 = vadd.f32 %v7961, %v9465
          %v9467 = vpop.f32.mrb[0].mxu0
          %v9468 = vpop.f32.mrb[0].mxu0
          %v9469 = vadd.f32 %v7962, %v9468
          %v9470 = vpop.f32.mrb[0].mxu0
          %9471 = vmatprep.mubr.bf16.mxu0 %v8928
          %9472 = vmatmul.mubr.bf16.gmra.mrb[0].mxu0 %v8927
          %v9473 = vpop.f32.mrb[0].mxu0
          %v9474 = vadd.f32 %v7963, %v9473
          %v9475 = vpop.f32.mrb[0].mxu0
          %v9476 = vpop.f32.mrb[0].mxu0
          %v9477 = vadd.f32 %v7964, %v9476
          %v9478 = vpop.f32.mrb[0].mxu0
          %9479 = vmatprep.mubr.bf16.mxu0 %v8936
          %9480 = vmatmul.mubr.bf16.gmra.mrb[0].mxu0 %v8935
          %v9481 = vpop.f32.mrb[0].mxu0
          %v9482 = vadd.f32 %v7965, %v9481
          %v9483 = vpop.f32.mrb[0].mxu0
          %v9484 = vpop.f32.mrb[0].mxu0
          %v9485 = vadd.f32 %v7966, %v9484
          %v9486 = vpop.f32.mrb[0].mxu0
          %9487 = vmatprep.mubr.bf16.mxu0 %v8944
          %9488 = vmatmul.mubr.bf16.gmra.mrb[0].mxu0 %v8943
          %v9489 = vpop.f32.mrb[0].mxu0
          %v9490 = vadd.f32 %v7967, %v9489
          %v9491 = vpop.f32.mrb[0].mxu0
          %v9492 = vpop.f32.mrb[0].mxu0
          %v9493 = vadd.f32 %v7968, %v9492
          %v9494 = vpop.f32.mrb[0].mxu0
          %9495 = vmatprep.mubr.bf16.mxu0 %v8952
          %9496 = vmatmul.mubr.bf16.gmra.mrb[0].mxu0 %v8951
          %v9497 = vpop.f32.mrb[0].mxu0
          %v9498 = vadd.f32 %v7969, %v9497
          %v9499 = vpop.f32.mrb[0].mxu0
          %v9500 = vpop.f32.mrb[0].mxu0
          %v9501 = vadd.f32 %v7970, %v9500
          %v9502 = vpop.f32.mrb[0].mxu0
          %9503 = vmatprep.mubr.bf16.mxu0 %v8960
          %9504 = vmatmul.mubr.bf16.gmra.mrb[0].mxu0 %v8959
          %v9505 = vpop.f32.mrb[0].mxu0
          %v9506 = vadd.f32 %v7971, %v9505
          %v9507 = vpop.f32.mrb[0].mxu0
          %v9508 = vpop.f32.mrb[0].mxu0
          %v9509 = vadd.f32 %v7972, %v9508
          %v9510 = vpop.f32.mrb[0].mxu0
          %9511 = vmatprep.mubr.bf16.mxu0 %v8968
          %9512 = vmatmul.mubr.bf16.gmra.mrb[0].mxu0 %v8967
          %v9513 = vpop.f32.mrb[0].mxu0
          %v9514 = vadd.f32 %v7973, %v9513
          %v9515 = vpop.f32.mrb[0].mxu0
          %v9516 = vpop.f32.mrb[0].mxu0
          %v9517 = vadd.f32 %v7974, %v9516
          %v9518 = vpop.f32.mrb[0].mxu0
          %9519 = vmatprep.mubr.bf16.mxu0 %v8976
          %9520 = vmatmul.mubr.bf16.gmra.mrb[0].mxu0 %v8975
          %v9521 = vpop.f32.mrb[0].mxu0
          %v9522 = vadd.f32 %v7975, %v9521
          %v9523 = vpop.f32.mrb[0].mxu0
          %v9524 = vpop.f32.mrb[0].mxu0
          %v9525 = vadd.f32 %v7976, %v9524
          %v9526 = vpop.f32.mrb[0].mxu0
          %9527 = vmatprep.mubr.bf16.mxu0 %v8984
          %9528 = vmatmul.mubr.bf16.gmra.mrb[0].mxu0 %v8983
          %v9529 = vpop.f32.mrb[0].mxu0
          %v9530 = vadd.f32 %v7977, %v9529
          %v9531 = vpop.f32.mrb[0].mxu0
          %v9532 = vpop.f32.mrb[0].mxu0
          %v9533 = vadd.f32 %v7978, %v9532
          %v9534 = vpop.f32.mrb[0].mxu0
          %9535 = vmatprep.mubr.bf16.mxu0 %v8992
          %9536 = vmatmul.mubr.bf16.gmra.mrb[0].mxu0 %v8991
          %v9537 = vpop.f32.mrb[0].mxu0
          %v9538 = vadd.f32 %v7979, %v9537
          %v9539 = vpop.f32.mrb[0].mxu0
          %v9540 = vpop.f32.mrb[0].mxu0
          %v9541 = vadd.f32 %v7980, %v9540
          %v9542 = vpop.f32.mrb[0].mxu0
          %9543 = vmatprep.mubr.bf16.mxu0 %v9000
          %9544 = vmatmul.mubr.bf16.gmra.mrb[0].mxu0 %v8999
          %v9545 = vpop.f32.mrb[0].mxu0
          %v9546 = vadd.f32 %v7981, %v9545
          %v9547 = vpop.f32.mrb[0].mxu0
          %v9548 = vpop.f32.mrb[0].mxu0
          %v9549 = vadd.f32 %v7982, %v9548
          %v9550 = vpop.f32.mrb[0].mxu0
          %9551 = vdwg.mxu0
          %9552 = vmatprep.subr.bf16.mxu0 0
          %9553 = vmatpush1.bf16.msra.mxu0 %v7615
          %9554 = vmatprep.subr.bf16.mxu0 0
          %9555 = vmatpush1.bf16.msra.mxu0 %v7616
          %9556 = vmatprep.subr.bf16.mxu0 0
          %9557 = vmatpush1.bf16.msra.mxu0 %v7617
          %9558 = vmatprep.subr.bf16.mxu0 0
          %9559 = vmatpush1.bf16.msra.mxu0 %v7618
          %9560 = vmatprep.subr.bf16.mxu0 0
          %9561 = vmatpush1.bf16.msra.mxu0 %v7619
          %9562 = vmatprep.subr.bf16.mxu0 0
          %9563 = vmatpush1.bf16.msra.mxu0 %v7620
          %9564 = vmatprep.subr.bf16.mxu0 0
          %9565 = vmatpush1.bf16.msra.mxu0 %v7621
          %9566 = vmatprep.subr.bf16.mxu0 0
          %9567 = vmatpush1.bf16.msra.mxu0 %v7622
          %9568 = vmatprep.subr.bf16.mxu0 0
          %9569 = vmatpush1.bf16.msra.mxu0 %v7623
          %9570 = vmatprep.subr.bf16.mxu0 0
          %9571 = vmatpush1.bf16.msra.mxu0 %v7624
          %9572 = vmatprep.subr.bf16.mxu0 0
          %9573 = vmatpush1.bf16.msra.mxu0 %v7625
          %9574 = vmatprep.subr.bf16.mxu0 0
          %9575 = vmatpush1.bf16.msra.mxu0 %v7626
          %9576 = vmatprep.subr.bf16.mxu0 0
          %9577 = vmatpush1.bf16.msra.mxu0 %v7627
          %9578 = vmatprep.subr.bf16.mxu0 0
          %9579 = vmatpush1.bf16.msra.mxu0 %v7628
          %9580 = vmatprep.subr.bf16.mxu0 0
          %9581 = vmatpush1.bf16.msra.mxu0 %v7629
          %9582 = vmatprep.subr.bf16.mxu0 0
          %9583 = vmatpush1.bf16.msra.mxu0 %v7630
          %9584 = vmatprep.mubr.bf16.mxu0 %v8754
          %9585 = vmatmul.mubr.bf16.gmra.mrb[0].mxu0 %v8753
          %v9586 = vpop.f32.mrb[0].mxu0
          %v9587 = vadd.f32 %v9298, %v9586
          %v9588 = vpop.f32.mrb[0].mxu0
          %v9589 = vpop.f32.mrb[0].mxu0
          %v9590 = vadd.f32 %v9301, %v9589
          %v9591 = vpop.f32.mrb[0].mxu0
          %9592 = vmatprep.mubr.bf16.mxu0 %v8762
          %9593 = vmatmul.mubr.bf16.gmra.mrb[0].mxu0 %v8761
          %v9594 = vpop.f32.mrb[0].mxu0
          %v9595 = vadd.f32 %v9306, %v9594
          %v9596 = vpop.f32.mrb[0].mxu0
          %v9597 = vpop.f32.mrb[0].mxu0
          %v9598 = vadd.f32 %v9309, %v9597
          %v9599 = vpop.f32.mrb[0].mxu0
          %9600 = vmatprep.mubr.bf16.mxu0 %v8770
          %9601 = vmatmul.mubr.bf16.gmra.mrb[0].mxu0 %v8769
          %v9602 = vpop.f32.mrb[0].mxu0
          %v9603 = vadd.f32 %v9314, %v9602
          %v9604 = vpop.f32.mrb[0].mxu0
          %v9605 = vpop.f32.mrb[0].mxu0
          %v9606 = vadd.f32 %v9317, %v9605
          %v9607 = vpop.f32.mrb[0].mxu0
          %9608 = vmatprep.mubr.bf16.mxu0 %v8778
          %9609 = vmatmul.mubr.bf16.gmra.mrb[0].mxu0 %v8777
          %v9610 = vpop.f32.mrb[0].mxu0
          %v9611 = vadd.f32 %v9322, %v9610
          %v9612 = vpop.f32.mrb[0].mxu0
          %v9613 = vpop.f32.mrb[0].mxu0
          %v9614 = vadd.f32 %v9325, %v9613
          %v9615 = vpop.f32.mrb[0].mxu0
          %9616 = vmatprep.mubr.bf16.mxu0 %v8786
          %9617 = vmatmul.mubr.bf16.gmra.mrb[0].mxu0 %v8785
          %v9618 = vpop.f32.mrb[0].mxu0
          %v9619 = vadd.f32 %v9330, %v9618
          %v9620 = vpop.f32.mrb[0].mxu0
          %v9621 = vpop.f32.mrb[0].mxu0
          %v9622 = vadd.f32 %v9333, %v9621
          %v9623 = vpop.f32.mrb[0].mxu0
          %9624 = vmatprep.mubr.bf16.mxu0 %v8794
          %9625 = vmatmul.mubr.bf16.gmra.mrb[0].mxu0 %v8793
          %v9626 = vpop.f32.mrb[0].mxu0
          %v9627 = vadd.f32 %v9338, %v9626
          %v9628 = vpop.f32.mrb[0].mxu0
          %v9629 = vpop.f32.mrb[0].mxu0
          %v9630 = vadd.f32 %v9341, %v9629
          %v9631 = vpop.f32.mrb[0].mxu0
          %9632 = vmatprep.mubr.bf16.mxu0 %v8802
          %9633 = vmatmul.mubr.bf16.gmra.mrb[0].mxu0 %v8801
          %v9634 = vpop.f32.mrb[0].mxu0
          %v9635 = vadd.f32 %v9346, %v9634
          %v9636 = vpop.f32.mrb[0].mxu0
          %v9637 = vpop.f32.mrb[0].mxu0
          %v9638 = vadd.f32 %v9349, %v9637
          %v9639 = vpop.f32.mrb[0].mxu0
          %9640 = vmatprep.mubr.bf16.mxu0 %v8810
          %9641 = vmatmul.mubr.bf16.gmra.mrb[0].mxu0 %v8809
          %v9642 = vpop.f32.mrb[0].mxu0
          %v9643 = vadd.f32 %v9354, %v9642
          %v9644 = vpop.f32.mrb[0].mxu0
          %v9645 = vpop.f32.mrb[0].mxu0
          %v9646 = vadd.f32 %v9357, %v9645
          %v9647 = vpop.f32.mrb[0].mxu0
          %9648 = vmatprep.mubr.bf16.mxu0 %v8818
          %9649 = vmatmul.mubr.bf16.gmra.mrb[0].mxu0 %v8817
          %v9650 = vpop.f32.mrb[0].mxu0
          %v9651 = vadd.f32 %v9362, %v9650
          %v9652 = vpop.f32.mrb[0].mxu0
          %v9653 = vpop.f32.mrb[0].mxu0
          %v9654 = vadd.f32 %v9365, %v9653
          %v9655 = vpop.f32.mrb[0].mxu0
          %9656 = vmatprep.mubr.bf16.mxu0 %v8826
          %9657 = vmatmul.mubr.bf16.gmra.mrb[0].mxu0 %v8825
          %v9658 = vpop.f32.mrb[0].mxu0
          %v9659 = vadd.f32 %v9370, %v9658
          %v9660 = vpop.f32.mrb[0].mxu0
          %v9661 = vpop.f32.mrb[0].mxu0
          %v9662 = vadd.f32 %v9373, %v9661
          %v9663 = vpop.f32.mrb[0].mxu0
          %9664 = vmatprep.mubr.bf16.mxu0 %v8834
          %9665 = vmatmul.mubr.bf16.gmra.mrb[0].mxu0 %v8833
          %v9666 = vpop.f32.mrb[0].mxu0
          %v9667 = vadd.f32 %v9378, %v9666
          %v9668 = vpop.f32.mrb[0].mxu0
          %v9669 = vpop.f32.mrb[0].mxu0
          %v9670 = vadd.f32 %v9381, %v9669
          %v9671 = vpop.f32.mrb[0].mxu0
          %9672 = vmatprep.mubr.bf16.mxu0 %v8842
          %9673 = vmatmul.mubr.bf16.gmra.mrb[0].mxu0 %v8841
          %v9674 = vpop.f32.mrb[0].mxu0
          %v9675 = vadd.f32 %v9386, %v9674
          %v9676 = vpop.f32.mrb[0].mxu0
          %v9677 = vpop.f32.mrb[0].mxu0
          %v9678 = vadd.f32 %v9389, %v9677
          %v9679 = vpop.f32.mrb[0].mxu0
          %9680 = vmatprep.mubr.bf16.mxu0 %v8850
          %9681 = vmatmul.mubr.bf16.gmra.mrb[0].mxu0 %v8849
          %v9682 = vpop.f32.mrb[0].mxu0
          %v9683 = vadd.f32 %v9394, %v9682
          %v9684 = vpop.f32.mrb[0].mxu0
          %v9685 = vpop.f32.mrb[0].mxu0
          %v9686 = vadd.f32 %v9397, %v9685
          %v9687 = vpop.f32.mrb[0].mxu0
          %9688 = vmatprep.mubr.bf16.mxu0 %v8858
          %9689 = vmatmul.mubr.bf16.gmra.mrb[0].mxu0 %v8857
          %v9690 = vpop.f32.mrb[0].mxu0
          %v9691 = vadd.f32 %v9402, %v9690
          %v9692 = vpop.f32.mrb[0].mxu0
          %v9693 = vpop.f32.mrb[0].mxu0
          %v9694 = vadd.f32 %v9405, %v9693
          %v9695 = vpop.f32.mrb[0].mxu0
          %9696 = vmatprep.mubr.bf16.mxu0 %v8866
          %9697 = vmatmul.mubr.bf16.gmra.mrb[0].mxu0 %v8865
          %v9698 = vpop.f32.mrb[0].mxu0
          %v9699 = vadd.f32 %v9410, %v9698
          %v9700 = vpop.f32.mrb[0].mxu0
          %v9701 = vpop.f32.mrb[0].mxu0
          %v9702 = vadd.f32 %v9413, %v9701
          %v9703 = vpop.f32.mrb[0].mxu0
          %9704 = vmatprep.mubr.bf16.mxu0 %v8874
          %9705 = vmatmul.mubr.bf16.gmra.mrb[0].mxu0 %v8873
          %v9706 = vpop.f32.mrb[0].mxu0
          %v9707 = vadd.f32 %v9418, %v9706
          %v9708 = vpop.f32.mrb[0].mxu0
          %v9709 = vpop.f32.mrb[0].mxu0
          %v9710 = vadd.f32 %v9421, %v9709
          %v9711 = vpop.f32.mrb[0].mxu0
          %9712 = vmatprep.mubr.bf16.mxu0 %v8882
          %9713 = vmatmul.mubr.bf16.gmra.mrb[0].mxu0 %v8881
          %v9714 = vpop.f32.mrb[0].mxu0
          %v9715 = vadd.f32 %v9426, %v9714
          %v9716 = vpop.f32.mrb[0].mxu0
          %v9717 = vpop.f32.mrb[0].mxu0
          %v9718 = vadd.f32 %v9429, %v9717
          %v9719 = vpop.f32.mrb[0].mxu0
          %9720 = vmatprep.mubr.bf16.mxu0 %v8890
          %9721 = vmatmul.mubr.bf16.gmra.mrb[0].mxu0 %v8889
          %v9722 = vpop.f32.mrb[0].mxu0
          %v9723 = vadd.f32 %v9434, %v9722
          %v9724 = vpop.f32.mrb[0].mxu0
          %v9725 = vpop.f32.mrb[0].mxu0
          %v9726 = vadd.f32 %v9437, %v9725
          %v9727 = vpop.f32.mrb[0].mxu0
          %9728 = vmatprep.mubr.bf16.mxu0 %v8898
          %9729 = vmatmul.mubr.bf16.gmra.mrb[0].mxu0 %v8897
          %v9730 = vpop.f32.mrb[0].mxu0
          %v9731 = vadd.f32 %v9442, %v9730
          %v9732 = vpop.f32.mrb[0].mxu0
          %v9733 = vpop.f32.mrb[0].mxu0
          %v9734 = vadd.f32 %v9445, %v9733
          %v9735 = vpop.f32.mrb[0].mxu0
          %9736 = vmatprep.mubr.bf16.mxu0 %v8906
          %9737 = vmatmul.mubr.bf16.gmra.mrb[0].mxu0 %v8905
          %v9738 = vpop.f32.mrb[0].mxu0
          %v9739 = vadd.f32 %v9450, %v9738
          %v9740 = vpop.f32.mrb[0].mxu0
          %v9741 = vpop.f32.mrb[0].mxu0
          %v9742 = vadd.f32 %v9453, %v9741
          %v9743 = vpop.f32.mrb[0].mxu0
          %9744 = vmatprep.mubr.bf16.mxu0 %v8914
          %9745 = vmatmul.mubr.bf16.gmra.mrb[0].mxu0 %v8913
          %v9746 = vpop.f32.mrb[0].mxu0
          %v9747 = vadd.f32 %v9458, %v9746
          %v9748 = vpop.f32.mrb[0].mxu0
          %v9749 = vpop.f32.mrb[0].mxu0
          %v9750 = vadd.f32 %v9461, %v9749
          %v9751 = vpop.f32.mrb[0].mxu0
          %9752 = vmatprep.mubr.bf16.mxu0 %v8922
          %9753 = vmatmul.mubr.bf16.gmra.mrb[0].mxu0 %v8921
          %v9754 = vpop.f32.mrb[0].mxu0
          %v9755 = vadd.f32 %v9466, %v9754
          %v9756 = vpop.f32.mrb[0].mxu0
          %v9757 = vpop.f32.mrb[0].mxu0
          %v9758 = vadd.f32 %v9469, %v9757
          %v9759 = vpop.f32.mrb[0].mxu0
          %9760 = vmatprep.mubr.bf16.mxu0 %v8930
          %9761 = vmatmul.mubr.bf16.gmra.mrb[0].mxu0 %v8929
          %v9762 = vpop.f32.mrb[0].mxu0
          %v9763 = vadd.f32 %v9474, %v9762
          %v9764 = vpop.f32.mrb[0].mxu0
          %v9765 = vpop.f32.mrb[0].mxu0
          %v9766 = vadd.f32 %v9477, %v9765
          %v9767 = vpop.f32.mrb[0].mxu0
          %9768 = vmatprep.mubr.bf16.mxu0 %v8938
          %9769 = vmatmul.mubr.bf16.gmra.mrb[0].mxu0 %v8937
          %v9770 = vpop.f32.mrb[0].mxu0
          %v9771 = vadd.f32 %v9482, %v9770
          %v9772 = vpop.f32.mrb[0].mxu0
          %v9773 = vpop.f32.mrb[0].mxu0
          %v9774 = vadd.f32 %v9485, %v9773
          %v9775 = vpop.f32.mrb[0].mxu0
          %9776 = vmatprep.mubr.bf16.mxu0 %v8946
          %9777 = vmatmul.mubr.bf16.gmra.mrb[0].mxu0 %v8945
          %v9778 = vpop.f32.mrb[0].mxu0
          %v9779 = vadd.f32 %v9490, %v9778
          %v9780 = vpop.f32.mrb[0].mxu0
          %v9781 = vpop.f32.mrb[0].mxu0
          %v9782 = vadd.f32 %v9493, %v9781
          %v9783 = vpop.f32.mrb[0].mxu0
          %9784 = vmatprep.mubr.bf16.mxu0 %v8954
          %9785 = vmatmul.mubr.bf16.gmra.mrb[0].mxu0 %v8953
          %v9786 = vpop.f32.mrb[0].mxu0
          %v9787 = vadd.f32 %v9498, %v9786
          %v9788 = vpop.f32.mrb[0].mxu0
          %v9789 = vpop.f32.mrb[0].mxu0
          %v9790 = vadd.f32 %v9501, %v9789
          %v9791 = vpop.f32.mrb[0].mxu0
          %9792 = vmatprep.mubr.bf16.mxu0 %v8962
          %9793 = vmatmul.mubr.bf16.gmra.mrb[0].mxu0 %v8961
          %v9794 = vpop.f32.mrb[0].mxu0
          %v9795 = vadd.f32 %v9506, %v9794
          %v9796 = vpop.f32.mrb[0].mxu0
          %v9797 = vpop.f32.mrb[0].mxu0
          %v9798 = vadd.f32 %v9509, %v9797
          %v9799 = vpop.f32.mrb[0].mxu0
          %9800 = vmatprep.mubr.bf16.mxu0 %v8970
          %9801 = vmatmul.mubr.bf16.gmra.mrb[0].mxu0 %v8969
          %v9802 = vpop.f32.mrb[0].mxu0
          %v9803 = vadd.f32 %v9514, %v9802
          %v9804 = vpop.f32.mrb[0].mxu0
          %v9805 = vpop.f32.mrb[0].mxu0
          %v9806 = vadd.f32 %v9517, %v9805
          %v9807 = vpop.f32.mrb[0].mxu0
          %9808 = vmatprep.mubr.bf16.mxu0 %v8978
          %9809 = vmatmul.mubr.bf16.gmra.mrb[0].mxu0 %v8977
          %v9810 = vpop.f32.mrb[0].mxu0
          %v9811 = vadd.f32 %v9522, %v9810
          %v9812 = vpop.f32.mrb[0].mxu0
          %v9813 = vpop.f32.mrb[0].mxu0
          %v9814 = vadd.f32 %v9525, %v9813
          %v9815 = vpop.f32.mrb[0].mxu0
          %9816 = vmatprep.mubr.bf16.mxu0 %v8986
          %9817 = vmatmul.mubr.bf16.gmra.mrb[0].mxu0 %v8985
          %v9818 = vpop.f32.mrb[0].mxu0
          %v9819 = vadd.f32 %v9530, %v9818
          %v9820 = vpop.f32.mrb[0].mxu0
          %v9821 = vpop.f32.mrb[0].mxu0
          %v9822 = vadd.f32 %v9533, %v9821
          %v9823 = vpop.f32.mrb[0].mxu0
          %9824 = vmatprep.mubr.bf16.mxu0 %v8994
          %9825 = vmatmul.mubr.bf16.gmra.mrb[0].mxu0 %v8993
          %v9826 = vpop.f32.mrb[0].mxu0
          %v9827 = vadd.f32 %v9538, %v9826
          %v9828 = vpop.f32.mrb[0].mxu0
          %v9829 = vpop.f32.mrb[0].mxu0
          %v9830 = vadd.f32 %v9541, %v9829
          %v9831 = vpop.f32.mrb[0].mxu0
          %9832 = vmatprep.mubr.bf16.mxu0 %v9002
          %9833 = vmatmul.mubr.bf16.gmra.mrb[0].mxu0 %v9001
          %v9834 = vpop.f32.mrb[0].mxu0
          %v9835 = vadd.f32 %v9546, %v9834
          %v9836 = vpop.f32.mrb[0].mxu0
          %v9837 = vpop.f32.mrb[0].mxu0
          %v9838 = vadd.f32 %v9549, %v9837
          %v9839 = vpop.f32.mrb[0].mxu0
          %9840 = vdwg.mxu0
          %9841 = vmatprep.subr.bf16.mxu0 0
          %9842 = vmatpush1.bf16.msra.mxu0 %v7631
          %9843 = vmatprep.subr.bf16.mxu0 0
          %9844 = vmatpush1.bf16.msra.mxu0 %v7632
          %9845 = vmatprep.subr.bf16.mxu0 0
          %9846 = vmatpush1.bf16.msra.mxu0 %v7633
          %9847 = vmatprep.subr.bf16.mxu0 0
          %9848 = vmatpush1.bf16.msra.mxu0 %v7634
          %9849 = vmatprep.subr.bf16.mxu0 0
          %9850 = vmatpush1.bf16.msra.mxu0 %v7635
          %9851 = vmatprep.subr.bf16.mxu0 0
          %9852 = vmatpush1.bf16.msra.mxu0 %v7636
          %9853 = vmatprep.subr.bf16.mxu0 0
          %9854 = vmatpush1.bf16.msra.mxu0 %v7637
          %9855 = vmatprep.subr.bf16.mxu0 0
          %9856 = vmatpush1.bf16.msra.mxu0 %v7638
          %9857 = vmatprep.subr.bf16.mxu0 0
          %9858 = vmatpush1.bf16.msra.mxu0 %v7639
          %9859 = vmatprep.subr.bf16.mxu0 0
          %9860 = vmatpush1.bf16.msra.mxu0 %v7640
          %9861 = vmatprep.subr.bf16.mxu0 0
          %9862 = vmatpush1.bf16.msra.mxu0 %v7641
          %9863 = vmatprep.subr.bf16.mxu0 0
          %9864 = vmatpush1.bf16.msra.mxu0 %v7642
          %9865 = vmatprep.subr.bf16.mxu0 0
          %9866 = vmatpush1.bf16.msra.mxu0 %v7643
          %9867 = vmatprep.subr.bf16.mxu0 0
          %9868 = vmatpush1.bf16.msra.mxu0 %v7644
          %9869 = vmatprep.subr.bf16.mxu0 0
          %9870 = vmatpush1.bf16.msra.mxu0 %v7645
          %9871 = vmatprep.subr.bf16.mxu0 0
          %9872 = vmatpush1.bf16.msra.mxu0 %v7646
          %9873 = vmatprep.mubr.bf16.mxu0 %v8756
          %9874 = vmatmul.mubr.bf16.gmra.mrb[0].mxu0 %v8755
          %v9875 = vpop.f32.mrb[0].mxu0
          %v9876 = vadd.f32 %v9587, %v9875
          %v9877 = vpop.f32.mrb[0].mxu0
          %v9878 = vpop.f32.mrb[0].mxu0
          %v9879 = vadd.f32 %v9590, %v9878
          %v9880 = vpop.f32.mrb[0].mxu0
          %9881 = vmatprep.mubr.bf16.mxu0 %v8764
          %9882 = vmatmul.mubr.bf16.gmra.mrb[0].mxu0 %v8763
          %v9883 = vpop.f32.mrb[0].mxu0
          %v9884 = vadd.f32 %v9595, %v9883
          %v9885 = vpop.f32.mrb[0].mxu0
          %v9886 = vpop.f32.mrb[0].mxu0
          %v9887 = vadd.f32 %v9598, %v9886
          %v9888 = vpop.f32.mrb[0].mxu0
          %9889 = vmatprep.mubr.bf16.mxu0 %v8772
          %9890 = vmatmul.mubr.bf16.gmra.mrb[0].mxu0 %v8771
          %v9891 = vpop.f32.mrb[0].mxu0
          %v9892 = vadd.f32 %v9603, %v9891
          %v9893 = vpop.f32.mrb[0].mxu0
          %v9894 = vpop.f32.mrb[0].mxu0
          %v9895 = vadd.f32 %v9606, %v9894
          %v9896 = vpop.f32.mrb[0].mxu0
          %9897 = vmatprep.mubr.bf16.mxu0 %v8780
          %9898 = vmatmul.mubr.bf16.gmra.mrb[0].mxu0 %v8779
          %v9899 = vpop.f32.mrb[0].mxu0
          %v9900 = vadd.f32 %v9611, %v9899
          %v9901 = vpop.f32.mrb[0].mxu0
          %v9902 = vpop.f32.mrb[0].mxu0
          %v9903 = vadd.f32 %v9614, %v9902
          %v9904 = vpop.f32.mrb[0].mxu0
          %9905 = vmatprep.mubr.bf16.mxu0 %v8788
          %9906 = vmatmul.mubr.bf16.gmra.mrb[0].mxu0 %v8787
          %v9907 = vpop.f32.mrb[0].mxu0
          %v9908 = vadd.f32 %v9619, %v9907
          %v9909 = vpop.f32.mrb[0].mxu0
          %v9910 = vpop.f32.mrb[0].mxu0
          %v9911 = vadd.f32 %v9622, %v9910
          %v9912 = vpop.f32.mrb[0].mxu0
          %9913 = vmatprep.mubr.bf16.mxu0 %v8796
          %9914 = vmatmul.mubr.bf16.gmra.mrb[0].mxu0 %v8795
          %v9915 = vpop.f32.mrb[0].mxu0
          %v9916 = vadd.f32 %v9627, %v9915
          %v9917 = vpop.f32.mrb[0].mxu0
          %v9918 = vpop.f32.mrb[0].mxu0
          %v9919 = vadd.f32 %v9630, %v9918
          %v9920 = vpop.f32.mrb[0].mxu0
          %9921 = vmatprep.mubr.bf16.mxu0 %v8804
          %9922 = vmatmul.mubr.bf16.gmra.mrb[0].mxu0 %v8803
          %v9923 = vpop.f32.mrb[0].mxu0
          %v9924 = vadd.f32 %v9635, %v9923
          %v9925 = vpop.f32.mrb[0].mxu0
          %v9926 = vpop.f32.mrb[0].mxu0
          %v9927 = vadd.f32 %v9638, %v9926
          %v9928 = vpop.f32.mrb[0].mxu0
          %9929 = vmatprep.mubr.bf16.mxu0 %v8812
          %9930 = vmatmul.mubr.bf16.gmra.mrb[0].mxu0 %v8811
          %v9931 = vpop.f32.mrb[0].mxu0
          %v9932 = vadd.f32 %v9643, %v9931
          %v9933 = vpop.f32.mrb[0].mxu0
          %v9934 = vpop.f32.mrb[0].mxu0
          %v9935 = vadd.f32 %v9646, %v9934
          %v9936 = vpop.f32.mrb[0].mxu0
          %9937 = vmatprep.mubr.bf16.mxu0 %v8820
          %9938 = vmatmul.mubr.bf16.gmra.mrb[0].mxu0 %v8819
          %v9939 = vpop.f32.mrb[0].mxu0
          %v9940 = vadd.f32 %v9651, %v9939
          %v9941 = vpop.f32.mrb[0].mxu0
          %v9942 = vpop.f32.mrb[0].mxu0
          %v9943 = vadd.f32 %v9654, %v9942
          %v9944 = vpop.f32.mrb[0].mxu0
          %9945 = vmatprep.mubr.bf16.mxu0 %v8828
          %9946 = vmatmul.mubr.bf16.gmra.mrb[0].mxu0 %v8827
          %v9947 = vpop.f32.mrb[0].mxu0
          %v9948 = vadd.f32 %v9659, %v9947
          %v9949 = vpop.f32.mrb[0].mxu0
          %v9950 = vpop.f32.mrb[0].mxu0
          %v9951 = vadd.f32 %v9662, %v9950
          %v9952 = vpop.f32.mrb[0].mxu0
          %9953 = vmatprep.mubr.bf16.mxu0 %v8836
          %9954 = vmatmul.mubr.bf16.gmra.mrb[0].mxu0 %v8835
          %v9955 = vpop.f32.mrb[0].mxu0
          %v9956 = vadd.f32 %v9667, %v9955
          %v9957 = vpop.f32.mrb[0].mxu0
          %v9958 = vpop.f32.mrb[0].mxu0
          %v9959 = vadd.f32 %v9670, %v9958
          %v9960 = vpop.f32.mrb[0].mxu0
          %9961 = vmatprep.mubr.bf16.mxu0 %v8844
          %9962 = vmatmul.mubr.bf16.gmra.mrb[0].mxu0 %v8843
          %v9963 = vpop.f32.mrb[0].mxu0
          %v9964 = vadd.f32 %v9675, %v9963
          %v9965 = vpop.f32.mrb[0].mxu0
          %v9966 = vpop.f32.mrb[0].mxu0
          %v9967 = vadd.f32 %v9678, %v9966
          %v9968 = vpop.f32.mrb[0].mxu0
          %9969 = vmatprep.mubr.bf16.mxu0 %v8852
          %9970 = vmatmul.mubr.bf16.gmra.mrb[0].mxu0 %v8851
          %v9971 = vpop.f32.mrb[0].mxu0
          %v9972 = vadd.f32 %v9683, %v9971
          %v9973 = vpop.f32.mrb[0].mxu0
          %v9974 = vpop.f32.mrb[0].mxu0
          %v9975 = vadd.f32 %v9686, %v9974
          %v9976 = vpop.f32.mrb[0].mxu0
          %9977 = vmatprep.mubr.bf16.mxu0 %v8860
          %9978 = vmatmul.mubr.bf16.gmra.mrb[0].mxu0 %v8859
          %v9979 = vpop.f32.mrb[0].mxu0
          %v9980 = vadd.f32 %v9691, %v9979
          %v9981 = vpop.f32.mrb[0].mxu0
          %v9982 = vpop.f32.mrb[0].mxu0
          %v9983 = vadd.f32 %v9694, %v9982
          %v9984 = vpop.f32.mrb[0].mxu0
          %9985 = vmatprep.mubr.bf16.mxu0 %v8868
          %9986 = vmatmul.mubr.bf16.gmra.mrb[0].mxu0 %v8867
          %v9987 = vpop.f32.mrb[0].mxu0
          %v9988 = vadd.f32 %v9699, %v9987
          %v9989 = vpop.f32.mrb[0].mxu0
          %v9990 = vpop.f32.mrb[0].mxu0
          %v9991 = vadd.f32 %v9702, %v9990
          %v9992 = vpop.f32.mrb[0].mxu0
          %9993 = vmatprep.mubr.bf16.mxu0 %v8876
          %9994 = vmatmul.mubr.bf16.gmra.mrb[0].mxu0 %v8875
          %v9995 = vpop.f32.mrb[0].mxu0
          %v9996 = vadd.f32 %v9707, %v9995
          %v9997 = vpop.f32.mrb[0].mxu0
          %v9998 = vpop.f32.mrb[0].mxu0
          %v9999 = vadd.f32 %v9710, %v9998
          %v10000 = vpop.f32.mrb[0].mxu0
          %10001 = vmatprep.mubr.bf16.mxu0 %v8884
          %10002 = vmatmul.mubr.bf16.gmra.mrb[0].mxu0 %v8883
          %v10003 = vpop.f32.mrb[0].mxu0
          %v10004 = vadd.f32 %v9715, %v10003
          %v10005 = vpop.f32.mrb[0].mxu0
          %v10006 = vpop.f32.mrb[0].mxu0
          %v10007 = vadd.f32 %v9718, %v10006
          %v10008 = vpop.f32.mrb[0].mxu0
          %10009 = vmatprep.mubr.bf16.mxu0 %v8892
          %10010 = vmatmul.mubr.bf16.gmra.mrb[0].mxu0 %v8891
          %v10011 = vpop.f32.mrb[0].mxu0
          %v10012 = vadd.f32 %v9723, %v10011
          %v10013 = vpop.f32.mrb[0].mxu0
          %v10014 = vpop.f32.mrb[0].mxu0
          %v10015 = vadd.f32 %v9726, %v10014
          %v10016 = vpop.f32.mrb[0].mxu0
          %10017 = vmatprep.mubr.bf16.mxu0 %v8900
          %10018 = vmatmul.mubr.bf16.gmra.mrb[0].mxu0 %v8899
          %v10019 = vpop.f32.mrb[0].mxu0
          %v10020 = vadd.f32 %v9731, %v10019
          %v10021 = vpop.f32.mrb[0].mxu0
          %v10022 = vpop.f32.mrb[0].mxu0
          %v10023 = vadd.f32 %v9734, %v10022
          %v10024 = vpop.f32.mrb[0].mxu0
          %10025 = vmatprep.mubr.bf16.mxu0 %v8908
          %10026 = vmatmul.mubr.bf16.gmra.mrb[0].mxu0 %v8907
          %v10027 = vpop.f32.mrb[0].mxu0
          %v10028 = vadd.f32 %v9739, %v10027
          %v10029 = vpop.f32.mrb[0].mxu0
          %v10030 = vpop.f32.mrb[0].mxu0
          %v10031 = vadd.f32 %v9742, %v10030
          %v10032 = vpop.f32.mrb[0].mxu0
          %10033 = vmatprep.mubr.bf16.mxu0 %v8916
          %10034 = vmatmul.mubr.bf16.gmra.mrb[0].mxu0 %v8915
          %v10035 = vpop.f32.mrb[0].mxu0
          %v10036 = vadd.f32 %v9747, %v10035
          %v10037 = vpop.f32.mrb[0].mxu0
          %v10038 = vpop.f32.mrb[0].mxu0
          %v10039 = vadd.f32 %v9750, %v10038
          %v10040 = vpop.f32.mrb[0].mxu0
          %10041 = vmatprep.mubr.bf16.mxu0 %v8924
          %10042 = vmatmul.mubr.bf16.gmra.mrb[0].mxu0 %v8923
          %v10043 = vpop.f32.mrb[0].mxu0
          %v10044 = vadd.f32 %v9755, %v10043
          %v10045 = vpop.f32.mrb[0].mxu0
          %v10046 = vpop.f32.mrb[0].mxu0
          %v10047 = vadd.f32 %v9758, %v10046
          %v10048 = vpop.f32.mrb[0].mxu0
          %10049 = vmatprep.mubr.bf16.mxu0 %v8932
          %10050 = vmatmul.mubr.bf16.gmra.mrb[0].mxu0 %v8931
          %v10051 = vpop.f32.mrb[0].mxu0
          %v10052 = vadd.f32 %v9763, %v10051
          %v10053 = vpop.f32.mrb[0].mxu0
          %v10054 = vpop.f32.mrb[0].mxu0
          %v10055 = vadd.f32 %v9766, %v10054
          %v10056 = vpop.f32.mrb[0].mxu0
          %10057 = vmatprep.mubr.bf16.mxu0 %v8940
          %10058 = vmatmul.mubr.bf16.gmra.mrb[0].mxu0 %v8939
          %v10059 = vpop.f32.mrb[0].mxu0
          %v10060 = vadd.f32 %v9771, %v10059
          %v10061 = vpop.f32.mrb[0].mxu0
          %v10062 = vpop.f32.mrb[0].mxu0
          %v10063 = vadd.f32 %v9774, %v10062
          %v10064 = vpop.f32.mrb[0].mxu0
          %10065 = vmatprep.mubr.bf16.mxu0 %v8948
          %10066 = vmatmul.mubr.bf16.gmra.mrb[0].mxu0 %v8947
          %v10067 = vpop.f32.mrb[0].mxu0
          %v10068 = vadd.f32 %v9779, %v10067
          %v10069 = vpop.f32.mrb[0].mxu0
          %v10070 = vpop.f32.mrb[0].mxu0
          %v10071 = vadd.f32 %v9782, %v10070
          %v10072 = vpop.f32.mrb[0].mxu0
          %10073 = vmatprep.mubr.bf16.mxu0 %v8956
          %10074 = vmatmul.mubr.bf16.gmra.mrb[0].mxu0 %v8955
          %v10075 = vpop.f32.mrb[0].mxu0
          %v10076 = vadd.f32 %v9787, %v10075
          %v10077 = vpop.f32.mrb[0].mxu0
          %v10078 = vpop.f32.mrb[0].mxu0
          %v10079 = vadd.f32 %v9790, %v10078
          %v10080 = vpop.f32.mrb[0].mxu0
          %10081 = vmatprep.mubr.bf16.mxu0 %v8964
          %10082 = vmatmul.mubr.bf16.gmra.mrb[0].mxu0 %v8963
          %v10083 = vpop.f32.mrb[0].mxu0
          %v10084 = vadd.f32 %v9795, %v10083
          %v10085 = vpop.f32.mrb[0].mxu0
          %v10086 = vpop.f32.mrb[0].mxu0
          %v10087 = vadd.f32 %v9798, %v10086
          %v10088 = vpop.f32.mrb[0].mxu0
          %10089 = vmatprep.mubr.bf16.mxu0 %v8972
          %10090 = vmatmul.mubr.bf16.gmra.mrb[0].mxu0 %v8971
          %v10091 = vpop.f32.mrb[0].mxu0
          %v10092 = vadd.f32 %v9803, %v10091
          %v10093 = vpop.f32.mrb[0].mxu0
          %v10094 = vpop.f32.mrb[0].mxu0
          %v10095 = vadd.f32 %v9806, %v10094
          %v10096 = vpop.f32.mrb[0].mxu0
          %10097 = vmatprep.mubr.bf16.mxu0 %v8980
          %10098 = vmatmul.mubr.bf16.gmra.mrb[0].mxu0 %v8979
          %v10099 = vpop.f32.mrb[0].mxu0
          %v10100 = vadd.f32 %v9811, %v10099
          %v10101 = vpop.f32.mrb[0].mxu0
          %v10102 = vpop.f32.mrb[0].mxu0
          %v10103 = vadd.f32 %v9814, %v10102
          %v10104 = vpop.f32.mrb[0].mxu0
          %10105 = vmatprep.mubr.bf16.mxu0 %v8988
          %10106 = vmatmul.mubr.bf16.gmra.mrb[0].mxu0 %v8987
          %v10107 = vpop.f32.mrb[0].mxu0
          %v10108 = vadd.f32 %v9819, %v10107
          %v10109 = vpop.f32.mrb[0].mxu0
          %v10110 = vpop.f32.mrb[0].mxu0
          %v10111 = vadd.f32 %v9822, %v10110
          %v10112 = vpop.f32.mrb[0].mxu0
          %10113 = vmatprep.mubr.bf16.mxu0 %v8996
          %10114 = vmatmul.mubr.bf16.gmra.mrb[0].mxu0 %v8995
          %v10115 = vpop.f32.mrb[0].mxu0
          %v10116 = vadd.f32 %v9827, %v10115
          %v10117 = vpop.f32.mrb[0].mxu0
          %v10118 = vpop.f32.mrb[0].mxu0
          %v10119 = vadd.f32 %v9830, %v10118
          %v10120 = vpop.f32.mrb[0].mxu0
          %10121 = vmatprep.mubr.bf16.mxu0 %v9004
          %10122 = vmatmul.mubr.bf16.gmra.mrb[0].mxu0 %v9003
          %v10123 = vpop.f32.mrb[0].mxu0
          %v10124 = vadd.f32 %v9835, %v10123
          %v10125 = vpop.f32.mrb[0].mxu0
          %v10126 = vpop.f32.mrb[0].mxu0
          %v10127 = vadd.f32 %v9838, %v10126
          %v10128 = vpop.f32.mrb[0].mxu0
          %10129 = vdwg.mxu0
          %10130 = vmatprep.subr.bf16.mxu0 0
          %10131 = vmatpush1.bf16.msra.mxu0 %v7647
          %10132 = vmatprep.subr.bf16.mxu0 0
          %10133 = vmatpush1.bf16.msra.mxu0 %v7648
          %10134 = vmatprep.subr.bf16.mxu0 0
          %10135 = vmatpush1.bf16.msra.mxu0 %v7649
          %10136 = vmatprep.subr.bf16.mxu0 0
          %10137 = vmatpush1.bf16.msra.mxu0 %v7650
          %10138 = vmatprep.subr.bf16.mxu0 0
          %10139 = vmatpush1.bf16.msra.mxu0 %v7651
          %10140 = vmatprep.subr.bf16.mxu0 0
          %10141 = vmatpush1.bf16.msra.mxu0 %v7652
          %10142 = vmatprep.subr.bf16.mxu0 0
          %10143 = vmatpush1.bf16.msra.mxu0 %v7653
          %10144 = vmatprep.subr.bf16.mxu0 0
          %10145 = vmatpush1.bf16.msra.mxu0 %v7654
          %10146 = vmatprep.subr.bf16.mxu0 0
          %10147 = vmatpush1.bf16.msra.mxu0 %v7655
          %10148 = vmatprep.subr.bf16.mxu0 0
          %10149 = vmatpush1.bf16.msra.mxu0 %v7656
          %10150 = vmatprep.subr.bf16.mxu0 0
          %10151 = vmatpush1.bf16.msra.mxu0 %v7657
          %10152 = vmatprep.subr.bf16.mxu0 0
          %10153 = vmatpush1.bf16.msra.mxu0 %v7658
          %10154 = vmatprep.subr.bf16.mxu0 0
          %10155 = vmatpush1.bf16.msra.mxu0 %v7659
          %10156 = vmatprep.subr.bf16.mxu0 0
          %10157 = vmatpush1.bf16.msra.mxu0 %v7660
          %10158 = vmatprep.subr.bf16.mxu0 0
          %10159 = vmatpush1.bf16.msra.mxu0 %v7661
          %10160 = vmatprep.subr.bf16.mxu0 0
          %10161 = vmatpush1.bf16.msra.mxu0 %v7662
          %10162 = vmatprep.mubr.bf16.mxu0 %v8758
          %10163 = vmatmul.mubr.bf16.gmra.mrb[0].mxu0 %v8757
          %v10164 = vpop.f32.mrb[0].mxu0
          %v10165 = vadd.f32 %v9876, %v10164
          %v10166 = vpop.f32.mrb[0].mxu0
          %v10167 = vpop.f32.mrb[0].mxu0
          %v10168 = vadd.f32 %v9879, %v10167
          %v10169 = vpop.f32.mrb[0].mxu0
          %10170 = vmatprep.mubr.bf16.mxu0 %v8766
          %10171 = vmatmul.mubr.bf16.gmra.mrb[0].mxu0 %v8765
          %v10172 = vpop.f32.mrb[0].mxu0
          %v10173 = vadd.f32 %v9884, %v10172
          %v10174 = vpop.f32.mrb[0].mxu0
          %v10175 = vpop.f32.mrb[0].mxu0
          %v10176 = vadd.f32 %v9887, %v10175
          %v10177 = vpop.f32.mrb[0].mxu0
          %10178 = vmatprep.mubr.bf16.mxu0 %v8774
          %10179 = vmatmul.mubr.bf16.gmra.mrb[0].mxu0 %v8773
          %v10180 = vpop.f32.mrb[0].mxu0
          %v10181 = vadd.f32 %v9892, %v10180
          %v10182 = vpop.f32.mrb[0].mxu0
          %v10183 = vpop.f32.mrb[0].mxu0
          %v10184 = vadd.f32 %v9895, %v10183
          %v10185 = vpop.f32.mrb[0].mxu0
          %10186 = vmatprep.mubr.bf16.mxu0 %v8782
          %10187 = vmatmul.mubr.bf16.gmra.mrb[0].mxu0 %v8781
          %v10188 = vpop.f32.mrb[0].mxu0
          %v10189 = vadd.f32 %v9900, %v10188
          %v10190 = vpop.f32.mrb[0].mxu0
          %v10191 = vpop.f32.mrb[0].mxu0
          %v10192 = vadd.f32 %v9903, %v10191
          %v10193 = vpop.f32.mrb[0].mxu0
          %10194 = vmatprep.mubr.bf16.mxu0 %v8790
          %10195 = vmatmul.mubr.bf16.gmra.mrb[0].mxu0 %v8789
          %v10196 = vpop.f32.mrb[0].mxu0
          %v10197 = vadd.f32 %v9908, %v10196
          %v10198 = vpop.f32.mrb[0].mxu0
          %v10199 = vpop.f32.mrb[0].mxu0
          %v10200 = vadd.f32 %v9911, %v10199
          %v10201 = vpop.f32.mrb[0].mxu0
          %10202 = vmatprep.mubr.bf16.mxu0 %v8798
          %10203 = vmatmul.mubr.bf16.gmra.mrb[0].mxu0 %v8797
          %v10204 = vpop.f32.mrb[0].mxu0
          %v10205 = vadd.f32 %v9916, %v10204
          %v10206 = vpop.f32.mrb[0].mxu0
          %v10207 = vpop.f32.mrb[0].mxu0
          %v10208 = vadd.f32 %v9919, %v10207
          %v10209 = vpop.f32.mrb[0].mxu0
          %10210 = vmatprep.mubr.bf16.mxu0 %v8806
          %10211 = vmatmul.mubr.bf16.gmra.mrb[0].mxu0 %v8805
          %v10212 = vpop.f32.mrb[0].mxu0
          %v10213 = vadd.f32 %v9924, %v10212
          %v10214 = vpop.f32.mrb[0].mxu0
          %v10215 = vpop.f32.mrb[0].mxu0
          %v10216 = vadd.f32 %v9927, %v10215
          %v10217 = vpop.f32.mrb[0].mxu0
          %10218 = vmatprep.mubr.bf16.mxu0 %v8814
          %10219 = vmatmul.mubr.bf16.gmra.mrb[0].mxu0 %v8813
          %v10220 = vpop.f32.mrb[0].mxu0
          %v10221 = vadd.f32 %v9932, %v10220
          %v10222 = vpop.f32.mrb[0].mxu0
          %v10223 = vpop.f32.mrb[0].mxu0
          %v10224 = vadd.f32 %v9935, %v10223
          %v10225 = vpop.f32.mrb[0].mxu0
          %10226 = vmatprep.mubr.bf16.mxu0 %v8822
          %10227 = vmatmul.mubr.bf16.gmra.mrb[0].mxu0 %v8821
          %v10228 = vpop.f32.mrb[0].mxu0
          %v10229 = vadd.f32 %v9940, %v10228
          %v10230 = vpop.f32.mrb[0].mxu0
          %v10231 = vpop.f32.mrb[0].mxu0
          %v10232 = vadd.f32 %v9943, %v10231
          %v10233 = vpop.f32.mrb[0].mxu0
          %10234 = vmatprep.mubr.bf16.mxu0 %v8830
          %10235 = vmatmul.mubr.bf16.gmra.mrb[0].mxu0 %v8829
          %v10236 = vpop.f32.mrb[0].mxu0
          %v10237 = vadd.f32 %v9948, %v10236
          %v10238 = vpop.f32.mrb[0].mxu0
          %v10239 = vpop.f32.mrb[0].mxu0
          %v10240 = vadd.f32 %v9951, %v10239
          %v10241 = vpop.f32.mrb[0].mxu0
          %10242 = vmatprep.mubr.bf16.mxu0 %v8838
          %10243 = vmatmul.mubr.bf16.gmra.mrb[0].mxu0 %v8837
          %v10244 = vpop.f32.mrb[0].mxu0
          %v10245 = vadd.f32 %v9956, %v10244
          %v10246 = vpop.f32.mrb[0].mxu0
          %v10247 = vpop.f32.mrb[0].mxu0
          %v10248 = vadd.f32 %v9959, %v10247
          %v10249 = vpop.f32.mrb[0].mxu0
          %10250 = vmatprep.mubr.bf16.mxu0 %v8846
          %10251 = vmatmul.mubr.bf16.gmra.mrb[0].mxu0 %v8845
          %v10252 = vpop.f32.mrb[0].mxu0
          %v10253 = vadd.f32 %v9964, %v10252
          %v10254 = vpop.f32.mrb[0].mxu0
          %v10255 = vpop.f32.mrb[0].mxu0
          %v10256 = vadd.f32 %v9967, %v10255
          %v10257 = vpop.f32.mrb[0].mxu0
          %10258 = vmatprep.mubr.bf16.mxu0 %v8854
          %10259 = vmatmul.mubr.bf16.gmra.mrb[0].mxu0 %v8853
          %v10260 = vpop.f32.mrb[0].mxu0
          %v10261 = vadd.f32 %v9972, %v10260
          %v10262 = vpop.f32.mrb[0].mxu0
          %v10263 = vpop.f32.mrb[0].mxu0
          %v10264 = vadd.f32 %v9975, %v10263
          %v10265 = vpop.f32.mrb[0].mxu0
          %10266 = vmatprep.mubr.bf16.mxu0 %v8862
          %10267 = vmatmul.mubr.bf16.gmra.mrb[0].mxu0 %v8861
          %v10268 = vpop.f32.mrb[0].mxu0
          %v10269 = vadd.f32 %v9980, %v10268
          %v10270 = vpop.f32.mrb[0].mxu0
          %v10271 = vpop.f32.mrb[0].mxu0
          %v10272 = vadd.f32 %v9983, %v10271
          %v10273 = vpop.f32.mrb[0].mxu0
          %10274 = vmatprep.mubr.bf16.mxu0 %v8870
          %10275 = vmatmul.mubr.bf16.gmra.mrb[0].mxu0 %v8869
          %v10276 = vpop.f32.mrb[0].mxu0
          %v10277 = vadd.f32 %v9988, %v10276
          %v10278 = vpop.f32.mrb[0].mxu0
          %v10279 = vpop.f32.mrb[0].mxu0
          %v10280 = vadd.f32 %v9991, %v10279
          %v10281 = vpop.f32.mrb[0].mxu0
          %10282 = vmatprep.mubr.bf16.mxu0 %v8878
          %10283 = vmatmul.mubr.bf16.gmra.mrb[0].mxu0 %v8877
          %v10284 = vpop.f32.mrb[0].mxu0
          %v10285 = vadd.f32 %v9996, %v10284
          %v10286 = vpop.f32.mrb[0].mxu0
          %v10287 = vpop.f32.mrb[0].mxu0
          %v10288 = vadd.f32 %v9999, %v10287
          %v10289 = vpop.f32.mrb[0].mxu0
          %10290 = vmatprep.mubr.bf16.mxu0 %v8886
          %10291 = vmatmul.mubr.bf16.gmra.mrb[0].mxu0 %v8885
          %v10292 = vpop.f32.mrb[0].mxu0
          %v10293 = vadd.f32 %v10004, %v10292
          %v10294 = vpop.f32.mrb[0].mxu0
          %v10295 = vpop.f32.mrb[0].mxu0
          %v10296 = vadd.f32 %v10007, %v10295
          %v10297 = vpop.f32.mrb[0].mxu0
          %10298 = vmatprep.mubr.bf16.mxu0 %v8894
          %10299 = vmatmul.mubr.bf16.gmra.mrb[0].mxu0 %v8893
          %v10300 = vpop.f32.mrb[0].mxu0
          %v10301 = vadd.f32 %v10012, %v10300
          %v10302 = vpop.f32.mrb[0].mxu0
          %v10303 = vpop.f32.mrb[0].mxu0
          %v10304 = vadd.f32 %v10015, %v10303
          %v10305 = vpop.f32.mrb[0].mxu0
          %10306 = vmatprep.mubr.bf16.mxu0 %v8902
          %10307 = vmatmul.mubr.bf16.gmra.mrb[0].mxu0 %v8901
          %v10308 = vpop.f32.mrb[0].mxu0
          %v10309 = vadd.f32 %v10020, %v10308
          %v10310 = vpop.f32.mrb[0].mxu0
          %v10311 = vpop.f32.mrb[0].mxu0
          %v10312 = vadd.f32 %v10023, %v10311
          %v10313 = vpop.f32.mrb[0].mxu0
          %10314 = vmatprep.mubr.bf16.mxu0 %v8910
          %10315 = vmatmul.mubr.bf16.gmra.mrb[0].mxu0 %v8909
          %v10316 = vpop.f32.mrb[0].mxu0
          %v10317 = vadd.f32 %v10028, %v10316
          %v10318 = vpop.f32.mrb[0].mxu0
          %v10319 = vpop.f32.mrb[0].mxu0
          %v10320 = vadd.f32 %v10031, %v10319
          %v10321 = vpop.f32.mrb[0].mxu0
          %10322 = vmatprep.mubr.bf16.mxu0 %v8918
          %10323 = vmatmul.mubr.bf16.gmra.mrb[0].mxu0 %v8917
          %v10324 = vpop.f32.mrb[0].mxu0
          %v10325 = vadd.f32 %v10036, %v10324
          %v10326 = vpop.f32.mrb[0].mxu0
          %v10327 = vpop.f32.mrb[0].mxu0
          %v10328 = vadd.f32 %v10039, %v10327
          %v10329 = vpop.f32.mrb[0].mxu0
          %10330 = vmatprep.mubr.bf16.mxu0 %v8926
          %10331 = vmatmul.mubr.bf16.gmra.mrb[0].mxu0 %v8925
          %v10332 = vpop.f32.mrb[0].mxu0
          %v10333 = vadd.f32 %v10044, %v10332
          %v10334 = vpop.f32.mrb[0].mxu0
          %v10335 = vpop.f32.mrb[0].mxu0
          %v10336 = vadd.f32 %v10047, %v10335
          %v10337 = vpop.f32.mrb[0].mxu0
          %10338 = vmatprep.mubr.bf16.mxu0 %v8934
          %10339 = vmatmul.mubr.bf16.gmra.mrb[0].mxu0 %v8933
          %v10340 = vpop.f32.mrb[0].mxu0
          %v10341 = vadd.f32 %v10052, %v10340
          %v10342 = vpop.f32.mrb[0].mxu0
          %v10343 = vpop.f32.mrb[0].mxu0
          %v10344 = vadd.f32 %v10055, %v10343
          %v10345 = vpop.f32.mrb[0].mxu0
          %10346 = vmatprep.mubr.bf16.mxu0 %v8942
          %10347 = vmatmul.mubr.bf16.gmra.mrb[0].mxu0 %v8941
          %v10348 = vpop.f32.mrb[0].mxu0
          %v10349 = vadd.f32 %v10060, %v10348
          %v10350 = vpop.f32.mrb[0].mxu0
          %v10351 = vpop.f32.mrb[0].mxu0
          %v10352 = vadd.f32 %v10063, %v10351
          %v10353 = vpop.f32.mrb[0].mxu0
          %10354 = vmatprep.mubr.bf16.mxu0 %v8950
          %10355 = vmatmul.mubr.bf16.gmra.mrb[0].mxu0 %v8949
          %v10356 = vpop.f32.mrb[0].mxu0
          %v10357 = vadd.f32 %v10068, %v10356
          %v10358 = vpop.f32.mrb[0].mxu0
          %v10359 = vpop.f32.mrb[0].mxu0
          %v10360 = vadd.f32 %v10071, %v10359
          %v10361 = vpop.f32.mrb[0].mxu0
          %10362 = vmatprep.mubr.bf16.mxu0 %v8958
          %10363 = vmatmul.mubr.bf16.gmra.mrb[0].mxu0 %v8957
          %v10364 = vpop.f32.mrb[0].mxu0
          %v10365 = vadd.f32 %v10076, %v10364
          %v10366 = vpop.f32.mrb[0].mxu0
          %v10367 = vpop.f32.mrb[0].mxu0
          %v10368 = vadd.f32 %v10079, %v10367
          %v10369 = vpop.f32.mrb[0].mxu0
          %10370 = vmatprep.mubr.bf16.mxu0 %v8966
          %10371 = vmatmul.mubr.bf16.gmra.mrb[0].mxu0 %v8965
          %v10372 = vpop.f32.mrb[0].mxu0
          %v10373 = vadd.f32 %v10084, %v10372
          %v10374 = vpop.f32.mrb[0].mxu0
          %v10375 = vpop.f32.mrb[0].mxu0
          %v10376 = vadd.f32 %v10087, %v10375
          %v10377 = vpop.f32.mrb[0].mxu0
          %10378 = vmatprep.mubr.bf16.mxu0 %v8974
          %10379 = vmatmul.mubr.bf16.gmra.mrb[0].mxu0 %v8973
          %v10380 = vpop.f32.mrb[0].mxu0
          %v10381 = vadd.f32 %v10092, %v10380
          %v10382 = vpop.f32.mrb[0].mxu0
          %v10383 = vpop.f32.mrb[0].mxu0
          %v10384 = vadd.f32 %v10095, %v10383
          %v10385 = vpop.f32.mrb[0].mxu0
          %10386 = vmatprep.mubr.bf16.mxu0 %v8982
          %10387 = vmatmul.mubr.bf16.gmra.mrb[0].mxu0 %v8981
          %v10388 = vpop.f32.mrb[0].mxu0
          %v10389 = vadd.f32 %v10100, %v10388
          %v10390 = vpop.f32.mrb[0].mxu0
          %v10391 = vpop.f32.mrb[0].mxu0
          %v10392 = vadd.f32 %v10103, %v10391
          %v10393 = vpop.f32.mrb[0].mxu0
          %10394 = vmatprep.mubr.bf16.mxu0 %v8990
          %10395 = vmatmul.mubr.bf16.gmra.mrb[0].mxu0 %v8989
          %v10396 = vpop.f32.mrb[0].mxu0
          %v10397 = vadd.f32 %v10108, %v10396
          %v10398 = vpop.f32.mrb[0].mxu0
          %v10399 = vpop.f32.mrb[0].mxu0
          %v10400 = vadd.f32 %v10111, %v10399
          %v10401 = vpop.f32.mrb[0].mxu0
          %10402 = vmatprep.mubr.bf16.mxu0 %v8998
          %10403 = vmatmul.mubr.bf16.gmra.mrb[0].mxu0 %v8997
          %v10404 = vpop.f32.mrb[0].mxu0
          %v10405 = vadd.f32 %v10116, %v10404
          %v10406 = vpop.f32.mrb[0].mxu0
          %v10407 = vpop.f32.mrb[0].mxu0
          %v10408 = vadd.f32 %v10119, %v10407
          %v10409 = vpop.f32.mrb[0].mxu0
          %10410 = vmatprep.mubr.bf16.mxu0 %v9006
          %10411 = vmatmul.mubr.bf16.gmra.mrb[0].mxu0 %v9005
          %v10412 = vpop.f32.mrb[0].mxu0
          %v10413 = vadd.f32 %v10124, %v10412
          %v10414 = vpop.f32.mrb[0].mxu0
          %v10415 = vpop.f32.mrb[0].mxu0
          %v10416 = vadd.f32 %v10127, %v10415
          %v10417 = vpop.f32.mrb[0].mxu0
          %10418 = vdwg.mxu0
          %v10419 = vmax.f32 %v10165, 0.0
          %v10420 = vmax.f32 %v10168, 0.0
          %v10421 = vmax.f32 %v10173, 0.0
          %v10422 = vmax.f32 %v10176, 0.0
          %v10423 = vmax.f32 %v10181, 0.0
          %v10424 = vmax.f32 %v10184, 0.0
          %v10425 = vmax.f32 %v10189, 0.0
          %v10426 = vmax.f32 %v10192, 0.0
          %v10427 = vmax.f32 %v10197, 0.0
          %v10428 = vmax.f32 %v10200, 0.0
          %v10429 = vmax.f32 %v10205, 0.0
          %v10430 = vmax.f32 %v10208, 0.0
          %v10431 = vmax.f32 %v10213, 0.0
          %v10432 = vmax.f32 %v10216, 0.0
          %v10433 = vmax.f32 %v10221, 0.0
          %v10434 = vmax.f32 %v10224, 0.0
          %v10435 = vmax.f32 %v10229, 0.0
          %v10436 = vmax.f32 %v10232, 0.0
          %v10437 = vmax.f32 %v10237, 0.0
          %v10438 = vmax.f32 %v10240, 0.0
          %v10439 = vmax.f32 %v10245, 0.0
          %v10440 = vmax.f32 %v10248, 0.0
          %v10441 = vmax.f32 %v10253, 0.0
          %v10442 = vmax.f32 %v10256, 0.0
          %v10443 = vmax.f32 %v10261, 0.0
          %v10444 = vmax.f32 %v10264, 0.0
          %v10445 = vmax.f32 %v10269, 0.0
          %v10446 = vmax.f32 %v10272, 0.0
          %v10447 = vmax.f32 %v10277, 0.0
          %v10448 = vmax.f32 %v10280, 0.0
          %v10449 = vmax.f32 %v10285, 0.0
          %v10450 = vmax.f32 %v10288, 0.0
          %v10451 = vmax.f32 %v10293, 0.0
          %v10452 = vmax.f32 %v10296, 0.0
          %v10453 = vmax.f32 %v10301, 0.0
          %v10454 = vmax.f32 %v10304, 0.0
          %v10455 = vmax.f32 %v10309, 0.0
          %v10456 = vmax.f32 %v10312, 0.0
          %v10457 = vmax.f32 %v10317, 0.0
          %v10458 = vmax.f32 %v10320, 0.0
          %v10459 = vmax.f32 %v10325, 0.0
          %v10460 = vmax.f32 %v10328, 0.0
          %v10461 = vmax.f32 %v10333, 0.0
          %v10462 = vmax.f32 %v10336, 0.0
          %v10463 = vmax.f32 %v10341, 0.0
          %v10464 = vmax.f32 %v10344, 0.0
          %v10465 = vmax.f32 %v10349, 0.0
          %v10466 = vmax.f32 %v10352, 0.0
          %v10467 = vmax.f32 %v10357, 0.0
          %v10468 = vmax.f32 %v10360, 0.0
          %v10469 = vmax.f32 %v10365, 0.0
          %v10470 = vmax.f32 %v10368, 0.0
          %v10471 = vmax.f32 %v10373, 0.0
          %v10472 = vmax.f32 %v10376, 0.0
          %v10473 = vmax.f32 %v10381, 0.0
          %v10474 = vmax.f32 %v10384, 0.0
          %v10475 = vmax.f32 %v10389, 0.0
          %v10476 = vmax.f32 %v10392, 0.0
          %v10477 = vmax.f32 %v10397, 0.0
          %v10478 = vmax.f32 %v10400, 0.0
          %v10479 = vmax.f32 %v10405, 0.0
          %v10480 = vmax.f32 %v10408, 0.0
          %v10481 = vmax.f32 %v10413, 0.0
          %v10482 = vmax.f32 %v10416, 0.0
          %v10483 = vld [vmem:[#allocation5] sm:$0xff]
          %v10484 = vld [vmem:[#allocation5 + $0x8] sm:$0xff]
          %v10485 = vld [vmem:[#allocation5 + $0x10] sm:$0xff]
          %v10486 = vld [vmem:[#allocation5 + $0x18] sm:$0xff]
          %v10487 = vld [vmem:[#allocation5 + $0x20] sm:$0xff]
          %v10488 = vld [vmem:[#allocation5 + $0x28] sm:$0xff]
          %v10489 = vld [vmem:[#allocation5 + $0x30] sm:$0xff]
          %v10490 = vld [vmem:[#allocation5 + $0x38] sm:$0xff]
          %v10491 = vld [vmem:[#allocation5 + $0x40] sm:$0xff]
          %v10492 = vld [vmem:[#allocation5 + $0x48] sm:$0xff]
          %v10493 = vld [vmem:[#allocation5 + $0x50] sm:$0xff]
          %v10494 = vld [vmem:[#allocation5 + $0x58] sm:$0xff]
          %v10495 = vld [vmem:[#allocation5 + $0x60] sm:$0xff]
          %v10496 = vld [vmem:[#allocation5 + $0x68] sm:$0xff]
          %v10497 = vld [vmem:[#allocation5 + $0x70] sm:$0xff]
          %v10498 = vld [vmem:[#allocation5 + $0x78] sm:$0xff]
          %v10499 = vld [vmem:[#allocation5 + $0x80] sm:$0xff]
          %v10500 = vld [vmem:[#allocation5 + $0x88] sm:$0xff]
          %v10501 = vld [vmem:[#allocation5 + $0x90] sm:$0xff]
          %v10502 = vld [vmem:[#allocation5 + $0x98] sm:$0xff]
          %v10503 = vld [vmem:[#allocation5 + $0xa0] sm:$0xff]
          %v10504 = vld [vmem:[#allocation5 + $0xa8] sm:$0xff]
          %v10505 = vld [vmem:[#allocation5 + $0xb0] sm:$0xff]
          %v10506 = vld [vmem:[#allocation5 + $0xb8] sm:$0xff]
          %v10507 = vld [vmem:[#allocation5 + $0xc0] sm:$0xff]
          %v10508 = vld [vmem:[#allocation5 + $0xc8] sm:$0xff]
          %v10509 = vld [vmem:[#allocation5 + $0xd0] sm:$0xff]
          %v10510 = vld [vmem:[#allocation5 + $0xd8] sm:$0xff]
          %v10511 = vld [vmem:[#allocation5 + $0xe0] sm:$0xff]
          %v10512 = vld [vmem:[#allocation5 + $0xe8] sm:$0xff]
          %v10513 = vld [vmem:[#allocation5 + $0xf0] sm:$0xff]
          %v10514 = vld [vmem:[#allocation5 + $0xf8] sm:$0xff]
          %v10515 = vld [vmem:[#allocation5 + $0x100] sm:$0xff]
          %v10516 = vld [vmem:[#allocation5 + $0x108] sm:$0xff]
          %v10517 = vld [vmem:[#allocation5 + $0x110] sm:$0xff]
          %v10518 = vld [vmem:[#allocation5 + $0x118] sm:$0xff]
          %v10519 = vld [vmem:[#allocation5 + $0x120] sm:$0xff]
          %v10520 = vld [vmem:[#allocation5 + $0x128] sm:$0xff]
          %v10521 = vld [vmem:[#allocation5 + $0x130] sm:$0xff]
          %v10522 = vld [vmem:[#allocation5 + $0x138] sm:$0xff]
          %v10523 = vld [vmem:[#allocation5 + $0x140] sm:$0xff]
          %v10524 = vld [vmem:[#allocation5 + $0x148] sm:$0xff]
          %v10525 = vld [vmem:[#allocation5 + $0x150] sm:$0xff]
          %v10526 = vld [vmem:[#allocation5 + $0x158] sm:$0xff]
          %v10527 = vld [vmem:[#allocation5 + $0x160] sm:$0xff]
          %v10528 = vld [vmem:[#allocation5 + $0x168] sm:$0xff]
          %v10529 = vld [vmem:[#allocation5 + $0x170] sm:$0xff]
          %v10530 = vld [vmem:[#allocation5 + $0x178] sm:$0xff]
          %v10531 = vld [vmem:[#allocation5 + $0x180] sm:$0xff]
          %v10532 = vld [vmem:[#allocation5 + $0x188] sm:$0xff]
          %v10533 = vld [vmem:[#allocation5 + $0x190] sm:$0xff]
          %v10534 = vld [vmem:[#allocation5 + $0x198] sm:$0xff]
          %v10535 = vld [vmem:[#allocation5 + $0x1a0] sm:$0xff]
          %v10536 = vld [vmem:[#allocation5 + $0x1a8] sm:$0xff]
          %v10537 = vld [vmem:[#allocation5 + $0x1b0] sm:$0xff]
          %v10538 = vld [vmem:[#allocation5 + $0x1b8] sm:$0xff]
          %v10539 = vld [vmem:[#allocation5 + $0x1c0] sm:$0xff]
          %v10540 = vld [vmem:[#allocation5 + $0x1c8] sm:$0xff]
          %v10541 = vld [vmem:[#allocation5 + $0x1d0] sm:$0xff]
          %v10542 = vld [vmem:[#allocation5 + $0x1d8] sm:$0xff]
          %v10543 = vld [vmem:[#allocation5 + $0x1e0] sm:$0xff]
          %v10544 = vld [vmem:[#allocation5 + $0x1e8] sm:$0xff]
          %v10545 = vld [vmem:[#allocation5 + $0x1f0] sm:$0xff]
          %v10546 = vld [vmem:[#allocation5 + $0x1f8] sm:$0xff]
          %v10547 = vpack.c.bf16 %v10420, %v10419
          %v10548 = vpack.c.bf16 %v10422, %v10421
          %v10549 = vpack.c.bf16 %v10424, %v10423
          %v10550 = vpack.c.bf16 %v10426, %v10425
          %v10551 = vpack.c.bf16 %v10428, %v10427
          %v10552 = vpack.c.bf16 %v10430, %v10429
          %v10553 = vpack.c.bf16 %v10432, %v10431
          %v10554 = vpack.c.bf16 %v10434, %v10433
          %v10555 = vpack.c.bf16 %v10436, %v10435
          %v10556 = vpack.c.bf16 %v10438, %v10437
          %v10557 = vpack.c.bf16 %v10440, %v10439
          %v10558 = vpack.c.bf16 %v10442, %v10441
          %v10559 = vpack.c.bf16 %v10444, %v10443
          %v10560 = vpack.c.bf16 %v10446, %v10445
          %v10561 = vpack.c.bf16 %v10448, %v10447
          %v10562 = vpack.c.bf16 %v10450, %v10449
          %v10563 = vpack.c.bf16 %v10452, %v10451
          %v10564 = vpack.c.bf16 %v10454, %v10453
          %v10565 = vpack.c.bf16 %v10456, %v10455
          %v10566 = vpack.c.bf16 %v10458, %v10457
          %v10567 = vpack.c.bf16 %v10460, %v10459
          %v10568 = vpack.c.bf16 %v10462, %v10461
          %v10569 = vpack.c.bf16 %v10464, %v10463
          %v10570 = vpack.c.bf16 %v10466, %v10465
          %v10571 = vpack.c.bf16 %v10468, %v10467
          %v10572 = vpack.c.bf16 %v10470, %v10469
          %v10573 = vpack.c.bf16 %v10472, %v10471
          %v10574 = vpack.c.bf16 %v10474, %v10473
          %v10575 = vpack.c.bf16 %v10476, %v10475
          %v10576 = vpack.c.bf16 %v10478, %v10477
          %v10577 = vpack.c.bf16 %v10480, %v10479
          %v10578 = vpack.c.bf16 %v10482, %v10481
          %v10579 = vld [vmem:[%s10] sm:$0xff]
          %v10580 = vld [vmem:[%s10 + $0x8] sm:$0xff]
          %v10581 = vld [vmem:[%s10 + $0x10] sm:$0xff]
          %v10582 = vld [vmem:[%s10 + $0x18] sm:$0xff]
          %v10583 = vld [vmem:[%s10 + $0x20] sm:$0xff]
          %v10584 = vld [vmem:[%s10 + $0x28] sm:$0xff]
          %v10585 = vld [vmem:[%s10 + $0x30] sm:$0xff]
          %v10586 = vld [vmem:[%s10 + $0x38] sm:$0xff]
          %v10587 = vld [vmem:[%s10 + $0x40] sm:$0xff]
          %v10588 = vld [vmem:[%s10 + $0x48] sm:$0xff]
          %v10589 = vld [vmem:[%s10 + $0x50] sm:$0xff]
          %v10590 = vld [vmem:[%s10 + $0x58] sm:$0xff]
          %v10591 = vld [vmem:[%s10 + $0x60] sm:$0xff]
          %v10592 = vld [vmem:[%s10 + $0x68] sm:$0xff]
          %v10593 = vld [vmem:[%s10 + $0x70] sm:$0xff]
          %v10594 = vld [vmem:[%s10 + $0x78] sm:$0xff]
          %v10595 = vld [vmem:[%s10 + $0x80] sm:$0xff]
          %v10596 = vld [vmem:[%s10 + $0x88] sm:$0xff]
          %v10597 = vld [vmem:[%s10 + $0x90] sm:$0xff]
          %v10598 = vld [vmem:[%s10 + $0x98] sm:$0xff]
          %v10599 = vld [vmem:[%s10 + $0xa0] sm:$0xff]
          %v10600 = vld [vmem:[%s10 + $0xa8] sm:$0xff]
          %v10601 = vld [vmem:[%s10 + $0xb0] sm:$0xff]
          %v10602 = vld [vmem:[%s10 + $0xb8] sm:$0xff]
          %v10603 = vld [vmem:[%s10 + $0xc0] sm:$0xff]
          %v10604 = vld [vmem:[%s10 + $0xc8] sm:$0xff]
          %v10605 = vld [vmem:[%s10 + $0xd0] sm:$0xff]
          %v10606 = vld [vmem:[%s10 + $0xd8] sm:$0xff]
          %v10607 = vld [vmem:[%s10 + $0xe0] sm:$0xff]
          %v10608 = vld [vmem:[%s10 + $0xe8] sm:$0xff]
          %v10609 = vld [vmem:[%s10 + $0xf0] sm:$0xff]
          %v10610 = vld [vmem:[%s10 + $0xf8] sm:$0xff]
          %v10675 = vunpack.c.l.b16 %v10483
          %v10676 = vunpack.c.h.b16 %v10483
          %v10677 = vunpack.c.l.b16 %v10484
          %v10678 = vunpack.c.h.b16 %v10484
          %v10679 = vunpack.c.l.b16 %v10485
          %v10680 = vunpack.c.h.b16 %v10485
          %v10681 = vunpack.c.l.b16 %v10486
          %v10682 = vunpack.c.h.b16 %v10486
          %v10683 = vunpack.c.l.b16 %v10487
          %v10684 = vunpack.c.h.b16 %v10487
          %v10685 = vunpack.c.l.b16 %v10488
          %v10686 = vunpack.c.h.b16 %v10488
          %v10687 = vunpack.c.l.b16 %v10489
          %v10688 = vunpack.c.h.b16 %v10489
          %v10689 = vunpack.c.l.b16 %v10490
          %v10690 = vunpack.c.h.b16 %v10490
          %v10691 = vunpack.c.l.b16 %v10491
          %v10692 = vunpack.c.h.b16 %v10491
          %v10693 = vunpack.c.l.b16 %v10492
          %v10694 = vunpack.c.h.b16 %v10492
          %v10695 = vunpack.c.l.b16 %v10493
          %v10696 = vunpack.c.h.b16 %v10493
          %v10697 = vunpack.c.l.b16 %v10494
          %v10698 = vunpack.c.h.b16 %v10494
          %v10699 = vunpack.c.l.b16 %v10495
          %v10700 = vunpack.c.h.b16 %v10495
          %v10701 = vunpack.c.l.b16 %v10496
          %v10702 = vunpack.c.h.b16 %v10496
          %v10703 = vunpack.c.l.b16 %v10497
          %v10704 = vunpack.c.h.b16 %v10497
          %v10705 = vunpack.c.l.b16 %v10498
          %v10706 = vunpack.c.h.b16 %v10498
          %v10707 = vunpack.c.l.b16 %v10499
          %v10708 = vunpack.c.h.b16 %v10499
          %v10709 = vunpack.c.l.b16 %v10500
          %v10710 = vunpack.c.h.b16 %v10500
          %v10711 = vunpack.c.l.b16 %v10501
          %v10712 = vunpack.c.h.b16 %v10501
          %v10713 = vunpack.c.l.b16 %v10502
          %v10714 = vunpack.c.h.b16 %v10502
          %v10715 = vunpack.c.l.b16 %v10503
          %v10716 = vunpack.c.h.b16 %v10503
          %v10717 = vunpack.c.l.b16 %v10504
          %v10718 = vunpack.c.h.b16 %v10504
          %v10719 = vunpack.c.l.b16 %v10505
          %v10720 = vunpack.c.h.b16 %v10505
          %v10721 = vunpack.c.l.b16 %v10506
          %v10722 = vunpack.c.h.b16 %v10506
          %v10723 = vunpack.c.l.b16 %v10507
          %v10724 = vunpack.c.h.b16 %v10507
          %v10725 = vunpack.c.l.b16 %v10508
          %v10726 = vunpack.c.h.b16 %v10508
          %v10727 = vunpack.c.l.b16 %v10509
          %v10728 = vunpack.c.h.b16 %v10509
          %v10729 = vunpack.c.l.b16 %v10510
          %v10730 = vunpack.c.h.b16 %v10510
          %v10731 = vunpack.c.l.b16 %v10511
          %v10732 = vunpack.c.h.b16 %v10511
          %v10733 = vunpack.c.l.b16 %v10512
          %v10734 = vunpack.c.h.b16 %v10512
          %v10735 = vunpack.c.l.b16 %v10513
          %v10736 = vunpack.c.h.b16 %v10513
          %v10737 = vunpack.c.l.b16 %v10514
          %v10738 = vunpack.c.h.b16 %v10514
          %v10739 = vunpack.c.l.b16 %v10515
          %v10740 = vunpack.c.h.b16 %v10515
          %v10741 = vunpack.c.l.b16 %v10516
          %v10742 = vunpack.c.h.b16 %v10516
          %v10743 = vunpack.c.l.b16 %v10517
          %v10744 = vunpack.c.h.b16 %v10517
          %v10745 = vunpack.c.l.b16 %v10518
          %v10746 = vunpack.c.h.b16 %v10518
          %v10747 = vunpack.c.l.b16 %v10519
          %v10748 = vunpack.c.h.b16 %v10519
          %v10749 = vunpack.c.l.b16 %v10520
          %v10750 = vunpack.c.h.b16 %v10520
          %v10751 = vunpack.c.l.b16 %v10521
          %v10752 = vunpack.c.h.b16 %v10521
          %v10753 = vunpack.c.l.b16 %v10522
          %v10754 = vunpack.c.h.b16 %v10522
          %v10755 = vunpack.c.l.b16 %v10523
          %v10756 = vunpack.c.h.b16 %v10523
          %v10757 = vunpack.c.l.b16 %v10524
          %v10758 = vunpack.c.h.b16 %v10524
          %v10759 = vunpack.c.l.b16 %v10525
          %v10760 = vunpack.c.h.b16 %v10525
          %v10761 = vunpack.c.l.b16 %v10526
          %v10762 = vunpack.c.h.b16 %v10526
          %v10763 = vunpack.c.l.b16 %v10527
          %v10764 = vunpack.c.h.b16 %v10527
          %v10765 = vunpack.c.l.b16 %v10528
          %v10766 = vunpack.c.h.b16 %v10528
          %v10767 = vunpack.c.l.b16 %v10529
          %v10768 = vunpack.c.h.b16 %v10529
          %v10769 = vunpack.c.l.b16 %v10530
          %v10770 = vunpack.c.h.b16 %v10530
          %v10771 = vunpack.c.l.b16 %v10531
          %v10772 = vunpack.c.h.b16 %v10531
          %v10773 = vunpack.c.l.b16 %v10532
          %v10774 = vunpack.c.h.b16 %v10532
          %v10775 = vunpack.c.l.b16 %v10533
          %v10776 = vunpack.c.h.b16 %v10533
          %v10777 = vunpack.c.l.b16 %v10534
          %v10778 = vunpack.c.h.b16 %v10534
          %v10779 = vunpack.c.l.b16 %v10535
          %v10780 = vunpack.c.h.b16 %v10535
          %v10781 = vunpack.c.l.b16 %v10536
          %v10782 = vunpack.c.h.b16 %v10536
          %v10783 = vunpack.c.l.b16 %v10537
          %v10784 = vunpack.c.h.b16 %v10537
          %v10785 = vunpack.c.l.b16 %v10538
          %v10786 = vunpack.c.h.b16 %v10538
          %v10787 = vunpack.c.l.b16 %v10539
          %v10788 = vunpack.c.h.b16 %v10539
          %v10789 = vunpack.c.l.b16 %v10540
          %v10790 = vunpack.c.h.b16 %v10540
          %v10791 = vunpack.c.l.b16 %v10541
          %v10792 = vunpack.c.h.b16 %v10541
          %v10793 = vunpack.c.l.b16 %v10542
          %v10794 = vunpack.c.h.b16 %v10542
          %v10795 = vunpack.c.l.b16 %v10543
          %v10796 = vunpack.c.h.b16 %v10543
          %v10797 = vunpack.c.l.b16 %v10544
          %v10798 = vunpack.c.h.b16 %v10544
          %v10799 = vunpack.c.l.b16 %v10545
          %v10800 = vunpack.c.h.b16 %v10545
          %v10801 = vunpack.c.l.b16 %v10546
          %v10802 = vunpack.c.h.b16 %v10546
          %v10803 = vpack.c.b16 %v10679, %v10675
          %v10804 = vpack.c.b16 %v10680, %v10676
          %v10805 = vpack.c.b16 %v10681, %v10677
          %v10806 = vpack.c.b16 %v10682, %v10678
          %v10807 = vpack.c.b16 %v10687, %v10683
          %v10808 = vpack.c.b16 %v10688, %v10684
          %v10809 = vpack.c.b16 %v10689, %v10685
          %v10810 = vpack.c.b16 %v10690, %v10686
          %v10811 = vpack.c.b16 %v10695, %v10691
          %v10812 = vpack.c.b16 %v10696, %v10692
          %v10813 = vpack.c.b16 %v10697, %v10693
          %v10814 = vpack.c.b16 %v10698, %v10694
          %v10815 = vpack.c.b16 %v10703, %v10699
          %v10816 = vpack.c.b16 %v10704, %v10700
          %v10817 = vpack.c.b16 %v10705, %v10701
          %v10818 = vpack.c.b16 %v10706, %v10702
          %v10819 = vpack.c.b16 %v10711, %v10707
          %v10820 = vpack.c.b16 %v10712, %v10708
          %v10821 = vpack.c.b16 %v10713, %v10709
          %v10822 = vpack.c.b16 %v10714, %v10710
          %v10823 = vpack.c.b16 %v10719, %v10715
          %v10824 = vpack.c.b16 %v10720, %v10716
          %v10825 = vpack.c.b16 %v10721, %v10717
          %v10826 = vpack.c.b16 %v10722, %v10718
          %v10827 = vpack.c.b16 %v10727, %v10723
          %v10828 = vpack.c.b16 %v10728, %v10724
          %v10829 = vpack.c.b16 %v10729, %v10725
          %v10830 = vpack.c.b16 %v10730, %v10726
          %v10831 = vpack.c.b16 %v10735, %v10731
          %v10832 = vpack.c.b16 %v10736, %v10732
          %v10833 = vpack.c.b16 %v10737, %v10733
          %v10834 = vpack.c.b16 %v10738, %v10734
          %v10835 = vpack.c.b16 %v10743, %v10739
          %v10836 = vpack.c.b16 %v10744, %v10740
          %v10837 = vpack.c.b16 %v10745, %v10741
          %v10838 = vpack.c.b16 %v10746, %v10742
          %v10839 = vpack.c.b16 %v10751, %v10747
          %v10840 = vpack.c.b16 %v10752, %v10748
          %v10841 = vpack.c.b16 %v10753, %v10749
          %v10842 = vpack.c.b16 %v10754, %v10750
          %v10843 = vpack.c.b16 %v10759, %v10755
          %v10844 = vpack.c.b16 %v10760, %v10756
          %v10845 = vpack.c.b16 %v10761, %v10757
          %v10846 = vpack.c.b16 %v10762, %v10758
          %v10847 = vpack.c.b16 %v10767, %v10763
          %v10848 = vpack.c.b16 %v10768, %v10764
          %v10849 = vpack.c.b16 %v10769, %v10765
          %v10850 = vpack.c.b16 %v10770, %v10766
          %v10851 = vpack.c.b16 %v10775, %v10771
          %v10852 = vpack.c.b16 %v10776, %v10772
          %v10853 = vpack.c.b16 %v10777, %v10773
          %v10854 = vpack.c.b16 %v10778, %v10774
          %v10855 = vpack.c.b16 %v10783, %v10779
          %v10856 = vpack.c.b16 %v10784, %v10780
          %v10857 = vpack.c.b16 %v10785, %v10781
          %v10858 = vpack.c.b16 %v10786, %v10782
          %v10859 = vpack.c.b16 %v10791, %v10787
          %v10860 = vpack.c.b16 %v10792, %v10788
          %v10861 = vpack.c.b16 %v10793, %v10789
          %v10862 = vpack.c.b16 %v10794, %v10790
          %v10863 = vpack.c.b16 %v10799, %v10795
          %v10864 = vpack.c.b16 %v10800, %v10796
          %v10865 = vpack.c.b16 %v10801, %v10797
          %v10866 = vpack.c.b16 %v10802, %v10798
          %10931 = vmatprep.subr.bf16.mxu0 0
          %10932 = vmatpush1.bf16.msra.mxu0 %v10547
          %10933 = vmatprep.subr.bf16.mxu0 0
          %10934 = vmatpush1.bf16.msra.mxu0 %v10548
          %10935 = vmatprep.subr.bf16.mxu0 0
          %10936 = vmatpush1.bf16.msra.mxu0 %v10549
          %10937 = vmatprep.subr.bf16.mxu0 0
          %10938 = vmatpush1.bf16.msra.mxu0 %v10550
          %10939 = vmatprep.subr.bf16.mxu0 0
          %10940 = vmatpush1.bf16.msra.mxu0 %v10551
          %10941 = vmatprep.subr.bf16.mxu0 0
          %10942 = vmatpush1.bf16.msra.mxu0 %v10552
          %10943 = vmatprep.subr.bf16.mxu0 0
          %10944 = vmatpush1.bf16.msra.mxu0 %v10553
          %10945 = vmatprep.subr.bf16.mxu0 0
          %10946 = vmatpush1.bf16.msra.mxu0 %v10554
          %10947 = vmatprep.subr.bf16.mxu0 0
          %10948 = vmatpush1.bf16.msra.mxu0 %v10555
          %10949 = vmatprep.subr.bf16.mxu0 0
          %10950 = vmatpush1.bf16.msra.mxu0 %v10556
          %10951 = vmatprep.subr.bf16.mxu0 0
          %10952 = vmatpush1.bf16.msra.mxu0 %v10557
          %10953 = vmatprep.subr.bf16.mxu0 0
          %10954 = vmatpush1.bf16.msra.mxu0 %v10558
          %10955 = vmatprep.subr.bf16.mxu0 0
          %10956 = vmatpush1.bf16.msra.mxu0 %v10559
          %10957 = vmatprep.subr.bf16.mxu0 0
          %10958 = vmatpush1.bf16.msra.mxu0 %v10560
          %10959 = vmatprep.subr.bf16.mxu0 0
          %10960 = vmatpush1.bf16.msra.mxu0 %v10561
          %10961 = vmatprep.subr.bf16.mxu0 0
          %10962 = vmatpush1.bf16.msra.mxu0 %v10562
          %10963 = vmatprep.mubr.bf16.mxu0 %v10804
          %10964 = vmatmul.mubr.bf16.gmra.mrb[0].mxu0 %v10803
          %v10965 = vpop.f32.mrb[0].mxu0
          %v10966 = vadd.f32 %v10579, %v10965
          %v10967 = vpop.f32.mrb[0].mxu0
          %v10968 = vpop.f32.mrb[0].mxu0
          %v10969 = vadd.f32 %v10580, %v10968
          %v10970 = vpop.f32.mrb[0].mxu0
          %10971 = vmatprep.mubr.bf16.mxu0 %v10808
          %10972 = vmatmul.mubr.bf16.gmra.mrb[0].mxu0 %v10807
          %v10973 = vpop.f32.mrb[0].mxu0
          %v10974 = vadd.f32 %v10581, %v10973
          %v10975 = vpop.f32.mrb[0].mxu0
          %v10976 = vpop.f32.mrb[0].mxu0
          %v10977 = vadd.f32 %v10582, %v10976
          %v10978 = vpop.f32.mrb[0].mxu0
          %10979 = vmatprep.mubr.bf16.mxu0 %v10812
          %10980 = vmatmul.mubr.bf16.gmra.mrb[0].mxu0 %v10811
          %v10981 = vpop.f32.mrb[0].mxu0
          %v10982 = vadd.f32 %v10583, %v10981
          %v10983 = vpop.f32.mrb[0].mxu0
          %v10984 = vpop.f32.mrb[0].mxu0
          %v10985 = vadd.f32 %v10584, %v10984
          %v10986 = vpop.f32.mrb[0].mxu0
          %10987 = vmatprep.mubr.bf16.mxu0 %v10816
          %10988 = vmatmul.mubr.bf16.gmra.mrb[0].mxu0 %v10815
          %v10989 = vpop.f32.mrb[0].mxu0
          %v10990 = vadd.f32 %v10585, %v10989
          %v10991 = vpop.f32.mrb[0].mxu0
          %v10992 = vpop.f32.mrb[0].mxu0
          %v10993 = vadd.f32 %v10586, %v10992
          %v10994 = vpop.f32.mrb[0].mxu0
          %10995 = vmatprep.mubr.bf16.mxu0 %v10820
          %10996 = vmatmul.mubr.bf16.gmra.mrb[0].mxu0 %v10819
          %v10997 = vpop.f32.mrb[0].mxu0
          %v10998 = vadd.f32 %v10587, %v10997
          %v10999 = vpop.f32.mrb[0].mxu0
          %v11000 = vpop.f32.mrb[0].mxu0
          %v11001 = vadd.f32 %v10588, %v11000
          %v11002 = vpop.f32.mrb[0].mxu0
          %11003 = vmatprep.mubr.bf16.mxu0 %v10824
          %11004 = vmatmul.mubr.bf16.gmra.mrb[0].mxu0 %v10823
          %v11005 = vpop.f32.mrb[0].mxu0
          %v11006 = vadd.f32 %v10589, %v11005
          %v11007 = vpop.f32.mrb[0].mxu0
          %v11008 = vpop.f32.mrb[0].mxu0
          %v11009 = vadd.f32 %v10590, %v11008
          %v11010 = vpop.f32.mrb[0].mxu0
          %11011 = vmatprep.mubr.bf16.mxu0 %v10828
          %11012 = vmatmul.mubr.bf16.gmra.mrb[0].mxu0 %v10827
          %v11013 = vpop.f32.mrb[0].mxu0
          %v11014 = vadd.f32 %v10591, %v11013
          %v11015 = vpop.f32.mrb[0].mxu0
          %v11016 = vpop.f32.mrb[0].mxu0
          %v11017 = vadd.f32 %v10592, %v11016
          %v11018 = vpop.f32.mrb[0].mxu0
          %11019 = vmatprep.mubr.bf16.mxu0 %v10832
          %11020 = vmatmul.mubr.bf16.gmra.mrb[0].mxu0 %v10831
          %v11021 = vpop.f32.mrb[0].mxu0
          %v11022 = vadd.f32 %v10593, %v11021
          %v11023 = vpop.f32.mrb[0].mxu0
          %v11024 = vpop.f32.mrb[0].mxu0
          %v11025 = vadd.f32 %v10594, %v11024
          %v11026 = vpop.f32.mrb[0].mxu0
          %11027 = vmatprep.mubr.bf16.mxu0 %v10836
          %11028 = vmatmul.mubr.bf16.gmra.mrb[0].mxu0 %v10835
          %v11029 = vpop.f32.mrb[0].mxu0
          %v11030 = vadd.f32 %v10595, %v11029
          %v11031 = vpop.f32.mrb[0].mxu0
          %v11032 = vpop.f32.mrb[0].mxu0
          %v11033 = vadd.f32 %v10596, %v11032
          %v11034 = vpop.f32.mrb[0].mxu0
          %11035 = vmatprep.mubr.bf16.mxu0 %v10840
          %11036 = vmatmul.mubr.bf16.gmra.mrb[0].mxu0 %v10839
          %v11037 = vpop.f32.mrb[0].mxu0
          %v11038 = vadd.f32 %v10597, %v11037
          %v11039 = vpop.f32.mrb[0].mxu0
          %v11040 = vpop.f32.mrb[0].mxu0
          %v11041 = vadd.f32 %v10598, %v11040
          %v11042 = vpop.f32.mrb[0].mxu0
          %11043 = vmatprep.mubr.bf16.mxu0 %v10844
          %11044 = vmatmul.mubr.bf16.gmra.mrb[0].mxu0 %v10843
          %v11045 = vpop.f32.mrb[0].mxu0
          %v11046 = vadd.f32 %v10599, %v11045
          %v11047 = vpop.f32.mrb[0].mxu0
          %v11048 = vpop.f32.mrb[0].mxu0
          %v11049 = vadd.f32 %v10600, %v11048
          %v11050 = vpop.f32.mrb[0].mxu0
          %11051 = vmatprep.mubr.bf16.mxu0 %v10848
          %11052 = vmatmul.mubr.bf16.gmra.mrb[0].mxu0 %v10847
          %v11053 = vpop.f32.mrb[0].mxu0
          %v11054 = vadd.f32 %v10601, %v11053
          %v11055 = vpop.f32.mrb[0].mxu0
          %v11056 = vpop.f32.mrb[0].mxu0
          %v11057 = vadd.f32 %v10602, %v11056
          %v11058 = vpop.f32.mrb[0].mxu0
          %11059 = vmatprep.mubr.bf16.mxu0 %v10852
          %11060 = vmatmul.mubr.bf16.gmra.mrb[0].mxu0 %v10851
          %v11061 = vpop.f32.mrb[0].mxu0
          %v11062 = vadd.f32 %v10603, %v11061
          %v11063 = vpop.f32.mrb[0].mxu0
          %v11064 = vpop.f32.mrb[0].mxu0
          %v11065 = vadd.f32 %v10604, %v11064
          %v11066 = vpop.f32.mrb[0].mxu0
          %11067 = vmatprep.mubr.bf16.mxu0 %v10856
          %11068 = vmatmul.mubr.bf16.gmra.mrb[0].mxu0 %v10855
          %v11069 = vpop.f32.mrb[0].mxu0
          %v11070 = vadd.f32 %v10605, %v11069
          %v11071 = vpop.f32.mrb[0].mxu0
          %v11072 = vpop.f32.mrb[0].mxu0
          %v11073 = vadd.f32 %v10606, %v11072
          %v11074 = vpop.f32.mrb[0].mxu0
          %11075 = vmatprep.mubr.bf16.mxu0 %v10860
          %11076 = vmatmul.mubr.bf16.gmra.mrb[0].mxu0 %v10859
          %v11077 = vpop.f32.mrb[0].mxu0
          %v11078 = vadd.f32 %v10607, %v11077
          %v11079 = vpop.f32.mrb[0].mxu0
          %v11080 = vpop.f32.mrb[0].mxu0
          %v11081 = vadd.f32 %v10608, %v11080
          %v11082 = vpop.f32.mrb[0].mxu0
          %11083 = vmatprep.mubr.bf16.mxu0 %v10864
          %11084 = vmatmul.mubr.bf16.gmra.mrb[0].mxu0 %v10863
          %v11085 = vpop.f32.mrb[0].mxu0
          %v11086 = vadd.f32 %v10609, %v11085
          %v11087 = vpop.f32.mrb[0].mxu0
          %v11088 = vpop.f32.mrb[0].mxu0
          %v11089 = vadd.f32 %v10610, %v11088
          %v11090 = vpop.f32.mrb[0].mxu0
          %11091 = vdwg.mxu0
          %11092 = vmatprep.subr.bf16.mxu0 0
          %11093 = vmatpush1.bf16.msra.mxu0 %v10563
          %11094 = vmatprep.subr.bf16.mxu0 0
          %11095 = vmatpush1.bf16.msra.mxu0 %v10564
          %11096 = vmatprep.subr.bf16.mxu0 0
          %11097 = vmatpush1.bf16.msra.mxu0 %v10565
          %11098 = vmatprep.subr.bf16.mxu0 0
          %11099 = vmatpush1.bf16.msra.mxu0 %v10566
          %11100 = vmatprep.subr.bf16.mxu0 0
          %11101 = vmatpush1.bf16.msra.mxu0 %v10567
          %11102 = vmatprep.subr.bf16.mxu0 0
          %11103 = vmatpush1.bf16.msra.mxu0 %v10568
          %11104 = vmatprep.subr.bf16.mxu0 0
          %11105 = vmatpush1.bf16.msra.mxu0 %v10569
          %11106 = vmatprep.subr.bf16.mxu0 0
          %11107 = vmatpush1.bf16.msra.mxu0 %v10570
          %11108 = vmatprep.subr.bf16.mxu0 0
          %11109 = vmatpush1.bf16.msra.mxu0 %v10571
          %11110 = vmatprep.subr.bf16.mxu0 0
          %11111 = vmatpush1.bf16.msra.mxu0 %v10572
          %11112 = vmatprep.subr.bf16.mxu0 0
          %11113 = vmatpush1.bf16.msra.mxu0 %v10573
          %11114 = vmatprep.subr.bf16.mxu0 0
          %11115 = vmatpush1.bf16.msra.mxu0 %v10574
          %11116 = vmatprep.subr.bf16.mxu0 0
          %11117 = vmatpush1.bf16.msra.mxu0 %v10575
          %11118 = vmatprep.subr.bf16.mxu0 0
          %11119 = vmatpush1.bf16.msra.mxu0 %v10576
          %11120 = vmatprep.subr.bf16.mxu0 0
          %11121 = vmatpush1.bf16.msra.mxu0 %v10577
          %11122 = vmatprep.subr.bf16.mxu0 0
          %11123 = vmatpush1.bf16.msra.mxu0 %v10578
          %11124 = vmatprep.mubr.bf16.mxu0 %v10806
          %11125 = vmatmul.mubr.bf16.gmra.mrb[0].mxu0 %v10805
          %v11126 = vpop.f32.mrb[0].mxu0
          %v11127 = vadd.f32 %v10966, %v11126
          %v11128 = vpop.f32.mrb[0].mxu0
          %v11129 = vpop.f32.mrb[0].mxu0
          %v11130 = vadd.f32 %v10969, %v11129
          %v11131 = vpop.f32.mrb[0].mxu0
          %11132 = vmatprep.mubr.bf16.mxu0 %v10810
          %11133 = vmatmul.mubr.bf16.gmra.mrb[0].mxu0 %v10809
          %v11134 = vpop.f32.mrb[0].mxu0
          %v11135 = vadd.f32 %v10974, %v11134
          %v11136 = vpop.f32.mrb[0].mxu0
          %v11137 = vpop.f32.mrb[0].mxu0
          %v11138 = vadd.f32 %v10977, %v11137
          %v11139 = vpop.f32.mrb[0].mxu0
          %11140 = vmatprep.mubr.bf16.mxu0 %v10814
          %11141 = vmatmul.mubr.bf16.gmra.mrb[0].mxu0 %v10813
          %v11142 = vpop.f32.mrb[0].mxu0
          %v11143 = vadd.f32 %v10982, %v11142
          %v11144 = vpop.f32.mrb[0].mxu0
          %v11145 = vpop.f32.mrb[0].mxu0
          %v11146 = vadd.f32 %v10985, %v11145
          %v11147 = vpop.f32.mrb[0].mxu0
          %11148 = vmatprep.mubr.bf16.mxu0 %v10818
          %11149 = vmatmul.mubr.bf16.gmra.mrb[0].mxu0 %v10817
          %v11150 = vpop.f32.mrb[0].mxu0
          %v11151 = vadd.f32 %v10990, %v11150
          %v11152 = vpop.f32.mrb[0].mxu0
          %v11153 = vpop.f32.mrb[0].mxu0
          %v11154 = vadd.f32 %v10993, %v11153
          %v11155 = vpop.f32.mrb[0].mxu0
          %11156 = vmatprep.mubr.bf16.mxu0 %v10822
          %11157 = vmatmul.mubr.bf16.gmra.mrb[0].mxu0 %v10821
          %v11158 = vpop.f32.mrb[0].mxu0
          %v11159 = vadd.f32 %v10998, %v11158
          %v11160 = vpop.f32.mrb[0].mxu0
          %v11161 = vpop.f32.mrb[0].mxu0
          %v11162 = vadd.f32 %v11001, %v11161
          %v11163 = vpop.f32.mrb[0].mxu0
          %11164 = vmatprep.mubr.bf16.mxu0 %v10826
          %11165 = vmatmul.mubr.bf16.gmra.mrb[0].mxu0 %v10825
          %v11166 = vpop.f32.mrb[0].mxu0
          %v11167 = vadd.f32 %v11006, %v11166
          %v11168 = vpop.f32.mrb[0].mxu0
          %v11169 = vpop.f32.mrb[0].mxu0
          %v11170 = vadd.f32 %v11009, %v11169
          %v11171 = vpop.f32.mrb[0].mxu0
          %11172 = vmatprep.mubr.bf16.mxu0 %v10830
          %11173 = vmatmul.mubr.bf16.gmra.mrb[0].mxu0 %v10829
          %v11174 = vpop.f32.mrb[0].mxu0
          %v11175 = vadd.f32 %v11014, %v11174
          %v11176 = vpop.f32.mrb[0].mxu0
          %v11177 = vpop.f32.mrb[0].mxu0
          %v11178 = vadd.f32 %v11017, %v11177
          %v11179 = vpop.f32.mrb[0].mxu0
          %11180 = vmatprep.mubr.bf16.mxu0 %v10834
          %11181 = vmatmul.mubr.bf16.gmra.mrb[0].mxu0 %v10833
          %v11182 = vpop.f32.mrb[0].mxu0
          %v11183 = vadd.f32 %v11022, %v11182
          %v11184 = vpop.f32.mrb[0].mxu0
          %v11185 = vpop.f32.mrb[0].mxu0
          %v11186 = vadd.f32 %v11025, %v11185
          %v11187 = vpop.f32.mrb[0].mxu0
          %11188 = vmatprep.mubr.bf16.mxu0 %v10838
          %11189 = vmatmul.mubr.bf16.gmra.mrb[0].mxu0 %v10837
          %v11190 = vpop.f32.mrb[0].mxu0
          %v11191 = vadd.f32 %v11030, %v11190
          %v11192 = vpop.f32.mrb[0].mxu0
          %v11193 = vpop.f32.mrb[0].mxu0
          %v11194 = vadd.f32 %v11033, %v11193
          %v11195 = vpop.f32.mrb[0].mxu0
          %11196 = vmatprep.mubr.bf16.mxu0 %v10842
          %11197 = vmatmul.mubr.bf16.gmra.mrb[0].mxu0 %v10841
          %v11198 = vpop.f32.mrb[0].mxu0
          %v11199 = vadd.f32 %v11038, %v11198
          %v11200 = vpop.f32.mrb[0].mxu0
          %v11201 = vpop.f32.mrb[0].mxu0
          %v11202 = vadd.f32 %v11041, %v11201
          %v11203 = vpop.f32.mrb[0].mxu0
          %11204 = vmatprep.mubr.bf16.mxu0 %v10846
          %11205 = vmatmul.mubr.bf16.gmra.mrb[0].mxu0 %v10845
          %v11206 = vpop.f32.mrb[0].mxu0
          %v11207 = vadd.f32 %v11046, %v11206
          %v11208 = vpop.f32.mrb[0].mxu0
          %v11209 = vpop.f32.mrb[0].mxu0
          %v11210 = vadd.f32 %v11049, %v11209
          %v11211 = vpop.f32.mrb[0].mxu0
          %11212 = vmatprep.mubr.bf16.mxu0 %v10850
          %11213 = vmatmul.mubr.bf16.gmra.mrb[0].mxu0 %v10849
          %v11214 = vpop.f32.mrb[0].mxu0
          %v11215 = vadd.f32 %v11054, %v11214
          %v11216 = vpop.f32.mrb[0].mxu0
          %v11217 = vpop.f32.mrb[0].mxu0
          %v11218 = vadd.f32 %v11057, %v11217
          %v11219 = vpop.f32.mrb[0].mxu0
          %11220 = vmatprep.mubr.bf16.mxu0 %v10854
          %11221 = vmatmul.mubr.bf16.gmra.mrb[0].mxu0 %v10853
          %v11222 = vpop.f32.mrb[0].mxu0
          %v11223 = vadd.f32 %v11062, %v11222
          %v11224 = vpop.f32.mrb[0].mxu0
          %v11225 = vpop.f32.mrb[0].mxu0
          %v11226 = vadd.f32 %v11065, %v11225
          %v11227 = vpop.f32.mrb[0].mxu0
          %11228 = vmatprep.mubr.bf16.mxu0 %v10858
          %11229 = vmatmul.mubr.bf16.gmra.mrb[0].mxu0 %v10857
          %v11230 = vpop.f32.mrb[0].mxu0
          %v11231 = vadd.f32 %v11070, %v11230
          %v11232 = vpop.f32.mrb[0].mxu0
          %v11233 = vpop.f32.mrb[0].mxu0
          %v11234 = vadd.f32 %v11073, %v11233
          %v11235 = vpop.f32.mrb[0].mxu0
          %11236 = vmatprep.mubr.bf16.mxu0 %v10862
          %11237 = vmatmul.mubr.bf16.gmra.mrb[0].mxu0 %v10861
          %v11238 = vpop.f32.mrb[0].mxu0
          %v11239 = vadd.f32 %v11078, %v11238
          %v11240 = vpop.f32.mrb[0].mxu0
          %v11241 = vpop.f32.mrb[0].mxu0
          %v11242 = vadd.f32 %v11081, %v11241
          %v11243 = vpop.f32.mrb[0].mxu0
          %11244 = vmatprep.mubr.bf16.mxu0 %v10866
          %11245 = vmatmul.mubr.bf16.gmra.mrb[0].mxu0 %v10865
          %v11246 = vpop.f32.mrb[0].mxu0
          %v11247 = vadd.f32 %v11086, %v11246
          %v11248 = vpop.f32.mrb[0].mxu0
          %v11249 = vpop.f32.mrb[0].mxu0
          %v11250 = vadd.f32 %v11089, %v11249
          %v11251 = vpop.f32.mrb[0].mxu0
          %11252 = vdwg.mxu0
          %v11253 = vmax.f32 %v11127, 0.0
          %v11254 = vmax.f32 %v11130, 0.0
          %v11255 = vmax.f32 %v11135, 0.0
          %v11256 = vmax.f32 %v11138, 0.0
          %v11257 = vmax.f32 %v11143, 0.0
          %v11258 = vmax.f32 %v11146, 0.0
          %v11259 = vmax.f32 %v11151, 0.0
          %v11260 = vmax.f32 %v11154, 0.0
          %v11261 = vmax.f32 %v11159, 0.0
          %v11262 = vmax.f32 %v11162, 0.0
          %v11263 = vmax.f32 %v11167, 0.0
          %v11264 = vmax.f32 %v11170, 0.0
          %v11265 = vmax.f32 %v11175, 0.0
          %v11266 = vmax.f32 %v11178, 0.0
          %v11267 = vmax.f32 %v11183, 0.0
          %v11268 = vmax.f32 %v11186, 0.0
          %v11269 = vmax.f32 %v11191, 0.0
          %v11270 = vmax.f32 %v11194, 0.0
          %v11271 = vmax.f32 %v11199, 0.0
          %v11272 = vmax.f32 %v11202, 0.0
          %v11273 = vmax.f32 %v11207, 0.0
          %v11274 = vmax.f32 %v11210, 0.0
          %v11275 = vmax.f32 %v11215, 0.0
          %v11276 = vmax.f32 %v11218, 0.0
          %v11277 = vmax.f32 %v11223, 0.0
          %v11278 = vmax.f32 %v11226, 0.0
          %v11279 = vmax.f32 %v11231, 0.0
          %v11280 = vmax.f32 %v11234, 0.0
          %v11281 = vmax.f32 %v11239, 0.0
          %v11282 = vmax.f32 %v11242, 0.0
          %v11283 = vmax.f32 %v11247, 0.0
          %v11284 = vmax.f32 %v11250, 0.0
          %v11285 = vld [vmem:[%s11] sm:$0xff]
          %v11286 = vld [vmem:[%s11 + $0x8] sm:$0x11]
          %v11287 = vpack.c.bf16 %v11254, %v11253
          %v11288 = vpack.c.bf16 %v11256, %v11255
          %v11289 = vpack.c.bf16 %v11258, %v11257
          %v11290 = vpack.c.bf16 %v11260, %v11259
          %v11291 = vpack.c.bf16 %v11262, %v11261
          %v11292 = vpack.c.bf16 %v11264, %v11263
          %v11293 = vpack.c.bf16 %v11266, %v11265
          %v11294 = vpack.c.bf16 %v11268, %v11267
          %v11295 = vpack.c.bf16 %v11270, %v11269
          %v11296 = vpack.c.bf16 %v11272, %v11271
          %v11297 = vpack.c.bf16 %v11274, %v11273
          %v11298 = vpack.c.bf16 %v11276, %v11275
          %v11299 = vpack.c.bf16 %v11278, %v11277
          %v11300 = vpack.c.bf16 %v11280, %v11279
          %v11301 = vpack.c.bf16 %v11282, %v11281
          %v11302 = vpack.c.bf16 %v11284, %v11283
          %v11303 = vld [vmem:[%s12] sm:$0xff]
          %v11304 = vld [vmem:[%s12 + $0x8] sm:$0x1]
          %v11307 = vunpack.c.l.b16 %v11285
          %v11308 = vunpack.c.h.b16 %v11285
          %v11309 = vunpack.c.l.b16 %v11286
          %v11310 = vunpack.c.h.b16 %v11286
          %v11311 = vpack.c.b16 %v11309, %v11307
          %v11312 = vpack.c.b16 %v11310, %v11308
          %11315 = vmatprep.subr.bf16.mxu0 0
          %11316 = vmatpush1.bf16.msra.mxu0 %v11287
          %11317 = vmatprep.subr.bf16.mxu0 0
          %11318 = vmatpush1.bf16.msra.mxu0 %v11288
          %11319 = vmatprep.subr.bf16.mxu0 0
          %11320 = vmatpush1.bf16.msra.mxu0 %v11289
          %11321 = vmatprep.subr.bf16.mxu0 0
          %11322 = vmatpush1.bf16.msra.mxu0 %v11290
          %11323 = vmatprep.subr.bf16.mxu0 0
          %11324 = vmatpush1.bf16.msra.mxu0 %v11291
          %11325 = vmatprep.subr.bf16.mxu0 0
          %11326 = vmatpush1.bf16.msra.mxu0 %v11292
          %11327 = vmatprep.subr.bf16.mxu0 0
          %11328 = vmatpush1.bf16.msra.mxu0 %v11293
          %11329 = vmatprep.subr.bf16.mxu0 0
          %11330 = vmatpush1.bf16.msra.mxu0 %v11294
          %11331 = vmatprep.subr.bf16.mxu0 0
          %11332 = vmatpush1.bf16.msra.mxu0 %v11295
          %11333 = vmatprep.subr.bf16.mxu0 0
          %11334 = vmatpush1.bf16.msra.mxu0 %v11296
          %11335 = vmatprep.subr.bf16.mxu0 0
          %11336 = vmatpush1.bf16.msra.mxu0 %v11297
          %11337 = vmatprep.subr.bf16.mxu0 0
          %11338 = vmatpush1.bf16.msra.mxu0 %v11298
          %11339 = vmatprep.subr.bf16.mxu0 0
          %11340 = vmatpush1.bf16.msra.mxu0 %v11299
          %11341 = vmatprep.subr.bf16.mxu0 0
          %11342 = vmatpush1.bf16.msra.mxu0 %v11300
          %11343 = vmatprep.subr.bf16.mxu0 0
          %11344 = vmatpush1.bf16.msra.mxu0 %v11301
          %11345 = vmatprep.subr.bf16.mxu0 0
          %11346 = vmatpush1.bf16.msra.mxu0 %v11302
          %11347 = vmatprep.mubr.bf16.mxu0 %v11312
          %11348 = vmatmul.mubr.bf16.gmra.mrb[0].mxu0 %v11311
          %v11349 = vpop.f32.mrb[0].mxu0
          %v11350 = vadd.f32 %v11303, %v11349
          %v11351 = vpop.f32.mrb[0].mxu0
          %v11352 = vpop.f32.mrb[0].mxu0
          %v11353 = vadd.f32 %v11304, %v11352
          %v11354 = vpop.f32.mrb[0].mxu0
          %11355 = vdwg.mxu0
          %v11356 = vld [vmem:[%s13] sm:$0xff]
          %v11357 = vld [vmem:[%s13 + $0x8] sm:$0x1]
          %v11358 = vadd.f32 %v11350, %v11356
          %v11359 = vadd.f32 %v11353, %v11357
          %vm11360 = vcmask 7168
          %11361 = vst.msk [vmem:[%s525] sm:$0xff] %vm11360, %v11358
          %vm11362 = vcmask 0
          %11363 = vst.msk [vmem:[%s525 + $0x8] sm:$0x1] %vm11362, %v11359
        $region92: #{tpu_custom_call.1} parent=75 // pred_fallthru
          _
        %p11364 = scmp.lt.s32.totalorder %s31, 1
        %s11365 = scalar_select %p11364, %s31, 1
        %s11366 = smul.addr %s11365, 2
        %s11367 = smul.addr %s11366, 8
        %s11368 = scalar_lea.vmem %s14, %s11367
        // Predicated region
        $region93: #{tpu_custom_call.1} parent=75 // pred_check
          %p11369 = pneg %p358
        $region94: #{tpu_custom_call.1} parent=75 // pred_check_branch
          %11371 = sbr.rel (%p11369) target = $region96
        $region95: #{tpu_custom_call.1} parent=75 // pred_region
          _
        $region96: #{tpu_custom_call.1} parent=75 // pred_fallthru
          _
      $region76: #{tpu_custom_call.1} parent=5 // pred_fallthru
        _
      %p11372 = scmp.le.s32.totalorder 2, %s22
      // Predicated region
      $region97: #{tpu_custom_call.1} parent=5 // pred_check
        %p11373 = pneg %p11372
      $region98: #{tpu_custom_call.1} parent=5 // pred_check_branch
        %11375 = sbr.rel (%p11373) target = $region100
      $region99: #{tpu_custom_call.1} parent=5 // pred_region
        %s11376 = ssub.s32 %s22, 2
        // Predicated region
        $region101: #{tpu_custom_call.1} parent=99 // pred_check
          %p11377 = pneg %p364
        $region102: #{tpu_custom_call.1} parent=99 // pred_check_branch
          %11379 = sbr.rel (%p11377) target = $region104
        $region103: #{tpu_custom_call.1} parent=99 // pred_region
          %p11380 = scmp.lt.s32.totalorder %s33, 1
          %s11381 = scalar_select %p11380, %s33, 1
          %s11382 = smul.addr %s11381, 2
          %s11383 = smul.addr %s11382, 8
          %s11384 = scalar_lea.vmem %s14, %s11383
        $region104: #{tpu_custom_call.1} parent=99 // pred_fallthru
          _
      $region100: #{tpu_custom_call.1} parent=5 // pred_fallthru
        _
    $region6: #{tpu_custom_call.1} parent=1 // loop_footer
      %s26 = sadd.s32 1, %s22
    $region7: #{tpu_custom_call.1} parent=1 // loop_footer_branch
      %21 = sbr.rel target = $region3
    $region8: #{tpu_custom_call.1} parent=1 // loop_exit
      _
    %11385 = vsyncpa [#allocation4], 1
    %s11386 = scalar_lea.sflag [#allocation4], 1
    %11387 = vsyncpa %s11386, 1
    %11388 = vsyncpa [#allocation6], 1

</llo_original>
